<compile_context>
chip_gen: v5e
topology: v5e:2x2
jax: 0.10.0
libtpu: 0.0.40
codegen_flags: <defaults>
</compile_context>

<pallas_src>
import functools

import jax
import jax.numpy as jnp
from jax.experimental import pallas as pl
from jax.experimental.pallas import tpu as pltpu

EPS = 1e-5                      # PyTorch BatchNorm2d default eps
_LANE = 128                     # TPU lane width


def _round_up(v, m):
    return ((v + m - 1) // m) * m


@functools.lru_cache(maxsize=None)
def _vmem_limit_bytes():
    """Generation-aware VMEM budget (v5e/v6e: 128 MiB, v7x: 64 MiB per TC)."""
    try:
        cap = pltpu.get_tpu_info().vmem_capacity_bytes
    except Exception:
        cap = 64 * 1024 * 1024          # conservative default (v7x per-core)
    return min(int(cap * 3 // 4), 100 * 1024 * 1024)


def _pick_row_tile(rows, max_chans, vmem_limit):
    cap = 512 if vmem_limit < (64 << 20) else 1024
    tile = min(cap, _round_up(rows, 8))
    budget = max(8 << 20, vmem_limit // 6)   # per double-buffered in/out pair
    while tile > 8 and tile * max_chans * 6 * 2 > budget:
        tile //= 2
    return max(8, (tile // 8) * 8)


def _pad_vec(v, c):
    return jnp.pad(v, (0, c - v.shape[0])).reshape(1, c)


# ----------------------------- Pallas kernels ------------------------------

def _conv_partial_stats_kernel(r_valid, mask_rows, apply_bn, *refs):
    """[optional BN-apply + ReLU] -> 1x1-conv-as-matmul -> per-tile PARTIAL
    per-channel sum / sum-of-squares (reduced in the wrapper)."""
    if apply_bn:
        (x_ref, s_ref, q_ref, g_ref, b_ref, w_ref,
         o_ref, os_ref, oq_ref) = refs
    else:
        x_ref, w_ref, o_ref, os_ref, oq_ref = refs

    x = x_ref[...].astype(jnp.float32)
    if apply_bn:
        inv_n = 1.0 / r_valid
        mean = s_ref[...] * inv_n
        var = q_ref[...] * inv_n - mean * mean
        scale = g_ref[...] * jax.lax.rsqrt(var + EPS)
        shift = b_ref[...] - mean * scale
        x = jnp.maximum(x * scale + shift, 0.0)

    y = jnp.dot(x.astype(jnp.bfloat16), w_ref[...],
                preferred_element_type=jnp.float32)
    o_ref[...] = y.astype(o_ref.dtype)

    if mask_rows:       # only emitted when the row dim actually has padding
        tile = y.shape[0]
        row = (pl.program_id(0) * tile
               + jax.lax.broadcasted_iota(jnp.int32, (tile, 1), 0))
        ym = jnp.where(row < r_valid, y, 0.0)
    else:
        ym = y
    os_ref[...] = jnp.sum(ym, axis=0, keepdims=True)[None]
    oq_ref[...] = jnp.sum(ym * ym, axis=0, keepdims=True)[None]


def _bn_conv3x3_stats_kernel(r_valid, h, w, y_ref, s_ref, q_ref, g_ref, b_ref,
                             w_ref, o_ref, os_ref, oq_ref, pad_ref, acc_ref):
    """BN1 apply + ReLU + 3x3 conv (9 shifted MXU matmuls over a flat padded
    VMEM scratch; contiguous leading-dim tap slabs) + BN2 partial stats.
    One image per grid step."""
    cin = y_ref.shape[-1]
    cout = acc_ref.shape[-1]
    wp = w + 2
    interior = h * wp
    prows = pad_ref.shape[0]

    inv_n = 1.0 / r_valid
    mean = s_ref[...] * inv_n
    var = q_ref[...] * inv_n - mean * mean
    scale = g_ref[...] * jax.lax.rsqrt(var + EPS)
    shift = b_ref[...] - mean * scale

    z = jnp.maximum(
        y_ref[...].reshape(h * w, cin).astype(jnp.float32) * scale + shift, 0.0)

    # Zero only the small top/bottom halo regions every step (cheap, and safe
    # when the image axis is sharded across cores — no "first step" memset).
    pad_ref[pl.ds(0, wp), :] = jnp.zeros((wp, cin), pad_ref.dtype)
    tail = prows - (h + 1) * wp
    pad_ref[pl.ds((h + 1) * wp, tail), :] = jnp.zeros((tail, cin), pad_ref.dtype)

    # One contiguous interior store: flat rows [(w+2), (h+1)*(w+2)), with the
    # zero left/right halo columns folded into the stored block.
    zimg = z.reshape(h, w, cin)
    zcol = jnp.zeros((h, 1, cin), z.dtype)
    pad_ref[pl.ds(wp, interior), :] = (
        jnp.concatenate([zcol, zimg, zcol], axis=1).reshape(interior, cin))

    # 9 shifted taps; each reads a contiguous run of `interior` rows at a
    # static offset and accumulates into the f32 VMEM scratch (no vreg-resident
    # (h*w, C) accumulator, no per-tap patch copies, no full-acc memset).
    for tap in range(9):
        dy, dx = tap // 3, tap % 3
        slab = pad_ref[pl.ds(dy * wp + dx, interior), :]
        contrib = jnp.dot(slab.astype(jnp.bfloat16), w_ref[tap],
                          preferred_element_type=jnp.float32)
        if tap == 0:
            acc_ref[...] = contrib
        else:
            acc_ref[...] += contrib

    # Drop the two junk columns per image row, emit output + partial stats.
    out = acc_ref[...].reshape(h, wp, cout)[:, :w, :]
    o_ref[...] = out[None].astype(o_ref.dtype)
    os_ref[...] = jnp.sum(out, axis=(0, 1))[None, None, :]
    oq_ref[...] = jnp.sum(out * out, axis=(0, 1))[None, None, :]


def _bn_add_relu_kernel(r_valid, y_ref, s_ref, q_ref, g_ref, b_ref,
                        res_ref, o_ref):
    """BN3 apply + residual add + ReLU (pointwise, row-parallel)."""
    inv_n = 1.0 / r_valid
    mean = s_ref[...] * inv_n
    var = q_ref[...] * inv_n - mean * mean
    scale = g_ref[...] * jax.lax.rsqrt(var + EPS)
    shift = b_ref[...] - mean * scale
    y = y_ref[...].astype(jnp.float32)
    o_ref[...] = jnp.maximum(y * scale + shift + res_ref[...], 0.0)


# ------------------------------ call builders -------------------------------

def _conv_stage(x2d, w_mat, stats, affine, r_valid, tile_r, vmem_limit):
    rows, cin = x2d.shape
    cout = w_mat.shape[1]
    ntiles = rows // tile_r
    apply_bn = stats is not None
    kernel = functools.partial(_conv_partial_stats_kernel,
                               r_valid, rows != r_valid, apply_bn)

    in_arrays = [x2d]
    in_specs = [pl.BlockSpec((tile_r, cin), lambda i: (i, 0))]
    if apply_bn:
        s, q = stats
        g, b = affine
        in_arrays += [s, q, g, b]
        in_specs += [pl.BlockSpec((1, cin), lambda i: (0, 0))] * 4
    in_arrays.append(w_mat)
    # TODO(synk): at large channel counts mark this constant-index weight spec
    # pipeline_mode=pl.Buffered(1) to avoid double-buffering it in VMEM.
    in_specs.append(pl.BlockSpec((cin, cout), lambda i: (0, 0)))

    y, ps, pq = pl.pallas_call(
        kernel,
        out_shape=(jax.ShapeDtypeStruct((rows, cout), jnp.bfloat16),
                   jax.ShapeDtypeStruct((ntiles, 1, cout), jnp.float32),
                   jax.ShapeDtypeStruct((ntiles, 1, cout), jnp.float32)),
        grid=(ntiles,),
        in_specs=in_specs,
        out_specs=(pl.BlockSpec((tile_r, cout), lambda i: (i, 0)),
                   pl.BlockSpec((1, 1, cout), lambda i: (i, 0, 0)),
                   pl.BlockSpec((1, 1, cout), lambda i: (i, 0, 0))),
        compiler_params=pltpu.CompilerParams(
            dimension_semantics=("parallel",),
            vmem_limit_bytes=vmem_limit),
    )(*in_arrays)
    # tiny partial-stats reduction (a few KB) done by XLA
    return y, jnp.sum(ps, axis=0), jnp.sum(pq, axis=0)


def _conv3x3_stage(y_img, stats, affine, w9, r_valid, vmem_limit):
    n, h, w, cin = y_img.shape
    cout = w9.shape[-1]
    s, q = stats
    g, b = affine
    wp = w + 2
    prows = _round_up((h + 2) * wp + 2, 8)
    interior = h * wp
    kernel = functools.partial(_bn_conv3x3_stats_kernel, r_valid, h, w)
    # TODO(synk): for very small batches the (n,) grid gives few pipeline
    # steps; a (n, row_subtile) grid with inter-tile halo exchange would
    # pipeline and balance across TensorCores better.
    y2, ps, pq = pl.pallas_call(
        kernel,
        out_shape=(jax.ShapeDtypeStruct((n, h, w, cout), jnp.bfloat16),
                   jax.ShapeDtypeStruct((n, 1, cout), jnp.float32),
                   jax.ShapeDtypeStruct((n, 1, cout), jnp.float32)),
        grid=(n,),
        in_specs=[pl.BlockSpec((1, h, w, cin), lambda i: (i, 0, 0, 0)),
                  pl.BlockSpec((1, cin), lambda i: (0, 0)),
                  pl.BlockSpec((1, cin), lambda i: (0, 0)),
                  pl.BlockSpec((1, cin), lambda i: (0, 0)),
                  pl.BlockSpec((1, cin), lambda i: (0, 0)),
                  pl.BlockSpec((9, cin, cout), lambda i: (0, 0, 0))],
        out_specs=(pl.BlockSpec((1, h, w, cout), lambda i: (i, 0, 0, 0)),
                   pl.BlockSpec((1, 1, cout), lambda i: (i, 0, 0)),
                   pl.BlockSpec((1, 1, cout), lambda i: (i, 0, 0))),
        scratch_shapes=[pltpu.VMEM((prows, cin), jnp.float32),
                        pltpu.VMEM((interior, cout), jnp.float32)],
        compiler_params=pltpu.CompilerParams(
            dimension_semantics=("parallel",),
            vmem_limit_bytes=vmem_limit),
    )(y_img, s, q, g, b, w9)
    return y2, jnp.sum(ps, axis=0), jnp.sum(pq, axis=0)


# ------------------------------ forward pass --------------------------------

def bottleneck_forward(x, params):
    # x: NCHW float32
    # TODO(synk): stride>1 / downsample conv path not implemented (module
    # defaults stride=1, downsample=None -> identity residual).
    w1, w2, w3, g1, b1, g2, b2, g3, b3 = params
    n, cin, h, w = x.shape
    planes = w1.shape[0]
    cout = 4 * planes
    assert cin == cout, "identity residual requires inplanes == 4*planes"

    vmem_limit = _vmem_limit_bytes()
    cin_p = _round_up(cin, _LANE)
    pla_p = _round_up(planes, _LANE)
    cout_p = _round_up(cout, _LANE)

    r = n * h * w
    tile_r = _pick_row_tile(r, max(cin_p, pla_p, cout_p), vmem_limit)
    r_pad = _round_up(r, tile_r)

    # NCHW -> (rows, channels) with channels on the lane axis.
    # TODO(synk): the NCHW<->NHWC transposes cost one extra HBM round trip
    # each; drop them if the surrounding graph can produce/consume NHWC.
    x2d = jnp.transpose(x, (0, 2, 3, 1)).reshape(r, cin)
    x2d = jnp.pad(x2d, ((0, r_pad - r), (0, cin_p - cin)))

    # PyTorch OIHW weights -> (Cin, Cout) matmul weights, bf16 MXU operands.
    w1m = jnp.pad(jnp.transpose(w1[:, :, 0, 0]),
                  ((0, cin_p - cin), (0, pla_p - planes))).astype(jnp.bfloat16)
    w2m = jnp.pad(jnp.transpose(w2, (2, 3, 1, 0)).reshape(9, planes, planes),
                  ((0, 0), (0, pla_p - planes), (0, pla_p - planes))
                  ).astype(jnp.bfloat16)
    w3m = jnp.pad(jnp.transpose(w3[:, :, 0, 0]),
                  ((0, pla_p - planes), (0, cout_p - cout))).astype(jnp.bfloat16)

    g1p, b1p = _pad_vec(g1, pla_p), _pad_vec(b1, pla_p)
    g2p, b2p = _pad_vec(g2, pla_p), _pad_vec(b2, pla_p)
    g3p, b3p = _pad_vec(g3, cout_p), _pad_vec(b3, cout_p)

    # K1: conv1 (1x1) + BN1 partial stats
    y1, s1, q1 = _conv_stage(x2d, w1m, None, None, r, tile_r, vmem_limit)

    # K2: BN1 apply + ReLU + conv2 (3x3, fused in VMEM) + BN2 partial stats
    y1_img = y1[:r].reshape(n, h, w, pla_p)
    y2_img, s2, q2 = _conv3x3_stage(y1_img, (s1, q1), (g1p, b1p), w2m, r,
                                    vmem_limit)

    # K3: BN2 apply + ReLU + conv3 (1x1) + BN3 partial stats
    y2 = y2_img.reshape(r, pla_p)
    if r_pad != r:
        y2 = jnp.pad(y2, ((0, r_pad - r), (0, 0)))
    y3, s3, q3 = _conv_stage(y2, w3m, (s2, q2), (g2p, b2p), r, tile_r,
                             vmem_limit)

    # K4: BN3 apply + residual add + ReLU (row-parallel across TensorCores)
    out2d = pl.pallas_call(
        functools.partial(_bn_add_relu_kernel, r),
        out_shape=jax.ShapeDtypeStruct((r_pad, cout_p), jnp.float32),
        grid=(r_pad // tile_r,),
        in_specs=[pl.BlockSpec((tile_r, cout_p), lambda i: (i, 0)),
                  pl.BlockSpec((1, cout_p), lambda i: (0, 0)),
                  pl.BlockSpec((1, cout_p), lambda i: (0, 0)),
                  pl.BlockSpec((1, cout_p), lambda i: (0, 0)),
                  pl.BlockSpec((1, cout_p), lambda i: (0, 0)),
                  pl.BlockSpec((tile_r, cout_p), lambda i: (i, 0))],
        out_specs=pl.BlockSpec((tile_r, cout_p), lambda i: (i, 0)),
        compiler_params=pltpu.CompilerParams(
            dimension_semantics=("parallel",),
            vmem_limit_bytes=vmem_limit),
    )(y3, s3, q3, g3p, b3p, x2d)

    out = out2d[:r, :cout].reshape(n, h, w, cout)
    return jnp.transpose(out, (0, 3, 1, 2))


# -------------------------- pure-JAX reference ------------------------------

def bottleneck_reference(x, params):
    w1, w2, w3, g1, b1, g2, b2, g3, b3 = params

    def conv(y, wt, pad):
        return jax.lax.conv_general_dilated(
            y, wt, (1, 1), pad, dimension_numbers=('NCHW', 'OIHW', 'NCHW'))

    def bn(y, g, b):
        mean = jnp.mean(y, axis=(0, 2, 3), keepdims=True)
        var = jnp.mean(jnp.square(y - mean), axis=(0, 2, 3), keepdims=True)
        yn = (y - mean) * jax.lax.rsqrt(var + EPS)
        return yn * g.reshape(1, -1, 1, 1) + b.reshape(1, -1, 1, 1)

    out = jax.nn.relu(bn(conv(x, w1, 'VALID'), g1, b1))
    out = jax.nn.relu(bn(conv(out, w2, ((1, 1), (1, 1))), g2, b2))
    out = bn(conv(out, w3, 'VALID'), g3, b3)
    return jax.nn.relu(out + x)


# ------------------------------- params -------------------------------------

def init_params(key, inplanes, planes):
    ks = jax.random.split(key, 9)
    w1 = 0.1 * jax.random.normal(ks[0], (planes, inplanes, 1, 1), jnp.float32)
    w2 = 0.1 * jax.random.normal(ks[1], (planes, planes, 3, 3), jnp.float32)
    w3 = 0.1 * jax.random.normal(ks[2], (planes * 4, planes, 1, 1), jnp.float32)
    g1 = 1.0 + 0.1 * jax.random.normal(ks[3], (planes,), jnp.float32)
    b1 = 0.1 * jax.random.normal(ks[4], (planes,), jnp.float32)
    g2 = 1.0 + 0.1 * jax.random.normal(ks[5], (planes,), jnp.float32)
    b2 = 0.1 * jax.random.normal(ks[6], (planes,), jnp.float32)
    g3 = 1.0 + 0.1 * jax.random.normal(ks[7], (planes * 4,), jnp.float32)
    b3 = 0.1 * jax.random.normal(ks[8], (planes * 4,), jnp.float32)
    return (w1, w2, w3, g1, b1, g2, b2, g3, b3)


if __name__ == "__main__":
    key = jax.random.PRNGKey(0)
    k_x, k_p = jax.random.split(key)

    # Bottleneck(inplanes=16, planes=4): identity residual (inplanes==4*planes,
    # stride=1, downsample=None). N*H*W = 1024 -> two 512-row tiles, so the
    # partial-stats reduction and the BN-apply paths are both exercised.
    N, INPLANES, PLANES, H, W = 4, 16, 4, 16, 16
    x = jax.random.normal(k_x, (N, INPLANES, H, W), jnp.float32)
    params = init_params(k_p, INPLANES, PLANES)

    out = jax.jit(bottleneck_forward)(x, params)
    out = jax.block_until_ready(out)

    ref = bottleneck_reference(x, params)
    assert out.shape == (N, 4 * PLANES, H, W)
    max_err = float(jnp.max(jnp.abs(out - ref)))
    # bf16 MXU operands + bf16 HBM intermediates (f32 accumulate / f32 stats)
    # vs an all-f32 reference -> loose tolerance
    assert bool(jnp.allclose(out, ref, atol=5e-2, rtol=5e-2)), max_err

    print("KERNEL_OK")
</pallas_src>

<mosaic_0001>
module attributes {stable_mosaic.version = 11 : i64} {
  func.func @_conv_partial_stats_kernel(%arg0: i32, %arg1: memref<512x128xf32, #tpu.memory_space<vmem>>, %arg2: memref<128x128xbf16, #tpu.memory_space<vmem>>, %arg3: memref<512x128xbf16, #tpu.memory_space<vmem>>, %arg4: memref<1x1x128xf32, #tpu.memory_space<vmem>>, %arg5: memref<1x1x128xf32, #tpu.memory_space<vmem>>) attributes {dimension_semantics = [#tpu.dimension_semantics<parallel>], iteration_bounds = array<i64: 2>, scalar_prefetch = 0 : i64, scratch_operands = 0 : i64, tpu.core_type = #tpu.core_type<tc>, window_params = [{transform_indices = @transform_0, window_bounds = array<i64: 512, 128>}, {pipeline_mode = #tpu.pipeline_mode<synchronous>, transform_indices = @transform_1, window_bounds = array<i64: 128, 128>}, {transform_indices = @transform_2, window_bounds = array<i64: 512, 128>}, {transform_indices = @transform_3, window_bounds = array<i64: 1, 1, 128>}, {transform_indices = @transform_4, window_bounds = array<i64: 1, 1, 128>}]} {
    %c0 = arith.constant 0 : index
    %c0_0 = arith.constant 0 : index
    %0 = vector.load %arg1[%c0, %c0_0] : memref<512x128xf32, #tpu.memory_space<vmem>>, vector<512x128xf32>
    %1 = arith.truncf %0 : vector<512x128xf32> to vector<512x128xbf16>
    %c0_1 = arith.constant 0 : index
    %c0_2 = arith.constant 0 : index
    %2 = vector.load %arg2[%c0_1, %c0_2] : memref<128x128xbf16, #tpu.memory_space<vmem>>, vector<128x128xbf16>
    %cst = arith.constant dense<0.000000e+00> : vector<512x128xf32>
    %3 = tpu.matmul %1, %2, %cst {dimension_numbers = #tpu.dot_dimension_numbers<[1], [0], [0], [1], [0, 0, 1, 1], [], []>} : vector<512x128xbf16>, vector<128x128xbf16>, vector<512x128xf32> -> vector<512x128xf32>
    %4 = arith.truncf %3 : vector<512x128xf32> to vector<512x128xbf16>
    %c0_3 = arith.constant 0 : index
    %c0_4 = arith.constant 0 : index
    %5 = vector.load %arg3[%c0_3, %c0_4] : memref<512x128xbf16, #tpu.memory_space<vmem>>, vector<512x128xbf16>
    tpu.vector_store %arg3[%c0_3, %c0_4], %4 {strides = array<i32>} : memref<512x128xbf16, #tpu.memory_space<vmem>>, vector<512x128xbf16>,
    %cst_5 = arith.constant dense<0.000000e+00> : vector<128xf32>
    %6 = vector.multi_reduction <add>, %3, %cst_5 [0] : vector<512x128xf32> to vector<128xf32>
    %7 = vector.shape_cast %6 : vector<128xf32> to vector<1x128xf32>
    %8 = vector.shape_cast %7 : vector<1x128xf32> to vector<1x1x128xf32>
    %c0_6 = arith.constant 0 : index
    %c0_7 = arith.constant 0 : index
    %c0_8 = arith.constant 0 : index
    %9 = vector.load %arg4[%c0_6, %c0_7, %c0_8] : memref<1x1x128xf32, #tpu.memory_space<vmem>>, vector<1x1x128xf32>
    tpu.vector_store %arg4[%c0_6, %c0_7, %c0_8], %8 {strides = array<i32>} : memref<1x1x128xf32, #tpu.memory_space<vmem>>, vector<1x1x128xf32>,
    %10 = arith.mulf %3, %3 : vector<512x128xf32>
    %cst_9 = arith.constant dense<0.000000e+00> : vector<128xf32>
    %11 = vector.multi_reduction <add>, %10, %cst_9 [0] : vector<512x128xf32> to vector<128xf32>
    %12 = vector.shape_cast %11 : vector<128xf32> to vector<1x128xf32>
    %13 = vector.shape_cast %12 : vector<1x128xf32> to vector<1x1x128xf32>
    %c0_10 = arith.constant 0 : index
    %c0_11 = arith.constant 0 : index
    %c0_12 = arith.constant 0 : index
    %14 = vector.load %arg5[%c0_10, %c0_11, %c0_12] : memref<1x1x128xf32, #tpu.memory_space<vmem>>, vector<1x1x128xf32>
    tpu.vector_store %arg5[%c0_10, %c0_11, %c0_12], %13 {strides = array<i32>} : memref<1x1x128xf32, #tpu.memory_space<vmem>>, vector<1x1x128xf32>,
    return
  }
  func.func @transform_0(%arg0: i32) -> (i32, i32) {
    %c0_i32 = arith.constant 0 : i32
    %c0_i32_0 = arith.constant 0 : i32
    return %arg0, %c0_i32 : i32, i32
  }
  func.func @transform_1(%arg0: i32) -> (i32, i32) {
    %c0_i32 = arith.constant 0 : i32
    %c0_i32_0 = arith.constant 0 : i32
    %c0_i32_1 = arith.constant 0 : i32
    return %c0_i32, %c0_i32_0 : i32, i32
  }
  func.func @transform_2(%arg0: i32) -> (i32, i32) {
    %c0_i32 = arith.constant 0 : i32
    %c0_i32_0 = arith.constant 0 : i32
    return %arg0, %c0_i32 : i32, i32
  }
  func.func @transform_3(%arg0: i32) -> (i32, i32, i32) {
    %c0_i32 = arith.constant 0 : i32
    %c0_i32_0 = arith.constant 0 : i32
    %c0_i32_1 = arith.constant 0 : i32
    return %arg0, %c0_i32, %c0_i32_0 : i32, i32, i32
  }
  func.func @transform_4(%arg0: i32) -> (i32, i32, i32) {
    %c0_i32 = arith.constant 0 : i32
    %c0_i32_0 = arith.constant 0 : i32
    %c0_i32_1 = arith.constant 0 : i32
    return %arg0, %c0_i32, %c0_i32_0 : i32, i32, i32
  }
}

module attributes {stable_mosaic.version = 11 : i64} {
  func.func @_conv_partial_stats_kernel(%arg0: i32, %arg1: memref<512x128xbf16, #tpu.memory_space<vmem>>, %arg2: memref<1x128xf32, #tpu.memory_space<vmem>>, %arg3: memref<1x128xf32, #tpu.memory_space<vmem>>, %arg4: memref<1x128xf32, #tpu.memory_space<vmem>>, %arg5: memref<1x128xf32, #tpu.memory_space<vmem>>, %arg6: memref<128x128xbf16, #tpu.memory_space<vmem>>, %arg7: memref<512x128xbf16, #tpu.memory_space<vmem>>, %arg8: memref<1x1x128xf32, #tpu.memory_space<vmem>>, %arg9: memref<1x1x128xf32, #tpu.memory_space<vmem>>) attributes {dimension_semantics = [#tpu.dimension_semantics<parallel>], iteration_bounds = array<i64: 2>, scalar_prefetch = 0 : i64, scratch_operands = 0 : i64, tpu.core_type = #tpu.core_type<tc>, window_params = [{transform_indices = @transform_0, window_bounds = array<i64: 512, 128>}, {pipeline_mode = #tpu.pipeline_mode<synchronous>, transform_indices = @transform_1, window_bounds = array<i64: 1, 128>}, {pipeline_mode = #tpu.pipeline_mode<synchronous>, transform_indices = @transform_2, window_bounds = array<i64: 1, 128>}, {pipeline_mode = #tpu.pipeline_mode<synchronous>, transform_indices = @transform_3, window_bounds = array<i64: 1, 128>}, {pipeline_mode = #tpu.pipeline_mode<synchronous>, transform_indices = @transform_4, window_bounds = array<i64: 1, 128>}, {pipeline_mode = #tpu.pipeline_mode<synchronous>, transform_indices = @transform_5, window_bounds = array<i64: 128, 128>}, {transform_indices = @transform_6, window_bounds = array<i64: 512, 128>}, {transform_indices = @transform_7, window_bounds = array<i64: 1, 1, 128>}, {transform_indices = @transform_8, window_bounds = array<i64: 1, 1, 128>}]} {
    %c0 = arith.constant 0 : index
    %c0_0 = arith.constant 0 : index
    %0 = vector.load %arg1[%c0, %c0_0] : memref<512x128xbf16, #tpu.memory_space<vmem>>, vector<512x128xbf16>
    %1 = arith.extf %0 : vector<512x128xbf16> to vector<512x128xf32>
    %c0_1 = arith.constant 0 : index
    %c0_2 = arith.constant 0 : index
    %2 = vector.load %arg2[%c0_1, %c0_2] : memref<1x128xf32, #tpu.memory_space<vmem>>, vector<1x128xf32>
    %cst = arith.constant 9.765625E-4 : f32
    %3 = vector.broadcast %cst : f32 to vector<1x128xf32>
    %4 = arith.mulf %2, %3 : vector<1x128xf32>
    %c0_3 = arith.constant 0 : index
    %c0_4 = arith.constant 0 : index
    %5 = vector.load %arg3[%c0_3, %c0_4] : memref<1x128xf32, #tpu.memory_space<vmem>>, vector<1x128xf32>
    %cst_5 = arith.constant 9.765625E-4 : f32
    %6 = vector.broadcast %cst_5 : f32 to vector<1x128xf32>
    %7 = arith.mulf %5, %6 : vector<1x128xf32>
    %8 = arith.mulf %4, %4 : vector<1x128xf32>
    %9 = arith.subf %7, %8 : vector<1x128xf32>
    %c0_6 = arith.constant 0 : index
    %c0_7 = arith.constant 0 : index
    %10 = vector.load %arg4[%c0_6, %c0_7] : memref<1x128xf32, #tpu.memory_space<vmem>>, vector<1x128xf32>
    %cst_8 = arith.constant 9.99999974E-6 : f32
    %11 = vector.broadcast %cst_8 : f32 to vector<1x128xf32>
    %12 = arith.addf %9, %11 : vector<1x128xf32>
    %13 = math.rsqrt %12 : vector<1x128xf32>
    %14 = arith.mulf %10, %13 : vector<1x128xf32>
    %c0_9 = arith.constant 0 : index
    %c0_10 = arith.constant 0 : index
    %15 = vector.load %arg5[%c0_9, %c0_10] : memref<1x128xf32, #tpu.memory_space<vmem>>, vector<1x128xf32>
    %16 = arith.mulf %4, %14 : vector<1x128xf32>
    %17 = arith.subf %15, %16 : vector<1x128xf32>
    %18 = vector.broadcast %14 : vector<1x128xf32> to vector<512x128xf32>
    %19 = arith.mulf %1, %18 : vector<512x128xf32>
    %20 = vector.broadcast %17 : vector<1x128xf32> to vector<512x128xf32>
    %21 = arith.addf %19, %20 : vector<512x128xf32>
    %cst_11 = arith.constant 0.000000e+00 : f32
    %22 = vector.broadcast %cst_11 : f32 to vector<512x128xf32>
    %23 = arith.maximumf %21, %22 : vector<512x128xf32>
    %24 = arith.truncf %23 : vector<512x128xf32> to vector<512x128xbf16>
    %c0_12 = arith.constant 0 : index
    %c0_13 = arith.constant 0 : index
    %25 = vector.load %arg6[%c0_12, %c0_13] : memref<128x128xbf16, #tpu.memory_space<vmem>>, vector<128x128xbf16>
    %cst_14 = arith.constant dense<0.000000e+00> : vector<512x128xf32>
    %26 = tpu.matmul %24, %25, %cst_14 {dimension_numbers = #tpu.dot_dimension_numbers<[1], [0], [0], [1], [0, 0, 1, 1], [], []>} : vector<512x128xbf16>, vector<128x128xbf16>, vector<512x128xf32> -> vector<512x128xf32>
    %27 = arith.truncf %26 : vector<512x128xf32> to vector<512x128xbf16>
    %c0_15 = arith.constant 0 : index
    %c0_16 = arith.constant 0 : index
    %28 = vector.load %arg7[%c0_15, %c0_16] : memref<512x128xbf16, #tpu.memory_space<vmem>>, vector<512x128xbf16>
    tpu.vector_store %arg7[%c0_15, %c0_16], %27 {strides = array<i32>} : memref<512x128xbf16, #tpu.memory_space<vmem>>, vector<512x128xbf16>,
    %cst_17 = arith.constant dense<0.000000e+00> : vector<128xf32>
    %29 = vector.multi_reduction <add>, %26, %cst_17 [0] : vector<512x128xf32> to vector<128xf32>
    %30 = vector.shape_cast %29 : vector<128xf32> to vector<1x128xf32>
    %31 = vector.shape_cast %30 : vector<1x128xf32> to vector<1x1x128xf32>
    %c0_18 = arith.constant 0 : index
    %c0_19 = arith.constant 0 : index
    %c0_20 = arith.constant 0 : index
    %32 = vector.load %arg8[%c0_18, %c0_19, %c0_20] : memref<1x1x128xf32, #tpu.memory_space<vmem>>, vector<1x1x128xf32>
    tpu.vector_store %arg8[%c0_18, %c0_19, %c0_20], %31 {strides = array<i32>} : memref<1x1x128xf32, #tpu.memory_space<vmem>>, vector<1x1x128xf32>,
    %33 = arith.mulf %26, %26 : vector<512x128xf32>
    %cst_21 = arith.constant dense<0.000000e+00> : vector<128xf32>
    %34 = vector.multi_reduction <add>, %33, %cst_21 [0] : vector<512x128xf32> to vector<128xf32>
    %35 = vector.shape_cast %34 : vector<128xf32> to vector<1x128xf32>
    %36 = vector.shape_cast %35 : vector<1x128xf32> to vector<1x1x128xf32>
    %c0_22 = arith.constant 0 : index
    %c0_23 = arith.constant 0 : index
    %c0_24 = arith.constant 0 : index
    %37 = vector.load %arg9[%c0_22, %c0_23, %c0_24] : memref<1x1x128xf32, #tpu.memory_space<vmem>>, vector<1x1x128xf32>
    tpu.vector_store %arg9[%c0_22, %c0_23, %c0_24], %36 {strides = array<i32>} : memref<1x1x128xf32, #tpu.memory_space<vmem>>, vector<1x1x128xf32>,
    return
  }
  func.func @transform_0(%arg0: i32) -> (i32, i32) {
    %c0_i32 = arith.constant 0 : i32
    %c0_i32_0 = arith.constant 0 : i32
    return %arg0, %c0_i32 : i32, i32
  }
  func.func @transform_1(%arg0: i32) -> (i32, i32) {
    %c0_i32 = arith.constant 0 : i32
    %c0_i32_0 = arith.constant 0 : i32
    %c0_i32_1 = arith.constant 0 : i32
    return %c0_i32, %c0_i32_0 : i32, i32
  }
  func.func @transform_2(%arg0: i32) -> (i32, i32) {
    %c0_i32 = arith.constant 0 : i32
    %c0_i32_0 = arith.constant 0 : i32
    %c0_i32_1 = arith.constant 0 : i32
    return %c0_i32, %c0_i32_0 : i32, i32
  }
  func.func @transform_3(%arg0: i32) -> (i32, i32) {
    %c0_i32 = arith.constant 0 : i32
    %c0_i32_0 = arith.constant 0 : i32
    %c0_i32_1 = arith.constant 0 : i32
    return %c0_i32, %c0_i32_0 : i32, i32
  }
  func.func @transform_4(%arg0: i32) -> (i32, i32) {
    %c0_i32 = arith.constant 0 : i32
    %c0_i32_0 = arith.constant 0 : i32
    %c0_i32_1 = arith.constant 0 : i32
    return %c0_i32, %c0_i32_0 : i32, i32
  }
  func.func @transform_5(%arg0: i32) -> (i32, i32) {
    %c0_i32 = arith.constant 0 : i32
    %c0_i32_0 = arith.constant 0 : i32
    %c0_i32_1 = arith.constant 0 : i32
    return %c0_i32, %c0_i32_0 : i32, i32
  }
  func.func @transform_6(%arg0: i32) -> (i32, i32) {
    %c0_i32 = arith.constant 0 : i32
    %c0_i32_0 = arith.constant 0 : i32
    return %arg0, %c0_i32 : i32, i32
  }
  func.func @transform_7(%arg0: i32) -> (i32, i32, i32) {
    %c0_i32 = arith.constant 0 : i32
    %c0_i32_0 = arith.constant 0 : i32
    %c0_i32_1 = arith.constant 0 : i32
    return %arg0, %c0_i32, %c0_i32_0 : i32, i32, i32
  }
  func.func @transform_8(%arg0: i32) -> (i32, i32, i32) {
    %c0_i32 = arith.constant 0 : i32
    %c0_i32_0 = arith.constant 0 : i32
    %c0_i32_1 = arith.constant 0 : i32
    return %arg0, %c0_i32, %c0_i32_0 : i32, i32, i32
  }
}

module attributes {stable_mosaic.version = 11 : i64} {
  func.func @_bn_conv3x3_stats_kernel(%arg0: i32, %arg1: memref<1x16x16x128xbf16, #tpu.memory_space<vmem>>, %arg2: memref<1x128xf32, #tpu.memory_space<vmem>>, %arg3: memref<1x128xf32, #tpu.memory_space<vmem>>, %arg4: memref<1x128xf32, #tpu.memory_space<vmem>>, %arg5: memref<1x128xf32, #tpu.memory_space<vmem>>, %arg6: memref<9x128x128xbf16, #tpu.memory_space<vmem>>, %arg7: memref<1x16x16x128xbf16, #tpu.memory_space<vmem>>, %arg8: memref<1x1x128xf32, #tpu.memory_space<vmem>>, %arg9: memref<1x1x128xf32, #tpu.memory_space<vmem>>, %arg10: memref<328x128xf32, #tpu.memory_space<vmem>>, %arg11: memref<288x128xf32, #tpu.memory_space<vmem>>) attributes {dimension_semantics = [#tpu.dimension_semantics<parallel>], iteration_bounds = array<i64: 4>, scalar_prefetch = 0 : i64, scratch_operands = 2 : i64, tpu.core_type = #tpu.core_type<tc>, window_params = [{transform_indices = @transform_0, window_bounds = array<i64: 1, 16, 16, 128>}, {pipeline_mode = #tpu.pipeline_mode<synchronous>, transform_indices = @transform_1, window_bounds = array<i64: 1, 128>}, {pipeline_mode = #tpu.pipeline_mode<synchronous>, transform_indices = @transform_2, window_bounds = array<i64: 1, 128>}, {pipeline_mode = #tpu.pipeline_mode<synchronous>, transform_indices = @transform_3, window_bounds = array<i64: 1, 128>}, {pipeline_mode = #tpu.pipeline_mode<synchronous>, transform_indices = @transform_4, window_bounds = array<i64: 1, 128>}, {pipeline_mode = #tpu.pipeline_mode<synchronous>, transform_indices = @transform_5, window_bounds = array<i64: 9, 128, 128>}, {transform_indices = @transform_6, window_bounds = array<i64: 1, 16, 16, 128>}, {transform_indices = @transform_7, window_bounds = array<i64: 1, 1, 128>}, {transform_indices = @transform_8, window_bounds = array<i64: 1, 1, 128>}]} {
    %c0 = arith.constant 0 : index
    %c0_0 = arith.constant 0 : index
    %0 = vector.load %arg2[%c0, %c0_0] : memref<1x128xf32, #tpu.memory_space<vmem>>, vector<1x128xf32>
    %cst = arith.constant 9.765625E-4 : f32
    %1 = vector.broadcast %cst : f32 to vector<1x128xf32>
    %2 = arith.mulf %0, %1 : vector<1x128xf32>
    %c0_1 = arith.constant 0 : index
    %c0_2 = arith.constant 0 : index
    %3 = vector.load %arg3[%c0_1, %c0_2] : memref<1x128xf32, #tpu.memory_space<vmem>>, vector<1x128xf32>
    %cst_3 = arith.constant 9.765625E-4 : f32
    %4 = vector.broadcast %cst_3 : f32 to vector<1x128xf32>
    %5 = arith.mulf %3, %4 : vector<1x128xf32>
    %6 = arith.mulf %2, %2 : vector<1x128xf32>
    %7 = arith.subf %5, %6 : vector<1x128xf32>
    %c0_4 = arith.constant 0 : index
    %c0_5 = arith.constant 0 : index
    %8 = vector.load %arg4[%c0_4, %c0_5] : memref<1x128xf32, #tpu.memory_space<vmem>>, vector<1x128xf32>
    %cst_6 = arith.constant 9.99999974E-6 : f32
    %9 = vector.broadcast %cst_6 : f32 to vector<1x128xf32>
    %10 = arith.addf %7, %9 : vector<1x128xf32>
    %11 = math.rsqrt %10 : vector<1x128xf32>
    %12 = arith.mulf %8, %11 : vector<1x128xf32>
    %c0_7 = arith.constant 0 : index
    %c0_8 = arith.constant 0 : index
    %13 = vector.load %arg5[%c0_7, %c0_8] : memref<1x128xf32, #tpu.memory_space<vmem>>, vector<1x128xf32>
    %14 = arith.mulf %2, %12 : vector<1x128xf32>
    %15 = arith.subf %13, %14 : vector<1x128xf32>
    %c0_9 = arith.constant 0 : index
    %c0_10 = arith.constant 0 : index
    %c0_11 = arith.constant 0 : index
    %c0_12 = arith.constant 0 : index
    %16 = vector.load %arg1[%c0_9, %c0_10, %c0_11, %c0_12] : memref<1x16x16x128xbf16, #tpu.memory_space<vmem>>, vector<1x16x16x128xbf16>
    %17 = vector.shape_cast %16 : vector<1x16x16x128xbf16> to vector<256x128xbf16>
    %18 = arith.extf %17 : vector<256x128xbf16> to vector<256x128xf32>
    %19 = vector.broadcast %12 : vector<1x128xf32> to vector<256x128xf32>
    %20 = arith.mulf %18, %19 : vector<256x128xf32>
    %21 = vector.broadcast %15 : vector<1x128xf32> to vector<256x128xf32>
    %22 = arith.addf %20, %21 : vector<256x128xf32>
    %cst_13 = arith.constant 0.000000e+00 : f32
    %23 = vector.broadcast %cst_13 : f32 to vector<256x128xf32>
    %24 = arith.maximumf %22, %23 : vector<256x128xf32>
    %cst_14 = arith.constant 0.000000e+00 : f32
    %25 = vector.broadcast %cst_14 : f32 to vector<18x128xf32>
    %c0_15 = arith.constant 0 : index
    %c0_16 = arith.constant 0 : index
    %26 = vector.load %arg10[%c0_15, %c0_16] : memref<328x128xf32, #tpu.memory_space<vmem>>, vector<18x128xf32>
    tpu.vector_store %arg10[%c0_15, %c0_16], %25 {strides = array<i32>} : memref<328x128xf32, #tpu.memory_space<vmem>>, vector<18x128xf32>,
    %cst_17 = arith.constant 0.000000e+00 : f32
    %27 = vector.broadcast %cst_17 : f32 to vector<22x128xf32>
    %c306 = arith.constant 306 : index
    %c0_18 = arith.constant 0 : index
    %28 = vector.load %arg10[%c306, %c0_18] : memref<328x128xf32, #tpu.memory_space<vmem>>, vector<22x128xf32>
    tpu.vector_store %arg10[%c306, %c0_18], %27 {strides = array<i32>} : memref<328x128xf32, #tpu.memory_space<vmem>>, vector<22x128xf32>,
    %29 = vector.shape_cast %24 : vector<256x128xf32> to vector<16x16x128xf32>
    %cst_19 = arith.constant 0.000000e+00 : f32
    %30 = vector.broadcast %cst_19 : f32 to vector<16x1x128xf32>
    %31 = tpu.concatenate %30, %29, %30 in 1 : vector<16x1x128xf32>, vector<16x16x128xf32>, vector<16x1x128xf32> -> vector<16x18x128xf32>
    %32 = vector.shape_cast %31 : vector<16x18x128xf32> to vector<288x128xf32>
    %c18 = arith.constant 18 : index
    %c0_20 = arith.constant 0 : index
    %33 = vector.load %arg10[%c18, %c0_20] : memref<328x128xf32, #tpu.memory_space<vmem>>, vector<288x128xf32>
    tpu.vector_store %arg10[%c18, %c0_20], %32 {strides = array<i32>} : memref<328x128xf32, #tpu.memory_space<vmem>>, vector<288x128xf32>,
    %c0_21 = arith.constant 0 : index
    %c0_22 = arith.constant 0 : index
    %34 = vector.load %arg10[%c0_21, %c0_22] : memref<328x128xf32, #tpu.memory_space<vmem>>, vector<288x128xf32>
    %35 = arith.truncf %34 : vector<288x128xf32> to vector<288x128xbf16>
    %c0_23 = arith.constant 0 : index
    %c0_24 = arith.constant 0 : index
    %c0_25 = arith.constant 0 : index
    %36 = vector.load %arg6[%c0_23, %c0_24, %c0_25] : memref<9x128x128xbf16, #tpu.memory_space<vmem>>, vector<1x128x128xbf16>
    %37 = vector.shape_cast %36 : vector<1x128x128xbf16> to vector<128x128xbf16>
    %cst_26 = arith.constant dense<0.000000e+00> : vector<288x128xf32>
    %38 = tpu.matmul %35, %37, %cst_26 {dimension_numbers = #tpu.dot_dimension_numbers<[1], [0], [0], [1], [0, 0, 1, 1], [], []>} : vector<288x128xbf16>, vector<128x128xbf16>, vector<288x128xf32> -> vector<288x128xf32>
    %c0_27 = arith.constant 0 : index
    %c0_28 = arith.constant 0 : index
    %39 = vector.load %arg11[%c0_27, %c0_28] : memref<288x128xf32, #tpu.memory_space<vmem>>, vector<288x128xf32>
    tpu.vector_store %arg11[%c0_27, %c0_28], %38 {strides = array<i32>} : memref<288x128xf32, #tpu.memory_space<vmem>>, vector<288x128xf32>,
    %c1 = arith.constant 1 : index
    %c0_29 = arith.constant 0 : index
    %40 = vector.load %arg10[%c1, %c0_29] : memref<328x128xf32, #tpu.memory_space<vmem>>, vector<288x128xf32>
    %41 = arith.truncf %40 : vector<288x128xf32> to vector<288x128xbf16>
    %c1_30 = arith.constant 1 : index
    %c0_31 = arith.constant 0 : index
    %c0_32 = arith.constant 0 : index
    %42 = vector.load %arg6[%c1_30, %c0_31, %c0_32] : memref<9x128x128xbf16, #tpu.memory_space<vmem>>, vector<1x128x128xbf16>
    %43 = vector.shape_cast %42 : vector<1x128x128xbf16> to vector<128x128xbf16>
    %cst_33 = arith.constant dense<0.000000e+00> : vector<288x128xf32>
    %44 = tpu.matmul %41, %43, %cst_33 {dimension_numbers = #tpu.dot_dimension_numbers<[1], [0], [0], [1], [0, 0, 1, 1], [], []>} : vector<288x128xbf16>, vector<128x128xbf16>, vector<288x128xf32> -> vector<288x128xf32>
    %c0_34 = arith.constant 0 : index
    %c0_35 = arith.constant 0 : index
    %45 = vector.load %arg11[%c0_34, %c0_35] : memref<288x128xf32, #tpu.memory_space<vmem>>, vector<288x128xf32>
    %46 = arith.addf %45, %44 : vector<288x128xf32>
    %c0_36 = arith.constant 0 : index
    %c0_37 = arith.constant 0 : index
    %47 = vector.load %arg11[%c0_36, %c0_37] : memref<288x128xf32, #tpu.memory_space<vmem>>, vector<288x128xf32>
    tpu.vector_store %arg11[%c0_36, %c0_37], %46 {strides = array<i32>} : memref<288x128xf32, #tpu.memory_space<vmem>>, vector<288x128xf32>,
    %c2 = arith.constant 2 : index
    %c0_38 = arith.constant 0 : index
    %48 = vector.load %arg10[%c2, %c0_38] : memref<328x128xf32, #tpu.memory_space<vmem>>, vector<288x128xf32>
    %49 = arith.truncf %48 : vector<288x128xf32> to vector<288x128xbf16>
    %c2_39 = arith.constant 2 : index
    %c0_40 = arith.constant 0 : index
    %c0_41 = arith.constant 0 : index
    %50 = vector.load %arg6[%c2_39, %c0_40, %c0_41] : memref<9x128x128xbf16, #tpu.memory_space<vmem>>, vector<1x128x128xbf16>
    %51 = vector.shape_cast %50 : vector<1x128x128xbf16> to vector<128x128xbf16>
    %cst_42 = arith.constant dense<0.000000e+00> : vector<288x128xf32>
    %52 = tpu.matmul %49, %51, %cst_42 {dimension_numbers = #tpu.dot_dimension_numbers<[1], [0], [0], [1], [0, 0, 1, 1], [], []>} : vector<288x128xbf16>, vector<128x128xbf16>, vector<288x128xf32> -> vector<288x128xf32>
    %c0_43 = arith.constant 0 : index
    %c0_44 = arith.constant 0 : index
    %53 = vector.load %arg11[%c0_43, %c0_44] : memref<288x128xf32, #tpu.memory_space<vmem>>, vector<288x128xf32>
    %54 = arith.addf %53, %52 : vector<288x128xf32>
    %c0_45 = arith.constant 0 : index
    %c0_46 = arith.constant 0 : index
    %55 = vector.load %arg11[%c0_45, %c0_46] : memref<288x128xf32, #tpu.memory_space<vmem>>, vector<288x128xf32>
    tpu.vector_store %arg11[%c0_45, %c0_46], %54 {strides = array<i32>} : memref<288x128xf32, #tpu.memory_space<vmem>>, vector<288x128xf32>,
    %c18_47 = arith.constant 18 : index
    %c0_48 = arith.constant 0 : index
    %56 = vector.load %arg10[%c18_47, %c0_48] : memref<328x128xf32, #tpu.memory_space<vmem>>, vector<288x128xf32>
    %57 = arith.truncf %56 : vector<288x128xf32> to vector<288x128xbf16>
    %c3 = arith.constant 3 : index
    %c0_49 = arith.constant 0 : index
    %c0_50 = arith.constant 0 : index
    %58 = vector.load %arg6[%c3, %c0_49, %c0_50] : memref<9x128x128xbf16, #tpu.memory_space<vmem>>, vector<1x128x128xbf16>
    %59 = vector.shape_cast %58 : vector<1x128x128xbf16> to vector<128x128xbf16>
    %cst_51 = arith.constant dense<0.000000e+00> : vector<288x128xf32>
    %60 = tpu.matmul %57, %59, %cst_51 {dimension_numbers = #tpu.dot_dimension_numbers<[1], [0], [0], [1], [0, 0, 1, 1], [], []>} : vector<288x128xbf16>, vector<128x128xbf16>, vector<288x128xf32> -> vector<288x128xf32>
    %c0_52 = arith.constant 0 : index
    %c0_53 = arith.constant 0 : index
    %61 = vector.load %arg11[%c0_52, %c0_53] : memref<288x128xf32, #tpu.memory_space<vmem>>, vector<288x128xf32>
    %62 = arith.addf %61, %60 : vector<288x128xf32>
    %c0_54 = arith.constant 0 : index
    %c0_55 = arith.constant 0 : index
    %63 = vector.load %arg11[%c0_54, %c0_55] : memref<288x128xf32, #tpu.memory_space<vmem>>, vector<288x128xf32>
    tpu.vector_store %arg11[%c0_54, %c0_55], %62 {strides = array<i32>} : memref<288x128xf32, #tpu.memory_space<vmem>>, vector<288x128xf32>,
    %c19 = arith.constant 19 : index
    %c0_56 = arith.constant 0 : index
    %64 = vector.load %arg10[%c19, %c0_56] : memref<328x128xf32, #tpu.memory_space<vmem>>, vector<288x128xf32>
    %65 = arith.truncf %64 : vector<288x128xf32> to vector<288x128xbf16>
    %c4 = arith.constant 4 : index
    %c0_57 = arith.constant 0 : index
    %c0_58 = arith.constant 0 : index
    %66 = vector.load %arg6[%c4, %c0_57, %c0_58] : memref<9x128x128xbf16, #tpu.memory_space<vmem>>, vector<1x128x128xbf16>
    %67 = vector.shape_cast %66 : vector<1x128x128xbf16> to vector<128x128xbf16>
    %cst_59 = arith.constant dense<0.000000e+00> : vector<288x128xf32>
    %68 = tpu.matmul %65, %67, %cst_59 {dimension_numbers = #tpu.dot_dimension_numbers<[1], [0], [0], [1], [0, 0, 1, 1], [], []>} : vector<288x128xbf16>, vector<128x128xbf16>, vector<288x128xf32> -> vector<288x128xf32>
    %c0_60 = arith.constant 0 : index
    %c0_61 = arith.constant 0 : index
    %69 = vector.load %arg11[%c0_60, %c0_61] : memref<288x128xf32, #tpu.memory_space<vmem>>, vector<288x128xf32>
    %70 = arith.addf %69, %68 : vector<288x128xf32>
    %c0_62 = arith.constant 0 : index
    %c0_63 = arith.constant 0 : index
    %71 = vector.load %arg11[%c0_62, %c0_63] : memref<288x128xf32, #tpu.memory_space<vmem>>, vector<288x128xf32>
    tpu.vector_store %arg11[%c0_62, %c0_63], %70 {strides = array<i32>} : memref<288x128xf32, #tpu.memory_space<vmem>>, vector<288x128xf32>,
    %c20 = arith.constant 20 : index
    %c0_64 = arith.constant 0 : index
    %72 = vector.load %arg10[%c20, %c0_64] : memref<328x128xf32, #tpu.memory_space<vmem>>, vector<288x128xf32>
    %73 = arith.truncf %72 : vector<288x128xf32> to vector<288x128xbf16>
    %c5 = arith.constant 5 : index
    %c0_65 = arith.constant 0 : index
    %c0_66 = arith.constant 0 : index
    %74 = vector.load %arg6[%c5, %c0_65, %c0_66] : memref<9x128x128xbf16, #tpu.memory_space<vmem>>, vector<1x128x128xbf16>
    %75 = vector.shape_cast %74 : vector<1x128x128xbf16> to vector<128x128xbf16>
    %cst_67 = arith.constant dense<0.000000e+00> : vector<288x128xf32>
    %76 = tpu.matmul %73, %75, %cst_67 {dimension_numbers = #tpu.dot_dimension_numbers<[1], [0], [0], [1], [0, 0, 1, 1], [], []>} : vector<288x128xbf16>, vector<128x128xbf16>, vector<288x128xf32> -> vector<288x128xf32>
    %c0_68 = arith.constant 0 : index
    %c0_69 = arith.constant 0 : index
    %77 = vector.load %arg11[%c0_68, %c0_69] : memref<288x128xf32, #tpu.memory_space<vmem>>, vector<288x128xf32>
    %78 = arith.addf %77, %76 : vector<288x128xf32>
    %c0_70 = arith.constant 0 : index
    %c0_71 = arith.constant 0 : index
    %79 = vector.load %arg11[%c0_70, %c0_71] : memref<288x128xf32, #tpu.memory_space<vmem>>, vector<288x128xf32>
    tpu.vector_store %arg11[%c0_70, %c0_71], %78 {strides = array<i32>} : memref<288x128xf32, #tpu.memory_space<vmem>>, vector<288x128xf32>,
    %c36 = arith.constant 36 : index
    %c0_72 = arith.constant 0 : index
    %80 = vector.load %arg10[%c36, %c0_72] : memref<328x128xf32, #tpu.memory_space<vmem>>, vector<288x128xf32>
    %81 = arith.truncf %80 : vector<288x128xf32> to vector<288x128xbf16>
    %c6 = arith.constant 6 : index
    %c0_73 = arith.constant 0 : index
    %c0_74 = arith.constant 0 : index
    %82 = vector.load %arg6[%c6, %c0_73, %c0_74] : memref<9x128x128xbf16, #tpu.memory_space<vmem>>, vector<1x128x128xbf16>
    %83 = vector.shape_cast %82 : vector<1x128x128xbf16> to vector<128x128xbf16>
    %cst_75 = arith.constant dense<0.000000e+00> : vector<288x128xf32>
    %84 = tpu.matmul %81, %83, %cst_75 {dimension_numbers = #tpu.dot_dimension_numbers<[1], [0], [0], [1], [0, 0, 1, 1], [], []>} : vector<288x128xbf16>, vector<128x128xbf16>, vector<288x128xf32> -> vector<288x128xf32>
    %c0_76 = arith.constant 0 : index
    %c0_77 = arith.constant 0 : index
    %85 = vector.load %arg11[%c0_76, %c0_77] : memref<288x128xf32, #tpu.memory_space<vmem>>, vector<288x128xf32>
    %86 = arith.addf %85, %84 : vector<288x128xf32>
    %c0_78 = arith.constant 0 : index
    %c0_79 = arith.constant 0 : index
    %87 = vector.load %arg11[%c0_78, %c0_79] : memref<288x128xf32, #tpu.memory_space<vmem>>, vector<288x128xf32>
    tpu.vector_store %arg11[%c0_78, %c0_79], %86 {strides = array<i32>} : memref<288x128xf32, #tpu.memory_space<vmem>>, vector<288x128xf32>,
    %c37 = arith.constant 37 : index
    %c0_80 = arith.constant 0 : index
    %88 = vector.load %arg10[%c37, %c0_80] : memref<328x128xf32, #tpu.memory_space<vmem>>, vector<288x128xf32>
    %89 = arith.truncf %88 : vector<288x128xf32> to vector<288x128xbf16>
    %c7 = arith.constant 7 : index
    %c0_81 = arith.constant 0 : index
    %c0_82 = arith.constant 0 : index
    %90 = vector.load %arg6[%c7, %c0_81, %c0_82] : memref<9x128x128xbf16, #tpu.memory_space<vmem>>, vector<1x128x128xbf16>
    %91 = vector.shape_cast %90 : vector<1x128x128xbf16> to vector<128x128xbf16>
    %cst_83 = arith.constant dense<0.000000e+00> : vector<288x128xf32>
    %92 = tpu.matmul %89, %91, %cst_83 {dimension_numbers = #tpu.dot_dimension_numbers<[1], [0], [0], [1], [0, 0, 1, 1], [], []>} : vector<288x128xbf16>, vector<128x128xbf16>, vector<288x128xf32> -> vector<288x128xf32>
    %c0_84 = arith.constant 0 : index
    %c0_85 = arith.constant 0 : index
    %93 = vector.load %arg11[%c0_84, %c0_85] : memref<288x128xf32, #tpu.memory_space<vmem>>, vector<288x128xf32>
    %94 = arith.addf %93, %92 : vector<288x128xf32>
    %c0_86 = arith.constant 0 : index
    %c0_87 = arith.constant 0 : index
    %95 = vector.load %arg11[%c0_86, %c0_87] : memref<288x128xf32, #tpu.memory_space<vmem>>, vector<288x128xf32>
    tpu.vector_store %arg11[%c0_86, %c0_87], %94 {strides = array<i32>} : memref<288x128xf32, #tpu.memory_space<vmem>>, vector<288x128xf32>,
    %c38 = arith.constant 38 : index
    %c0_88 = arith.constant 0 : index
    %96 = vector.load %arg10[%c38, %c0_88] : memref<328x128xf32, #tpu.memory_space<vmem>>, vector<288x128xf32>
    %97 = arith.truncf %96 : vector<288x128xf32> to vector<288x128xbf16>
    %c8 = arith.constant 8 : index
    %c0_89 = arith.constant 0 : index
    %c0_90 = arith.constant 0 : index
    %98 = vector.load %arg6[%c8, %c0_89, %c0_90] : memref<9x128x128xbf16, #tpu.memory_space<vmem>>, vector<1x128x128xbf16>
    %99 = vector.shape_cast %98 : vector<1x128x128xbf16> to vector<128x128xbf16>
    %cst_91 = arith.constant dense<0.000000e+00> : vector<288x128xf32>
    %100 = tpu.matmul %97, %99, %cst_91 {dimension_numbers = #tpu.dot_dimension_numbers<[1], [0], [0], [1], [0, 0, 1, 1], [], []>} : vector<288x128xbf16>, vector<128x128xbf16>, vector<288x128xf32> -> vector<288x128xf32>
    %c0_92 = arith.constant 0 : index
    %c0_93 = arith.constant 0 : index
    %101 = vector.load %arg11[%c0_92, %c0_93] : memref<288x128xf32, #tpu.memory_space<vmem>>, vector<288x128xf32>
    %102 = arith.addf %101, %100 : vector<288x128xf32>
    %c0_94 = arith.constant 0 : index
    %c0_95 = arith.constant 0 : index
    %103 = vector.load %arg11[%c0_94, %c0_95] : memref<288x128xf32, #tpu.memory_space<vmem>>, vector<288x128xf32>
    tpu.vector_store %arg11[%c0_94, %c0_95], %102 {strides = array<i32>} : memref<288x128xf32, #tpu.memory_space<vmem>>, vector<288x128xf32>,
    %c0_96 = arith.constant 0 : index
    %c0_97 = arith.constant 0 : index
    %104 = vector.load %arg11[%c0_96, %c0_97] : memref<288x128xf32, #tpu.memory_space<vmem>>, vector<288x128xf32>
    %105 = vector.shape_cast %104 : vector<288x128xf32> to vector<16x18x128xf32>
    %106 = vector.extract_strided_slice %105 {offsets = [0, 0, 0], sizes = [16, 16, 128], strides = [1, 1, 1]} : vector<16x18x128xf32> to vector<16x16x128xf32>
    %107 = vector.shape_cast %106 : vector<16x16x128xf32> to vector<1x16x16x128xf32>
    %108 = arith.truncf %107 : vector<1x16x16x128xf32> to vector<1x16x16x128xbf16>
    %c0_98 = arith.constant 0 : index
    %c0_99 = arith.constant 0 : index
    %c0_100 = arith.constant 0 : index
    %c0_101 = arith.constant 0 : index
    %109 = vector.load %arg7[%c0_98, %c0_99, %c0_100, %c0_101] : memref<1x16x16x128xbf16, #tpu.memory_space<vmem>>, vector<1x16x16x128xbf16>
    tpu.vector_store %arg7[%c0_98, %c0_99, %c0_100, %c0_101], %108 {strides = array<i32>} : memref<1x16x16x128xbf16, #tpu.memory_space<vmem>>, vector<1x16x16x128xbf16>,
    %cst_102 = arith.constant dense<0.000000e+00> : vector<128xf32>
    %110 = vector.multi_reduction <add>, %106, %cst_102 [0, 1] : vector<16x16x128xf32> to vector<128xf32>
    %111 = vector.shape_cast %110 : vector<128xf32> to vector<1x1x128xf32>
    %c0_103 = arith.constant 0 : index
    %c0_104 = arith.constant 0 : index
    %c0_105 = arith.constant 0 : index
    %112 = vector.load %arg8[%c0_103, %c0_104, %c0_105] : memref<1x1x128xf32, #tpu.memory_space<vmem>>, vector<1x1x128xf32>
    tpu.vector_store %arg8[%c0_103, %c0_104, %c0_105], %111 {strides = array<i32>} : memref<1x1x128xf32, #tpu.memory_space<vmem>>, vector<1x1x128xf32>,
    %113 = arith.mulf %106, %106 : vector<16x16x128xf32>
    %cst_106 = arith.constant dense<0.000000e+00> : vector<128xf32>
    %114 = vector.multi_reduction <add>, %113, %cst_106 [0, 1] : vector<16x16x128xf32> to vector<128xf32>
    %115 = vector.shape_cast %114 : vector<128xf32> to vector<1x1x128xf32>
    %c0_107 = arith.constant 0 : index
    %c0_108 = arith.constant 0 : index
    %c0_109 = arith.constant 0 : index
    %116 = vector.load %arg9[%c0_107, %c0_108, %c0_109] : memref<1x1x128xf32, #tpu.memory_space<vmem>>, vector<1x1x128xf32>
    tpu.vector_store %arg9[%c0_107, %c0_108, %c0_109], %115 {strides = array<i32>} : memref<1x1x128xf32, #tpu.memory_space<vmem>>, vector<1x1x128xf32>,
    return
  }
  func.func @transform_0(%arg0: i32) -> (i32, i32, i32, i32) {
    %c0_i32 = arith.constant 0 : i32
    %c0_i32_0 = arith.constant 0 : i32
    %c0_i32_1 = arith.constant 0 : i32
    %c0_i32_2 = arith.constant 0 : i32
    return %arg0, %c0_i32, %c0_i32_0, %c0_i32_1 : i32, i32, i32, i32
  }
  func.func @transform_1(%arg0: i32) -> (i32, i32) {
    %c0_i32 = arith.constant 0 : i32
    %c0_i32_0 = arith.constant 0 : i32
    %c0_i32_1 = arith.constant 0 : i32
    return %c0_i32, %c0_i32_0 : i32, i32
  }
  func.func @transform_2(%arg0: i32) -> (i32, i32) {
    %c0_i32 = arith.constant 0 : i32
    %c0_i32_0 = arith.constant 0 : i32
    %c0_i32_1 = arith.constant 0 : i32
    return %c0_i32, %c0_i32_0 : i32, i32
  }
  func.func @transform_3(%arg0: i32) -> (i32, i32) {
    %c0_i32 = arith.constant 0 : i32
    %c0_i32_0 = arith.constant 0 : i32
    %c0_i32_1 = arith.constant 0 : i32
    return %c0_i32, %c0_i32_0 : i32, i32
  }
  func.func @transform_4(%arg0: i32) -> (i32, i32) {
    %c0_i32 = arith.constant 0 : i32
    %c0_i32_0 = arith.constant 0 : i32
    %c0_i32_1 = arith.constant 0 : i32
    return %c0_i32, %c0_i32_0 : i32, i32
  }
  func.func @transform_5(%arg0: i32) -> (i32, i32, i32) {
    %c0_i32 = arith.constant 0 : i32
    %c0_i32_0 = arith.constant 0 : i32
    %c0_i32_1 = arith.constant 0 : i32
    %c0_i32_2 = arith.constant 0 : i32
    return %c0_i32, %c0_i32_0, %c0_i32_1 : i32, i32, i32
  }
  func.func @transform_6(%arg0: i32) -> (i32, i32, i32, i32) {
    %c0_i32 = arith.constant 0 : i32
    %c0_i32_0 = arith.constant 0 : i32
    %c0_i32_1 = arith.constant 0 : i32
    %c0_i32_2 = arith.constant 0 : i32
    return %arg0, %c0_i32, %c0_i32_0, %c0_i32_1 : i32, i32, i32, i32
  }
  func.func @transform_7(%arg0: i32) -> (i32, i32, i32) {
    %c0_i32 = arith.constant 0 : i32
    %c0_i32_0 = arith.constant 0 : i32
    %c0_i32_1 = arith.constant 0 : i32
    return %arg0, %c0_i32, %c0_i32_0 : i32, i32, i32
  }
  func.func @transform_8(%arg0: i32) -> (i32, i32, i32) {
    %c0_i32 = arith.constant 0 : i32
    %c0_i32_0 = arith.constant 0 : i32
    %c0_i32_1 = arith.constant 0 : i32
    return %arg0, %c0_i32, %c0_i32_0 : i32, i32, i32
  }
}

module attributes {stable_mosaic.version = 11 : i64} {
  func.func @_bn_add_relu_kernel(%arg0: i32, %arg1: memref<512x128xbf16, #tpu.memory_space<vmem>>, %arg2: memref<1x128xf32, #tpu.memory_space<vmem>>, %arg3: memref<1x128xf32, #tpu.memory_space<vmem>>, %arg4: memref<1x128xf32, #tpu.memory_space<vmem>>, %arg5: memref<1x128xf32, #tpu.memory_space<vmem>>, %arg6: memref<512x128xf32, #tpu.memory_space<vmem>>, %arg7: memref<512x128xf32, #tpu.memory_space<vmem>>) attributes {dimension_semantics = [#tpu.dimension_semantics<parallel>], iteration_bounds = array<i64: 2>, scalar_prefetch = 0 : i64, scratch_operands = 0 : i64, tpu.core_type = #tpu.core_type<tc>, window_params = [{transform_indices = @transform_0, window_bounds = array<i64: 512, 128>}, {pipeline_mode = #tpu.pipeline_mode<synchronous>, transform_indices = @transform_1, window_bounds = array<i64: 1, 128>}, {pipeline_mode = #tpu.pipeline_mode<synchronous>, transform_indices = @transform_2, window_bounds = array<i64: 1, 128>}, {pipeline_mode = #tpu.pipeline_mode<synchronous>, transform_indices = @transform_3, window_bounds = array<i64: 1, 128>}, {pipeline_mode = #tpu.pipeline_mode<synchronous>, transform_indices = @transform_4, window_bounds = array<i64: 1, 128>}, {transform_indices = @transform_5, window_bounds = array<i64: 512, 128>}, {transform_indices = @transform_6, window_bounds = array<i64: 512, 128>}]} {
    %c0 = arith.constant 0 : index
    %c0_0 = arith.constant 0 : index
    %0 = vector.load %arg2[%c0, %c0_0] : memref<1x128xf32, #tpu.memory_space<vmem>>, vector<1x128xf32>
    %cst = arith.constant 9.765625E-4 : f32
    %1 = vector.broadcast %cst : f32 to vector<1x128xf32>
    %2 = arith.mulf %0, %1 : vector<1x128xf32>
    %c0_1 = arith.constant 0 : index
    %c0_2 = arith.constant 0 : index
    %3 = vector.load %arg3[%c0_1, %c0_2] : memref<1x128xf32, #tpu.memory_space<vmem>>, vector<1x128xf32>
    %cst_3 = arith.constant 9.765625E-4 : f32
    %4 = vector.broadcast %cst_3 : f32 to vector<1x128xf32>
    %5 = arith.mulf %3, %4 : vector<1x128xf32>
    %6 = arith.mulf %2, %2 : vector<1x128xf32>
    %7 = arith.subf %5, %6 : vector<1x128xf32>
    %c0_4 = arith.constant 0 : index
    %c0_5 = arith.constant 0 : index
    %8 = vector.load %arg4[%c0_4, %c0_5] : memref<1x128xf32, #tpu.memory_space<vmem>>, vector<1x128xf32>
    %cst_6 = arith.constant 9.99999974E-6 : f32
    %9 = vector.broadcast %cst_6 : f32 to vector<1x128xf32>
    %10 = arith.addf %7, %9 : vector<1x128xf32>
    %11 = math.rsqrt %10 : vector<1x128xf32>
    %12 = arith.mulf %8, %11 : vector<1x128xf32>
    %c0_7 = arith.constant 0 : index
    %c0_8 = arith.constant 0 : index
    %13 = vector.load %arg5[%c0_7, %c0_8] : memref<1x128xf32, #tpu.memory_space<vmem>>, vector<1x128xf32>
    %14 = arith.mulf %2, %12 : vector<1x128xf32>
    %15 = arith.subf %13, %14 : vector<1x128xf32>
    %c0_9 = arith.constant 0 : index
    %c0_10 = arith.constant 0 : index
    %16 = vector.load %arg1[%c0_9, %c0_10] : memref<512x128xbf16, #tpu.memory_space<vmem>>, vector<512x128xbf16>
    %17 = arith.extf %16 : vector<512x128xbf16> to vector<512x128xf32>
    %18 = vector.broadcast %12 : vector<1x128xf32> to vector<512x128xf32>
    %19 = arith.mulf %17, %18 : vector<512x128xf32>
    %20 = vector.broadcast %15 : vector<1x128xf32> to vector<512x128xf32>
    %21 = arith.addf %19, %20 : vector<512x128xf32>
    %c0_11 = arith.constant 0 : index
    %c0_12 = arith.constant 0 : index
    %22 = vector.load %arg6[%c0_11, %c0_12] : memref<512x128xf32, #tpu.memory_space<vmem>>, vector<512x128xf32>
    %23 = arith.addf %21, %22 : vector<512x128xf32>
    %cst_13 = arith.constant 0.000000e+00 : f32
    %24 = vector.broadcast %cst_13 : f32 to vector<512x128xf32>
    %25 = arith.maximumf %23, %24 : vector<512x128xf32>
    %c0_14 = arith.constant 0 : index
    %c0_15 = arith.constant 0 : index
    %26 = vector.load %arg7[%c0_14, %c0_15] : memref<512x128xf32, #tpu.memory_space<vmem>>, vector<512x128xf32>
    tpu.vector_store %arg7[%c0_14, %c0_15], %25 {strides = array<i32>} : memref<512x128xf32, #tpu.memory_space<vmem>>, vector<512x128xf32>,
    return
  }
  func.func @transform_0(%arg0: i32) -> (i32, i32) {
    %c0_i32 = arith.constant 0 : i32
    %c0_i32_0 = arith.constant 0 : i32
    return %arg0, %c0_i32 : i32, i32
  }
  func.func @transform_1(%arg0: i32) -> (i32, i32) {
    %c0_i32 = arith.constant 0 : i32
    %c0_i32_0 = arith.constant 0 : i32
    %c0_i32_1 = arith.constant 0 : i32
    return %c0_i32, %c0_i32_0 : i32, i32
  }
  func.func @transform_2(%arg0: i32) -> (i32, i32) {
    %c0_i32 = arith.constant 0 : i32
    %c0_i32_0 = arith.constant 0 : i32
    %c0_i32_1 = arith.constant 0 : i32
    return %c0_i32, %c0_i32_0 : i32, i32
  }
  func.func @transform_3(%arg0: i32) -> (i32, i32) {
    %c0_i32 = arith.constant 0 : i32
    %c0_i32_0 = arith.constant 0 : i32
    %c0_i32_1 = arith.constant 0 : i32
    return %c0_i32, %c0_i32_0 : i32, i32
  }
  func.func @transform_4(%arg0: i32) -> (i32, i32) {
    %c0_i32 = arith.constant 0 : i32
    %c0_i32_0 = arith.constant 0 : i32
    %c0_i32_1 = arith.constant 0 : i32
    return %c0_i32, %c0_i32_0 : i32, i32
  }
  func.func @transform_5(%arg0: i32) -> (i32, i32) {
    %c0_i32 = arith.constant 0 : i32
    %c0_i32_0 = arith.constant 0 : i32
    return %arg0, %c0_i32 : i32, i32
  }
  func.func @transform_6(%arg0: i32) -> (i32, i32) {
    %c0_i32 = arith.constant 0 : i32
    %c0_i32_0 = arith.constant 0 : i32
    return %arg0, %c0_i32 : i32, i32
  }
}

</mosaic_0001>

<llo_original>
// kernel: bottleneck_forward.4
$region0: #{bottleneck_forward.4}
  #allocation0 [shape = 'u32[]', space=smem, size = 0x4, offset = 0x4, fixed_abs, tag = 'smem constant byte address 0x4 - core index']
  #allocation1 [shape = 'u32[72,128]{1,0:T(1,128)}', space=vmem, size = 0x9000, scoped, tag = 'internal scratch']
  %s0 = inlined_call_operand.vmem [shape: f32[1024,128], index: 0, kind: input, shape index: {}]
  %s1 = inlined_call_operand.vmem [shape: bf16[128,128], index: 1, kind: input, shape index: {}]
  %s2 = inlined_call_operand.vmem [shape: bf16[1024,128], index: 2, kind: output, shape index: {0}]
  %s3 = inlined_call_operand.vmem [shape: f32[2,1,128], index: 3, kind: output, shape index: {1}]
  %s4 = inlined_call_operand.vmem [shape: f32[2,1,128], index: 4, kind: output, shape index: {2}]
  %5 = xla_tuple %s2, %s3, %s4
  %s6 = sld [smem:[#allocation0]]
  $region57: #{bottleneck_forward.4} parent=0
    _
  %s8 = ssub.s32 1, %s6
  %s9 = scalar_select 0, %s8, %s6
  loop: start=0, step=1, limit=4
  $region2: #{bottleneck_forward.4} parent=0 // loop_pre_header
    _
  $region3: #{bottleneck_forward.4} parent=0 // loop_header
    %s11 = sphi 0, %s15
    %p12 = scmp.ge.s32.totalorder %s11, 4
    %s21 = sphi 0, %s23
    %s24 = sphi 0, %s21
    %s25 = sphi 0, %s24
    %s41 = sphi 0, %s25
    %s45 = sphi 0, %s45
    %s47 = sphi 0, %s45
    %s48 = sphi 0, %s47
    %s62 = sphi 0, %s48
    %s68 = sphi 0, %s70
    %s71 = sphi 0, %s68
    %s72 = sphi 0, %s71
    %s88 = sphi 0, %s72
    %s94 = sphi 0, %s96
    %s97 = sphi 0, %s94
    %s98 = sphi 0, %s97
    %s114 = sphi 0, %s98
    %s120 = sphi 0, %s122
    %s123 = sphi 0, %s120
    %s124 = sphi 0, %s123
    %s140 = sphi 0, %s124
  $region4: #{bottleneck_forward.4} parent=0 // loop_header_branch
    %14 = sbr.rel (%p12) target = $region8
  $region5: #{bottleneck_forward.4} parent=0 // loop_body
    %s16 = ssub.s32 %s11, 1
    %s17 = ssub.s32 %s11, 2
    %s18 = sadd.s32 %s11, 1
    %s19 = ssub.s32 %s11, %s18
    %p20 = scmp.eq.s32.totalorder %s19, 0
    %s22 = sadd.s32 %s21, 1
    %s23 = scalar_select %p20, %s21, %s22
    %p26 = pneg %p20
    %p27 = scmp.eq.s32.totalorder %s11, 1
    %p28 = por %p26, %p27
    %p29 = scmp.ne.s32.totalorder %s21, %s24
    %p30 = scmp.eq.s32.totalorder %s11, 0
    %p31 = por %p29, %p30
    %p32 = scmp.ne.s32.totalorder %s21, %s24
    %p33 = scmp.eq.s32.totalorder %s16, 1
    %p34 = por %p32, %p33
    %p35 = scmp.ne.s32.totalorder %s24, %s25
    %p36 = scmp.eq.s32.totalorder %s16, 0
    %p37 = por %p35, %p36
    %p38 = scmp.ne.s32.totalorder %s24, %s25
    %p39 = scmp.eq.s32.totalorder %s17, 1
    %p40 = por %p38, %p39
    %p42 = scmp.ne.s32.totalorder %s25, %s41
    %p43 = scmp.eq.s32.totalorder %s17, 0
    %p44 = por %p42, %p43
    %s46 = sadd.s32 %s45, 1
    %p49 = scmp.eq.s32.totalorder %s11, 1
    %p50 = scmp.ne.s32.totalorder %s45, %s47
    %p51 = scmp.eq.s32.totalorder %s11, 0
    %p52 = por %p50, %p51
    %p53 = scmp.ne.s32.totalorder %s45, %s47
    %p54 = scmp.eq.s32.totalorder %s16, 1
    %p55 = por %p53, %p54
    %p56 = scmp.ne.s32.totalorder %s47, %s48
    %p57 = scmp.eq.s32.totalorder %s16, 0
    %p58 = por %p56, %p57
    %p59 = scmp.ne.s32.totalorder %s47, %s48
    %p60 = scmp.eq.s32.totalorder %s17, 1
    %p61 = por %p59, %p60
    %p63 = scmp.ne.s32.totalorder %s48, %s62
    %p64 = scmp.eq.s32.totalorder %s17, 0
    %p65 = por %p63, %p64
    %s66 = ssub.s32 %s11, %s18
    %p67 = scmp.eq.s32.totalorder %s66, 0
    %s69 = sadd.s32 %s68, 1
    %s70 = scalar_select %p67, %s68, %s69
    %p73 = pneg %p67
    %p74 = scmp.eq.s32.totalorder %s11, 1
    %p75 = por %p73, %p74
    %p76 = scmp.ne.s32.totalorder %s68, %s71
    %p77 = scmp.eq.s32.totalorder %s11, 0
    %p78 = por %p76, %p77
    %p79 = scmp.ne.s32.totalorder %s68, %s71
    %p80 = scmp.eq.s32.totalorder %s16, 1
    %p81 = por %p79, %p80
    %p82 = scmp.ne.s32.totalorder %s71, %s72
    %p83 = scmp.eq.s32.totalorder %s16, 0
    %p84 = por %p82, %p83
    %p85 = scmp.ne.s32.totalorder %s71, %s72
    %p86 = scmp.eq.s32.totalorder %s17, 1
    %p87 = por %p85, %p86
    %p89 = scmp.ne.s32.totalorder %s72, %s88
    %p90 = scmp.eq.s32.totalorder %s17, 0
    %p91 = por %p89, %p90
    %s92 = ssub.s32 %s11, %s18
    %p93 = scmp.eq.s32.totalorder %s92, 0
    %s95 = sadd.s32 %s94, 1
    %s96 = scalar_select %p93, %s94, %s95
    %p99 = pneg %p93
    %p100 = scmp.eq.s32.totalorder %s11, 1
    %p101 = por %p99, %p100
    %p102 = scmp.ne.s32.totalorder %s94, %s97
    %p103 = scmp.eq.s32.totalorder %s11, 0
    %p104 = por %p102, %p103
    %p105 = scmp.ne.s32.totalorder %s94, %s97
    %p106 = scmp.eq.s32.totalorder %s16, 1
    %p107 = por %p105, %p106
    %p108 = scmp.ne.s32.totalorder %s97, %s98
    %p109 = scmp.eq.s32.totalorder %s16, 0
    %p110 = por %p108, %p109
    %p111 = scmp.ne.s32.totalorder %s97, %s98
    %p112 = scmp.eq.s32.totalorder %s17, 1
    %p113 = por %p111, %p112
    %p115 = scmp.ne.s32.totalorder %s98, %s114
    %p116 = scmp.eq.s32.totalorder %s17, 0
    %p117 = por %p115, %p116
    %s118 = ssub.s32 %s11, %s18
    %p119 = scmp.eq.s32.totalorder %s118, 0
    %s121 = sadd.s32 %s120, 1
    %s122 = scalar_select %p119, %s120, %s121
    %p125 = pneg %p119
    %p126 = scmp.eq.s32.totalorder %s11, 1
    %p127 = por %p125, %p126
    %p128 = scmp.ne.s32.totalorder %s120, %s123
    %p129 = scmp.eq.s32.totalorder %s11, 0
    %p130 = por %p128, %p129
    %p131 = scmp.ne.s32.totalorder %s120, %s123
    %p132 = scmp.eq.s32.totalorder %s16, 1
    %p133 = por %p131, %p132
    %p134 = scmp.ne.s32.totalorder %s123, %s124
    %p135 = scmp.eq.s32.totalorder %s16, 0
    %p136 = por %p134, %p135
    %p137 = scmp.ne.s32.totalorder %s123, %s124
    %p138 = scmp.eq.s32.totalorder %s17, 1
    %p139 = por %p137, %p138
    %p141 = scmp.ne.s32.totalorder %s124, %s140
    %p142 = scmp.eq.s32.totalorder %s17, 0
    %p143 = por %p141, %p142
    %p144 = scmp.le.s32.totalorder 1, %s11
    %p145 = scmp.lt.s32.totalorder %s11, 3
    %p146 = pnand %p144, %p145
    %p147 = pneg %p146
    // Predicated region
    $region9: #{bottleneck_forward.4} parent=5 // pred_check
      _
    $region10: #{bottleneck_forward.4} parent=5 // pred_check_branch
      %149 = sbr.rel (%p146) target = $region12
    $region11: #{bottleneck_forward.4} parent=5 // pred_region
      %s150 = ssub.s32 %s11, 1
      // Predicated region
      $region13: #{bottleneck_forward.4} parent=11 // pred_check
        %p151 = pneg %p58
      $region14: #{bottleneck_forward.4} parent=11 // pred_check_branch
        %153 = sbr.rel (%p151) target = $region16
      $region15: #{bottleneck_forward.4} parent=11 // pred_region
        _
      $region16: #{bottleneck_forward.4} parent=11 // pred_fallthru
        _
    $region12: #{bottleneck_forward.4} parent=5 // pred_fallthru
      _
    %p154 = scmp.lt.s32.totalorder %s11, 2
    // Predicated region
    $region17: #{bottleneck_forward.4} parent=5 // pred_check
      %p155 = pneg %p154
    $region18: #{bottleneck_forward.4} parent=5 // pred_check_branch
      %157 = sbr.rel (%p155) target = $region20
    $region19: #{bottleneck_forward.4} parent=5 // pred_region
      // Predicated region
      $region21: #{bottleneck_forward.4} parent=19 // pred_check
        %p158 = pneg %p31
      $region22: #{bottleneck_forward.4} parent=19 // pred_check_branch
        %160 = sbr.rel (%p158) target = $region24
      $region23: #{bottleneck_forward.4} parent=19 // pred_region
        %s161 = smul.u32 64, %s11
        %p162 = scmp.lt.s32.totalorder %s161, 127
        %s163 = scalar_select %p162, %s161, 127
        %s164 = smul.addr %s163, 8
        %s165 = scalar_lea.vmem %s0, %s164
        %s166 = smul.u32 64, %s11
      $region24: #{bottleneck_forward.4} parent=19 // pred_fallthru
        _
    $region20: #{bottleneck_forward.4} parent=5 // pred_fallthru
      _
    %p167 = scmp.le.s32.totalorder 1, %s11
    %p168 = scmp.lt.s32.totalorder %s11, 3
    %p169 = pnand %p167, %p168
    %p170 = pneg %p169
    // Predicated region
    $region25: #{bottleneck_forward.4} parent=5 // pred_check
      _
    $region26: #{bottleneck_forward.4} parent=5 // pred_check_branch
      %172 = sbr.rel (%p169) target = $region28
    $region27: #{bottleneck_forward.4} parent=5 // pred_region
      %s173 = ssub.s32 %s11, 1
      %s174 = smul.u32 64, %s16
      %p175 = scmp.lt.s32.totalorder %s174, 127
      %s176 = scalar_select %p175, %s174, 127
      %s177 = smul.addr %s176, 8
      %s178 = scalar_lea.vmem %s0, %s177
      %p179 = pneg %p37
      %p180 = pneg %p34
      %p181 = pneg %p58
      %p182 = pneg %p55
      %p183 = pneg %p84
      %p184 = pneg %p81
      %s185 = smul.u32 64, %s16
      %p186 = scmp.lt.s32.totalorder %s185, 127
      %s187 = scalar_select %p186, %s185, 127
      %s188 = smul.addr %s187, 4
      %s189 = scalar_lea.vmem %s2, %s188
      %p190 = pneg %p110
      %p191 = pneg %p107
      %p192 = scmp.lt.s32.totalorder %s16, 1
      %s193 = scalar_select %p192, %s16, 1
      %s194 = scalar_lea.vmem %s3, %s193
      %p195 = pneg %p136
      %p196 = pneg %p133
      %p197 = scmp.lt.s32.totalorder %s16, 1
      %s198 = scalar_select %p197, %s16, 1
      %s199 = scalar_lea.vmem %s4, %s198
      %s200 = smul.u32 64, %s16
      %p201 = scmp.lt.s32.totalorder %s200, 127
      %s202 = scalar_select %p201, %s200, 127
      %s203 = smul.addr %s202, 8
      %s204 = scalar_lea.vmem %s0, %s203
      %s205 = smul.u32 64, %s16
      %s206 = smul.u32 64, %s16
      %p207 = scmp.lt.s32.totalorder %s206, 127
      %s208 = scalar_select %p207, %s206, 127
      %s209 = smul.addr %s208, 4
      %s210 = scalar_lea.vmem %s2, %s209
      %s211 = smul.u32 64, %s16
      %p212 = scmp.lt.s32.totalorder %s16, 1
      %s213 = scalar_select %p212, %s16, 1
      %s214 = scalar_lea.vmem %s3, %s213
      %p215 = scmp.lt.s32.totalorder %s16, 1
      %s216 = scalar_select %p215, %s16, 1
      %s217 = scalar_lea.vmem %s4, %s216
      %v218 = vld [vmem:[%s204] sm:$0xff]
      %v219 = vld [vmem:[%s204 + $0x8] sm:$0xff]
      %v220 = vld [vmem:[%s204 + $0x10] sm:$0xff]
      %v221 = vld [vmem:[%s204 + $0x18] sm:$0xff]
      %v222 = vld [vmem:[%s204 + $0x20] sm:$0xff]
      %v223 = vld [vmem:[%s204 + $0x28] sm:$0xff]
      %v224 = vld [vmem:[%s204 + $0x30] sm:$0xff]
      %v225 = vld [vmem:[%s204 + $0x38] sm:$0xff]
      %v226 = vld [vmem:[%s204 + $0x40] sm:$0xff]
      %v227 = vld [vmem:[%s204 + $0x48] sm:$0xff]
      %v228 = vld [vmem:[%s204 + $0x50] sm:$0xff]
      %v229 = vld [vmem:[%s204 + $0x58] sm:$0xff]
      %v230 = vld [vmem:[%s204 + $0x60] sm:$0xff]
      %v231 = vld [vmem:[%s204 + $0x68] sm:$0xff]
      %v232 = vld [vmem:[%s204 + $0x70] sm:$0xff]
      %v233 = vld [vmem:[%s204 + $0x78] sm:$0xff]
      %v234 = vld [vmem:[%s204 + $0x80] sm:$0xff]
      %v235 = vld [vmem:[%s204 + $0x88] sm:$0xff]
      %v236 = vld [vmem:[%s204 + $0x90] sm:$0xff]
      %v237 = vld [vmem:[%s204 + $0x98] sm:$0xff]
      %v238 = vld [vmem:[%s204 + $0xa0] sm:$0xff]
      %v239 = vld [vmem:[%s204 + $0xa8] sm:$0xff]
      %v240 = vld [vmem:[%s204 + $0xb0] sm:$0xff]
      %v241 = vld [vmem:[%s204 + $0xb8] sm:$0xff]
      %v242 = vld [vmem:[%s204 + $0xc0] sm:$0xff]
      %v243 = vld [vmem:[%s204 + $0xc8] sm:$0xff]
      %v244 = vld [vmem:[%s204 + $0xd0] sm:$0xff]
      %v245 = vld [vmem:[%s204 + $0xd8] sm:$0xff]
      %v246 = vld [vmem:[%s204 + $0xe0] sm:$0xff]
      %v247 = vld [vmem:[%s204 + $0xe8] sm:$0xff]
      %v248 = vld [vmem:[%s204 + $0xf0] sm:$0xff]
      %v249 = vld [vmem:[%s204 + $0xf8] sm:$0xff]
      %v250 = vld [vmem:[%s204 + $0x100] sm:$0xff]
      %v251 = vld [vmem:[%s204 + $0x108] sm:$0xff]
      %v252 = vld [vmem:[%s204 + $0x110] sm:$0xff]
      %v253 = vld [vmem:[%s204 + $0x118] sm:$0xff]
      %v254 = vld [vmem:[%s204 + $0x120] sm:$0xff]
      %v255 = vld [vmem:[%s204 + $0x128] sm:$0xff]
      %v256 = vld [vmem:[%s204 + $0x130] sm:$0xff]
      %v257 = vld [vmem:[%s204 + $0x138] sm:$0xff]
      %v258 = vld [vmem:[%s204 + $0x140] sm:$0xff]
      %v259 = vld [vmem:[%s204 + $0x148] sm:$0xff]
      %v260 = vld [vmem:[%s204 + $0x150] sm:$0xff]
      %v261 = vld [vmem:[%s204 + $0x158] sm:$0xff]
      %v262 = vld [vmem:[%s204 + $0x160] sm:$0xff]
      %v263 = vld [vmem:[%s204 + $0x168] sm:$0xff]
      %v264 = vld [vmem:[%s204 + $0x170] sm:$0xff]
      %v265 = vld [vmem:[%s204 + $0x178] sm:$0xff]
      %v266 = vld [vmem:[%s204 + $0x180] sm:$0xff]
      %v267 = vld [vmem:[%s204 + $0x188] sm:$0xff]
      %v268 = vld [vmem:[%s204 + $0x190] sm:$0xff]
      %v269 = vld [vmem:[%s204 + $0x198] sm:$0xff]
      %v270 = vld [vmem:[%s204 + $0x1a0] sm:$0xff]
      %v271 = vld [vmem:[%s204 + $0x1a8] sm:$0xff]
      %v272 = vld [vmem:[%s204 + $0x1b0] sm:$0xff]
      %v273 = vld [vmem:[%s204 + $0x1b8] sm:$0xff]
      %v274 = vld [vmem:[%s204 + $0x1c0] sm:$0xff]
      %v275 = vld [vmem:[%s204 + $0x1c8] sm:$0xff]
      %v276 = vld [vmem:[%s204 + $0x1d0] sm:$0xff]
      %v277 = vld [vmem:[%s204 + $0x1d8] sm:$0xff]
      %v278 = vld [vmem:[%s204 + $0x1e0] sm:$0xff]
      %v279 = vld [vmem:[%s204 + $0x1e8] sm:$0xff]
      %v280 = vld [vmem:[%s204 + $0x1f0] sm:$0xff]
      %v281 = vld [vmem:[%s204 + $0x1f8] sm:$0xff]
      %v282 = vpack.c.bf16 %v219, %v218
      %v283 = vpack.c.bf16 %v221, %v220
      %v284 = vpack.c.bf16 %v223, %v222
      %v285 = vpack.c.bf16 %v225, %v224
      %v286 = vpack.c.bf16 %v227, %v226
      %v287 = vpack.c.bf16 %v229, %v228
      %v288 = vpack.c.bf16 %v231, %v230
      %v289 = vpack.c.bf16 %v233, %v232
      %v290 = vpack.c.bf16 %v235, %v234
      %v291 = vpack.c.bf16 %v237, %v236
      %v292 = vpack.c.bf16 %v239, %v238
      %v293 = vpack.c.bf16 %v241, %v240
      %v294 = vpack.c.bf16 %v243, %v242
      %v295 = vpack.c.bf16 %v245, %v244
      %v296 = vpack.c.bf16 %v247, %v246
      %v297 = vpack.c.bf16 %v249, %v248
      %v298 = vpack.c.bf16 %v251, %v250
      %v299 = vpack.c.bf16 %v253, %v252
      %v300 = vpack.c.bf16 %v255, %v254
      %v301 = vpack.c.bf16 %v257, %v256
      %v302 = vpack.c.bf16 %v259, %v258
      %v303 = vpack.c.bf16 %v261, %v260
      %v304 = vpack.c.bf16 %v263, %v262
      %v305 = vpack.c.bf16 %v265, %v264
      %v306 = vpack.c.bf16 %v267, %v266
      %v307 = vpack.c.bf16 %v269, %v268
      %v308 = vpack.c.bf16 %v271, %v270
      %v309 = vpack.c.bf16 %v273, %v272
      %v310 = vpack.c.bf16 %v275, %v274
      %v311 = vpack.c.bf16 %v277, %v276
      %v312 = vpack.c.bf16 %v279, %v278
      %v313 = vpack.c.bf16 %v281, %v280
      %v314 = vld [vmem:[%s1] sm:$0xf]
      %v315 = vld [vmem:[%s1 + $0x4] sm:$0xf]
      %v316 = vld [vmem:[%s1 + $0x8] sm:$0xf]
      %v317 = vld [vmem:[%s1 + $0xc] sm:$0xf]
      %v318 = vld [vmem:[%s1 + $0x10] sm:$0xf]
      %v319 = vld [vmem:[%s1 + $0x14] sm:$0xf]
      %v320 = vld [vmem:[%s1 + $0x18] sm:$0xf]
      %v321 = vld [vmem:[%s1 + $0x1c] sm:$0xf]
      %v322 = vld [vmem:[%s1 + $0x20] sm:$0xf]
      %v323 = vld [vmem:[%s1 + $0x24] sm:$0xf]
      %v324 = vld [vmem:[%s1 + $0x28] sm:$0xf]
      %v325 = vld [vmem:[%s1 + $0x2c] sm:$0xf]
      %v326 = vld [vmem:[%s1 + $0x30] sm:$0xf]
      %v327 = vld [vmem:[%s1 + $0x34] sm:$0xf]
      %v328 = vld [vmem:[%s1 + $0x38] sm:$0xf]
      %v329 = vld [vmem:[%s1 + $0x3c] sm:$0xf]
      %v346 = vunpack.c.l.b16 %v314
      %v347 = vunpack.c.l.b16 %v315
      %v348 = vunpack.c.l.b16 %v316
      %v349 = vunpack.c.l.b16 %v317
      %v350 = vunpack.c.l.b16 %v318
      %v351 = vunpack.c.l.b16 %v319
      %v352 = vunpack.c.l.b16 %v320
      %v353 = vunpack.c.l.b16 %v321
      %v354 = vunpack.c.l.b16 %v322
      %v355 = vunpack.c.l.b16 %v323
      %v356 = vunpack.c.l.b16 %v324
      %v357 = vunpack.c.l.b16 %v325
      %v358 = vunpack.c.l.b16 %v326
      %v359 = vunpack.c.l.b16 %v327
      %v360 = vunpack.c.l.b16 %v328
      %v361 = vunpack.c.l.b16 %v329
      %v362 = vpack.c.b16 %v347, %v346
      %v363 = vpack.c.b16 %v349, %v348
      %v364 = vpack.c.b16 %v351, %v350
      %v365 = vpack.c.b16 %v353, %v352
      %v366 = vpack.c.b16 %v355, %v354
      %v367 = vpack.c.b16 %v357, %v356
      %v368 = vpack.c.b16 %v359, %v358
      %v369 = vpack.c.b16 %v361, %v360
      %378 = vmatpush.bf16.msra.mxu0 %v369
      %379 = vmatpush.bf16.msra.mxu0 %v368
      %380 = vmatpush.bf16.msra.mxu0 %v367
      %381 = vmatpush.bf16.msra.mxu0 %v366
      %382 = vmatpush.bf16.msra.mxu0 %v365
      %383 = vmatpush.bf16.msra.mxu0 %v364
      %384 = vmatpush.bf16.msra.mxu0 %v363
      %385 = vmatpush.bf16.msra.mxu0 %v362
      %386 = vmatmul.bf16.gmra.mxu0 %v282
      %v387 = vpop.f32.mrf.mxu0
      %v388 = vadd.f32 0.0, %v387
      %v389 = vpop.f32.mrf.mxu0
      %v390 = vadd.f32 0.0, %v389
      %391 = vmatmul.bf16.gmra.mxu0 %v283
      %v392 = vpop.f32.mrf.mxu0
      %v393 = vadd.f32 0.0, %v392
      %v394 = vpop.f32.mrf.mxu0
      %v395 = vadd.f32 0.0, %v394
      %396 = vmatmul.bf16.gmra.mxu0 %v284
      %v397 = vpop.f32.mrf.mxu0
      %v398 = vadd.f32 0.0, %v397
      %v399 = vpop.f32.mrf.mxu0
      %v400 = vadd.f32 0.0, %v399
      %401 = vmatmul.bf16.gmra.mxu0 %v285
      %v402 = vpop.f32.mrf.mxu0
      %v403 = vadd.f32 0.0, %v402
      %v404 = vpop.f32.mrf.mxu0
      %v405 = vadd.f32 0.0, %v404
      %406 = vmatmul.bf16.gmra.mxu0 %v286
      %v407 = vpop.f32.mrf.mxu0
      %v408 = vadd.f32 0.0, %v407
      %v409 = vpop.f32.mrf.mxu0
      %v410 = vadd.f32 0.0, %v409
      %411 = vmatmul.bf16.gmra.mxu0 %v287
      %v412 = vpop.f32.mrf.mxu0
      %v413 = vadd.f32 0.0, %v412
      %v414 = vpop.f32.mrf.mxu0
      %v415 = vadd.f32 0.0, %v414
      %416 = vmatmul.bf16.gmra.mxu0 %v288
      %v417 = vpop.f32.mrf.mxu0
      %v418 = vadd.f32 0.0, %v417
      %v419 = vpop.f32.mrf.mxu0
      %v420 = vadd.f32 0.0, %v419
      %421 = vmatmul.bf16.gmra.mxu0 %v289
      %v422 = vpop.f32.mrf.mxu0
      %v423 = vadd.f32 0.0, %v422
      %v424 = vpop.f32.mrf.mxu0
      %v425 = vadd.f32 0.0, %v424
      %426 = vmatmul.bf16.gmra.mxu0 %v290
      %v427 = vpop.f32.mrf.mxu0
      %v428 = vadd.f32 0.0, %v427
      %v429 = vpop.f32.mrf.mxu0
      %v430 = vadd.f32 0.0, %v429
      %431 = vmatmul.bf16.gmra.mxu0 %v291
      %v432 = vpop.f32.mrf.mxu0
      %v433 = vadd.f32 0.0, %v432
      %v434 = vpop.f32.mrf.mxu0
      %v435 = vadd.f32 0.0, %v434
      %436 = vmatmul.bf16.gmra.mxu0 %v292
      %v437 = vpop.f32.mrf.mxu0
      %v438 = vadd.f32 0.0, %v437
      %v439 = vpop.f32.mrf.mxu0
      %v440 = vadd.f32 0.0, %v439
      %441 = vmatmul.bf16.gmra.mxu0 %v293
      %v442 = vpop.f32.mrf.mxu0
      %v443 = vadd.f32 0.0, %v442
      %v444 = vpop.f32.mrf.mxu0
      %v445 = vadd.f32 0.0, %v444
      %446 = vmatmul.bf16.gmra.mxu0 %v294
      %v447 = vpop.f32.mrf.mxu0
      %v448 = vadd.f32 0.0, %v447
      %v449 = vpop.f32.mrf.mxu0
      %v450 = vadd.f32 0.0, %v449
      %451 = vmatmul.bf16.gmra.mxu0 %v295
      %v452 = vpop.f32.mrf.mxu0
      %v453 = vadd.f32 0.0, %v452
      %v454 = vpop.f32.mrf.mxu0
      %v455 = vadd.f32 0.0, %v454
      %456 = vmatmul.bf16.gmra.mxu0 %v296
      %v457 = vpop.f32.mrf.mxu0
      %v458 = vadd.f32 0.0, %v457
      %v459 = vpop.f32.mrf.mxu0
      %v460 = vadd.f32 0.0, %v459
      %461 = vmatmul.bf16.gmra.mxu0 %v297
      %v462 = vpop.f32.mrf.mxu0
      %v463 = vadd.f32 0.0, %v462
      %v464 = vpop.f32.mrf.mxu0
      %v465 = vadd.f32 0.0, %v464
      %466 = vmatmul.bf16.gmra.mxu0 %v298
      %v467 = vpop.f32.mrf.mxu0
      %v468 = vadd.f32 0.0, %v467
      %v469 = vpop.f32.mrf.mxu0
      %v470 = vadd.f32 0.0, %v469
      %471 = vmatmul.bf16.gmra.mxu0 %v299
      %v472 = vpop.f32.mrf.mxu0
      %v473 = vadd.f32 0.0, %v472
      %v474 = vpop.f32.mrf.mxu0
      %v475 = vadd.f32 0.0, %v474
      %476 = vmatmul.bf16.gmra.mxu0 %v300
      %v477 = vpop.f32.mrf.mxu0
      %v478 = vadd.f32 0.0, %v477
      %v479 = vpop.f32.mrf.mxu0
      %v480 = vadd.f32 0.0, %v479
      %481 = vmatmul.bf16.gmra.mxu0 %v301
      %v482 = vpop.f32.mrf.mxu0
      %v483 = vadd.f32 0.0, %v482
      %v484 = vpop.f32.mrf.mxu0
      %v485 = vadd.f32 0.0, %v484
      %486 = vmatmul.bf16.gmra.mxu0 %v302
      %v487 = vpop.f32.mrf.mxu0
      %v488 = vadd.f32 0.0, %v487
      %v489 = vpop.f32.mrf.mxu0
      %v490 = vadd.f32 0.0, %v489
      %491 = vmatmul.bf16.gmra.mxu0 %v303
      %v492 = vpop.f32.mrf.mxu0
      %v493 = vadd.f32 0.0, %v492
      %v494 = vpop.f32.mrf.mxu0
      %v495 = vadd.f32 0.0, %v494
      %496 = vmatmul.bf16.gmra.mxu0 %v304
      %v497 = vpop.f32.mrf.mxu0
      %v498 = vadd.f32 0.0, %v497
      %v499 = vpop.f32.mrf.mxu0
      %v500 = vadd.f32 0.0, %v499
      %501 = vmatmul.bf16.gmra.mxu0 %v305
      %v502 = vpop.f32.mrf.mxu0
      %v503 = vadd.f32 0.0, %v502
      %v504 = vpop.f32.mrf.mxu0
      %v505 = vadd.f32 0.0, %v504
      %506 = vmatmul.bf16.gmra.mxu0 %v306
      %v507 = vpop.f32.mrf.mxu0
      %v508 = vadd.f32 0.0, %v507
      %v509 = vpop.f32.mrf.mxu0
      %v510 = vadd.f32 0.0, %v509
      %511 = vmatmul.bf16.gmra.mxu0 %v307
      %v512 = vpop.f32.mrf.mxu0
      %v513 = vadd.f32 0.0, %v512
      %v514 = vpop.f32.mrf.mxu0
      %v515 = vadd.f32 0.0, %v514
      %516 = vmatmul.bf16.gmra.mxu0 %v308
      %v517 = vpop.f32.mrf.mxu0
      %v518 = vadd.f32 0.0, %v517
      %v519 = vpop.f32.mrf.mxu0
      %v520 = vadd.f32 0.0, %v519
      %521 = vmatmul.bf16.gmra.mxu0 %v309
      %v522 = vpop.f32.mrf.mxu0
      %v523 = vadd.f32 0.0, %v522
      %v524 = vpop.f32.mrf.mxu0
      %v525 = vadd.f32 0.0, %v524
      %526 = vmatmul.bf16.gmra.mxu0 %v310
      %v527 = vpop.f32.mrf.mxu0
      %v528 = vadd.f32 0.0, %v527
      %v529 = vpop.f32.mrf.mxu0
      %v530 = vadd.f32 0.0, %v529
      %531 = vmatmul.bf16.gmra.mxu0 %v311
      %v532 = vpop.f32.mrf.mxu0
      %v533 = vadd.f32 0.0, %v532
      %v534 = vpop.f32.mrf.mxu0
      %v535 = vadd.f32 0.0, %v534
      %536 = vmatmul.bf16.gmra.mxu0 %v312
      %v537 = vpop.f32.mrf.mxu0
      %v538 = vadd.f32 0.0, %v537
      %v539 = vpop.f32.mrf.mxu0
      %v540 = vadd.f32 0.0, %v539
      %541 = vmatmul.bf16.gmra.mxu0 %v313
      %v542 = vpop.f32.mrf.mxu0
      %v543 = vadd.f32 0.0, %v542
      %v544 = vpop.f32.mrf.mxu0
      %v545 = vadd.f32 0.0, %v544
      %546 = vdwg.mxu0
      %v547 = vpack.c.bf16 %v388, %v388
      %v548 = vpack.c.bf16 %v390, %v390
      %v549 = vpack.c.bf16 %v393, %v393
      %v550 = vpack.c.bf16 %v395, %v395
      %v551 = vpack.c.bf16 %v398, %v398
      %v552 = vpack.c.bf16 %v400, %v400
      %v553 = vpack.c.bf16 %v403, %v403
      %v554 = vpack.c.bf16 %v405, %v405
      %v555 = vpack.c.bf16 %v408, %v408
      %v556 = vpack.c.bf16 %v410, %v410
      %v557 = vpack.c.bf16 %v413, %v413
      %v558 = vpack.c.bf16 %v415, %v415
      %v559 = vpack.c.bf16 %v418, %v418
      %v560 = vpack.c.bf16 %v420, %v420
      %v561 = vpack.c.bf16 %v423, %v423
      %v562 = vpack.c.bf16 %v425, %v425
      %v563 = vpack.c.bf16 %v428, %v428
      %v564 = vpack.c.bf16 %v430, %v430
      %v565 = vpack.c.bf16 %v433, %v433
      %v566 = vpack.c.bf16 %v435, %v435
      %v567 = vpack.c.bf16 %v438, %v438
      %v568 = vpack.c.bf16 %v440, %v440
      %v569 = vpack.c.bf16 %v443, %v443
      %v570 = vpack.c.bf16 %v445, %v445
      %v571 = vpack.c.bf16 %v448, %v448
      %v572 = vpack.c.bf16 %v450, %v450
      %v573 = vpack.c.bf16 %v453, %v453
      %v574 = vpack.c.bf16 %v455, %v455
      %v575 = vpack.c.bf16 %v458, %v458
      %v576 = vpack.c.bf16 %v460, %v460
      %v577 = vpack.c.bf16 %v463, %v463
      %v578 = vpack.c.bf16 %v465, %v465
      %v579 = vpack.c.bf16 %v468, %v468
      %v580 = vpack.c.bf16 %v470, %v470
      %v581 = vpack.c.bf16 %v473, %v473
      %v582 = vpack.c.bf16 %v475, %v475
      %v583 = vpack.c.bf16 %v478, %v478
      %v584 = vpack.c.bf16 %v480, %v480
      %v585 = vpack.c.bf16 %v483, %v483
      %v586 = vpack.c.bf16 %v485, %v485
      %v587 = vpack.c.bf16 %v488, %v488
      %v588 = vpack.c.bf16 %v490, %v490
      %v589 = vpack.c.bf16 %v493, %v493
      %v590 = vpack.c.bf16 %v495, %v495
      %v591 = vpack.c.bf16 %v498, %v498
      %v592 = vpack.c.bf16 %v500, %v500
      %v593 = vpack.c.bf16 %v503, %v503
      %v594 = vpack.c.bf16 %v505, %v505
      %v595 = vpack.c.bf16 %v508, %v508
      %v596 = vpack.c.bf16 %v510, %v510
      %v597 = vpack.c.bf16 %v513, %v513
      %v598 = vpack.c.bf16 %v515, %v515
      %v599 = vpack.c.bf16 %v518, %v518
      %v600 = vpack.c.bf16 %v520, %v520
      %v601 = vpack.c.bf16 %v523, %v523
      %v602 = vpack.c.bf16 %v525, %v525
      %v603 = vpack.c.bf16 %v528, %v528
      %v604 = vpack.c.bf16 %v530, %v530
      %v605 = vpack.c.bf16 %v533, %v533
      %v606 = vpack.c.bf16 %v535, %v535
      %v607 = vpack.c.bf16 %v538, %v538
      %v608 = vpack.c.bf16 %v540, %v540
      %v609 = vpack.c.bf16 %v543, %v543
      %v610 = vpack.c.bf16 %v545, %v545
      %611 = vst [vmem:[%s210] sm:$0xf] %v547
      %612 = vst [vmem:[%s210 + $0x4] sm:$0xf] %v548
      %613 = vst [vmem:[%s210 + $0x8] sm:$0xf] %v549
      %614 = vst [vmem:[%s210 + $0xc] sm:$0xf] %v550
      %615 = vst [vmem:[%s210 + $0x10] sm:$0xf] %v551
      %616 = vst [vmem:[%s210 + $0x14] sm:$0xf] %v552
      %617 = vst [vmem:[%s210 + $0x18] sm:$0xf] %v553
      %618 = vst [vmem:[%s210 + $0x1c] sm:$0xf] %v554
      %619 = vst [vmem:[%s210 + $0x20] sm:$0xf] %v555
      %620 = vst [vmem:[%s210 + $0x24] sm:$0xf] %v556
      %621 = vst [vmem:[%s210 + $0x28] sm:$0xf] %v557
      %622 = vst [vmem:[%s210 + $0x2c] sm:$0xf] %v558
      %623 = vst [vmem:[%s210 + $0x30] sm:$0xf] %v559
      %624 = vst [vmem:[%s210 + $0x34] sm:$0xf] %v560
      %625 = vst [vmem:[%s210 + $0x38] sm:$0xf] %v561
      %626 = vst [vmem:[%s210 + $0x3c] sm:$0xf] %v562
      %627 = vst [vmem:[%s210 + $0x40] sm:$0xf] %v563
      %628 = vst [vmem:[%s210 + $0x44] sm:$0xf] %v564
      %629 = vst [vmem:[%s210 + $0x48] sm:$0xf] %v565
      %630 = vst [vmem:[%s210 + $0x4c] sm:$0xf] %v566
      %631 = vst [vmem:[%s210 + $0x50] sm:$0xf] %v567
      %632 = vst [vmem:[%s210 + $0x54] sm:$0xf] %v568
      %633 = vst [vmem:[%s210 + $0x58] sm:$0xf] %v569
      %634 = vst [vmem:[%s210 + $0x5c] sm:$0xf] %v570
      %635 = vst [vmem:[%s210 + $0x60] sm:$0xf] %v571
      %636 = vst [vmem:[%s210 + $0x64] sm:$0xf] %v572
      %637 = vst [vmem:[%s210 + $0x68] sm:$0xf] %v573
      %638 = vst [vmem:[%s210 + $0x6c] sm:$0xf] %v574
      %639 = vst [vmem:[%s210 + $0x70] sm:$0xf] %v575
      %640 = vst [vmem:[%s210 + $0x74] sm:$0xf] %v576
      %641 = vst [vmem:[%s210 + $0x78] sm:$0xf] %v577
      %642 = vst [vmem:[%s210 + $0x7c] sm:$0xf] %v578
      %643 = vst [vmem:[%s210 + $0x80] sm:$0xf] %v579
      %644 = vst [vmem:[%s210 + $0x84] sm:$0xf] %v580
      %645 = vst [vmem:[%s210 + $0x88] sm:$0xf] %v581
      %646 = vst [vmem:[%s210 + $0x8c] sm:$0xf] %v582
      %647 = vst [vmem:[%s210 + $0x90] sm:$0xf] %v583
      %648 = vst [vmem:[%s210 + $0x94] sm:$0xf] %v584
      %649 = vst [vmem:[%s210 + $0x98] sm:$0xf] %v585
      %650 = vst [vmem:[%s210 + $0x9c] sm:$0xf] %v586
      %651 = vst [vmem:[%s210 + $0xa0] sm:$0xf] %v587
      %652 = vst [vmem:[%s210 + $0xa4] sm:$0xf] %v588
      %653 = vst [vmem:[%s210 + $0xa8] sm:$0xf] %v589
      %654 = vst [vmem:[%s210 + $0xac] sm:$0xf] %v590
      %655 = vst [vmem:[%s210 + $0xb0] sm:$0xf] %v591
      %656 = vst [vmem:[%s210 + $0xb4] sm:$0xf] %v592
      %657 = vst [vmem:[%s210 + $0xb8] sm:$0xf] %v593
      %658 = vst [vmem:[%s210 + $0xbc] sm:$0xf] %v594
      %659 = vst [vmem:[%s210 + $0xc0] sm:$0xf] %v595
      %660 = vst [vmem:[%s210 + $0xc4] sm:$0xf] %v596
      %661 = vst [vmem:[%s210 + $0xc8] sm:$0xf] %v597
      %662 = vst [vmem:[%s210 + $0xcc] sm:$0xf] %v598
      %663 = vst [vmem:[%s210 + $0xd0] sm:$0xf] %v599
      %664 = vst [vmem:[%s210 + $0xd4] sm:$0xf] %v600
      %665 = vst [vmem:[%s210 + $0xd8] sm:$0xf] %v601
      %666 = vst [vmem:[%s210 + $0xdc] sm:$0xf] %v602
      %667 = vst [vmem:[%s210 + $0xe0] sm:$0xf] %v603
      %668 = vst [vmem:[%s210 + $0xe4] sm:$0xf] %v604
      %669 = vst [vmem:[%s210 + $0xe8] sm:$0xf] %v605
      %670 = vst [vmem:[%s210 + $0xec] sm:$0xf] %v606
      %671 = vst [vmem:[%s210 + $0xf0] sm:$0xf] %v607
      %672 = vst [vmem:[%s210 + $0xf4] sm:$0xf] %v608
      %673 = vst [vmem:[%s210 + $0xf8] sm:$0xf] %v609
      %674 = vst [vmem:[%s210 + $0xfc] sm:$0xf] %v610
      %v675 = vadd.f32 %v388, %v390
      %v676 = vadd.f32 %v675, %v393
      %v677 = vadd.f32 %v676, %v395
      %v678 = vadd.f32 %v677, %v398
      %v679 = vadd.f32 %v678, %v400
      %v680 = vadd.f32 %v679, %v403
      %v681 = vadd.f32 %v680, %v405
      %v682 = vadd.f32 %v681, %v408
      %v683 = vadd.f32 %v682, %v410
      %v684 = vadd.f32 %v683, %v413
      %v685 = vadd.f32 %v684, %v415
      %v686 = vadd.f32 %v685, %v418
      %v687 = vadd.f32 %v686, %v420
      %v688 = vadd.f32 %v687, %v423
      %v689 = vadd.f32 %v688, %v425
      %v690 = vadd.f32 %v689, %v428
      %v691 = vadd.f32 %v690, %v430
      %v692 = vadd.f32 %v691, %v433
      %v693 = vadd.f32 %v692, %v435
      %v694 = vadd.f32 %v693, %v438
      %v695 = vadd.f32 %v694, %v440
      %v696 = vadd.f32 %v695, %v443
      %v697 = vadd.f32 %v696, %v445
      %v698 = vadd.f32 %v697, %v448
      %v699 = vadd.f32 %v698, %v450
      %v700 = vadd.f32 %v699, %v453
      %v701 = vadd.f32 %v700, %v455
      %v702 = vadd.f32 %v701, %v458
      %v703 = vadd.f32 %v702, %v460
      %v704 = vadd.f32 %v703, %v463
      %v705 = vadd.f32 %v704, %v465
      %v706 = vadd.f32 %v705, %v468
      %v707 = vadd.f32 %v706, %v470
      %v708 = vadd.f32 %v707, %v473
      %v709 = vadd.f32 %v708, %v475
      %v710 = vadd.f32 %v709, %v478
      %v711 = vadd.f32 %v710, %v480
      %v712 = vadd.f32 %v711, %v483
      %v713 = vadd.f32 %v712, %v485
      %v714 = vadd.f32 %v713, %v488
      %v715 = vadd.f32 %v714, %v490
      %v716 = vadd.f32 %v715, %v493
      %v717 = vadd.f32 %v716, %v495
      %v718 = vadd.f32 %v717, %v498
      %v719 = vadd.f32 %v718, %v500
      %v720 = vadd.f32 %v719, %v503
      %v721 = vadd.f32 %v720, %v505
      %v722 = vadd.f32 %v721, %v508
      %v723 = vadd.f32 %v722, %v510
      %v724 = vadd.f32 %v723, %v513
      %v725 = vadd.f32 %v724, %v515
      %v726 = vadd.f32 %v725, %v518
      %v727 = vadd.f32 %v726, %v520
      %v728 = vadd.f32 %v727, %v523
      %v729 = vadd.f32 %v728, %v525
      %v730 = vadd.f32 %v729, %v528
      %v731 = vadd.f32 %v730, %v530
      %v732 = vadd.f32 %v731, %v533
      %v733 = vadd.f32 %v732, %v535
      %v734 = vadd.f32 %v733, %v538
      %v735 = vadd.f32 %v734, %v540
      %v736 = vadd.f32 %v735, %v543
      %v737 = vadd.f32 %v736, %v545
      %v738 = vrot.slane %v737, 4
      %v739 = vadd.f32 %v737, %v738
      %v740 = vrot.slane %v739, 2
      %v741 = vadd.f32 %v739, %v740
      %v742 = vrot.slane %v741, 1
      %v743 = vadd.f32 %v741, %v742
      %744 = vst [vmem:[%s214] sm:$0x1] %v743
      %v745 = vmul.f32 %v388, %v388
      %v746 = vmul.f32 %v390, %v390
      %v747 = vmul.f32 %v393, %v393
      %v748 = vmul.f32 %v395, %v395
      %v749 = vmul.f32 %v398, %v398
      %v750 = vmul.f32 %v400, %v400
      %v751 = vmul.f32 %v403, %v403
      %v752 = vmul.f32 %v405, %v405
      %v753 = vmul.f32 %v408, %v408
      %v754 = vmul.f32 %v410, %v410
      %v755 = vmul.f32 %v413, %v413
      %v756 = vmul.f32 %v415, %v415
      %v757 = vmul.f32 %v418, %v418
      %v758 = vmul.f32 %v420, %v420
      %v759 = vmul.f32 %v423, %v423
      %v760 = vmul.f32 %v425, %v425
      %v761 = vmul.f32 %v428, %v428
      %v762 = vmul.f32 %v430, %v430
      %v763 = vmul.f32 %v433, %v433
      %v764 = vmul.f32 %v435, %v435
      %v765 = vmul.f32 %v438, %v438
      %v766 = vmul.f32 %v440, %v440
      %v767 = vmul.f32 %v443, %v443
      %v768 = vmul.f32 %v445, %v445
      %v769 = vmul.f32 %v448, %v448
      %v770 = vmul.f32 %v450, %v450
      %v771 = vmul.f32 %v453, %v453
      %v772 = vmul.f32 %v455, %v455
      %v773 = vmul.f32 %v458, %v458
      %v774 = vmul.f32 %v460, %v460
      %v775 = vmul.f32 %v463, %v463
      %v776 = vmul.f32 %v465, %v465
      %v777 = vmul.f32 %v468, %v468
      %v778 = vmul.f32 %v470, %v470
      %v779 = vmul.f32 %v473, %v473
      %v780 = vmul.f32 %v475, %v475
      %v781 = vmul.f32 %v478, %v478
      %v782 = vmul.f32 %v480, %v480
      %v783 = vmul.f32 %v483, %v483
      %v784 = vmul.f32 %v485, %v485
      %v785 = vmul.f32 %v488, %v488
      %v786 = vmul.f32 %v490, %v490
      %v787 = vmul.f32 %v493, %v493
      %v788 = vmul.f32 %v495, %v495
      %v789 = vmul.f32 %v498, %v498
      %v790 = vmul.f32 %v500, %v500
      %v791 = vmul.f32 %v503, %v503
      %v792 = vmul.f32 %v505, %v505
      %v793 = vmul.f32 %v508, %v508
      %v794 = vmul.f32 %v510, %v510
      %v795 = vmul.f32 %v513, %v513
      %v796 = vmul.f32 %v515, %v515
      %v797 = vmul.f32 %v518, %v518
      %v798 = vmul.f32 %v520, %v520
      %v799 = vmul.f32 %v523, %v523
      %v800 = vmul.f32 %v525, %v525
      %v801 = vmul.f32 %v528, %v528
      %v802 = vmul.f32 %v530, %v530
      %v803 = vmul.f32 %v533, %v533
      %v804 = vmul.f32 %v535, %v535
      %v805 = vmul.f32 %v538, %v538
      %v806 = vmul.f32 %v540, %v540
      %v807 = vmul.f32 %v543, %v543
      %v808 = vmul.f32 %v545, %v545
      %v809 = vadd.f32 %v745, %v746
      %v810 = vadd.f32 %v809, %v747
      %v811 = vadd.f32 %v810, %v748
      %v812 = vadd.f32 %v811, %v749
      %v813 = vadd.f32 %v812, %v750
      %v814 = vadd.f32 %v813, %v751
      %v815 = vadd.f32 %v814, %v752
      %v816 = vadd.f32 %v815, %v753
      %v817 = vadd.f32 %v816, %v754
      %v818 = vadd.f32 %v817, %v755
      %v819 = vadd.f32 %v818, %v756
      %v820 = vadd.f32 %v819, %v757
      %v821 = vadd.f32 %v820, %v758
      %v822 = vadd.f32 %v821, %v759
      %v823 = vadd.f32 %v822, %v760
      %v824 = vadd.f32 %v823, %v761
      %v825 = vadd.f32 %v824, %v762
      %v826 = vadd.f32 %v825, %v763
      %v827 = vadd.f32 %v826, %v764
      %v828 = vadd.f32 %v827, %v765
      %v829 = vadd.f32 %v828, %v766
      %v830 = vadd.f32 %v829, %v767
      %v831 = vadd.f32 %v830, %v768
      %v832 = vadd.f32 %v831, %v769
      %v833 = vadd.f32 %v832, %v770
      %v834 = vadd.f32 %v833, %v771
      %v835 = vadd.f32 %v834, %v772
      %v836 = vadd.f32 %v835, %v773
      %v837 = vadd.f32 %v836, %v774
      %v838 = vadd.f32 %v837, %v775
      %v839 = vadd.f32 %v838, %v776
      %v840 = vadd.f32 %v839, %v777
      %v841 = vadd.f32 %v840, %v778
      %v842 = vadd.f32 %v841, %v779
      %v843 = vadd.f32 %v842, %v780
      %v844 = vadd.f32 %v843, %v781
      %v845 = vadd.f32 %v844, %v782
      %v846 = vadd.f32 %v845, %v783
      %v847 = vadd.f32 %v846, %v784
      %v848 = vadd.f32 %v847, %v785
      %v849 = vadd.f32 %v848, %v786
      %v850 = vadd.f32 %v849, %v787
      %v851 = vadd.f32 %v850, %v788
      %v852 = vadd.f32 %v851, %v789
      %v853 = vadd.f32 %v852, %v790
      %v854 = vadd.f32 %v853, %v791
      %v855 = vadd.f32 %v854, %v792
      %v856 = vadd.f32 %v855, %v793
      %v857 = vadd.f32 %v856, %v794
      %v858 = vadd.f32 %v857, %v795
      %v859 = vadd.f32 %v858, %v796
      %v860 = vadd.f32 %v859, %v797
      %v861 = vadd.f32 %v860, %v798
      %v862 = vadd.f32 %v861, %v799
      %v863 = vadd.f32 %v862, %v800
      %v864 = vadd.f32 %v863, %v801
      %v865 = vadd.f32 %v864, %v802
      %v866 = vadd.f32 %v865, %v803
      %v867 = vadd.f32 %v866, %v804
      %v868 = vadd.f32 %v867, %v805
      %v869 = vadd.f32 %v868, %v806
      %v870 = vadd.f32 %v869, %v807
      %v871 = vadd.f32 %v870, %v808
      %v872 = vrot.slane %v871, 4
      %v873 = vadd.f32 %v871, %v872
      %v874 = vrot.slane %v873, 2
      %v875 = vadd.f32 %v873, %v874
      %v876 = vrot.slane %v875, 1
      %v877 = vadd.f32 %v875, %v876
      %878 = vst [vmem:[%s217] sm:$0x1] %v877
      %s879 = smul.u32 64, %s16
      %p880 = scmp.lt.s32.totalorder %s879, 127
      %s881 = scalar_select %p880, %s879, 127
      %s882 = smul.addr %s881, 4
      %s883 = scalar_lea.vmem %s2, %s882
      %p884 = scmp.lt.s32.totalorder %s16, 1
      %s885 = scalar_select %p884, %s16, 1
      %s886 = scalar_lea.vmem %s3, %s885
      %p887 = scmp.lt.s32.totalorder %s16, 1
      %s888 = scalar_select %p887, %s16, 1
      %s889 = scalar_lea.vmem %s4, %s888
      // Predicated region
      $region29: #{bottleneck_forward.4} parent=27 // pred_check
        %p890 = pneg %p81
      $region30: #{bottleneck_forward.4} parent=27 // pred_check_branch
        %892 = sbr.rel (%p890) target = $region32
      $region31: #{bottleneck_forward.4} parent=27 // pred_region
        %s893 = smul.u32 64, %s16
      $region32: #{bottleneck_forward.4} parent=27 // pred_fallthru
        _
      // Predicated region
      $region33: #{bottleneck_forward.4} parent=27 // pred_check
        %p894 = pneg %p107
      $region34: #{bottleneck_forward.4} parent=27 // pred_check_branch
        %896 = sbr.rel (%p894) target = $region36
      $region35: #{bottleneck_forward.4} parent=27 // pred_region
        _
      $region36: #{bottleneck_forward.4} parent=27 // pred_fallthru
        _
      // Predicated region
      $region37: #{bottleneck_forward.4} parent=27 // pred_check
        %p897 = pneg %p133
      $region38: #{bottleneck_forward.4} parent=27 // pred_check_branch
        %899 = sbr.rel (%p897) target = $region40
      $region39: #{bottleneck_forward.4} parent=27 // pred_region
        _
      $region40: #{bottleneck_forward.4} parent=27 // pred_fallthru
        _
    $region28: #{bottleneck_forward.4} parent=5 // pred_fallthru
      _
    %p900 = scmp.le.s32.totalorder 2, %s11
    // Predicated region
    $region41: #{bottleneck_forward.4} parent=5 // pred_check
      %p901 = pneg %p900
    $region42: #{bottleneck_forward.4} parent=5 // pred_check_branch
      %903 = sbr.rel (%p901) target = $region44
    $region43: #{bottleneck_forward.4} parent=5 // pred_region
      %s904 = ssub.s32 %s11, 2
      // Predicated region
      $region45: #{bottleneck_forward.4} parent=43 // pred_check
        %p905 = pneg %p87
      $region46: #{bottleneck_forward.4} parent=43 // pred_check_branch
        %907 = sbr.rel (%p905) target = $region48
      $region47: #{bottleneck_forward.4} parent=43 // pred_region
        %s908 = smul.u32 64, %s17
        %p909 = scmp.lt.s32.totalorder %s908, 127
        %s910 = scalar_select %p909, %s908, 127
        %s911 = smul.addr %s910, 4
        %s912 = scalar_lea.vmem %s2, %s911
      $region48: #{bottleneck_forward.4} parent=43 // pred_fallthru
        _
      // Predicated region
      $region49: #{bottleneck_forward.4} parent=43 // pred_check
        %p913 = pneg %p113
      $region50: #{bottleneck_forward.4} parent=43 // pred_check_branch
        %915 = sbr.rel (%p913) target = $region52
      $region51: #{bottleneck_forward.4} parent=43 // pred_region
        %p916 = scmp.lt.s32.totalorder %s17, 1
        %s917 = scalar_select %p916, %s17, 1
        %s918 = scalar_lea.vmem %s3, %s917
      $region52: #{bottleneck_forward.4} parent=43 // pred_fallthru
        _
      // Predicated region
      $region53: #{bottleneck_forward.4} parent=43 // pred_check
        %p919 = pneg %p139
      $region54: #{bottleneck_forward.4} parent=43 // pred_check_branch
        %921 = sbr.rel (%p919) target = $region56
      $region55: #{bottleneck_forward.4} parent=43 // pred_region
        %p922 = scmp.lt.s32.totalorder %s17, 1
        %s923 = scalar_select %p922, %s17, 1
        %s924 = scalar_lea.vmem %s4, %s923
      $region56: #{bottleneck_forward.4} parent=43 // pred_fallthru
        _
    $region44: #{bottleneck_forward.4} parent=5 // pred_fallthru
      _
  $region6: #{bottleneck_forward.4} parent=0 // loop_footer
    %s15 = sadd.s32 1, %s11
  $region7: #{bottleneck_forward.4} parent=0 // loop_footer_branch
    %10 = sbr.rel target = $region3
  $region8: #{bottleneck_forward.4} parent=0 // loop_exit
    _

// kernel: bottleneck_forward.6
$region0: #{bottleneck_forward.6}
  #allocation0 [shape = 'u32[]', space=smem, size = 0x4, offset = 0x4, fixed_abs, tag = 'smem constant byte address 0x4 - core index']
  #allocation1 [shape = 'u32[72,128]{1,0:T(1,128)}', space=vmem, size = 0x9000, scoped, tag = 'internal scratch']
  %s0 = inlined_call_operand.vmem [shape: bf16[1024,128], index: 0, kind: input, shape index: {}]
  %s1 = inlined_call_operand.vmem [shape: f32[1,128], index: 1, kind: input, shape index: {}]
  %s2 = inlined_call_operand.vmem [shape: f32[1,128], index: 2, kind: input, shape index: {}]
  %s3 = inlined_call_operand.vmem [shape: f32[1,128], index: 3, kind: input, shape index: {}]
  %s4 = inlined_call_operand.vmem [shape: f32[1,128], index: 4, kind: input, shape index: {}]
  %s5 = inlined_call_operand.vmem [shape: bf16[128,128], index: 5, kind: input, shape index: {}]
  %s6 = inlined_call_operand.vmem [shape: bf16[1024,128], index: 6, kind: output, shape index: {0}]
  %s7 = inlined_call_operand.vmem [shape: f32[2,1,128], index: 7, kind: output, shape index: {1}]
  %s8 = inlined_call_operand.vmem [shape: f32[2,1,128], index: 8, kind: output, shape index: {2}]
  %9 = xla_tuple %s6, %s7, %s8
  %s10 = sld [smem:[#allocation0]]
  $region73: #{bottleneck_forward.6} parent=0
    _
  %s12 = ssub.s32 1, %s10
  %s13 = scalar_select 0, %s12, %s10
  loop: start=0, step=1, limit=4
  $region2: #{bottleneck_forward.6} parent=0 // loop_pre_header
    _
  $region3: #{bottleneck_forward.6} parent=0 // loop_header
    %s15 = sphi 0, %s19
    %p16 = scmp.ge.s32.totalorder %s15, 4
    %s25 = sphi 0, %s27
    %s28 = sphi 0, %s25
    %s29 = sphi 0, %s28
    %s45 = sphi 0, %s29
    %s49 = sphi 0, %s49
    %s51 = sphi 0, %s49
    %s52 = sphi 0, %s51
    %s66 = sphi 0, %s52
    %s70 = sphi 0, %s70
    %s72 = sphi 0, %s70
    %s73 = sphi 0, %s72
    %s87 = sphi 0, %s73
    %s91 = sphi 0, %s91
    %s93 = sphi 0, %s91
    %s94 = sphi 0, %s93
    %s108 = sphi 0, %s94
    %s112 = sphi 0, %s112
    %s114 = sphi 0, %s112
    %s115 = sphi 0, %s114
    %s129 = sphi 0, %s115
    %s133 = sphi 0, %s133
    %s135 = sphi 0, %s133
    %s136 = sphi 0, %s135
    %s150 = sphi 0, %s136
    %s156 = sphi 0, %s158
    %s159 = sphi 0, %s156
    %s160 = sphi 0, %s159
    %s176 = sphi 0, %s160
    %s182 = sphi 0, %s184
    %s185 = sphi 0, %s182
    %s186 = sphi 0, %s185
    %s202 = sphi 0, %s186
    %s208 = sphi 0, %s210
    %s211 = sphi 0, %s208
    %s212 = sphi 0, %s211
    %s228 = sphi 0, %s212
  $region4: #{bottleneck_forward.6} parent=0 // loop_header_branch
    %18 = sbr.rel (%p16) target = $region8
  $region5: #{bottleneck_forward.6} parent=0 // loop_body
    %s20 = ssub.s32 %s15, 1
    %s21 = ssub.s32 %s15, 2
    %s22 = sadd.s32 %s15, 1
    %s23 = ssub.s32 %s15, %s22
    %p24 = scmp.eq.s32.totalorder %s23, 0
    %s26 = sadd.s32 %s25, 1
    %s27 = scalar_select %p24, %s25, %s26
    %p30 = pneg %p24
    %p31 = scmp.eq.s32.totalorder %s15, 1
    %p32 = por %p30, %p31
    %p33 = scmp.ne.s32.totalorder %s25, %s28
    %p34 = scmp.eq.s32.totalorder %s15, 0
    %p35 = por %p33, %p34
    %p36 = scmp.ne.s32.totalorder %s25, %s28
    %p37 = scmp.eq.s32.totalorder %s20, 1
    %p38 = por %p36, %p37
    %p39 = scmp.ne.s32.totalorder %s28, %s29
    %p40 = scmp.eq.s32.totalorder %s20, 0
    %p41 = por %p39, %p40
    %p42 = scmp.ne.s32.totalorder %s28, %s29
    %p43 = scmp.eq.s32.totalorder %s21, 1
    %p44 = por %p42, %p43
    %p46 = scmp.ne.s32.totalorder %s29, %s45
    %p47 = scmp.eq.s32.totalorder %s21, 0
    %p48 = por %p46, %p47
    %s50 = sadd.s32 %s49, 1
    %p53 = scmp.eq.s32.totalorder %s15, 1
    %p54 = scmp.ne.s32.totalorder %s49, %s51
    %p55 = scmp.eq.s32.totalorder %s15, 0
    %p56 = por %p54, %p55
    %p57 = scmp.ne.s32.totalorder %s49, %s51
    %p58 = scmp.eq.s32.totalorder %s20, 1
    %p59 = por %p57, %p58
    %p60 = scmp.ne.s32.totalorder %s51, %s52
    %p61 = scmp.eq.s32.totalorder %s20, 0
    %p62 = por %p60, %p61
    %p63 = scmp.ne.s32.totalorder %s51, %s52
    %p64 = scmp.eq.s32.totalorder %s21, 1
    %p65 = por %p63, %p64
    %p67 = scmp.ne.s32.totalorder %s52, %s66
    %p68 = scmp.eq.s32.totalorder %s21, 0
    %p69 = por %p67, %p68
    %s71 = sadd.s32 %s70, 1
    %p74 = scmp.eq.s32.totalorder %s15, 1
    %p75 = scmp.ne.s32.totalorder %s70, %s72
    %p76 = scmp.eq.s32.totalorder %s15, 0
    %p77 = por %p75, %p76
    %p78 = scmp.ne.s32.totalorder %s70, %s72
    %p79 = scmp.eq.s32.totalorder %s20, 1
    %p80 = por %p78, %p79
    %p81 = scmp.ne.s32.totalorder %s72, %s73
    %p82 = scmp.eq.s32.totalorder %s20, 0
    %p83 = por %p81, %p82
    %p84 = scmp.ne.s32.totalorder %s72, %s73
    %p85 = scmp.eq.s32.totalorder %s21, 1
    %p86 = por %p84, %p85
    %p88 = scmp.ne.s32.totalorder %s73, %s87
    %p89 = scmp.eq.s32.totalorder %s21, 0
    %p90 = por %p88, %p89
    %s92 = sadd.s32 %s91, 1
    %p95 = scmp.eq.s32.totalorder %s15, 1
    %p96 = scmp.ne.s32.totalorder %s91, %s93
    %p97 = scmp.eq.s32.totalorder %s15, 0
    %p98 = por %p96, %p97
    %p99 = scmp.ne.s32.totalorder %s91, %s93
    %p100 = scmp.eq.s32.totalorder %s20, 1
    %p101 = por %p99, %p100
    %p102 = scmp.ne.s32.totalorder %s93, %s94
    %p103 = scmp.eq.s32.totalorder %s20, 0
    %p104 = por %p102, %p103
    %p105 = scmp.ne.s32.totalorder %s93, %s94
    %p106 = scmp.eq.s32.totalorder %s21, 1
    %p107 = por %p105, %p106
    %p109 = scmp.ne.s32.totalorder %s94, %s108
    %p110 = scmp.eq.s32.totalorder %s21, 0
    %p111 = por %p109, %p110
    %s113 = sadd.s32 %s112, 1
    %p116 = scmp.eq.s32.totalorder %s15, 1
    %p117 = scmp.ne.s32.totalorder %s112, %s114
    %p118 = scmp.eq.s32.totalorder %s15, 0
    %p119 = por %p117, %p118
    %p120 = scmp.ne.s32.totalorder %s112, %s114
    %p121 = scmp.eq.s32.totalorder %s20, 1
    %p122 = por %p120, %p121
    %p123 = scmp.ne.s32.totalorder %s114, %s115
    %p124 = scmp.eq.s32.totalorder %s20, 0
    %p125 = por %p123, %p124
    %p126 = scmp.ne.s32.totalorder %s114, %s115
    %p127 = scmp.eq.s32.totalorder %s21, 1
    %p128 = por %p126, %p127
    %p130 = scmp.ne.s32.totalorder %s115, %s129
    %p131 = scmp.eq.s32.totalorder %s21, 0
    %p132 = por %p130, %p131
    %s134 = sadd.s32 %s133, 1
    %p137 = scmp.eq.s32.totalorder %s15, 1
    %p138 = scmp.ne.s32.totalorder %s133, %s135
    %p139 = scmp.eq.s32.totalorder %s15, 0
    %p140 = por %p138, %p139
    %p141 = scmp.ne.s32.totalorder %s133, %s135
    %p142 = scmp.eq.s32.totalorder %s20, 1
    %p143 = por %p141, %p142
    %p144 = scmp.ne.s32.totalorder %s135, %s136
    %p145 = scmp.eq.s32.totalorder %s20, 0
    %p146 = por %p144, %p145
    %p147 = scmp.ne.s32.totalorder %s135, %s136
    %p148 = scmp.eq.s32.totalorder %s21, 1
    %p149 = por %p147, %p148
    %p151 = scmp.ne.s32.totalorder %s136, %s150
    %p152 = scmp.eq.s32.totalorder %s21, 0
    %p153 = por %p151, %p152
    %s154 = ssub.s32 %s15, %s22
    %p155 = scmp.eq.s32.totalorder %s154, 0
    %s157 = sadd.s32 %s156, 1
    %s158 = scalar_select %p155, %s156, %s157
    %p161 = pneg %p155
    %p162 = scmp.eq.s32.totalorder %s15, 1
    %p163 = por %p161, %p162
    %p164 = scmp.ne.s32.totalorder %s156, %s159
    %p165 = scmp.eq.s32.totalorder %s15, 0
    %p166 = por %p164, %p165
    %p167 = scmp.ne.s32.totalorder %s156, %s159
    %p168 = scmp.eq.s32.totalorder %s20, 1
    %p169 = por %p167, %p168
    %p170 = scmp.ne.s32.totalorder %s159, %s160
    %p171 = scmp.eq.s32.totalorder %s20, 0
    %p172 = por %p170, %p171
    %p173 = scmp.ne.s32.totalorder %s159, %s160
    %p174 = scmp.eq.s32.totalorder %s21, 1
    %p175 = por %p173, %p174
    %p177 = scmp.ne.s32.totalorder %s160, %s176
    %p178 = scmp.eq.s32.totalorder %s21, 0
    %p179 = por %p177, %p178
    %s180 = ssub.s32 %s15, %s22
    %p181 = scmp.eq.s32.totalorder %s180, 0
    %s183 = sadd.s32 %s182, 1
    %s184 = scalar_select %p181, %s182, %s183
    %p187 = pneg %p181
    %p188 = scmp.eq.s32.totalorder %s15, 1
    %p189 = por %p187, %p188
    %p190 = scmp.ne.s32.totalorder %s182, %s185
    %p191 = scmp.eq.s32.totalorder %s15, 0
    %p192 = por %p190, %p191
    %p193 = scmp.ne.s32.totalorder %s182, %s185
    %p194 = scmp.eq.s32.totalorder %s20, 1
    %p195 = por %p193, %p194
    %p196 = scmp.ne.s32.totalorder %s185, %s186
    %p197 = scmp.eq.s32.totalorder %s20, 0
    %p198 = por %p196, %p197
    %p199 = scmp.ne.s32.totalorder %s185, %s186
    %p200 = scmp.eq.s32.totalorder %s21, 1
    %p201 = por %p199, %p200
    %p203 = scmp.ne.s32.totalorder %s186, %s202
    %p204 = scmp.eq.s32.totalorder %s21, 0
    %p205 = por %p203, %p204
    %s206 = ssub.s32 %s15, %s22
    %p207 = scmp.eq.s32.totalorder %s206, 0
    %s209 = sadd.s32 %s208, 1
    %s210 = scalar_select %p207, %s208, %s209
    %p213 = pneg %p207
    %p214 = scmp.eq.s32.totalorder %s15, 1
    %p215 = por %p213, %p214
    %p216 = scmp.ne.s32.totalorder %s208, %s211
    %p217 = scmp.eq.s32.totalorder %s15, 0
    %p218 = por %p216, %p217
    %p219 = scmp.ne.s32.totalorder %s208, %s211
    %p220 = scmp.eq.s32.totalorder %s20, 1
    %p221 = por %p219, %p220
    %p222 = scmp.ne.s32.totalorder %s211, %s212
    %p223 = scmp.eq.s32.totalorder %s20, 0
    %p224 = por %p222, %p223
    %p225 = scmp.ne.s32.totalorder %s211, %s212
    %p226 = scmp.eq.s32.totalorder %s21, 1
    %p227 = por %p225, %p226
    %p229 = scmp.ne.s32.totalorder %s212, %s228
    %p230 = scmp.eq.s32.totalorder %s21, 0
    %p231 = por %p229, %p230
    %p232 = scmp.le.s32.totalorder 1, %s15
    %p233 = scmp.lt.s32.totalorder %s15, 3
    %p234 = pnand %p232, %p233
    %p235 = pneg %p234
    // Predicated region
    $region9: #{bottleneck_forward.6} parent=5 // pred_check
      _
    $region10: #{bottleneck_forward.6} parent=5 // pred_check_branch
      %237 = sbr.rel (%p234) target = $region12
    $region11: #{bottleneck_forward.6} parent=5 // pred_region
      %s238 = ssub.s32 %s15, 1
      // Predicated region
      $region13: #{bottleneck_forward.6} parent=11 // pred_check
        %p239 = pneg %p62
      $region14: #{bottleneck_forward.6} parent=11 // pred_check_branch
        %241 = sbr.rel (%p239) target = $region16
      $region15: #{bottleneck_forward.6} parent=11 // pred_region
        _
      $region16: #{bottleneck_forward.6} parent=11 // pred_fallthru
        _
      // Predicated region
      $region17: #{bottleneck_forward.6} parent=11 // pred_check
        %p242 = pneg %p83
      $region18: #{bottleneck_forward.6} parent=11 // pred_check_branch
        %244 = sbr.rel (%p242) target = $region20
      $region19: #{bottleneck_forward.6} parent=11 // pred_region
        _
      $region20: #{bottleneck_forward.6} parent=11 // pred_fallthru
        _
      // Predicated region
      $region21: #{bottleneck_forward.6} parent=11 // pred_check
        %p245 = pneg %p104
      $region22: #{bottleneck_forward.6} parent=11 // pred_check_branch
        %247 = sbr.rel (%p245) target = $region24
      $region23: #{bottleneck_forward.6} parent=11 // pred_region
        _
      $region24: #{bottleneck_forward.6} parent=11 // pred_fallthru
        _
      // Predicated region
      $region25: #{bottleneck_forward.6} parent=11 // pred_check
        %p248 = pneg %p125
      $region26: #{bottleneck_forward.6} parent=11 // pred_check_branch
        %250 = sbr.rel (%p248) target = $region28
      $region27: #{bottleneck_forward.6} parent=11 // pred_region
        _
      $region28: #{bottleneck_forward.6} parent=11 // pred_fallthru
        _
      // Predicated region
      $region29: #{bottleneck_forward.6} parent=11 // pred_check
        %p251 = pneg %p146
      $region30: #{bottleneck_forward.6} parent=11 // pred_check_branch
        %253 = sbr.rel (%p251) target = $region32
      $region31: #{bottleneck_forward.6} parent=11 // pred_region
        _
      $region32: #{bottleneck_forward.6} parent=11 // pred_fallthru
        _
    $region12: #{bottleneck_forward.6} parent=5 // pred_fallthru
      _
    %p254 = scmp.lt.s32.totalorder %s15, 2
    // Predicated region
    $region33: #{bottleneck_forward.6} parent=5 // pred_check
      %p255 = pneg %p254
    $region34: #{bottleneck_forward.6} parent=5 // pred_check_branch
      %257 = sbr.rel (%p255) target = $region36
    $region35: #{bottleneck_forward.6} parent=5 // pred_region
      // Predicated region
      $region37: #{bottleneck_forward.6} parent=35 // pred_check
        %p258 = pneg %p35
      $region38: #{bottleneck_forward.6} parent=35 // pred_check_branch
        %260 = sbr.rel (%p258) target = $region40
      $region39: #{bottleneck_forward.6} parent=35 // pred_region
        %s261 = smul.u32 64, %s15
        %p262 = scmp.lt.s32.totalorder %s261, 127
        %s263 = scalar_select %p262, %s261, 127
        %s264 = smul.addr %s263, 4
        %s265 = scalar_lea.vmem %s0, %s264
        %s266 = smul.u32 64, %s15
      $region40: #{bottleneck_forward.6} parent=35 // pred_fallthru
        _
    $region36: #{bottleneck_forward.6} parent=5 // pred_fallthru
      _
    %p267 = scmp.le.s32.totalorder 1, %s15
    %p268 = scmp.lt.s32.totalorder %s15, 3
    %p269 = pnand %p267, %p268
    %p270 = pneg %p269
    // Predicated region
    $region41: #{bottleneck_forward.6} parent=5 // pred_check
      _
    $region42: #{bottleneck_forward.6} parent=5 // pred_check_branch
      %272 = sbr.rel (%p269) target = $region44
    $region43: #{bottleneck_forward.6} parent=5 // pred_region
      %s273 = ssub.s32 %s15, 1
      %s274 = smul.u32 64, %s20
      %p275 = scmp.lt.s32.totalorder %s274, 127
      %s276 = scalar_select %p275, %s274, 127
      %s277 = smul.addr %s276, 4
      %s278 = scalar_lea.vmem %s0, %s277
      %p279 = pneg %p41
      %p280 = pneg %p38
      %p281 = pneg %p62
      %p282 = pneg %p59
      %p283 = pneg %p83
      %p284 = pneg %p80
      %p285 = pneg %p104
      %p286 = pneg %p101
      %p287 = pneg %p125
      %p288 = pneg %p122
      %p289 = pneg %p146
      %p290 = pneg %p143
      %p291 = pneg %p172
      %p292 = pneg %p169
      %s293 = smul.u32 64, %s20
      %p294 = scmp.lt.s32.totalorder %s293, 127
      %s295 = scalar_select %p294, %s293, 127
      %s296 = smul.addr %s295, 4
      %s297 = scalar_lea.vmem %s6, %s296
      %p298 = pneg %p198
      %p299 = pneg %p195
      %p300 = scmp.lt.s32.totalorder %s20, 1
      %s301 = scalar_select %p300, %s20, 1
      %s302 = scalar_lea.vmem %s7, %s301
      %p303 = pneg %p224
      %p304 = pneg %p221
      %p305 = scmp.lt.s32.totalorder %s20, 1
      %s306 = scalar_select %p305, %s20, 1
      %s307 = scalar_lea.vmem %s8, %s306
      %s308 = smul.u32 64, %s20
      %p309 = scmp.lt.s32.totalorder %s308, 127
      %s310 = scalar_select %p309, %s308, 127
      %s311 = smul.addr %s310, 4
      %s312 = scalar_lea.vmem %s0, %s311
      %s313 = smul.u32 64, %s20
      %s314 = smul.u32 64, %s20
      %p315 = scmp.lt.s32.totalorder %s314, 127
      %s316 = scalar_select %p315, %s314, 127
      %s317 = smul.addr %s316, 4
      %s318 = scalar_lea.vmem %s6, %s317
      %s319 = smul.u32 64, %s20
      %p320 = scmp.lt.s32.totalorder %s20, 1
      %s321 = scalar_select %p320, %s20, 1
      %s322 = scalar_lea.vmem %s7, %s321
      %p323 = scmp.lt.s32.totalorder %s20, 1
      %s324 = scalar_select %p323, %s20, 1
      %s325 = scalar_lea.vmem %s8, %s324
      %v326 = vld [vmem:[%s312] sm:$0xf]
      %v327 = vld [vmem:[%s312 + $0x4] sm:$0xf]
      %v328 = vld [vmem:[%s312 + $0x8] sm:$0xf]
      %v329 = vld [vmem:[%s312 + $0xc] sm:$0xf]
      %v330 = vld [vmem:[%s312 + $0x10] sm:$0xf]
      %v331 = vld [vmem:[%s312 + $0x14] sm:$0xf]
      %v332 = vld [vmem:[%s312 + $0x18] sm:$0xf]
      %v333 = vld [vmem:[%s312 + $0x1c] sm:$0xf]
      %v334 = vld [vmem:[%s312 + $0x20] sm:$0xf]
      %v335 = vld [vmem:[%s312 + $0x24] sm:$0xf]
      %v336 = vld [vmem:[%s312 + $0x28] sm:$0xf]
      %v337 = vld [vmem:[%s312 + $0x2c] sm:$0xf]
      %v338 = vld [vmem:[%s312 + $0x30] sm:$0xf]
      %v339 = vld [vmem:[%s312 + $0x34] sm:$0xf]
      %v340 = vld [vmem:[%s312 + $0x38] sm:$0xf]
      %v341 = vld [vmem:[%s312 + $0x3c] sm:$0xf]
      %v342 = vld [vmem:[%s312 + $0x40] sm:$0xf]
      %v343 = vld [vmem:[%s312 + $0x44] sm:$0xf]
      %v344 = vld [vmem:[%s312 + $0x48] sm:$0xf]
      %v345 = vld [vmem:[%s312 + $0x4c] sm:$0xf]
      %v346 = vld [vmem:[%s312 + $0x50] sm:$0xf]
      %v347 = vld [vmem:[%s312 + $0x54] sm:$0xf]
      %v348 = vld [vmem:[%s312 + $0x58] sm:$0xf]
      %v349 = vld [vmem:[%s312 + $0x5c] sm:$0xf]
      %v350 = vld [vmem:[%s312 + $0x60] sm:$0xf]
      %v351 = vld [vmem:[%s312 + $0x64] sm:$0xf]
      %v352 = vld [vmem:[%s312 + $0x68] sm:$0xf]
      %v353 = vld [vmem:[%s312 + $0x6c] sm:$0xf]
      %v354 = vld [vmem:[%s312 + $0x70] sm:$0xf]
      %v355 = vld [vmem:[%s312 + $0x74] sm:$0xf]
      %v356 = vld [vmem:[%s312 + $0x78] sm:$0xf]
      %v357 = vld [vmem:[%s312 + $0x7c] sm:$0xf]
      %v358 = vld [vmem:[%s312 + $0x80] sm:$0xf]
      %v359 = vld [vmem:[%s312 + $0x84] sm:$0xf]
      %v360 = vld [vmem:[%s312 + $0x88] sm:$0xf]
      %v361 = vld [vmem:[%s312 + $0x8c] sm:$0xf]
      %v362 = vld [vmem:[%s312 + $0x90] sm:$0xf]
      %v363 = vld [vmem:[%s312 + $0x94] sm:$0xf]
      %v364 = vld [vmem:[%s312 + $0x98] sm:$0xf]
      %v365 = vld [vmem:[%s312 + $0x9c] sm:$0xf]
      %v366 = vld [vmem:[%s312 + $0xa0] sm:$0xf]
      %v367 = vld [vmem:[%s312 + $0xa4] sm:$0xf]
      %v368 = vld [vmem:[%s312 + $0xa8] sm:$0xf]
      %v369 = vld [vmem:[%s312 + $0xac] sm:$0xf]
      %v370 = vld [vmem:[%s312 + $0xb0] sm:$0xf]
      %v371 = vld [vmem:[%s312 + $0xb4] sm:$0xf]
      %v372 = vld [vmem:[%s312 + $0xb8] sm:$0xf]
      %v373 = vld [vmem:[%s312 + $0xbc] sm:$0xf]
      %v374 = vld [vmem:[%s312 + $0xc0] sm:$0xf]
      %v375 = vld [vmem:[%s312 + $0xc4] sm:$0xf]
      %v376 = vld [vmem:[%s312 + $0xc8] sm:$0xf]
      %v377 = vld [vmem:[%s312 + $0xcc] sm:$0xf]
      %v378 = vld [vmem:[%s312 + $0xd0] sm:$0xf]
      %v379 = vld [vmem:[%s312 + $0xd4] sm:$0xf]
      %v380 = vld [vmem:[%s312 + $0xd8] sm:$0xf]
      %v381 = vld [vmem:[%s312 + $0xdc] sm:$0xf]
      %v382 = vld [vmem:[%s312 + $0xe0] sm:$0xf]
      %v383 = vld [vmem:[%s312 + $0xe4] sm:$0xf]
      %v384 = vld [vmem:[%s312 + $0xe8] sm:$0xf]
      %v385 = vld [vmem:[%s312 + $0xec] sm:$0xf]
      %v386 = vld [vmem:[%s312 + $0xf0] sm:$0xf]
      %v387 = vld [vmem:[%s312 + $0xf4] sm:$0xf]
      %v388 = vld [vmem:[%s312 + $0xf8] sm:$0xf]
      %v389 = vld [vmem:[%s312 + $0xfc] sm:$0xf]
      %v390 = vunpack.c.l.bf16 %v326
      %v391 = vunpack.c.l.bf16 %v327
      %v392 = vunpack.c.l.bf16 %v328
      %v393 = vunpack.c.l.bf16 %v329
      %v394 = vunpack.c.l.bf16 %v330
      %v395 = vunpack.c.l.bf16 %v331
      %v396 = vunpack.c.l.bf16 %v332
      %v397 = vunpack.c.l.bf16 %v333
      %v398 = vunpack.c.l.bf16 %v334
      %v399 = vunpack.c.l.bf16 %v335
      %v400 = vunpack.c.l.bf16 %v336
      %v401 = vunpack.c.l.bf16 %v337
      %v402 = vunpack.c.l.bf16 %v338
      %v403 = vunpack.c.l.bf16 %v339
      %v404 = vunpack.c.l.bf16 %v340
      %v405 = vunpack.c.l.bf16 %v341
      %v406 = vunpack.c.l.bf16 %v342
      %v407 = vunpack.c.l.bf16 %v343
      %v408 = vunpack.c.l.bf16 %v344
      %v409 = vunpack.c.l.bf16 %v345
      %v410 = vunpack.c.l.bf16 %v346
      %v411 = vunpack.c.l.bf16 %v347
      %v412 = vunpack.c.l.bf16 %v348
      %v413 = vunpack.c.l.bf16 %v349
      %v414 = vunpack.c.l.bf16 %v350
      %v415 = vunpack.c.l.bf16 %v351
      %v416 = vunpack.c.l.bf16 %v352
      %v417 = vunpack.c.l.bf16 %v353
      %v418 = vunpack.c.l.bf16 %v354
      %v419 = vunpack.c.l.bf16 %v355
      %v420 = vunpack.c.l.bf16 %v356
      %v421 = vunpack.c.l.bf16 %v357
      %v422 = vunpack.c.l.bf16 %v358
      %v423 = vunpack.c.l.bf16 %v359
      %v424 = vunpack.c.l.bf16 %v360
      %v425 = vunpack.c.l.bf16 %v361
      %v426 = vunpack.c.l.bf16 %v362
      %v427 = vunpack.c.l.bf16 %v363
      %v428 = vunpack.c.l.bf16 %v364
      %v429 = vunpack.c.l.bf16 %v365
      %v430 = vunpack.c.l.bf16 %v366
      %v431 = vunpack.c.l.bf16 %v367
      %v432 = vunpack.c.l.bf16 %v368
      %v433 = vunpack.c.l.bf16 %v369
      %v434 = vunpack.c.l.bf16 %v370
      %v435 = vunpack.c.l.bf16 %v371
      %v436 = vunpack.c.l.bf16 %v372
      %v437 = vunpack.c.l.bf16 %v373
      %v438 = vunpack.c.l.bf16 %v374
      %v439 = vunpack.c.l.bf16 %v375
      %v440 = vunpack.c.l.bf16 %v376
      %v441 = vunpack.c.l.bf16 %v377
      %v442 = vunpack.c.l.bf16 %v378
      %v443 = vunpack.c.l.bf16 %v379
      %v444 = vunpack.c.l.bf16 %v380
      %v445 = vunpack.c.l.bf16 %v381
      %v446 = vunpack.c.l.bf16 %v382
      %v447 = vunpack.c.l.bf16 %v383
      %v448 = vunpack.c.l.bf16 %v384
      %v449 = vunpack.c.l.bf16 %v385
      %v450 = vunpack.c.l.bf16 %v386
      %v451 = vunpack.c.l.bf16 %v387
      %v452 = vunpack.c.l.bf16 %v388
      %v453 = vunpack.c.l.bf16 %v389
      %v454 = vld [vmem:[%s1] sm:$0x1]
      %v455 = vmul.f32 %v454, 0.0009765625
      %v456 = vld [vmem:[%s2] sm:$0x1]
      %v457 = vmul.f32 %v456, 0.0009765625
      %v458 = vmul.f32 %v455, %v455
      %v459 = vsub.f32 %v457, %v458
      %v460 = vld [vmem:[%s3] sm:$0x1]
      %v461 = vadd.f32 %v459, 1e-05
      %v462 = vrsqrt.pop %v461
      %v463 = vmul.f32 %v462, %v461
      %v464 = vmul.f32 %v463, %v462
      %v465 = vmul.f32 0.5, %v464
      %v466 = vsub.f32 1.5, %v465
      %v467 = vmul.f32 %v462, %v466
      %vm468 = vweird.f32 %v461
      %vm469 = vweird.f32 %v462
      %vm470 = vmor %vm468, %vm469
      %v471 = vsel %vm470, %v462, %v467
      %v472 = vmul.f32 %v460, %v471
      %v473 = vld [vmem:[%s4] sm:$0x1]
      %v474 = vmul.f32 %v455, %v472
      %v475 = vsub.f32 %v473, %v474
      %v477 = vperm.slane %v472, 0
      %v479 = vmul.f32 %v390, %v477
      %v480 = vmul.f32 %v391, %v477
      %v481 = vmul.f32 %v392, %v477
      %v482 = vmul.f32 %v393, %v477
      %v483 = vmul.f32 %v394, %v477
      %v484 = vmul.f32 %v395, %v477
      %v485 = vmul.f32 %v396, %v477
      %v486 = vmul.f32 %v397, %v477
      %v487 = vmul.f32 %v398, %v477
      %v488 = vmul.f32 %v399, %v477
      %v489 = vmul.f32 %v400, %v477
      %v490 = vmul.f32 %v401, %v477
      %v491 = vmul.f32 %v402, %v477
      %v492 = vmul.f32 %v403, %v477
      %v493 = vmul.f32 %v404, %v477
      %v494 = vmul.f32 %v405, %v477
      %v495 = vmul.f32 %v406, %v477
      %v496 = vmul.f32 %v407, %v477
      %v497 = vmul.f32 %v408, %v477
      %v498 = vmul.f32 %v409, %v477
      %v499 = vmul.f32 %v410, %v477
      %v500 = vmul.f32 %v411, %v477
      %v501 = vmul.f32 %v412, %v477
      %v502 = vmul.f32 %v413, %v477
      %v503 = vmul.f32 %v414, %v477
      %v504 = vmul.f32 %v415, %v477
      %v505 = vmul.f32 %v416, %v477
      %v506 = vmul.f32 %v417, %v477
      %v507 = vmul.f32 %v418, %v477
      %v508 = vmul.f32 %v419, %v477
      %v509 = vmul.f32 %v420, %v477
      %v510 = vmul.f32 %v421, %v477
      %v511 = vmul.f32 %v422, %v477
      %v512 = vmul.f32 %v423, %v477
      %v513 = vmul.f32 %v424, %v477
      %v514 = vmul.f32 %v425, %v477
      %v515 = vmul.f32 %v426, %v477
      %v516 = vmul.f32 %v427, %v477
      %v517 = vmul.f32 %v428, %v477
      %v518 = vmul.f32 %v429, %v477
      %v519 = vmul.f32 %v430, %v477
      %v520 = vmul.f32 %v431, %v477
      %v521 = vmul.f32 %v432, %v477
      %v522 = vmul.f32 %v433, %v477
      %v523 = vmul.f32 %v434, %v477
      %v524 = vmul.f32 %v435, %v477
      %v525 = vmul.f32 %v436, %v477
      %v526 = vmul.f32 %v437, %v477
      %v527 = vmul.f32 %v438, %v477
      %v528 = vmul.f32 %v439, %v477
      %v529 = vmul.f32 %v440, %v477
      %v530 = vmul.f32 %v441, %v477
      %v531 = vmul.f32 %v442, %v477
      %v532 = vmul.f32 %v443, %v477
      %v533 = vmul.f32 %v444, %v477
      %v534 = vmul.f32 %v445, %v477
      %v535 = vmul.f32 %v446, %v477
      %v536 = vmul.f32 %v447, %v477
      %v537 = vmul.f32 %v448, %v477
      %v538 = vmul.f32 %v449, %v477
      %v539 = vmul.f32 %v450, %v477
      %v540 = vmul.f32 %v451, %v477
      %v541 = vmul.f32 %v452, %v477
      %v542 = vmul.f32 %v453, %v477
      %v544 = vperm.slane %v475, 0
      %v546 = vadd.f32 %v479, %v544
      %v547 = vadd.f32 %v480, %v544
      %v548 = vadd.f32 %v481, %v544
      %v549 = vadd.f32 %v482, %v544
      %v550 = vadd.f32 %v483, %v544
      %v551 = vadd.f32 %v484, %v544
      %v552 = vadd.f32 %v485, %v544
      %v553 = vadd.f32 %v486, %v544
      %v554 = vadd.f32 %v487, %v544
      %v555 = vadd.f32 %v488, %v544
      %v556 = vadd.f32 %v489, %v544
      %v557 = vadd.f32 %v490, %v544
      %v558 = vadd.f32 %v491, %v544
      %v559 = vadd.f32 %v492, %v544
      %v560 = vadd.f32 %v493, %v544
      %v561 = vadd.f32 %v494, %v544
      %v562 = vadd.f32 %v495, %v544
      %v563 = vadd.f32 %v496, %v544
      %v564 = vadd.f32 %v497, %v544
      %v565 = vadd.f32 %v498, %v544
      %v566 = vadd.f32 %v499, %v544
      %v567 = vadd.f32 %v500, %v544
      %v568 = vadd.f32 %v501, %v544
      %v569 = vadd.f32 %v502, %v544
      %v570 = vadd.f32 %v503, %v544
      %v571 = vadd.f32 %v504, %v544
      %v572 = vadd.f32 %v505, %v544
      %v573 = vadd.f32 %v506, %v544
      %v574 = vadd.f32 %v507, %v544
      %v575 = vadd.f32 %v508, %v544
      %v576 = vadd.f32 %v509, %v544
      %v577 = vadd.f32 %v510, %v544
      %v578 = vadd.f32 %v511, %v544
      %v579 = vadd.f32 %v512, %v544
      %v580 = vadd.f32 %v513, %v544
      %v581 = vadd.f32 %v514, %v544
      %v582 = vadd.f32 %v515, %v544
      %v583 = vadd.f32 %v516, %v544
      %v584 = vadd.f32 %v517, %v544
      %v585 = vadd.f32 %v518, %v544
      %v586 = vadd.f32 %v519, %v544
      %v587 = vadd.f32 %v520, %v544
      %v588 = vadd.f32 %v521, %v544
      %v589 = vadd.f32 %v522, %v544
      %v590 = vadd.f32 %v523, %v544
      %v591 = vadd.f32 %v524, %v544
      %v592 = vadd.f32 %v525, %v544
      %v593 = vadd.f32 %v526, %v544
      %v594 = vadd.f32 %v527, %v544
      %v595 = vadd.f32 %v528, %v544
      %v596 = vadd.f32 %v529, %v544
      %v597 = vadd.f32 %v530, %v544
      %v598 = vadd.f32 %v531, %v544
      %v599 = vadd.f32 %v532, %v544
      %v600 = vadd.f32 %v533, %v544
      %v601 = vadd.f32 %v534, %v544
      %v602 = vadd.f32 %v535, %v544
      %v603 = vadd.f32 %v536, %v544
      %v604 = vadd.f32 %v537, %v544
      %v605 = vadd.f32 %v538, %v544
      %v606 = vadd.f32 %v539, %v544
      %v607 = vadd.f32 %v540, %v544
      %v608 = vadd.f32 %v541, %v544
      %v609 = vadd.f32 %v542, %v544
      %v610 = vmax.f32 %v546, 0.0
      %v611 = vmax.f32 %v547, 0.0
      %v612 = vmax.f32 %v548, 0.0
      %v613 = vmax.f32 %v549, 0.0
      %v614 = vmax.f32 %v550, 0.0
      %v615 = vmax.f32 %v551, 0.0
      %v616 = vmax.f32 %v552, 0.0
      %v617 = vmax.f32 %v553, 0.0
      %v618 = vmax.f32 %v554, 0.0
      %v619 = vmax.f32 %v555, 0.0
      %v620 = vmax.f32 %v556, 0.0
      %v621 = vmax.f32 %v557, 0.0
      %v622 = vmax.f32 %v558, 0.0
      %v623 = vmax.f32 %v559, 0.0
      %v624 = vmax.f32 %v560, 0.0
      %v625 = vmax.f32 %v561, 0.0
      %v626 = vmax.f32 %v562, 0.0
      %v627 = vmax.f32 %v563, 0.0
      %v628 = vmax.f32 %v564, 0.0
      %v629 = vmax.f32 %v565, 0.0
      %v630 = vmax.f32 %v566, 0.0
      %v631 = vmax.f32 %v567, 0.0
      %v632 = vmax.f32 %v568, 0.0
      %v633 = vmax.f32 %v569, 0.0
      %v634 = vmax.f32 %v570, 0.0
      %v635 = vmax.f32 %v571, 0.0
      %v636 = vmax.f32 %v572, 0.0
      %v637 = vmax.f32 %v573, 0.0
      %v638 = vmax.f32 %v574, 0.0
      %v639 = vmax.f32 %v575, 0.0
      %v640 = vmax.f32 %v576, 0.0
      %v641 = vmax.f32 %v577, 0.0
      %v642 = vmax.f32 %v578, 0.0
      %v643 = vmax.f32 %v579, 0.0
      %v644 = vmax.f32 %v580, 0.0
      %v645 = vmax.f32 %v581, 0.0
      %v646 = vmax.f32 %v582, 0.0
      %v647 = vmax.f32 %v583, 0.0
      %v648 = vmax.f32 %v584, 0.0
      %v649 = vmax.f32 %v585, 0.0
      %v650 = vmax.f32 %v586, 0.0
      %v651 = vmax.f32 %v587, 0.0
      %v652 = vmax.f32 %v588, 0.0
      %v653 = vmax.f32 %v589, 0.0
      %v654 = vmax.f32 %v590, 0.0
      %v655 = vmax.f32 %v591, 0.0
      %v656 = vmax.f32 %v592, 0.0
      %v657 = vmax.f32 %v593, 0.0
      %v658 = vmax.f32 %v594, 0.0
      %v659 = vmax.f32 %v595, 0.0
      %v660 = vmax.f32 %v596, 0.0
      %v661 = vmax.f32 %v597, 0.0
      %v662 = vmax.f32 %v598, 0.0
      %v663 = vmax.f32 %v599, 0.0
      %v664 = vmax.f32 %v600, 0.0
      %v665 = vmax.f32 %v601, 0.0
      %v666 = vmax.f32 %v602, 0.0
      %v667 = vmax.f32 %v603, 0.0
      %v668 = vmax.f32 %v604, 0.0
      %v669 = vmax.f32 %v605, 0.0
      %v670 = vmax.f32 %v606, 0.0
      %v671 = vmax.f32 %v607, 0.0
      %v672 = vmax.f32 %v608, 0.0
      %v673 = vmax.f32 %v609, 0.0
      %v674 = vpack.c.bf16 %v611, %v610
      %v675 = vpack.c.bf16 %v613, %v612
      %v676 = vpack.c.bf16 %v615, %v614
      %v677 = vpack.c.bf16 %v617, %v616
      %v678 = vpack.c.bf16 %v619, %v618
      %v679 = vpack.c.bf16 %v621, %v620
      %v680 = vpack.c.bf16 %v623, %v622
      %v681 = vpack.c.bf16 %v625, %v624
      %v682 = vpack.c.bf16 %v627, %v626
      %v683 = vpack.c.bf16 %v629, %v628
      %v684 = vpack.c.bf16 %v631, %v630
      %v685 = vpack.c.bf16 %v633, %v632
      %v686 = vpack.c.bf16 %v635, %v634
      %v687 = vpack.c.bf16 %v637, %v636
      %v688 = vpack.c.bf16 %v639, %v638
      %v689 = vpack.c.bf16 %v641, %v640
      %v690 = vpack.c.bf16 %v643, %v642
      %v691 = vpack.c.bf16 %v645, %v644
      %v692 = vpack.c.bf16 %v647, %v646
      %v693 = vpack.c.bf16 %v649, %v648
      %v694 = vpack.c.bf16 %v651, %v650
      %v695 = vpack.c.bf16 %v653, %v652
      %v696 = vpack.c.bf16 %v655, %v654
      %v697 = vpack.c.bf16 %v657, %v656
      %v698 = vpack.c.bf16 %v659, %v658
      %v699 = vpack.c.bf16 %v661, %v660
      %v700 = vpack.c.bf16 %v663, %v662
      %v701 = vpack.c.bf16 %v665, %v664
      %v702 = vpack.c.bf16 %v667, %v666
      %v703 = vpack.c.bf16 %v669, %v668
      %v704 = vpack.c.bf16 %v671, %v670
      %v705 = vpack.c.bf16 %v673, %v672
      %v706 = vld [vmem:[%s5] sm:$0xf]
      %v707 = vld [vmem:[%s5 + $0x4] sm:$0xf]
      %v708 = vld [vmem:[%s5 + $0x8] sm:$0xf]
      %v709 = vld [vmem:[%s5 + $0xc] sm:$0xf]
      %v710 = vld [vmem:[%s5 + $0x10] sm:$0xf]
      %v711 = vld [vmem:[%s5 + $0x14] sm:$0xf]
      %v712 = vld [vmem:[%s5 + $0x18] sm:$0xf]
      %v713 = vld [vmem:[%s5 + $0x1c] sm:$0xf]
      %v714 = vld [vmem:[%s5 + $0x20] sm:$0xf]
      %v715 = vld [vmem:[%s5 + $0x24] sm:$0xf]
      %v716 = vld [vmem:[%s5 + $0x28] sm:$0xf]
      %v717 = vld [vmem:[%s5 + $0x2c] sm:$0xf]
      %v718 = vld [vmem:[%s5 + $0x30] sm:$0xf]
      %v719 = vld [vmem:[%s5 + $0x34] sm:$0xf]
      %v720 = vld [vmem:[%s5 + $0x38] sm:$0xf]
      %v721 = vld [vmem:[%s5 + $0x3c] sm:$0xf]
      %v738 = vunpack.c.l.b16 %v706
      %v739 = vunpack.c.l.b16 %v707
      %v740 = vunpack.c.l.b16 %v708
      %v741 = vunpack.c.l.b16 %v709
      %v742 = vunpack.c.l.b16 %v710
      %v743 = vunpack.c.l.b16 %v711
      %v744 = vunpack.c.l.b16 %v712
      %v745 = vunpack.c.l.b16 %v713
      %v746 = vunpack.c.l.b16 %v714
      %v747 = vunpack.c.l.b16 %v715
      %v748 = vunpack.c.l.b16 %v716
      %v749 = vunpack.c.l.b16 %v717
      %v750 = vunpack.c.l.b16 %v718
      %v751 = vunpack.c.l.b16 %v719
      %v752 = vunpack.c.l.b16 %v720
      %v753 = vunpack.c.l.b16 %v721
      %v754 = vpack.c.b16 %v739, %v738
      %v755 = vpack.c.b16 %v741, %v740
      %v756 = vpack.c.b16 %v743, %v742
      %v757 = vpack.c.b16 %v745, %v744
      %v758 = vpack.c.b16 %v747, %v746
      %v759 = vpack.c.b16 %v749, %v748
      %v760 = vpack.c.b16 %v751, %v750
      %v761 = vpack.c.b16 %v753, %v752
      %770 = vmatpush.bf16.msra.mxu0 %v761
      %771 = vmatpush.bf16.msra.mxu0 %v760
      %772 = vmatpush.bf16.msra.mxu0 %v759
      %773 = vmatpush.bf16.msra.mxu0 %v758
      %774 = vmatpush.bf16.msra.mxu0 %v757
      %775 = vmatpush.bf16.msra.mxu0 %v756
      %776 = vmatpush.bf16.msra.mxu0 %v755
      %777 = vmatpush.bf16.msra.mxu0 %v754
      %778 = vmatmul.bf16.gmra.mxu0 %v674
      %v779 = vpop.f32.mrf.mxu0
      %v780 = vadd.f32 0.0, %v779
      %v781 = vpop.f32.mrf.mxu0
      %v782 = vadd.f32 0.0, %v781
      %783 = vmatmul.bf16.gmra.mxu0 %v675
      %v784 = vpop.f32.mrf.mxu0
      %v785 = vadd.f32 0.0, %v784
      %v786 = vpop.f32.mrf.mxu0
      %v787 = vadd.f32 0.0, %v786
      %788 = vmatmul.bf16.gmra.mxu0 %v676
      %v789 = vpop.f32.mrf.mxu0
      %v790 = vadd.f32 0.0, %v789
      %v791 = vpop.f32.mrf.mxu0
      %v792 = vadd.f32 0.0, %v791
      %793 = vmatmul.bf16.gmra.mxu0 %v677
      %v794 = vpop.f32.mrf.mxu0
      %v795 = vadd.f32 0.0, %v794
      %v796 = vpop.f32.mrf.mxu0
      %v797 = vadd.f32 0.0, %v796
      %798 = vmatmul.bf16.gmra.mxu0 %v678
      %v799 = vpop.f32.mrf.mxu0
      %v800 = vadd.f32 0.0, %v799
      %v801 = vpop.f32.mrf.mxu0
      %v802 = vadd.f32 0.0, %v801
      %803 = vmatmul.bf16.gmra.mxu0 %v679
      %v804 = vpop.f32.mrf.mxu0
      %v805 = vadd.f32 0.0, %v804
      %v806 = vpop.f32.mrf.mxu0
      %v807 = vadd.f32 0.0, %v806
      %808 = vmatmul.bf16.gmra.mxu0 %v680
      %v809 = vpop.f32.mrf.mxu0
      %v810 = vadd.f32 0.0, %v809
      %v811 = vpop.f32.mrf.mxu0
      %v812 = vadd.f32 0.0, %v811
      %813 = vmatmul.bf16.gmra.mxu0 %v681
      %v814 = vpop.f32.mrf.mxu0
      %v815 = vadd.f32 0.0, %v814
      %v816 = vpop.f32.mrf.mxu0
      %v817 = vadd.f32 0.0, %v816
      %818 = vmatmul.bf16.gmra.mxu0 %v682
      %v819 = vpop.f32.mrf.mxu0
      %v820 = vadd.f32 0.0, %v819
      %v821 = vpop.f32.mrf.mxu0
      %v822 = vadd.f32 0.0, %v821
      %823 = vmatmul.bf16.gmra.mxu0 %v683
      %v824 = vpop.f32.mrf.mxu0
      %v825 = vadd.f32 0.0, %v824
      %v826 = vpop.f32.mrf.mxu0
      %v827 = vadd.f32 0.0, %v826
      %828 = vmatmul.bf16.gmra.mxu0 %v684
      %v829 = vpop.f32.mrf.mxu0
      %v830 = vadd.f32 0.0, %v829
      %v831 = vpop.f32.mrf.mxu0
      %v832 = vadd.f32 0.0, %v831
      %833 = vmatmul.bf16.gmra.mxu0 %v685
      %v834 = vpop.f32.mrf.mxu0
      %v835 = vadd.f32 0.0, %v834
      %v836 = vpop.f32.mrf.mxu0
      %v837 = vadd.f32 0.0, %v836
      %838 = vmatmul.bf16.gmra.mxu0 %v686
      %v839 = vpop.f32.mrf.mxu0
      %v840 = vadd.f32 0.0, %v839
      %v841 = vpop.f32.mrf.mxu0
      %v842 = vadd.f32 0.0, %v841
      %843 = vmatmul.bf16.gmra.mxu0 %v687
      %v844 = vpop.f32.mrf.mxu0
      %v845 = vadd.f32 0.0, %v844
      %v846 = vpop.f32.mrf.mxu0
      %v847 = vadd.f32 0.0, %v846
      %848 = vmatmul.bf16.gmra.mxu0 %v688
      %v849 = vpop.f32.mrf.mxu0
      %v850 = vadd.f32 0.0, %v849
      %v851 = vpop.f32.mrf.mxu0
      %v852 = vadd.f32 0.0, %v851
      %853 = vmatmul.bf16.gmra.mxu0 %v689
      %v854 = vpop.f32.mrf.mxu0
      %v855 = vadd.f32 0.0, %v854
      %v856 = vpop.f32.mrf.mxu0
      %v857 = vadd.f32 0.0, %v856
      %858 = vmatmul.bf16.gmra.mxu0 %v690
      %v859 = vpop.f32.mrf.mxu0
      %v860 = vadd.f32 0.0, %v859
      %v861 = vpop.f32.mrf.mxu0
      %v862 = vadd.f32 0.0, %v861
      %863 = vmatmul.bf16.gmra.mxu0 %v691
      %v864 = vpop.f32.mrf.mxu0
      %v865 = vadd.f32 0.0, %v864
      %v866 = vpop.f32.mrf.mxu0
      %v867 = vadd.f32 0.0, %v866
      %868 = vmatmul.bf16.gmra.mxu0 %v692
      %v869 = vpop.f32.mrf.mxu0
      %v870 = vadd.f32 0.0, %v869
      %v871 = vpop.f32.mrf.mxu0
      %v872 = vadd.f32 0.0, %v871
      %873 = vmatmul.bf16.gmra.mxu0 %v693
      %v874 = vpop.f32.mrf.mxu0
      %v875 = vadd.f32 0.0, %v874
      %v876 = vpop.f32.mrf.mxu0
      %v877 = vadd.f32 0.0, %v876
      %878 = vmatmul.bf16.gmra.mxu0 %v694
      %v879 = vpop.f32.mrf.mxu0
      %v880 = vadd.f32 0.0, %v879
      %v881 = vpop.f32.mrf.mxu0
      %v882 = vadd.f32 0.0, %v881
      %883 = vmatmul.bf16.gmra.mxu0 %v695
      %v884 = vpop.f32.mrf.mxu0
      %v885 = vadd.f32 0.0, %v884
      %v886 = vpop.f32.mrf.mxu0
      %v887 = vadd.f32 0.0, %v886
      %888 = vmatmul.bf16.gmra.mxu0 %v696
      %v889 = vpop.f32.mrf.mxu0
      %v890 = vadd.f32 0.0, %v889
      %v891 = vpop.f32.mrf.mxu0
      %v892 = vadd.f32 0.0, %v891
      %893 = vmatmul.bf16.gmra.mxu0 %v697
      %v894 = vpop.f32.mrf.mxu0
      %v895 = vadd.f32 0.0, %v894
      %v896 = vpop.f32.mrf.mxu0
      %v897 = vadd.f32 0.0, %v896
      %898 = vmatmul.bf16.gmra.mxu0 %v698
      %v899 = vpop.f32.mrf.mxu0
      %v900 = vadd.f32 0.0, %v899
      %v901 = vpop.f32.mrf.mxu0
      %v902 = vadd.f32 0.0, %v901
      %903 = vmatmul.bf16.gmra.mxu0 %v699
      %v904 = vpop.f32.mrf.mxu0
      %v905 = vadd.f32 0.0, %v904
      %v906 = vpop.f32.mrf.mxu0
      %v907 = vadd.f32 0.0, %v906
      %908 = vmatmul.bf16.gmra.mxu0 %v700
      %v909 = vpop.f32.mrf.mxu0
      %v910 = vadd.f32 0.0, %v909
      %v911 = vpop.f32.mrf.mxu0
      %v912 = vadd.f32 0.0, %v911
      %913 = vmatmul.bf16.gmra.mxu0 %v701
      %v914 = vpop.f32.mrf.mxu0
      %v915 = vadd.f32 0.0, %v914
      %v916 = vpop.f32.mrf.mxu0
      %v917 = vadd.f32 0.0, %v916
      %918 = vmatmul.bf16.gmra.mxu0 %v702
      %v919 = vpop.f32.mrf.mxu0
      %v920 = vadd.f32 0.0, %v919
      %v921 = vpop.f32.mrf.mxu0
      %v922 = vadd.f32 0.0, %v921
      %923 = vmatmul.bf16.gmra.mxu0 %v703
      %v924 = vpop.f32.mrf.mxu0
      %v925 = vadd.f32 0.0, %v924
      %v926 = vpop.f32.mrf.mxu0
      %v927 = vadd.f32 0.0, %v926
      %928 = vmatmul.bf16.gmra.mxu0 %v704
      %v929 = vpop.f32.mrf.mxu0
      %v930 = vadd.f32 0.0, %v929
      %v931 = vpop.f32.mrf.mxu0
      %v932 = vadd.f32 0.0, %v931
      %933 = vmatmul.bf16.gmra.mxu0 %v705
      %v934 = vpop.f32.mrf.mxu0
      %v935 = vadd.f32 0.0, %v934
      %v936 = vpop.f32.mrf.mxu0
      %v937 = vadd.f32 0.0, %v936
      %938 = vdwg.mxu0
      %v939 = vpack.c.bf16 %v780, %v780
      %v940 = vpack.c.bf16 %v782, %v782
      %v941 = vpack.c.bf16 %v785, %v785
      %v942 = vpack.c.bf16 %v787, %v787
      %v943 = vpack.c.bf16 %v790, %v790
      %v944 = vpack.c.bf16 %v792, %v792
      %v945 = vpack.c.bf16 %v795, %v795
      %v946 = vpack.c.bf16 %v797, %v797
      %v947 = vpack.c.bf16 %v800, %v800
      %v948 = vpack.c.bf16 %v802, %v802
      %v949 = vpack.c.bf16 %v805, %v805
      %v950 = vpack.c.bf16 %v807, %v807
      %v951 = vpack.c.bf16 %v810, %v810
      %v952 = vpack.c.bf16 %v812, %v812
      %v953 = vpack.c.bf16 %v815, %v815
      %v954 = vpack.c.bf16 %v817, %v817
      %v955 = vpack.c.bf16 %v820, %v820
      %v956 = vpack.c.bf16 %v822, %v822
      %v957 = vpack.c.bf16 %v825, %v825
      %v958 = vpack.c.bf16 %v827, %v827
      %v959 = vpack.c.bf16 %v830, %v830
      %v960 = vpack.c.bf16 %v832, %v832
      %v961 = vpack.c.bf16 %v835, %v835
      %v962 = vpack.c.bf16 %v837, %v837
      %v963 = vpack.c.bf16 %v840, %v840
      %v964 = vpack.c.bf16 %v842, %v842
      %v965 = vpack.c.bf16 %v845, %v845
      %v966 = vpack.c.bf16 %v847, %v847
      %v967 = vpack.c.bf16 %v850, %v850
      %v968 = vpack.c.bf16 %v852, %v852
      %v969 = vpack.c.bf16 %v855, %v855
      %v970 = vpack.c.bf16 %v857, %v857
      %v971 = vpack.c.bf16 %v860, %v860
      %v972 = vpack.c.bf16 %v862, %v862
      %v973 = vpack.c.bf16 %v865, %v865
      %v974 = vpack.c.bf16 %v867, %v867
      %v975 = vpack.c.bf16 %v870, %v870
      %v976 = vpack.c.bf16 %v872, %v872
      %v977 = vpack.c.bf16 %v875, %v875
      %v978 = vpack.c.bf16 %v877, %v877
      %v979 = vpack.c.bf16 %v880, %v880
      %v980 = vpack.c.bf16 %v882, %v882
      %v981 = vpack.c.bf16 %v885, %v885
      %v982 = vpack.c.bf16 %v887, %v887
      %v983 = vpack.c.bf16 %v890, %v890
      %v984 = vpack.c.bf16 %v892, %v892
      %v985 = vpack.c.bf16 %v895, %v895
      %v986 = vpack.c.bf16 %v897, %v897
      %v987 = vpack.c.bf16 %v900, %v900
      %v988 = vpack.c.bf16 %v902, %v902
      %v989 = vpack.c.bf16 %v905, %v905
      %v990 = vpack.c.bf16 %v907, %v907
      %v991 = vpack.c.bf16 %v910, %v910
      %v992 = vpack.c.bf16 %v912, %v912
      %v993 = vpack.c.bf16 %v915, %v915
      %v994 = vpack.c.bf16 %v917, %v917
      %v995 = vpack.c.bf16 %v920, %v920
      %v996 = vpack.c.bf16 %v922, %v922
      %v997 = vpack.c.bf16 %v925, %v925
      %v998 = vpack.c.bf16 %v927, %v927
      %v999 = vpack.c.bf16 %v930, %v930
      %v1000 = vpack.c.bf16 %v932, %v932
      %v1001 = vpack.c.bf16 %v935, %v935
      %v1002 = vpack.c.bf16 %v937, %v937
      %1003 = vst [vmem:[%s318] sm:$0xf] %v939
      %1004 = vst [vmem:[%s318 + $0x4] sm:$0xf] %v940
      %1005 = vst [vmem:[%s318 + $0x8] sm:$0xf] %v941
      %1006 = vst [vmem:[%s318 + $0xc] sm:$0xf] %v942
      %1007 = vst [vmem:[%s318 + $0x10] sm:$0xf] %v943
      %1008 = vst [vmem:[%s318 + $0x14] sm:$0xf] %v944
      %1009 = vst [vmem:[%s318 + $0x18] sm:$0xf] %v945
      %1010 = vst [vmem:[%s318 + $0x1c] sm:$0xf] %v946
      %1011 = vst [vmem:[%s318 + $0x20] sm:$0xf] %v947
      %1012 = vst [vmem:[%s318 + $0x24] sm:$0xf] %v948
      %1013 = vst [vmem:[%s318 + $0x28] sm:$0xf] %v949
      %1014 = vst [vmem:[%s318 + $0x2c] sm:$0xf] %v950
      %1015 = vst [vmem:[%s318 + $0x30] sm:$0xf] %v951
      %1016 = vst [vmem:[%s318 + $0x34] sm:$0xf] %v952
      %1017 = vst [vmem:[%s318 + $0x38] sm:$0xf] %v953
      %1018 = vst [vmem:[%s318 + $0x3c] sm:$0xf] %v954
      %1019 = vst [vmem:[%s318 + $0x40] sm:$0xf] %v955
      %1020 = vst [vmem:[%s318 + $0x44] sm:$0xf] %v956
      %1021 = vst [vmem:[%s318 + $0x48] sm:$0xf] %v957
      %1022 = vst [vmem:[%s318 + $0x4c] sm:$0xf] %v958
      %1023 = vst [vmem:[%s318 + $0x50] sm:$0xf] %v959
      %1024 = vst [vmem:[%s318 + $0x54] sm:$0xf] %v960
      %1025 = vst [vmem:[%s318 + $0x58] sm:$0xf] %v961
      %1026 = vst [vmem:[%s318 + $0x5c] sm:$0xf] %v962
      %1027 = vst [vmem:[%s318 + $0x60] sm:$0xf] %v963
      %1028 = vst [vmem:[%s318 + $0x64] sm:$0xf] %v964
      %1029 = vst [vmem:[%s318 + $0x68] sm:$0xf] %v965
      %1030 = vst [vmem:[%s318 + $0x6c] sm:$0xf] %v966
      %1031 = vst [vmem:[%s318 + $0x70] sm:$0xf] %v967
      %1032 = vst [vmem:[%s318 + $0x74] sm:$0xf] %v968
      %1033 = vst [vmem:[%s318 + $0x78] sm:$0xf] %v969
      %1034 = vst [vmem:[%s318 + $0x7c] sm:$0xf] %v970
      %1035 = vst [vmem:[%s318 + $0x80] sm:$0xf] %v971
      %1036 = vst [vmem:[%s318 + $0x84] sm:$0xf] %v972
      %1037 = vst [vmem:[%s318 + $0x88] sm:$0xf] %v973
      %1038 = vst [vmem:[%s318 + $0x8c] sm:$0xf] %v974
      %1039 = vst [vmem:[%s318 + $0x90] sm:$0xf] %v975
      %1040 = vst [vmem:[%s318 + $0x94] sm:$0xf] %v976
      %1041 = vst [vmem:[%s318 + $0x98] sm:$0xf] %v977
      %1042 = vst [vmem:[%s318 + $0x9c] sm:$0xf] %v978
      %1043 = vst [vmem:[%s318 + $0xa0] sm:$0xf] %v979
      %1044 = vst [vmem:[%s318 + $0xa4] sm:$0xf] %v980
      %1045 = vst [vmem:[%s318 + $0xa8] sm:$0xf] %v981
      %1046 = vst [vmem:[%s318 + $0xac] sm:$0xf] %v982
      %1047 = vst [vmem:[%s318 + $0xb0] sm:$0xf] %v983
      %1048 = vst [vmem:[%s318 + $0xb4] sm:$0xf] %v984
      %1049 = vst [vmem:[%s318 + $0xb8] sm:$0xf] %v985
      %1050 = vst [vmem:[%s318 + $0xbc] sm:$0xf] %v986
      %1051 = vst [vmem:[%s318 + $0xc0] sm:$0xf] %v987
      %1052 = vst [vmem:[%s318 + $0xc4] sm:$0xf] %v988
      %1053 = vst [vmem:[%s318 + $0xc8] sm:$0xf] %v989
      %1054 = vst [vmem:[%s318 + $0xcc] sm:$0xf] %v990
      %1055 = vst [vmem:[%s318 + $0xd0] sm:$0xf] %v991
      %1056 = vst [vmem:[%s318 + $0xd4] sm:$0xf] %v992
      %1057 = vst [vmem:[%s318 + $0xd8] sm:$0xf] %v993
      %1058 = vst [vmem:[%s318 + $0xdc] sm:$0xf] %v994
      %1059 = vst [vmem:[%s318 + $0xe0] sm:$0xf] %v995
      %1060 = vst [vmem:[%s318 + $0xe4] sm:$0xf] %v996
      %1061 = vst [vmem:[%s318 + $0xe8] sm:$0xf] %v997
      %1062 = vst [vmem:[%s318 + $0xec] sm:$0xf] %v998
      %1063 = vst [vmem:[%s318 + $0xf0] sm:$0xf] %v999
      %1064 = vst [vmem:[%s318 + $0xf4] sm:$0xf] %v1000
      %1065 = vst [vmem:[%s318 + $0xf8] sm:$0xf] %v1001
      %1066 = vst [vmem:[%s318 + $0xfc] sm:$0xf] %v1002
      %v1067 = vadd.f32 %v780, %v782
      %v1068 = vadd.f32 %v1067, %v785
      %v1069 = vadd.f32 %v1068, %v787
      %v1070 = vadd.f32 %v1069, %v790
      %v1071 = vadd.f32 %v1070, %v792
      %v1072 = vadd.f32 %v1071, %v795
      %v1073 = vadd.f32 %v1072, %v797
      %v1074 = vadd.f32 %v1073, %v800
      %v1075 = vadd.f32 %v1074, %v802
      %v1076 = vadd.f32 %v1075, %v805
      %v1077 = vadd.f32 %v1076, %v807
      %v1078 = vadd.f32 %v1077, %v810
      %v1079 = vadd.f32 %v1078, %v812
      %v1080 = vadd.f32 %v1079, %v815
      %v1081 = vadd.f32 %v1080, %v817
      %v1082 = vadd.f32 %v1081, %v820
      %v1083 = vadd.f32 %v1082, %v822
      %v1084 = vadd.f32 %v1083, %v825
      %v1085 = vadd.f32 %v1084, %v827
      %v1086 = vadd.f32 %v1085, %v830
      %v1087 = vadd.f32 %v1086, %v832
      %v1088 = vadd.f32 %v1087, %v835
      %v1089 = vadd.f32 %v1088, %v837
      %v1090 = vadd.f32 %v1089, %v840
      %v1091 = vadd.f32 %v1090, %v842
      %v1092 = vadd.f32 %v1091, %v845
      %v1093 = vadd.f32 %v1092, %v847
      %v1094 = vadd.f32 %v1093, %v850
      %v1095 = vadd.f32 %v1094, %v852
      %v1096 = vadd.f32 %v1095, %v855
      %v1097 = vadd.f32 %v1096, %v857
      %v1098 = vadd.f32 %v1097, %v860
      %v1099 = vadd.f32 %v1098, %v862
      %v1100 = vadd.f32 %v1099, %v865
      %v1101 = vadd.f32 %v1100, %v867
      %v1102 = vadd.f32 %v1101, %v870
      %v1103 = vadd.f32 %v1102, %v872
      %v1104 = vadd.f32 %v1103, %v875
      %v1105 = vadd.f32 %v1104, %v877
      %v1106 = vadd.f32 %v1105, %v880
      %v1107 = vadd.f32 %v1106, %v882
      %v1108 = vadd.f32 %v1107, %v885
      %v1109 = vadd.f32 %v1108, %v887
      %v1110 = vadd.f32 %v1109, %v890
      %v1111 = vadd.f32 %v1110, %v892
      %v1112 = vadd.f32 %v1111, %v895
      %v1113 = vadd.f32 %v1112, %v897
      %v1114 = vadd.f32 %v1113, %v900
      %v1115 = vadd.f32 %v1114, %v902
      %v1116 = vadd.f32 %v1115, %v905
      %v1117 = vadd.f32 %v1116, %v907
      %v1118 = vadd.f32 %v1117, %v910
      %v1119 = vadd.f32 %v1118, %v912
      %v1120 = vadd.f32 %v1119, %v915
      %v1121 = vadd.f32 %v1120, %v917
      %v1122 = vadd.f32 %v1121, %v920
      %v1123 = vadd.f32 %v1122, %v922
      %v1124 = vadd.f32 %v1123, %v925
      %v1125 = vadd.f32 %v1124, %v927
      %v1126 = vadd.f32 %v1125, %v930
      %v1127 = vadd.f32 %v1126, %v932
      %v1128 = vadd.f32 %v1127, %v935
      %v1129 = vadd.f32 %v1128, %v937
      %v1130 = vrot.slane %v1129, 4
      %v1131 = vadd.f32 %v1129, %v1130
      %v1132 = vrot.slane %v1131, 2
      %v1133 = vadd.f32 %v1131, %v1132
      %v1134 = vrot.slane %v1133, 1
      %v1135 = vadd.f32 %v1133, %v1134
      %1136 = vst [vmem:[%s322] sm:$0x1] %v1135
      %v1137 = vmul.f32 %v780, %v780
      %v1138 = vmul.f32 %v782, %v782
      %v1139 = vmul.f32 %v785, %v785
      %v1140 = vmul.f32 %v787, %v787
      %v1141 = vmul.f32 %v790, %v790
      %v1142 = vmul.f32 %v792, %v792
      %v1143 = vmul.f32 %v795, %v795
      %v1144 = vmul.f32 %v797, %v797
      %v1145 = vmul.f32 %v800, %v800
      %v1146 = vmul.f32 %v802, %v802
      %v1147 = vmul.f32 %v805, %v805
      %v1148 = vmul.f32 %v807, %v807
      %v1149 = vmul.f32 %v810, %v810
      %v1150 = vmul.f32 %v812, %v812
      %v1151 = vmul.f32 %v815, %v815
      %v1152 = vmul.f32 %v817, %v817
      %v1153 = vmul.f32 %v820, %v820
      %v1154 = vmul.f32 %v822, %v822
      %v1155 = vmul.f32 %v825, %v825
      %v1156 = vmul.f32 %v827, %v827
      %v1157 = vmul.f32 %v830, %v830
      %v1158 = vmul.f32 %v832, %v832
      %v1159 = vmul.f32 %v835, %v835
      %v1160 = vmul.f32 %v837, %v837
      %v1161 = vmul.f32 %v840, %v840
      %v1162 = vmul.f32 %v842, %v842
      %v1163 = vmul.f32 %v845, %v845
      %v1164 = vmul.f32 %v847, %v847
      %v1165 = vmul.f32 %v850, %v850
      %v1166 = vmul.f32 %v852, %v852
      %v1167 = vmul.f32 %v855, %v855
      %v1168 = vmul.f32 %v857, %v857
      %v1169 = vmul.f32 %v860, %v860
      %v1170 = vmul.f32 %v862, %v862
      %v1171 = vmul.f32 %v865, %v865
      %v1172 = vmul.f32 %v867, %v867
      %v1173 = vmul.f32 %v870, %v870
      %v1174 = vmul.f32 %v872, %v872
      %v1175 = vmul.f32 %v875, %v875
      %v1176 = vmul.f32 %v877, %v877
      %v1177 = vmul.f32 %v880, %v880
      %v1178 = vmul.f32 %v882, %v882
      %v1179 = vmul.f32 %v885, %v885
      %v1180 = vmul.f32 %v887, %v887
      %v1181 = vmul.f32 %v890, %v890
      %v1182 = vmul.f32 %v892, %v892
      %v1183 = vmul.f32 %v895, %v895
      %v1184 = vmul.f32 %v897, %v897
      %v1185 = vmul.f32 %v900, %v900
      %v1186 = vmul.f32 %v902, %v902
      %v1187 = vmul.f32 %v905, %v905
      %v1188 = vmul.f32 %v907, %v907
      %v1189 = vmul.f32 %v910, %v910
      %v1190 = vmul.f32 %v912, %v912
      %v1191 = vmul.f32 %v915, %v915
      %v1192 = vmul.f32 %v917, %v917
      %v1193 = vmul.f32 %v920, %v920
      %v1194 = vmul.f32 %v922, %v922
      %v1195 = vmul.f32 %v925, %v925
      %v1196 = vmul.f32 %v927, %v927
      %v1197 = vmul.f32 %v930, %v930
      %v1198 = vmul.f32 %v932, %v932
      %v1199 = vmul.f32 %v935, %v935
      %v1200 = vmul.f32 %v937, %v937
      %v1201 = vadd.f32 %v1137, %v1138
      %v1202 = vadd.f32 %v1201, %v1139
      %v1203 = vadd.f32 %v1202, %v1140
      %v1204 = vadd.f32 %v1203, %v1141
      %v1205 = vadd.f32 %v1204, %v1142
      %v1206 = vadd.f32 %v1205, %v1143
      %v1207 = vadd.f32 %v1206, %v1144
      %v1208 = vadd.f32 %v1207, %v1145
      %v1209 = vadd.f32 %v1208, %v1146
      %v1210 = vadd.f32 %v1209, %v1147
      %v1211 = vadd.f32 %v1210, %v1148
      %v1212 = vadd.f32 %v1211, %v1149
      %v1213 = vadd.f32 %v1212, %v1150
      %v1214 = vadd.f32 %v1213, %v1151
      %v1215 = vadd.f32 %v1214, %v1152
      %v1216 = vadd.f32 %v1215, %v1153
      %v1217 = vadd.f32 %v1216, %v1154
      %v1218 = vadd.f32 %v1217, %v1155
      %v1219 = vadd.f32 %v1218, %v1156
      %v1220 = vadd.f32 %v1219, %v1157
      %v1221 = vadd.f32 %v1220, %v1158
      %v1222 = vadd.f32 %v1221, %v1159
      %v1223 = vadd.f32 %v1222, %v1160
      %v1224 = vadd.f32 %v1223, %v1161
      %v1225 = vadd.f32 %v1224, %v1162
      %v1226 = vadd.f32 %v1225, %v1163
      %v1227 = vadd.f32 %v1226, %v1164
      %v1228 = vadd.f32 %v1227, %v1165
      %v1229 = vadd.f32 %v1228, %v1166
      %v1230 = vadd.f32 %v1229, %v1167
      %v1231 = vadd.f32 %v1230, %v1168
      %v1232 = vadd.f32 %v1231, %v1169
      %v1233 = vadd.f32 %v1232, %v1170
      %v1234 = vadd.f32 %v1233, %v1171
      %v1235 = vadd.f32 %v1234, %v1172
      %v1236 = vadd.f32 %v1235, %v1173
      %v1237 = vadd.f32 %v1236, %v1174
      %v1238 = vadd.f32 %v1237, %v1175
      %v1239 = vadd.f32 %v1238, %v1176
      %v1240 = vadd.f32 %v1239, %v1177
      %v1241 = vadd.f32 %v1240, %v1178
      %v1242 = vadd.f32 %v1241, %v1179
      %v1243 = vadd.f32 %v1242, %v1180
      %v1244 = vadd.f32 %v1243, %v1181
      %v1245 = vadd.f32 %v1244, %v1182
      %v1246 = vadd.f32 %v1245, %v1183
      %v1247 = vadd.f32 %v1246, %v1184
      %v1248 = vadd.f32 %v1247, %v1185
      %v1249 = vadd.f32 %v1248, %v1186
      %v1250 = vadd.f32 %v1249, %v1187
      %v1251 = vadd.f32 %v1250, %v1188
      %v1252 = vadd.f32 %v1251, %v1189
      %v1253 = vadd.f32 %v1252, %v1190
      %v1254 = vadd.f32 %v1253, %v1191
      %v1255 = vadd.f32 %v1254, %v1192
      %v1256 = vadd.f32 %v1255, %v1193
      %v1257 = vadd.f32 %v1256, %v1194
      %v1258 = vadd.f32 %v1257, %v1195
      %v1259 = vadd.f32 %v1258, %v1196
      %v1260 = vadd.f32 %v1259, %v1197
      %v1261 = vadd.f32 %v1260, %v1198
      %v1262 = vadd.f32 %v1261, %v1199
      %v1263 = vadd.f32 %v1262, %v1200
      %v1264 = vrot.slane %v1263, 4
      %v1265 = vadd.f32 %v1263, %v1264
      %v1266 = vrot.slane %v1265, 2
      %v1267 = vadd.f32 %v1265, %v1266
      %v1268 = vrot.slane %v1267, 1
      %v1269 = vadd.f32 %v1267, %v1268
      %1270 = vst [vmem:[%s325] sm:$0x1] %v1269
      %s1271 = smul.u32 64, %s20
      %p1272 = scmp.lt.s32.totalorder %s1271, 127
      %s1273 = scalar_select %p1272, %s1271, 127
      %s1274 = smul.addr %s1273, 4
      %s1275 = scalar_lea.vmem %s6, %s1274
      %p1276 = scmp.lt.s32.totalorder %s20, 1
      %s1277 = scalar_select %p1276, %s20, 1
      %s1278 = scalar_lea.vmem %s7, %s1277
      %p1279 = scmp.lt.s32.totalorder %s20, 1
      %s1280 = scalar_select %p1279, %s20, 1
      %s1281 = scalar_lea.vmem %s8, %s1280
      // Predicated region
      $region45: #{bottleneck_forward.6} parent=43 // pred_check
        %p1282 = pneg %p169
      $region46: #{bottleneck_forward.6} parent=43 // pred_check_branch
        %1284 = sbr.rel (%p1282) target = $region48
      $region47: #{bottleneck_forward.6} parent=43 // pred_region
        %s1285 = smul.u32 64, %s20
      $region48: #{bottleneck_forward.6} parent=43 // pred_fallthru
        _
      // Predicated region
      $region49: #{bottleneck_forward.6} parent=43 // pred_check
        %p1286 = pneg %p195
      $region50: #{bottleneck_forward.6} parent=43 // pred_check_branch
        %1288 = sbr.rel (%p1286) target = $region52
      $region51: #{bottleneck_forward.6} parent=43 // pred_region
        _
      $region52: #{bottleneck_forward.6} parent=43 // pred_fallthru
        _
      // Predicated region
      $region53: #{bottleneck_forward.6} parent=43 // pred_check
        %p1289 = pneg %p221
      $region54: #{bottleneck_forward.6} parent=43 // pred_check_branch
        %1291 = sbr.rel (%p1289) target = $region56
      $region55: #{bottleneck_forward.6} parent=43 // pred_region
        _
      $region56: #{bottleneck_forward.6} parent=43 // pred_fallthru
        _
    $region44: #{bottleneck_forward.6} parent=5 // pred_fallthru
      _
    %p1292 = scmp.le.s32.totalorder 2, %s15
    // Predicated region
    $region57: #{bottleneck_forward.6} parent=5 // pred_check
      %p1293 = pneg %p1292
    $region58: #{bottleneck_forward.6} parent=5 // pred_check_branch
      %1295 = sbr.rel (%p1293) target = $region60
    $region59: #{bottleneck_forward.6} parent=5 // pred_region
      %s1296 = ssub.s32 %s15, 2
      // Predicated region
      $region61: #{bottleneck_forward.6} parent=59 // pred_check
        %p1297 = pneg %p175
      $region62: #{bottleneck_forward.6} parent=59 // pred_check_branch
        %1299 = sbr.rel (%p1297) target = $region64
      $region63: #{bottleneck_forward.6} parent=59 // pred_region
        %s1300 = smul.u32 64, %s21
        %p1301 = scmp.lt.s32.totalorder %s1300, 127
        %s1302 = scalar_select %p1301, %s1300, 127
        %s1303 = smul.addr %s1302, 4
        %s1304 = scalar_lea.vmem %s6, %s1303
      $region64: #{bottleneck_forward.6} parent=59 // pred_fallthru
        _
      // Predicated region
      $region65: #{bottleneck_forward.6} parent=59 // pred_check
        %p1305 = pneg %p201
      $region66: #{bottleneck_forward.6} parent=59 // pred_check_branch
        %1307 = sbr.rel (%p1305) target = $region68
      $region67: #{bottleneck_forward.6} parent=59 // pred_region
        %p1308 = scmp.lt.s32.totalorder %s21, 1
        %s1309 = scalar_select %p1308, %s21, 1
        %s1310 = scalar_lea.vmem %s7, %s1309
      $region68: #{bottleneck_forward.6} parent=59 // pred_fallthru
        _
      // Predicated region
      $region69: #{bottleneck_forward.6} parent=59 // pred_check
        %p1311 = pneg %p227
      $region70: #{bottleneck_forward.6} parent=59 // pred_check_branch
        %1313 = sbr.rel (%p1311) target = $region72
      $region71: #{bottleneck_forward.6} parent=59 // pred_region
        %p1314 = scmp.lt.s32.totalorder %s21, 1
        %s1315 = scalar_select %p1314, %s21, 1
        %s1316 = scalar_lea.vmem %s8, %s1315
      $region72: #{bottleneck_forward.6} parent=59 // pred_fallthru
        _
    $region60: #{bottleneck_forward.6} parent=5 // pred_fallthru
      _
  $region6: #{bottleneck_forward.6} parent=0 // loop_footer
    %s19 = sadd.s32 1, %s15
  $region7: #{bottleneck_forward.6} parent=0 // loop_footer_branch
    %14 = sbr.rel target = $region3
  $region8: #{bottleneck_forward.6} parent=0 // loop_exit
    _

// kernel: bottleneck_forward.7
$region0: #{bottleneck_forward.7}
  #allocation0 [shape = 'u32[]', space=smem, size = 0x4, offset = 0x4, fixed_abs, tag = 'smem constant byte address 0x4 - core index']
  #allocation1 [shape = 'u32[72,128]{1,0:T(1,128)}', space=vmem, size = 0x9000, scoped, tag = 'internal scratch']
  %s0 = inlined_call_operand.vmem [shape: bf16[1024,128], index: 0, kind: input, shape index: {}]
  %s1 = inlined_call_operand.vmem [shape: f32[1,128], index: 1, kind: input, shape index: {}]
  %s2 = inlined_call_operand.vmem [shape: f32[1,128], index: 2, kind: input, shape index: {}]
  %s3 = inlined_call_operand.vmem [shape: f32[1,128], index: 3, kind: input, shape index: {}]
  %s4 = inlined_call_operand.vmem [shape: f32[1,128], index: 4, kind: input, shape index: {}]
  %s5 = inlined_call_operand.vmem [shape: f32[1024,128], index: 5, kind: input, shape index: {}]
  %s6 = inlined_call_operand.vmem [shape: f32[1024,128], index: 6, kind: output, shape index: {}]
  %s7 = sld [smem:[#allocation0]]
  $region57: #{bottleneck_forward.7} parent=0
    _
  %s9 = ssub.s32 1, %s7
  %s10 = scalar_select 0, %s9, %s7
  loop: start=0, step=1, limit=4
  $region2: #{bottleneck_forward.7} parent=0 // loop_pre_header
    _
  $region3: #{bottleneck_forward.7} parent=0 // loop_header
    %s12 = sphi 0, %s16
    %p13 = scmp.ge.s32.totalorder %s12, 4
    %s22 = sphi 0, %s24
    %s25 = sphi 0, %s22
    %s26 = sphi 0, %s25
    %s42 = sphi 0, %s26
    %s46 = sphi 0, %s46
    %s48 = sphi 0, %s46
    %s49 = sphi 0, %s48
    %s63 = sphi 0, %s49
    %s67 = sphi 0, %s67
    %s69 = sphi 0, %s67
    %s70 = sphi 0, %s69
    %s84 = sphi 0, %s70
    %s88 = sphi 0, %s88
    %s90 = sphi 0, %s88
    %s91 = sphi 0, %s90
    %s105 = sphi 0, %s91
    %s109 = sphi 0, %s109
    %s111 = sphi 0, %s109
    %s112 = sphi 0, %s111
    %s126 = sphi 0, %s112
    %s132 = sphi 0, %s134
    %s135 = sphi 0, %s132
    %s136 = sphi 0, %s135
    %s152 = sphi 0, %s136
    %s158 = sphi 0, %s160
    %s161 = sphi 0, %s158
    %s162 = sphi 0, %s161
    %s178 = sphi 0, %s162
  $region4: #{bottleneck_forward.7} parent=0 // loop_header_branch
    %15 = sbr.rel (%p13) target = $region8
  $region5: #{bottleneck_forward.7} parent=0 // loop_body
    %s17 = ssub.s32 %s12, 1
    %s18 = ssub.s32 %s12, 2
    %s19 = sadd.s32 %s12, 1
    %s20 = ssub.s32 %s12, %s19
    %p21 = scmp.eq.s32.totalorder %s20, 0
    %s23 = sadd.s32 %s22, 1
    %s24 = scalar_select %p21, %s22, %s23
    %p27 = pneg %p21
    %p28 = scmp.eq.s32.totalorder %s12, 1
    %p29 = por %p27, %p28
    %p30 = scmp.ne.s32.totalorder %s22, %s25
    %p31 = scmp.eq.s32.totalorder %s12, 0
    %p32 = por %p30, %p31
    %p33 = scmp.ne.s32.totalorder %s22, %s25
    %p34 = scmp.eq.s32.totalorder %s17, 1
    %p35 = por %p33, %p34
    %p36 = scmp.ne.s32.totalorder %s25, %s26
    %p37 = scmp.eq.s32.totalorder %s17, 0
    %p38 = por %p36, %p37
    %p39 = scmp.ne.s32.totalorder %s25, %s26
    %p40 = scmp.eq.s32.totalorder %s18, 1
    %p41 = por %p39, %p40
    %p43 = scmp.ne.s32.totalorder %s26, %s42
    %p44 = scmp.eq.s32.totalorder %s18, 0
    %p45 = por %p43, %p44
    %s47 = sadd.s32 %s46, 1
    %p50 = scmp.eq.s32.totalorder %s12, 1
    %p51 = scmp.ne.s32.totalorder %s46, %s48
    %p52 = scmp.eq.s32.totalorder %s12, 0
    %p53 = por %p51, %p52
    %p54 = scmp.ne.s32.totalorder %s46, %s48
    %p55 = scmp.eq.s32.totalorder %s17, 1
    %p56 = por %p54, %p55
    %p57 = scmp.ne.s32.totalorder %s48, %s49
    %p58 = scmp.eq.s32.totalorder %s17, 0
    %p59 = por %p57, %p58
    %p60 = scmp.ne.s32.totalorder %s48, %s49
    %p61 = scmp.eq.s32.totalorder %s18, 1
    %p62 = por %p60, %p61
    %p64 = scmp.ne.s32.totalorder %s49, %s63
    %p65 = scmp.eq.s32.totalorder %s18, 0
    %p66 = por %p64, %p65
    %s68 = sadd.s32 %s67, 1
    %p71 = scmp.eq.s32.totalorder %s12, 1
    %p72 = scmp.ne.s32.totalorder %s67, %s69
    %p73 = scmp.eq.s32.totalorder %s12, 0
    %p74 = por %p72, %p73
    %p75 = scmp.ne.s32.totalorder %s67, %s69
    %p76 = scmp.eq.s32.totalorder %s17, 1
    %p77 = por %p75, %p76
    %p78 = scmp.ne.s32.totalorder %s69, %s70
    %p79 = scmp.eq.s32.totalorder %s17, 0
    %p80 = por %p78, %p79
    %p81 = scmp.ne.s32.totalorder %s69, %s70
    %p82 = scmp.eq.s32.totalorder %s18, 1
    %p83 = por %p81, %p82
    %p85 = scmp.ne.s32.totalorder %s70, %s84
    %p86 = scmp.eq.s32.totalorder %s18, 0
    %p87 = por %p85, %p86
    %s89 = sadd.s32 %s88, 1
    %p92 = scmp.eq.s32.totalorder %s12, 1
    %p93 = scmp.ne.s32.totalorder %s88, %s90
    %p94 = scmp.eq.s32.totalorder %s12, 0
    %p95 = por %p93, %p94
    %p96 = scmp.ne.s32.totalorder %s88, %s90
    %p97 = scmp.eq.s32.totalorder %s17, 1
    %p98 = por %p96, %p97
    %p99 = scmp.ne.s32.totalorder %s90, %s91
    %p100 = scmp.eq.s32.totalorder %s17, 0
    %p101 = por %p99, %p100
    %p102 = scmp.ne.s32.totalorder %s90, %s91
    %p103 = scmp.eq.s32.totalorder %s18, 1
    %p104 = por %p102, %p103
    %p106 = scmp.ne.s32.totalorder %s91, %s105
    %p107 = scmp.eq.s32.totalorder %s18, 0
    %p108 = por %p106, %p107
    %s110 = sadd.s32 %s109, 1
    %p113 = scmp.eq.s32.totalorder %s12, 1
    %p114 = scmp.ne.s32.totalorder %s109, %s111
    %p115 = scmp.eq.s32.totalorder %s12, 0
    %p116 = por %p114, %p115
    %p117 = scmp.ne.s32.totalorder %s109, %s111
    %p118 = scmp.eq.s32.totalorder %s17, 1
    %p119 = por %p117, %p118
    %p120 = scmp.ne.s32.totalorder %s111, %s112
    %p121 = scmp.eq.s32.totalorder %s17, 0
    %p122 = por %p120, %p121
    %p123 = scmp.ne.s32.totalorder %s111, %s112
    %p124 = scmp.eq.s32.totalorder %s18, 1
    %p125 = por %p123, %p124
    %p127 = scmp.ne.s32.totalorder %s112, %s126
    %p128 = scmp.eq.s32.totalorder %s18, 0
    %p129 = por %p127, %p128
    %s130 = ssub.s32 %s12, %s19
    %p131 = scmp.eq.s32.totalorder %s130, 0
    %s133 = sadd.s32 %s132, 1
    %s134 = scalar_select %p131, %s132, %s133
    %p137 = pneg %p131
    %p138 = scmp.eq.s32.totalorder %s12, 1
    %p139 = por %p137, %p138
    %p140 = scmp.ne.s32.totalorder %s132, %s135
    %p141 = scmp.eq.s32.totalorder %s12, 0
    %p142 = por %p140, %p141
    %p143 = scmp.ne.s32.totalorder %s132, %s135
    %p144 = scmp.eq.s32.totalorder %s17, 1
    %p145 = por %p143, %p144
    %p146 = scmp.ne.s32.totalorder %s135, %s136
    %p147 = scmp.eq.s32.totalorder %s17, 0
    %p148 = por %p146, %p147
    %p149 = scmp.ne.s32.totalorder %s135, %s136
    %p150 = scmp.eq.s32.totalorder %s18, 1
    %p151 = por %p149, %p150
    %p153 = scmp.ne.s32.totalorder %s136, %s152
    %p154 = scmp.eq.s32.totalorder %s18, 0
    %p155 = por %p153, %p154
    %s156 = ssub.s32 %s12, %s19
    %p157 = scmp.eq.s32.totalorder %s156, 0
    %s159 = sadd.s32 %s158, 1
    %s160 = scalar_select %p157, %s158, %s159
    %p163 = pneg %p157
    %p164 = scmp.eq.s32.totalorder %s12, 1
    %p165 = por %p163, %p164
    %p166 = scmp.ne.s32.totalorder %s158, %s161
    %p167 = scmp.eq.s32.totalorder %s12, 0
    %p168 = por %p166, %p167
    %p169 = scmp.ne.s32.totalorder %s158, %s161
    %p170 = scmp.eq.s32.totalorder %s17, 1
    %p171 = por %p169, %p170
    %p172 = scmp.ne.s32.totalorder %s161, %s162
    %p173 = scmp.eq.s32.totalorder %s17, 0
    %p174 = por %p172, %p173
    %p175 = scmp.ne.s32.totalorder %s161, %s162
    %p176 = scmp.eq.s32.totalorder %s18, 1
    %p177 = por %p175, %p176
    %p179 = scmp.ne.s32.totalorder %s162, %s178
    %p180 = scmp.eq.s32.totalorder %s18, 0
    %p181 = por %p179, %p180
    %p182 = scmp.le.s32.totalorder 1, %s12
    %p183 = scmp.lt.s32.totalorder %s12, 3
    %p184 = pnand %p182, %p183
    %p185 = pneg %p184
    // Predicated region
    $region9: #{bottleneck_forward.7} parent=5 // pred_check
      _
    $region10: #{bottleneck_forward.7} parent=5 // pred_check_branch
      %187 = sbr.rel (%p184) target = $region12
    $region11: #{bottleneck_forward.7} parent=5 // pred_region
      %s188 = ssub.s32 %s12, 1
      // Predicated region
      $region13: #{bottleneck_forward.7} parent=11 // pred_check
        %p189 = pneg %p59
      $region14: #{bottleneck_forward.7} parent=11 // pred_check_branch
        %191 = sbr.rel (%p189) target = $region16
      $region15: #{bottleneck_forward.7} parent=11 // pred_region
        _
      $region16: #{bottleneck_forward.7} parent=11 // pred_fallthru
        _
      // Predicated region
      $region17: #{bottleneck_forward.7} parent=11 // pred_check
        %p192 = pneg %p80
      $region18: #{bottleneck_forward.7} parent=11 // pred_check_branch
        %194 = sbr.rel (%p192) target = $region20
      $region19: #{bottleneck_forward.7} parent=11 // pred_region
        _
      $region20: #{bottleneck_forward.7} parent=11 // pred_fallthru
        _
      // Predicated region
      $region21: #{bottleneck_forward.7} parent=11 // pred_check
        %p195 = pneg %p101
      $region22: #{bottleneck_forward.7} parent=11 // pred_check_branch
        %197 = sbr.rel (%p195) target = $region24
      $region23: #{bottleneck_forward.7} parent=11 // pred_region
        _
      $region24: #{bottleneck_forward.7} parent=11 // pred_fallthru
        _
      // Predicated region
      $region25: #{bottleneck_forward.7} parent=11 // pred_check
        %p198 = pneg %p122
      $region26: #{bottleneck_forward.7} parent=11 // pred_check_branch
        %200 = sbr.rel (%p198) target = $region28
      $region27: #{bottleneck_forward.7} parent=11 // pred_region
        _
      $region28: #{bottleneck_forward.7} parent=11 // pred_fallthru
        _
    $region12: #{bottleneck_forward.7} parent=5 // pred_fallthru
      _
    %p201 = scmp.lt.s32.totalorder %s12, 2
    // Predicated region
    $region29: #{bottleneck_forward.7} parent=5 // pred_check
      %p202 = pneg %p201
    $region30: #{bottleneck_forward.7} parent=5 // pred_check_branch
      %204 = sbr.rel (%p202) target = $region32
    $region31: #{bottleneck_forward.7} parent=5 // pred_region
      // Predicated region
      $region33: #{bottleneck_forward.7} parent=31 // pred_check
        %p205 = pneg %p32
      $region34: #{bottleneck_forward.7} parent=31 // pred_check_branch
        %207 = sbr.rel (%p205) target = $region36
      $region35: #{bottleneck_forward.7} parent=31 // pred_region
        %s208 = smul.u32 64, %s12
        %p209 = scmp.lt.s32.totalorder %s208, 127
        %s210 = scalar_select %p209, %s208, 127
        %s211 = smul.addr %s210, 4
        %s212 = scalar_lea.vmem %s0, %s211
        %s213 = smul.u32 64, %s12
      $region36: #{bottleneck_forward.7} parent=31 // pred_fallthru
        _
      // Predicated region
      $region37: #{bottleneck_forward.7} parent=31 // pred_check
        %p214 = pneg %p142
      $region38: #{bottleneck_forward.7} parent=31 // pred_check_branch
        %216 = sbr.rel (%p214) target = $region40
      $region39: #{bottleneck_forward.7} parent=31 // pred_region
        %s217 = smul.u32 64, %s12
        %p218 = scmp.lt.s32.totalorder %s217, 127
        %s219 = scalar_select %p218, %s217, 127
        %s220 = smul.addr %s219, 8
        %s221 = scalar_lea.vmem %s5, %s220
        %s222 = smul.u32 64, %s12
      $region40: #{bottleneck_forward.7} parent=31 // pred_fallthru
        _
    $region32: #{bottleneck_forward.7} parent=5 // pred_fallthru
      _
    %p223 = scmp.le.s32.totalorder 1, %s12
    %p224 = scmp.lt.s32.totalorder %s12, 3
    %p225 = pnand %p223, %p224
    %p226 = pneg %p225
    // Predicated region
    $region41: #{bottleneck_forward.7} parent=5 // pred_check
      _
    $region42: #{bottleneck_forward.7} parent=5 // pred_check_branch
      %228 = sbr.rel (%p225) target = $region44
    $region43: #{bottleneck_forward.7} parent=5 // pred_region
      %s229 = ssub.s32 %s12, 1
      %s230 = smul.u32 64, %s17
      %p231 = scmp.lt.s32.totalorder %s230, 127
      %s232 = scalar_select %p231, %s230, 127
      %s233 = smul.addr %s232, 4
      %s234 = scalar_lea.vmem %s0, %s233
      %p235 = pneg %p38
      %p236 = pneg %p35
      %p237 = pneg %p59
      %p238 = pneg %p56
      %p239 = pneg %p80
      %p240 = pneg %p77
      %p241 = pneg %p101
      %p242 = pneg %p98
      %p243 = pneg %p122
      %p244 = pneg %p119
      %s245 = smul.u32 64, %s17
      %p246 = scmp.lt.s32.totalorder %s245, 127
      %s247 = scalar_select %p246, %s245, 127
      %s248 = smul.addr %s247, 8
      %s249 = scalar_lea.vmem %s5, %s248
      %p250 = pneg %p148
      %p251 = pneg %p145
      %p252 = pneg %p174
      %p253 = pneg %p171
      %s254 = smul.u32 64, %s17
      %p255 = scmp.lt.s32.totalorder %s254, 127
      %s256 = scalar_select %p255, %s254, 127
      %s257 = smul.addr %s256, 8
      %s258 = scalar_lea.vmem %s6, %s257
      %s259 = smul.u32 64, %s17
      %p260 = scmp.lt.s32.totalorder %s259, 127
      %s261 = scalar_select %p260, %s259, 127
      %s262 = smul.addr %s261, 4
      %s263 = scalar_lea.vmem %s0, %s262
      %s264 = smul.u32 64, %s17
      %s265 = smul.u32 64, %s17
      %p266 = scmp.lt.s32.totalorder %s265, 127
      %s267 = scalar_select %p266, %s265, 127
      %s268 = smul.addr %s267, 8
      %s269 = scalar_lea.vmem %s5, %s268
      %s270 = smul.u32 64, %s17
      %s271 = smul.u32 64, %s17
      %p272 = scmp.lt.s32.totalorder %s271, 127
      %s273 = scalar_select %p272, %s271, 127
      %s274 = smul.addr %s273, 8
      %s275 = scalar_lea.vmem %s6, %s274
      %s276 = smul.u32 64, %s17
      %v277 = vld [vmem:[%s1] sm:$0x1]
      %v278 = vmul.f32 %v277, 0.0009765625
      %v279 = vld [vmem:[%s2] sm:$0x1]
      %v280 = vmul.f32 %v279, 0.0009765625
      %v281 = vmul.f32 %v278, %v278
      %v282 = vsub.f32 %v280, %v281
      %v283 = vld [vmem:[%s3] sm:$0x1]
      %v284 = vadd.f32 %v282, 1e-05
      %v285 = vrsqrt.pop %v284
      %v286 = vmul.f32 %v285, %v284
      %v287 = vmul.f32 %v286, %v285
      %v288 = vmul.f32 0.5, %v287
      %v289 = vsub.f32 1.5, %v288
      %v290 = vmul.f32 %v285, %v289
      %vm291 = vweird.f32 %v284
      %vm292 = vweird.f32 %v285
      %vm293 = vmor %vm291, %vm292
      %v294 = vsel %vm293, %v285, %v290
      %v295 = vmul.f32 %v283, %v294
      %v296 = vld [vmem:[%s4] sm:$0x1]
      %v297 = vmul.f32 %v278, %v295
      %v298 = vsub.f32 %v296, %v297
      %v299 = vld [vmem:[%s263] sm:$0xf]
      %v300 = vld [vmem:[%s263 + $0x4] sm:$0xf]
      %v301 = vld [vmem:[%s263 + $0x8] sm:$0xf]
      %v302 = vld [vmem:[%s263 + $0xc] sm:$0xf]
      %v303 = vld [vmem:[%s263 + $0x10] sm:$0xf]
      %v304 = vld [vmem:[%s263 + $0x14] sm:$0xf]
      %v305 = vld [vmem:[%s263 + $0x18] sm:$0xf]
      %v306 = vld [vmem:[%s263 + $0x1c] sm:$0xf]
      %v307 = vld [vmem:[%s263 + $0x20] sm:$0xf]
      %v308 = vld [vmem:[%s263 + $0x24] sm:$0xf]
      %v309 = vld [vmem:[%s263 + $0x28] sm:$0xf]
      %v310 = vld [vmem:[%s263 + $0x2c] sm:$0xf]
      %v311 = vld [vmem:[%s263 + $0x30] sm:$0xf]
      %v312 = vld [vmem:[%s263 + $0x34] sm:$0xf]
      %v313 = vld [vmem:[%s263 + $0x38] sm:$0xf]
      %v314 = vld [vmem:[%s263 + $0x3c] sm:$0xf]
      %v315 = vld [vmem:[%s263 + $0x40] sm:$0xf]
      %v316 = vld [vmem:[%s263 + $0x44] sm:$0xf]
      %v317 = vld [vmem:[%s263 + $0x48] sm:$0xf]
      %v318 = vld [vmem:[%s263 + $0x4c] sm:$0xf]
      %v319 = vld [vmem:[%s263 + $0x50] sm:$0xf]
      %v320 = vld [vmem:[%s263 + $0x54] sm:$0xf]
      %v321 = vld [vmem:[%s263 + $0x58] sm:$0xf]
      %v322 = vld [vmem:[%s263 + $0x5c] sm:$0xf]
      %v323 = vld [vmem:[%s263 + $0x60] sm:$0xf]
      %v324 = vld [vmem:[%s263 + $0x64] sm:$0xf]
      %v325 = vld [vmem:[%s263 + $0x68] sm:$0xf]
      %v326 = vld [vmem:[%s263 + $0x6c] sm:$0xf]
      %v327 = vld [vmem:[%s263 + $0x70] sm:$0xf]
      %v328 = vld [vmem:[%s263 + $0x74] sm:$0xf]
      %v329 = vld [vmem:[%s263 + $0x78] sm:$0xf]
      %v330 = vld [vmem:[%s263 + $0x7c] sm:$0xf]
      %v331 = vld [vmem:[%s263 + $0x80] sm:$0xf]
      %v332 = vld [vmem:[%s263 + $0x84] sm:$0xf]
      %v333 = vld [vmem:[%s263 + $0x88] sm:$0xf]
      %v334 = vld [vmem:[%s263 + $0x8c] sm:$0xf]
      %v335 = vld [vmem:[%s263 + $0x90] sm:$0xf]
      %v336 = vld [vmem:[%s263 + $0x94] sm:$0xf]
      %v337 = vld [vmem:[%s263 + $0x98] sm:$0xf]
      %v338 = vld [vmem:[%s263 + $0x9c] sm:$0xf]
      %v339 = vld [vmem:[%s263 + $0xa0] sm:$0xf]
      %v340 = vld [vmem:[%s263 + $0xa4] sm:$0xf]
      %v341 = vld [vmem:[%s263 + $0xa8] sm:$0xf]
      %v342 = vld [vmem:[%s263 + $0xac] sm:$0xf]
      %v343 = vld [vmem:[%s263 + $0xb0] sm:$0xf]
      %v344 = vld [vmem:[%s263 + $0xb4] sm:$0xf]
      %v345 = vld [vmem:[%s263 + $0xb8] sm:$0xf]
      %v346 = vld [vmem:[%s263 + $0xbc] sm:$0xf]
      %v347 = vld [vmem:[%s263 + $0xc0] sm:$0xf]
      %v348 = vld [vmem:[%s263 + $0xc4] sm:$0xf]
      %v349 = vld [vmem:[%s263 + $0xc8] sm:$0xf]
      %v350 = vld [vmem:[%s263 + $0xcc] sm:$0xf]
      %v351 = vld [vmem:[%s263 + $0xd0] sm:$0xf]
      %v352 = vld [vmem:[%s263 + $0xd4] sm:$0xf]
      %v353 = vld [vmem:[%s263 + $0xd8] sm:$0xf]
      %v354 = vld [vmem:[%s263 + $0xdc] sm:$0xf]
      %v355 = vld [vmem:[%s263 + $0xe0] sm:$0xf]
      %v356 = vld [vmem:[%s263 + $0xe4] sm:$0xf]
      %v357 = vld [vmem:[%s263 + $0xe8] sm:$0xf]
      %v358 = vld [vmem:[%s263 + $0xec] sm:$0xf]
      %v359 = vld [vmem:[%s263 + $0xf0] sm:$0xf]
      %v360 = vld [vmem:[%s263 + $0xf4] sm:$0xf]
      %v361 = vld [vmem:[%s263 + $0xf8] sm:$0xf]
      %v362 = vld [vmem:[%s263 + $0xfc] sm:$0xf]
      %v363 = vunpack.c.l.bf16 %v299
      %v364 = vunpack.c.l.bf16 %v300
      %v365 = vunpack.c.l.bf16 %v301
      %v366 = vunpack.c.l.bf16 %v302
      %v367 = vunpack.c.l.bf16 %v303
      %v368 = vunpack.c.l.bf16 %v304
      %v369 = vunpack.c.l.bf16 %v305
      %v370 = vunpack.c.l.bf16 %v306
      %v371 = vunpack.c.l.bf16 %v307
      %v372 = vunpack.c.l.bf16 %v308
      %v373 = vunpack.c.l.bf16 %v309
      %v374 = vunpack.c.l.bf16 %v310
      %v375 = vunpack.c.l.bf16 %v311
      %v376 = vunpack.c.l.bf16 %v312
      %v377 = vunpack.c.l.bf16 %v313
      %v378 = vunpack.c.l.bf16 %v314
      %v379 = vunpack.c.l.bf16 %v315
      %v380 = vunpack.c.l.bf16 %v316
      %v381 = vunpack.c.l.bf16 %v317
      %v382 = vunpack.c.l.bf16 %v318
      %v383 = vunpack.c.l.bf16 %v319
      %v384 = vunpack.c.l.bf16 %v320
      %v385 = vunpack.c.l.bf16 %v321
      %v386 = vunpack.c.l.bf16 %v322
      %v387 = vunpack.c.l.bf16 %v323
      %v388 = vunpack.c.l.bf16 %v324
      %v389 = vunpack.c.l.bf16 %v325
      %v390 = vunpack.c.l.bf16 %v326
      %v391 = vunpack.c.l.bf16 %v327
      %v392 = vunpack.c.l.bf16 %v328
      %v393 = vunpack.c.l.bf16 %v329
      %v394 = vunpack.c.l.bf16 %v330
      %v395 = vunpack.c.l.bf16 %v331
      %v396 = vunpack.c.l.bf16 %v332
      %v397 = vunpack.c.l.bf16 %v333
      %v398 = vunpack.c.l.bf16 %v334
      %v399 = vunpack.c.l.bf16 %v335
      %v400 = vunpack.c.l.bf16 %v336
      %v401 = vunpack.c.l.bf16 %v337
      %v402 = vunpack.c.l.bf16 %v338
      %v403 = vunpack.c.l.bf16 %v339
      %v404 = vunpack.c.l.bf16 %v340
      %v405 = vunpack.c.l.bf16 %v341
      %v406 = vunpack.c.l.bf16 %v342
      %v407 = vunpack.c.l.bf16 %v343
      %v408 = vunpack.c.l.bf16 %v344
      %v409 = vunpack.c.l.bf16 %v345
      %v410 = vunpack.c.l.bf16 %v346
      %v411 = vunpack.c.l.bf16 %v347
      %v412 = vunpack.c.l.bf16 %v348
      %v413 = vunpack.c.l.bf16 %v349
      %v414 = vunpack.c.l.bf16 %v350
      %v415 = vunpack.c.l.bf16 %v351
      %v416 = vunpack.c.l.bf16 %v352
      %v417 = vunpack.c.l.bf16 %v353
      %v418 = vunpack.c.l.bf16 %v354
      %v419 = vunpack.c.l.bf16 %v355
      %v420 = vunpack.c.l.bf16 %v356
      %v421 = vunpack.c.l.bf16 %v357
      %v422 = vunpack.c.l.bf16 %v358
      %v423 = vunpack.c.l.bf16 %v359
      %v424 = vunpack.c.l.bf16 %v360
      %v425 = vunpack.c.l.bf16 %v361
      %v426 = vunpack.c.l.bf16 %v362
      %v428 = vperm.slane %v295, 0
      %v430 = vmul.f32 %v363, %v428
      %v431 = vmul.f32 %v364, %v428
      %v432 = vmul.f32 %v365, %v428
      %v433 = vmul.f32 %v366, %v428
      %v434 = vmul.f32 %v367, %v428
      %v435 = vmul.f32 %v368, %v428
      %v436 = vmul.f32 %v369, %v428
      %v437 = vmul.f32 %v370, %v428
      %v438 = vmul.f32 %v371, %v428
      %v439 = vmul.f32 %v372, %v428
      %v440 = vmul.f32 %v373, %v428
      %v441 = vmul.f32 %v374, %v428
      %v442 = vmul.f32 %v375, %v428
      %v443 = vmul.f32 %v376, %v428
      %v444 = vmul.f32 %v377, %v428
      %v445 = vmul.f32 %v378, %v428
      %v446 = vmul.f32 %v379, %v428
      %v447 = vmul.f32 %v380, %v428
      %v448 = vmul.f32 %v381, %v428
      %v449 = vmul.f32 %v382, %v428
      %v450 = vmul.f32 %v383, %v428
      %v451 = vmul.f32 %v384, %v428
      %v452 = vmul.f32 %v385, %v428
      %v453 = vmul.f32 %v386, %v428
      %v454 = vmul.f32 %v387, %v428
      %v455 = vmul.f32 %v388, %v428
      %v456 = vmul.f32 %v389, %v428
      %v457 = vmul.f32 %v390, %v428
      %v458 = vmul.f32 %v391, %v428
      %v459 = vmul.f32 %v392, %v428
      %v460 = vmul.f32 %v393, %v428
      %v461 = vmul.f32 %v394, %v428
      %v462 = vmul.f32 %v395, %v428
      %v463 = vmul.f32 %v396, %v428
      %v464 = vmul.f32 %v397, %v428
      %v465 = vmul.f32 %v398, %v428
      %v466 = vmul.f32 %v399, %v428
      %v467 = vmul.f32 %v400, %v428
      %v468 = vmul.f32 %v401, %v428
      %v469 = vmul.f32 %v402, %v428
      %v470 = vmul.f32 %v403, %v428
      %v471 = vmul.f32 %v404, %v428
      %v472 = vmul.f32 %v405, %v428
      %v473 = vmul.f32 %v406, %v428
      %v474 = vmul.f32 %v407, %v428
      %v475 = vmul.f32 %v408, %v428
      %v476 = vmul.f32 %v409, %v428
      %v477 = vmul.f32 %v410, %v428
      %v478 = vmul.f32 %v411, %v428
      %v479 = vmul.f32 %v412, %v428
      %v480 = vmul.f32 %v413, %v428
      %v481 = vmul.f32 %v414, %v428
      %v482 = vmul.f32 %v415, %v428
      %v483 = vmul.f32 %v416, %v428
      %v484 = vmul.f32 %v417, %v428
      %v485 = vmul.f32 %v418, %v428
      %v486 = vmul.f32 %v419, %v428
      %v487 = vmul.f32 %v420, %v428
      %v488 = vmul.f32 %v421, %v428
      %v489 = vmul.f32 %v422, %v428
      %v490 = vmul.f32 %v423, %v428
      %v491 = vmul.f32 %v424, %v428
      %v492 = vmul.f32 %v425, %v428
      %v493 = vmul.f32 %v426, %v428
      %v495 = vperm.slane %v298, 0
      %v497 = vadd.f32 %v430, %v495
      %v498 = vadd.f32 %v431, %v495
      %v499 = vadd.f32 %v432, %v495
      %v500 = vadd.f32 %v433, %v495
      %v501 = vadd.f32 %v434, %v495
      %v502 = vadd.f32 %v435, %v495
      %v503 = vadd.f32 %v436, %v495
      %v504 = vadd.f32 %v437, %v495
      %v505 = vadd.f32 %v438, %v495
      %v506 = vadd.f32 %v439, %v495
      %v507 = vadd.f32 %v440, %v495
      %v508 = vadd.f32 %v441, %v495
      %v509 = vadd.f32 %v442, %v495
      %v510 = vadd.f32 %v443, %v495
      %v511 = vadd.f32 %v444, %v495
      %v512 = vadd.f32 %v445, %v495
      %v513 = vadd.f32 %v446, %v495
      %v514 = vadd.f32 %v447, %v495
      %v515 = vadd.f32 %v448, %v495
      %v516 = vadd.f32 %v449, %v495
      %v517 = vadd.f32 %v450, %v495
      %v518 = vadd.f32 %v451, %v495
      %v519 = vadd.f32 %v452, %v495
      %v520 = vadd.f32 %v453, %v495
      %v521 = vadd.f32 %v454, %v495
      %v522 = vadd.f32 %v455, %v495
      %v523 = vadd.f32 %v456, %v495
      %v524 = vadd.f32 %v457, %v495
      %v525 = vadd.f32 %v458, %v495
      %v526 = vadd.f32 %v459, %v495
      %v527 = vadd.f32 %v460, %v495
      %v528 = vadd.f32 %v461, %v495
      %v529 = vadd.f32 %v462, %v495
      %v530 = vadd.f32 %v463, %v495
      %v531 = vadd.f32 %v464, %v495
      %v532 = vadd.f32 %v465, %v495
      %v533 = vadd.f32 %v466, %v495
      %v534 = vadd.f32 %v467, %v495
      %v535 = vadd.f32 %v468, %v495
      %v536 = vadd.f32 %v469, %v495
      %v537 = vadd.f32 %v470, %v495
      %v538 = vadd.f32 %v471, %v495
      %v539 = vadd.f32 %v472, %v495
      %v540 = vadd.f32 %v473, %v495
      %v541 = vadd.f32 %v474, %v495
      %v542 = vadd.f32 %v475, %v495
      %v543 = vadd.f32 %v476, %v495
      %v544 = vadd.f32 %v477, %v495
      %v545 = vadd.f32 %v478, %v495
      %v546 = vadd.f32 %v479, %v495
      %v547 = vadd.f32 %v480, %v495
      %v548 = vadd.f32 %v481, %v495
      %v549 = vadd.f32 %v482, %v495
      %v550 = vadd.f32 %v483, %v495
      %v551 = vadd.f32 %v484, %v495
      %v552 = vadd.f32 %v485, %v495
      %v553 = vadd.f32 %v486, %v495
      %v554 = vadd.f32 %v487, %v495
      %v555 = vadd.f32 %v488, %v495
      %v556 = vadd.f32 %v489, %v495
      %v557 = vadd.f32 %v490, %v495
      %v558 = vadd.f32 %v491, %v495
      %v559 = vadd.f32 %v492, %v495
      %v560 = vadd.f32 %v493, %v495
      %v561 = vld [vmem:[%s269] sm:$0xff]
      %v562 = vld [vmem:[%s269 + $0x8] sm:$0xff]
      %v563 = vld [vmem:[%s269 + $0x10] sm:$0xff]
      %v564 = vld [vmem:[%s269 + $0x18] sm:$0xff]
      %v565 = vld [vmem:[%s269 + $0x20] sm:$0xff]
      %v566 = vld [vmem:[%s269 + $0x28] sm:$0xff]
      %v567 = vld [vmem:[%s269 + $0x30] sm:$0xff]
      %v568 = vld [vmem:[%s269 + $0x38] sm:$0xff]
      %v569 = vld [vmem:[%s269 + $0x40] sm:$0xff]
      %v570 = vld [vmem:[%s269 + $0x48] sm:$0xff]
      %v571 = vld [vmem:[%s269 + $0x50] sm:$0xff]
      %v572 = vld [vmem:[%s269 + $0x58] sm:$0xff]
      %v573 = vld [vmem:[%s269 + $0x60] sm:$0xff]
      %v574 = vld [vmem:[%s269 + $0x68] sm:$0xff]
      %v575 = vld [vmem:[%s269 + $0x70] sm:$0xff]
      %v576 = vld [vmem:[%s269 + $0x78] sm:$0xff]
      %v577 = vld [vmem:[%s269 + $0x80] sm:$0xff]
      %v578 = vld [vmem:[%s269 + $0x88] sm:$0xff]
      %v579 = vld [vmem:[%s269 + $0x90] sm:$0xff]
      %v580 = vld [vmem:[%s269 + $0x98] sm:$0xff]
      %v581 = vld [vmem:[%s269 + $0xa0] sm:$0xff]
      %v582 = vld [vmem:[%s269 + $0xa8] sm:$0xff]
      %v583 = vld [vmem:[%s269 + $0xb0] sm:$0xff]
      %v584 = vld [vmem:[%s269 + $0xb8] sm:$0xff]
      %v585 = vld [vmem:[%s269 + $0xc0] sm:$0xff]
      %v586 = vld [vmem:[%s269 + $0xc8] sm:$0xff]
      %v587 = vld [vmem:[%s269 + $0xd0] sm:$0xff]
      %v588 = vld [vmem:[%s269 + $0xd8] sm:$0xff]
      %v589 = vld [vmem:[%s269 + $0xe0] sm:$0xff]
      %v590 = vld [vmem:[%s269 + $0xe8] sm:$0xff]
      %v591 = vld [vmem:[%s269 + $0xf0] sm:$0xff]
      %v592 = vld [vmem:[%s269 + $0xf8] sm:$0xff]
      %v593 = vld [vmem:[%s269 + $0x100] sm:$0xff]
      %v594 = vld [vmem:[%s269 + $0x108] sm:$0xff]
      %v595 = vld [vmem:[%s269 + $0x110] sm:$0xff]
      %v596 = vld [vmem:[%s269 + $0x118] sm:$0xff]
      %v597 = vld [vmem:[%s269 + $0x120] sm:$0xff]
      %v598 = vld [vmem:[%s269 + $0x128] sm:$0xff]
      %v599 = vld [vmem:[%s269 + $0x130] sm:$0xff]
      %v600 = vld [vmem:[%s269 + $0x138] sm:$0xff]
      %v601 = vld [vmem:[%s269 + $0x140] sm:$0xff]
      %v602 = vld [vmem:[%s269 + $0x148] sm:$0xff]
      %v603 = vld [vmem:[%s269 + $0x150] sm:$0xff]
      %v604 = vld [vmem:[%s269 + $0x158] sm:$0xff]
      %v605 = vld [vmem:[%s269 + $0x160] sm:$0xff]
      %v606 = vld [vmem:[%s269 + $0x168] sm:$0xff]
      %v607 = vld [vmem:[%s269 + $0x170] sm:$0xff]
      %v608 = vld [vmem:[%s269 + $0x178] sm:$0xff]
      %v609 = vld [vmem:[%s269 + $0x180] sm:$0xff]
      %v610 = vld [vmem:[%s269 + $0x188] sm:$0xff]
      %v611 = vld [vmem:[%s269 + $0x190] sm:$0xff]
      %v612 = vld [vmem:[%s269 + $0x198] sm:$0xff]
      %v613 = vld [vmem:[%s269 + $0x1a0] sm:$0xff]
      %v614 = vld [vmem:[%s269 + $0x1a8] sm:$0xff]
      %v615 = vld [vmem:[%s269 + $0x1b0] sm:$0xff]
      %v616 = vld [vmem:[%s269 + $0x1b8] sm:$0xff]
      %v617 = vld [vmem:[%s269 + $0x1c0] sm:$0xff]
      %v618 = vld [vmem:[%s269 + $0x1c8] sm:$0xff]
      %v619 = vld [vmem:[%s269 + $0x1d0] sm:$0xff]
      %v620 = vld [vmem:[%s269 + $0x1d8] sm:$0xff]
      %v621 = vld [vmem:[%s269 + $0x1e0] sm:$0xff]
      %v622 = vld [vmem:[%s269 + $0x1e8] sm:$0xff]
      %v623 = vld [vmem:[%s269 + $0x1f0] sm:$0xff]
      %v624 = vld [vmem:[%s269 + $0x1f8] sm:$0xff]
      %v625 = vadd.f32 %v497, %v561
      %v626 = vadd.f32 %v498, %v562
      %v627 = vadd.f32 %v499, %v563
      %v628 = vadd.f32 %v500, %v564
      %v629 = vadd.f32 %v501, %v565
      %v630 = vadd.f32 %v502, %v566
      %v631 = vadd.f32 %v503, %v567
      %v632 = vadd.f32 %v504, %v568
      %v633 = vadd.f32 %v505, %v569
      %v634 = vadd.f32 %v506, %v570
      %v635 = vadd.f32 %v507, %v571
      %v636 = vadd.f32 %v508, %v572
      %v637 = vadd.f32 %v509, %v573
      %v638 = vadd.f32 %v510, %v574
      %v639 = vadd.f32 %v511, %v575
      %v640 = vadd.f32 %v512, %v576
      %v641 = vadd.f32 %v513, %v577
      %v642 = vadd.f32 %v514, %v578
      %v643 = vadd.f32 %v515, %v579
      %v644 = vadd.f32 %v516, %v580
      %v645 = vadd.f32 %v517, %v581
      %v646 = vadd.f32 %v518, %v582
      %v647 = vadd.f32 %v519, %v583
      %v648 = vadd.f32 %v520, %v584
      %v649 = vadd.f32 %v521, %v585
      %v650 = vadd.f32 %v522, %v586
      %v651 = vadd.f32 %v523, %v587
      %v652 = vadd.f32 %v524, %v588
      %v653 = vadd.f32 %v525, %v589
      %v654 = vadd.f32 %v526, %v590
      %v655 = vadd.f32 %v527, %v591
      %v656 = vadd.f32 %v528, %v592
      %v657 = vadd.f32 %v529, %v593
      %v658 = vadd.f32 %v530, %v594
      %v659 = vadd.f32 %v531, %v595
      %v660 = vadd.f32 %v532, %v596
      %v661 = vadd.f32 %v533, %v597
      %v662 = vadd.f32 %v534, %v598
      %v663 = vadd.f32 %v535, %v599
      %v664 = vadd.f32 %v536, %v600
      %v665 = vadd.f32 %v537, %v601
      %v666 = vadd.f32 %v538, %v602
      %v667 = vadd.f32 %v539, %v603
      %v668 = vadd.f32 %v540, %v604
      %v669 = vadd.f32 %v541, %v605
      %v670 = vadd.f32 %v542, %v606
      %v671 = vadd.f32 %v543, %v607
      %v672 = vadd.f32 %v544, %v608
      %v673 = vadd.f32 %v545, %v609
      %v674 = vadd.f32 %v546, %v610
      %v675 = vadd.f32 %v547, %v611
      %v676 = vadd.f32 %v548, %v612
      %v677 = vadd.f32 %v549, %v613
      %v678 = vadd.f32 %v550, %v614
      %v679 = vadd.f32 %v551, %v615
      %v680 = vadd.f32 %v552, %v616
      %v681 = vadd.f32 %v553, %v617
      %v682 = vadd.f32 %v554, %v618
      %v683 = vadd.f32 %v555, %v619
      %v684 = vadd.f32 %v556, %v620
      %v685 = vadd.f32 %v557, %v621
      %v686 = vadd.f32 %v558, %v622
      %v687 = vadd.f32 %v559, %v623
      %v688 = vadd.f32 %v560, %v624
      %v689 = vmax.f32 %v625, 0.0
      %v690 = vmax.f32 %v626, 0.0
      %v691 = vmax.f32 %v627, 0.0
      %v692 = vmax.f32 %v628, 0.0
      %v693 = vmax.f32 %v629, 0.0
      %v694 = vmax.f32 %v630, 0.0
      %v695 = vmax.f32 %v631, 0.0
      %v696 = vmax.f32 %v632, 0.0
      %v697 = vmax.f32 %v633, 0.0
      %v698 = vmax.f32 %v634, 0.0
      %v699 = vmax.f32 %v635, 0.0
      %v700 = vmax.f32 %v636, 0.0
      %v701 = vmax.f32 %v637, 0.0
      %v702 = vmax.f32 %v638, 0.0
      %v703 = vmax.f32 %v639, 0.0
      %v704 = vmax.f32 %v640, 0.0
      %v705 = vmax.f32 %v641, 0.0
      %v706 = vmax.f32 %v642, 0.0
      %v707 = vmax.f32 %v643, 0.0
      %v708 = vmax.f32 %v644, 0.0
      %v709 = vmax.f32 %v645, 0.0
      %v710 = vmax.f32 %v646, 0.0
      %v711 = vmax.f32 %v647, 0.0
      %v712 = vmax.f32 %v648, 0.0
      %v713 = vmax.f32 %v649, 0.0
      %v714 = vmax.f32 %v650, 0.0
      %v715 = vmax.f32 %v651, 0.0
      %v716 = vmax.f32 %v652, 0.0
      %v717 = vmax.f32 %v653, 0.0
      %v718 = vmax.f32 %v654, 0.0
      %v719 = vmax.f32 %v655, 0.0
      %v720 = vmax.f32 %v656, 0.0
      %v721 = vmax.f32 %v657, 0.0
      %v722 = vmax.f32 %v658, 0.0
      %v723 = vmax.f32 %v659, 0.0
      %v724 = vmax.f32 %v660, 0.0
      %v725 = vmax.f32 %v661, 0.0
      %v726 = vmax.f32 %v662, 0.0
      %v727 = vmax.f32 %v663, 0.0
      %v728 = vmax.f32 %v664, 0.0
      %v729 = vmax.f32 %v665, 0.0
      %v730 = vmax.f32 %v666, 0.0
      %v731 = vmax.f32 %v667, 0.0
      %v732 = vmax.f32 %v668, 0.0
      %v733 = vmax.f32 %v669, 0.0
      %v734 = vmax.f32 %v670, 0.0
      %v735 = vmax.f32 %v671, 0.0
      %v736 = vmax.f32 %v672, 0.0
      %v737 = vmax.f32 %v673, 0.0
      %v738 = vmax.f32 %v674, 0.0
      %v739 = vmax.f32 %v675, 0.0
      %v740 = vmax.f32 %v676, 0.0
      %v741 = vmax.f32 %v677, 0.0
      %v742 = vmax.f32 %v678, 0.0
      %v743 = vmax.f32 %v679, 0.0
      %v744 = vmax.f32 %v680, 0.0
      %v745 = vmax.f32 %v681, 0.0
      %v746 = vmax.f32 %v682, 0.0
      %v747 = vmax.f32 %v683, 0.0
      %v748 = vmax.f32 %v684, 0.0
      %v749 = vmax.f32 %v685, 0.0
      %v750 = vmax.f32 %v686, 0.0
      %v751 = vmax.f32 %v687, 0.0
      %v752 = vmax.f32 %v688, 0.0
      %753 = vst [vmem:[%s275] sm:$0xff] %v689
      %754 = vst [vmem:[%s275 + $0x8] sm:$0xff] %v690
      %755 = vst [vmem:[%s275 + $0x10] sm:$0xff] %v691
      %756 = vst [vmem:[%s275 + $0x18] sm:$0xff] %v692
      %757 = vst [vmem:[%s275 + $0x20] sm:$0xff] %v693
      %758 = vst [vmem:[%s275 + $0x28] sm:$0xff] %v694
      %759 = vst [vmem:[%s275 + $0x30] sm:$0xff] %v695
      %760 = vst [vmem:[%s275 + $0x38] sm:$0xff] %v696
      %761 = vst [vmem:[%s275 + $0x40] sm:$0xff] %v697
      %762 = vst [vmem:[%s275 + $0x48] sm:$0xff] %v698
      %763 = vst [vmem:[%s275 + $0x50] sm:$0xff] %v699
      %764 = vst [vmem:[%s275 + $0x58] sm:$0xff] %v700
      %765 = vst [vmem:[%s275 + $0x60] sm:$0xff] %v701
      %766 = vst [vmem:[%s275 + $0x68] sm:$0xff] %v702
      %767 = vst [vmem:[%s275 + $0x70] sm:$0xff] %v703
      %768 = vst [vmem:[%s275 + $0x78] sm:$0xff] %v704
      %769 = vst [vmem:[%s275 + $0x80] sm:$0xff] %v705
      %770 = vst [vmem:[%s275 + $0x88] sm:$0xff] %v706
      %771 = vst [vmem:[%s275 + $0x90] sm:$0xff] %v707
      %772 = vst [vmem:[%s275 + $0x98] sm:$0xff] %v708
      %773 = vst [vmem:[%s275 + $0xa0] sm:$0xff] %v709
      %774 = vst [vmem:[%s275 + $0xa8] sm:$0xff] %v710
      %775 = vst [vmem:[%s275 + $0xb0] sm:$0xff] %v711
      %776 = vst [vmem:[%s275 + $0xb8] sm:$0xff] %v712
      %777 = vst [vmem:[%s275 + $0xc0] sm:$0xff] %v713
      %778 = vst [vmem:[%s275 + $0xc8] sm:$0xff] %v714
      %779 = vst [vmem:[%s275 + $0xd0] sm:$0xff] %v715
      %780 = vst [vmem:[%s275 + $0xd8] sm:$0xff] %v716
      %781 = vst [vmem:[%s275 + $0xe0] sm:$0xff] %v717
      %782 = vst [vmem:[%s275 + $0xe8] sm:$0xff] %v718
      %783 = vst [vmem:[%s275 + $0xf0] sm:$0xff] %v719
      %784 = vst [vmem:[%s275 + $0xf8] sm:$0xff] %v720
      %785 = vst [vmem:[%s275 + $0x100] sm:$0xff] %v721
      %786 = vst [vmem:[%s275 + $0x108] sm:$0xff] %v722
      %787 = vst [vmem:[%s275 + $0x110] sm:$0xff] %v723
      %788 = vst [vmem:[%s275 + $0x118] sm:$0xff] %v724
      %789 = vst [vmem:[%s275 + $0x120] sm:$0xff] %v725
      %790 = vst [vmem:[%s275 + $0x128] sm:$0xff] %v726
      %791 = vst [vmem:[%s275 + $0x130] sm:$0xff] %v727
      %792 = vst [vmem:[%s275 + $0x138] sm:$0xff] %v728
      %793 = vst [vmem:[%s275 + $0x140] sm:$0xff] %v729
      %794 = vst [vmem:[%s275 + $0x148] sm:$0xff] %v730
      %795 = vst [vmem:[%s275 + $0x150] sm:$0xff] %v731
      %796 = vst [vmem:[%s275 + $0x158] sm:$0xff] %v732
      %797 = vst [vmem:[%s275 + $0x160] sm:$0xff] %v733
      %798 = vst [vmem:[%s275 + $0x168] sm:$0xff] %v734
      %799 = vst [vmem:[%s275 + $0x170] sm:$0xff] %v735
      %800 = vst [vmem:[%s275 + $0x178] sm:$0xff] %v736
      %801 = vst [vmem:[%s275 + $0x180] sm:$0xff] %v737
      %802 = vst [vmem:[%s275 + $0x188] sm:$0xff] %v738
      %803 = vst [vmem:[%s275 + $0x190] sm:$0xff] %v739
      %804 = vst [vmem:[%s275 + $0x198] sm:$0xff] %v740
      %805 = vst [vmem:[%s275 + $0x1a0] sm:$0xff] %v741
      %806 = vst [vmem:[%s275 + $0x1a8] sm:$0xff] %v742
      %807 = vst [vmem:[%s275 + $0x1b0] sm:$0xff] %v743
      %808 = vst [vmem:[%s275 + $0x1b8] sm:$0xff] %v744
      %809 = vst [vmem:[%s275 + $0x1c0] sm:$0xff] %v745
      %810 = vst [vmem:[%s275 + $0x1c8] sm:$0xff] %v746
      %811 = vst [vmem:[%s275 + $0x1d0] sm:$0xff] %v747
      %812 = vst [vmem:[%s275 + $0x1d8] sm:$0xff] %v748
      %813 = vst [vmem:[%s275 + $0x1e0] sm:$0xff] %v749
      %814 = vst [vmem:[%s275 + $0x1e8] sm:$0xff] %v750
      %815 = vst [vmem:[%s275 + $0x1f0] sm:$0xff] %v751
      %816 = vst [vmem:[%s275 + $0x1f8] sm:$0xff] %v752
      %s817 = smul.u32 64, %s17
      %p818 = scmp.lt.s32.totalorder %s817, 127
      %s819 = scalar_select %p818, %s817, 127
      %s820 = smul.addr %s819, 8
      %s821 = scalar_lea.vmem %s6, %s820
      // Predicated region
      $region45: #{bottleneck_forward.7} parent=43 // pred_check
        %p822 = pneg %p171
      $region46: #{bottleneck_forward.7} parent=43 // pred_check_branch
        %824 = sbr.rel (%p822) target = $region48
      $region47: #{bottleneck_forward.7} parent=43 // pred_region
        %s825 = smul.u32 64, %s17
      $region48: #{bottleneck_forward.7} parent=43 // pred_fallthru
        _
    $region44: #{bottleneck_forward.7} parent=5 // pred_fallthru
      _
    %p826 = scmp.le.s32.totalorder 2, %s12
    // Predicated region
    $region49: #{bottleneck_forward.7} parent=5 // pred_check
      %p827 = pneg %p826
    $region50: #{bottleneck_forward.7} parent=5 // pred_check_branch
      %829 = sbr.rel (%p827) target = $region52
    $region51: #{bottleneck_forward.7} parent=5 // pred_region
      %s830 = ssub.s32 %s12, 2
      // Predicated region
      $region53: #{bottleneck_forward.7} parent=51 // pred_check
        %p831 = pneg %p177
      $region54: #{bottleneck_forward.7} parent=51 // pred_check_branch
        %833 = sbr.rel (%p831) target = $region56
      $region55: #{bottleneck_forward.7} parent=51 // pred_region
        %s834 = smul.u32 64, %s18
        %p835 = scmp.lt.s32.totalorder %s834, 127
        %s836 = scalar_select %p835, %s834, 127
        %s837 = smul.addr %s836, 8
        %s838 = scalar_lea.vmem %s6, %s837
      $region56: #{bottleneck_forward.7} parent=51 // pred_fallthru
        _
    $region52: #{bottleneck_forward.7} parent=5 // pred_fallthru
      _
  $region6: #{bottleneck_forward.7} parent=0 // loop_footer
    %s16 = sadd.s32 1, %s12
  $region7: #{bottleneck_forward.7} parent=0 // loop_footer_branch
    %11 = sbr.rel target = $region3
  $region8: #{bottleneck_forward.7} parent=0 // loop_exit
    _

// kernel: bottleneck_forward.5
$region0: #{bottleneck_forward.5}
  #allocation0 [shape = 'u32[]', space=smem, size = 0x4, offset = 0x4, fixed_abs, tag = 'smem constant byte address 0x4 - core index']
  #allocation1 [shape = 'u32[72,128]{1,0:T(1,128)}', space=vmem, size = 0x9000, scoped, tag = 'internal scratch']
  #allocation2 [shape = 'f32[328,128]{1,0:T(8,128)}', space=vmem, size = 0x29000, scoped, tag = 'scratch operand']
  #allocation3 [shape = 'f32[288,128]{1,0:T(8,128)}', space=vmem, size = 0x24000, scoped, tag = 'scratch operand']
  %s0 = inlined_call_operand.vmem [shape: bf16[4,16,16,128], index: 0, kind: input, shape index: {}]
  %s1 = inlined_call_operand.vmem [shape: f32[1,128], index: 1, kind: input, shape index: {}]
  %s2 = inlined_call_operand.vmem [shape: f32[1,128], index: 2, kind: input, shape index: {}]
  %s3 = inlined_call_operand.vmem [shape: f32[1,128], index: 3, kind: input, shape index: {}]
  %s4 = inlined_call_operand.vmem [shape: f32[1,128], index: 4, kind: input, shape index: {}]
  %s5 = inlined_call_operand.vmem [shape: bf16[9,128,128], index: 5, kind: input, shape index: {}]
  %s6 = inlined_call_operand.vmem [shape: bf16[4,16,16,128], index: 6, kind: output, shape index: {0}]
  %s7 = inlined_call_operand.vmem [shape: f32[4,1,128], index: 7, kind: output, shape index: {1}]
  %s8 = inlined_call_operand.vmem [shape: f32[4,1,128], index: 8, kind: output, shape index: {2}]
  %9 = xla_tuple %s6, %s7, %s8
  %s10 = sld [smem:[#allocation0]]
  $region73: #{bottleneck_forward.5} parent=0
    _
  %s12 = ssub.s32 1, %s10
  %s13 = scalar_select 0, %s12, %s10
  loop: start=0, step=1, limit=6
  $region2: #{bottleneck_forward.5} parent=0 // loop_pre_header
    _
  $region3: #{bottleneck_forward.5} parent=0 // loop_header
    %s15 = sphi 0, %s19
    %p16 = scmp.ge.s32.totalorder %s15, 6
    %s25 = sphi 0, %s27
    %s28 = sphi 0, %s25
    %s29 = sphi 0, %s28
    %s45 = sphi 0, %s29
    %s49 = sphi 0, %s49
    %s51 = sphi 0, %s49
    %s52 = sphi 0, %s51
    %s66 = sphi 0, %s52
    %s70 = sphi 0, %s70
    %s72 = sphi 0, %s70
    %s73 = sphi 0, %s72
    %s87 = sphi 0, %s73
    %s91 = sphi 0, %s91
    %s93 = sphi 0, %s91
    %s94 = sphi 0, %s93
    %s108 = sphi 0, %s94
    %s112 = sphi 0, %s112
    %s114 = sphi 0, %s112
    %s115 = sphi 0, %s114
    %s129 = sphi 0, %s115
    %s133 = sphi 0, %s133
    %s135 = sphi 0, %s133
    %s136 = sphi 0, %s135
    %s150 = sphi 0, %s136
    %s156 = sphi 0, %s158
    %s159 = sphi 0, %s156
    %s160 = sphi 0, %s159
    %s176 = sphi 0, %s160
    %s182 = sphi 0, %s184
    %s185 = sphi 0, %s182
    %s186 = sphi 0, %s185
    %s202 = sphi 0, %s186
    %s208 = sphi 0, %s210
    %s211 = sphi 0, %s208
    %s212 = sphi 0, %s211
    %s228 = sphi 0, %s212
  $region4: #{bottleneck_forward.5} parent=0 // loop_header_branch
    %18 = sbr.rel (%p16) target = $region8
  $region5: #{bottleneck_forward.5} parent=0 // loop_body
    %s20 = ssub.s32 %s15, 1
    %s21 = ssub.s32 %s15, 2
    %s22 = sadd.s32 %s15, 1
    %s23 = ssub.s32 %s15, %s22
    %p24 = scmp.eq.s32.totalorder %s23, 0
    %s26 = sadd.s32 %s25, 1
    %s27 = scalar_select %p24, %s25, %s26
    %p30 = pneg %p24
    %p31 = scmp.eq.s32.totalorder %s15, 3
    %p32 = por %p30, %p31
    %p33 = scmp.ne.s32.totalorder %s25, %s28
    %p34 = scmp.eq.s32.totalorder %s15, 0
    %p35 = por %p33, %p34
    %p36 = scmp.ne.s32.totalorder %s25, %s28
    %p37 = scmp.eq.s32.totalorder %s20, 3
    %p38 = por %p36, %p37
    %p39 = scmp.ne.s32.totalorder %s28, %s29
    %p40 = scmp.eq.s32.totalorder %s20, 0
    %p41 = por %p39, %p40
    %p42 = scmp.ne.s32.totalorder %s28, %s29
    %p43 = scmp.eq.s32.totalorder %s21, 3
    %p44 = por %p42, %p43
    %p46 = scmp.ne.s32.totalorder %s29, %s45
    %p47 = scmp.eq.s32.totalorder %s21, 0
    %p48 = por %p46, %p47
    %s50 = sadd.s32 %s49, 1
    %p53 = scmp.eq.s32.totalorder %s15, 3
    %p54 = scmp.ne.s32.totalorder %s49, %s51
    %p55 = scmp.eq.s32.totalorder %s15, 0
    %p56 = por %p54, %p55
    %p57 = scmp.ne.s32.totalorder %s49, %s51
    %p58 = scmp.eq.s32.totalorder %s20, 3
    %p59 = por %p57, %p58
    %p60 = scmp.ne.s32.totalorder %s51, %s52
    %p61 = scmp.eq.s32.totalorder %s20, 0
    %p62 = por %p60, %p61
    %p63 = scmp.ne.s32.totalorder %s51, %s52
    %p64 = scmp.eq.s32.totalorder %s21, 3
    %p65 = por %p63, %p64
    %p67 = scmp.ne.s32.totalorder %s52, %s66
    %p68 = scmp.eq.s32.totalorder %s21, 0
    %p69 = por %p67, %p68
    %s71 = sadd.s32 %s70, 1
    %p74 = scmp.eq.s32.totalorder %s15, 3
    %p75 = scmp.ne.s32.totalorder %s70, %s72
    %p76 = scmp.eq.s32.totalorder %s15, 0
    %p77 = por %p75, %p76
    %p78 = scmp.ne.s32.totalorder %s70, %s72
    %p79 = scmp.eq.s32.totalorder %s20, 3
    %p80 = por %p78, %p79
    %p81 = scmp.ne.s32.totalorder %s72, %s73
    %p82 = scmp.eq.s32.totalorder %s20, 0
    %p83 = por %p81, %p82
    %p84 = scmp.ne.s32.totalorder %s72, %s73
    %p85 = scmp.eq.s32.totalorder %s21, 3
    %p86 = por %p84, %p85
    %p88 = scmp.ne.s32.totalorder %s73, %s87
    %p89 = scmp.eq.s32.totalorder %s21, 0
    %p90 = por %p88, %p89
    %s92 = sadd.s32 %s91, 1
    %p95 = scmp.eq.s32.totalorder %s15, 3
    %p96 = scmp.ne.s32.totalorder %s91, %s93
    %p97 = scmp.eq.s32.totalorder %s15, 0
    %p98 = por %p96, %p97
    %p99 = scmp.ne.s32.totalorder %s91, %s93
    %p100 = scmp.eq.s32.totalorder %s20, 3
    %p101 = por %p99, %p100
    %p102 = scmp.ne.s32.totalorder %s93, %s94
    %p103 = scmp.eq.s32.totalorder %s20, 0
    %p104 = por %p102, %p103
    %p105 = scmp.ne.s32.totalorder %s93, %s94
    %p106 = scmp.eq.s32.totalorder %s21, 3
    %p107 = por %p105, %p106
    %p109 = scmp.ne.s32.totalorder %s94, %s108
    %p110 = scmp.eq.s32.totalorder %s21, 0
    %p111 = por %p109, %p110
    %s113 = sadd.s32 %s112, 1
    %p116 = scmp.eq.s32.totalorder %s15, 3
    %p117 = scmp.ne.s32.totalorder %s112, %s114
    %p118 = scmp.eq.s32.totalorder %s15, 0
    %p119 = por %p117, %p118
    %p120 = scmp.ne.s32.totalorder %s112, %s114
    %p121 = scmp.eq.s32.totalorder %s20, 3
    %p122 = por %p120, %p121
    %p123 = scmp.ne.s32.totalorder %s114, %s115
    %p124 = scmp.eq.s32.totalorder %s20, 0
    %p125 = por %p123, %p124
    %p126 = scmp.ne.s32.totalorder %s114, %s115
    %p127 = scmp.eq.s32.totalorder %s21, 3
    %p128 = por %p126, %p127
    %p130 = scmp.ne.s32.totalorder %s115, %s129
    %p131 = scmp.eq.s32.totalorder %s21, 0
    %p132 = por %p130, %p131
    %s134 = sadd.s32 %s133, 1
    %p137 = scmp.eq.s32.totalorder %s15, 3
    %p138 = scmp.ne.s32.totalorder %s133, %s135
    %p139 = scmp.eq.s32.totalorder %s15, 0
    %p140 = por %p138, %p139
    %p141 = scmp.ne.s32.totalorder %s133, %s135
    %p142 = scmp.eq.s32.totalorder %s20, 3
    %p143 = por %p141, %p142
    %p144 = scmp.ne.s32.totalorder %s135, %s136
    %p145 = scmp.eq.s32.totalorder %s20, 0
    %p146 = por %p144, %p145
    %p147 = scmp.ne.s32.totalorder %s135, %s136
    %p148 = scmp.eq.s32.totalorder %s21, 3
    %p149 = por %p147, %p148
    %p151 = scmp.ne.s32.totalorder %s136, %s150
    %p152 = scmp.eq.s32.totalorder %s21, 0
    %p153 = por %p151, %p152
    %s154 = ssub.s32 %s15, %s22
    %p155 = scmp.eq.s32.totalorder %s154, 0
    %s157 = sadd.s32 %s156, 1
    %s158 = scalar_select %p155, %s156, %s157
    %p161 = pneg %p155
    %p162 = scmp.eq.s32.totalorder %s15, 3
    %p163 = por %p161, %p162
    %p164 = scmp.ne.s32.totalorder %s156, %s159
    %p165 = scmp.eq.s32.totalorder %s15, 0
    %p166 = por %p164, %p165
    %p167 = scmp.ne.s32.totalorder %s156, %s159
    %p168 = scmp.eq.s32.totalorder %s20, 3
    %p169 = por %p167, %p168
    %p170 = scmp.ne.s32.totalorder %s159, %s160
    %p171 = scmp.eq.s32.totalorder %s20, 0
    %p172 = por %p170, %p171
    %p173 = scmp.ne.s32.totalorder %s159, %s160
    %p174 = scmp.eq.s32.totalorder %s21, 3
    %p175 = por %p173, %p174
    %p177 = scmp.ne.s32.totalorder %s160, %s176
    %p178 = scmp.eq.s32.totalorder %s21, 0
    %p179 = por %p177, %p178
    %s180 = ssub.s32 %s15, %s22
    %p181 = scmp.eq.s32.totalorder %s180, 0
    %s183 = sadd.s32 %s182, 1
    %s184 = scalar_select %p181, %s182, %s183
    %p187 = pneg %p181
    %p188 = scmp.eq.s32.totalorder %s15, 3
    %p189 = por %p187, %p188
    %p190 = scmp.ne.s32.totalorder %s182, %s185
    %p191 = scmp.eq.s32.totalorder %s15, 0
    %p192 = por %p190, %p191
    %p193 = scmp.ne.s32.totalorder %s182, %s185
    %p194 = scmp.eq.s32.totalorder %s20, 3
    %p195 = por %p193, %p194
    %p196 = scmp.ne.s32.totalorder %s185, %s186
    %p197 = scmp.eq.s32.totalorder %s20, 0
    %p198 = por %p196, %p197
    %p199 = scmp.ne.s32.totalorder %s185, %s186
    %p200 = scmp.eq.s32.totalorder %s21, 3
    %p201 = por %p199, %p200
    %p203 = scmp.ne.s32.totalorder %s186, %s202
    %p204 = scmp.eq.s32.totalorder %s21, 0
    %p205 = por %p203, %p204
    %s206 = ssub.s32 %s15, %s22
    %p207 = scmp.eq.s32.totalorder %s206, 0
    %s209 = sadd.s32 %s208, 1
    %s210 = scalar_select %p207, %s208, %s209
    %p213 = pneg %p207
    %p214 = scmp.eq.s32.totalorder %s15, 3
    %p215 = por %p213, %p214
    %p216 = scmp.ne.s32.totalorder %s208, %s211
    %p217 = scmp.eq.s32.totalorder %s15, 0
    %p218 = por %p216, %p217
    %p219 = scmp.ne.s32.totalorder %s208, %s211
    %p220 = scmp.eq.s32.totalorder %s20, 3
    %p221 = por %p219, %p220
    %p222 = scmp.ne.s32.totalorder %s211, %s212
    %p223 = scmp.eq.s32.totalorder %s20, 0
    %p224 = por %p222, %p223
    %p225 = scmp.ne.s32.totalorder %s211, %s212
    %p226 = scmp.eq.s32.totalorder %s21, 3
    %p227 = por %p225, %p226
    %p229 = scmp.ne.s32.totalorder %s212, %s228
    %p230 = scmp.eq.s32.totalorder %s21, 0
    %p231 = por %p229, %p230
    %p232 = scmp.le.s32.totalorder 1, %s15
    %p233 = scmp.lt.s32.totalorder %s15, 5
    %p234 = pnand %p232, %p233
    %p235 = pneg %p234
    // Predicated region
    $region9: #{bottleneck_forward.5} parent=5 // pred_check
      _
    $region10: #{bottleneck_forward.5} parent=5 // pred_check_branch
      %237 = sbr.rel (%p234) target = $region12
    $region11: #{bottleneck_forward.5} parent=5 // pred_region
      %s238 = ssub.s32 %s15, 1
      // Predicated region
      $region13: #{bottleneck_forward.5} parent=11 // pred_check
        %p239 = pneg %p62
      $region14: #{bottleneck_forward.5} parent=11 // pred_check_branch
        %241 = sbr.rel (%p239) target = $region16
      $region15: #{bottleneck_forward.5} parent=11 // pred_region
        _
      $region16: #{bottleneck_forward.5} parent=11 // pred_fallthru
        _
      // Predicated region
      $region17: #{bottleneck_forward.5} parent=11 // pred_check
        %p242 = pneg %p83
      $region18: #{bottleneck_forward.5} parent=11 // pred_check_branch
        %244 = sbr.rel (%p242) target = $region20
      $region19: #{bottleneck_forward.5} parent=11 // pred_region
        _
      $region20: #{bottleneck_forward.5} parent=11 // pred_fallthru
        _
      // Predicated region
      $region21: #{bottleneck_forward.5} parent=11 // pred_check
        %p245 = pneg %p104
      $region22: #{bottleneck_forward.5} parent=11 // pred_check_branch
        %247 = sbr.rel (%p245) target = $region24
      $region23: #{bottleneck_forward.5} parent=11 // pred_region
        _
      $region24: #{bottleneck_forward.5} parent=11 // pred_fallthru
        _
      // Predicated region
      $region25: #{bottleneck_forward.5} parent=11 // pred_check
        %p248 = pneg %p125
      $region26: #{bottleneck_forward.5} parent=11 // pred_check_branch
        %250 = sbr.rel (%p248) target = $region28
      $region27: #{bottleneck_forward.5} parent=11 // pred_region
        _
      $region28: #{bottleneck_forward.5} parent=11 // pred_fallthru
        _
      // Predicated region
      $region29: #{bottleneck_forward.5} parent=11 // pred_check
        %p251 = pneg %p146
      $region30: #{bottleneck_forward.5} parent=11 // pred_check_branch
        %253 = sbr.rel (%p251) target = $region32
      $region31: #{bottleneck_forward.5} parent=11 // pred_region
        _
      $region32: #{bottleneck_forward.5} parent=11 // pred_fallthru
        _
    $region12: #{bottleneck_forward.5} parent=5 // pred_fallthru
      _
    %p254 = scmp.lt.s32.totalorder %s15, 4
    // Predicated region
    $region33: #{bottleneck_forward.5} parent=5 // pred_check
      %p255 = pneg %p254
    $region34: #{bottleneck_forward.5} parent=5 // pred_check_branch
      %257 = sbr.rel (%p255) target = $region36
    $region35: #{bottleneck_forward.5} parent=5 // pred_region
      // Predicated region
      $region37: #{bottleneck_forward.5} parent=35 // pred_check
        %p258 = pneg %p35
      $region38: #{bottleneck_forward.5} parent=35 // pred_check_branch
        %260 = sbr.rel (%p258) target = $region40
      $region39: #{bottleneck_forward.5} parent=35 // pred_region
        %p261 = scmp.lt.s32.totalorder %s15, 3
        %s262 = scalar_select %p261, %s15, 3
        %s263 = smul.addr %s262, 32
        %s264 = smul.addr %s263, 4
        %s265 = scalar_lea.vmem %s0, %s264
      $region40: #{bottleneck_forward.5} parent=35 // pred_fallthru
        _
    $region36: #{bottleneck_forward.5} parent=5 // pred_fallthru
      _
    %p266 = scmp.le.s32.totalorder 1, %s15
    %p267 = scmp.lt.s32.totalorder %s15, 5
    %p268 = pnand %p266, %p267
    %p269 = pneg %p268
    // Predicated region
    $region41: #{bottleneck_forward.5} parent=5 // pred_check
      _
    $region42: #{bottleneck_forward.5} parent=5 // pred_check_branch
      %271 = sbr.rel (%p268) target = $region44
    $region43: #{bottleneck_forward.5} parent=5 // pred_region
      %s272 = ssub.s32 %s15, 1
      %p273 = scmp.lt.s32.totalorder %s20, 3
      %s274 = scalar_select %p273, %s20, 3
      %s275 = smul.addr %s274, 32
      %s276 = smul.addr %s275, 4
      %s277 = scalar_lea.vmem %s0, %s276
      %p278 = pneg %p41
      %p279 = pneg %p38
      %p280 = pneg %p62
      %p281 = pneg %p59
      %p282 = pneg %p83
      %p283 = pneg %p80
      %p284 = pneg %p104
      %p285 = pneg %p101
      %p286 = pneg %p125
      %p287 = pneg %p122
      %p288 = pneg %p146
      %p289 = pneg %p143
      %p290 = pneg %p172
      %p291 = pneg %p169
      %p292 = scmp.lt.s32.totalorder %s20, 3
      %s293 = scalar_select %p292, %s20, 3
      %s294 = smul.addr %s293, 32
      %s295 = smul.addr %s294, 4
      %s296 = scalar_lea.vmem %s6, %s295
      %p297 = pneg %p198
      %p298 = pneg %p195
      %p299 = scmp.lt.s32.totalorder %s20, 3
      %s300 = scalar_select %p299, %s20, 3
      %s301 = scalar_lea.vmem %s7, %s300
      %p302 = pneg %p224
      %p303 = pneg %p221
      %p304 = scmp.lt.s32.totalorder %s20, 3
      %s305 = scalar_select %p304, %s20, 3
      %s306 = scalar_lea.vmem %s8, %s305
      %p307 = scmp.lt.s32.totalorder %s20, 3
      %s308 = scalar_select %p307, %s20, 3
      %s309 = smul.addr %s308, 32
      %s310 = smul.addr %s309, 4
      %s311 = scalar_lea.vmem %s0, %s310
      %p312 = scmp.lt.s32.totalorder %s20, 3
      %s313 = scalar_select %p312, %s20, 3
      %s314 = smul.addr %s313, 32
      %s315 = smul.addr %s314, 4
      %s316 = scalar_lea.vmem %s6, %s315
      %p317 = scmp.lt.s32.totalorder %s20, 3
      %s318 = scalar_select %p317, %s20, 3
      %s319 = scalar_lea.vmem %s7, %s318
      %p320 = scmp.lt.s32.totalorder %s20, 3
      %s321 = scalar_select %p320, %s20, 3
      %s322 = scalar_lea.vmem %s8, %s321
      %v323 = vld [vmem:[%s1] sm:$0x1]
      %v324 = vmul.f32 %v323, 0.0009765625
      %v325 = vld [vmem:[%s2] sm:$0x1]
      %v326 = vmul.f32 %v325, 0.0009765625
      %v327 = vmul.f32 %v324, %v324
      %v328 = vsub.f32 %v326, %v327
      %v329 = vld [vmem:[%s3] sm:$0x1]
      %v330 = vadd.f32 %v328, 1e-05
      %v331 = vrsqrt.pop %v330
      %v332 = vmul.f32 %v331, %v330
      %v333 = vmul.f32 %v332, %v331
      %v334 = vmul.f32 0.5, %v333
      %v335 = vsub.f32 1.5, %v334
      %v336 = vmul.f32 %v331, %v335
      %vm337 = vweird.f32 %v330
      %vm338 = vweird.f32 %v331
      %vm339 = vmor %vm337, %vm338
      %v340 = vsel %vm339, %v331, %v336
      %v341 = vmul.f32 %v329, %v340
      %v342 = vld [vmem:[%s4] sm:$0x1]
      %v343 = vmul.f32 %v324, %v341
      %v344 = vsub.f32 %v342, %v343
      %v345 = vld [vmem:[%s311] sm:$0xf]
      %v346 = vld [vmem:[%s311 + $0x4] sm:$0xf]
      %v347 = vld [vmem:[%s311 + $0x8] sm:$0xf]
      %v348 = vld [vmem:[%s311 + $0xc] sm:$0xf]
      %v349 = vld [vmem:[%s311 + $0x10] sm:$0xf]
      %v350 = vld [vmem:[%s311 + $0x14] sm:$0xf]
      %v351 = vld [vmem:[%s311 + $0x18] sm:$0xf]
      %v352 = vld [vmem:[%s311 + $0x1c] sm:$0xf]
      %v353 = vld [vmem:[%s311 + $0x20] sm:$0xf]
      %v354 = vld [vmem:[%s311 + $0x24] sm:$0xf]
      %v355 = vld [vmem:[%s311 + $0x28] sm:$0xf]
      %v356 = vld [vmem:[%s311 + $0x2c] sm:$0xf]
      %v357 = vld [vmem:[%s311 + $0x30] sm:$0xf]
      %v358 = vld [vmem:[%s311 + $0x34] sm:$0xf]
      %v359 = vld [vmem:[%s311 + $0x38] sm:$0xf]
      %v360 = vld [vmem:[%s311 + $0x3c] sm:$0xf]
      %v361 = vld [vmem:[%s311 + $0x40] sm:$0xf]
      %v362 = vld [vmem:[%s311 + $0x44] sm:$0xf]
      %v363 = vld [vmem:[%s311 + $0x48] sm:$0xf]
      %v364 = vld [vmem:[%s311 + $0x4c] sm:$0xf]
      %v365 = vld [vmem:[%s311 + $0x50] sm:$0xf]
      %v366 = vld [vmem:[%s311 + $0x54] sm:$0xf]
      %v367 = vld [vmem:[%s311 + $0x58] sm:$0xf]
      %v368 = vld [vmem:[%s311 + $0x5c] sm:$0xf]
      %v369 = vld [vmem:[%s311 + $0x60] sm:$0xf]
      %v370 = vld [vmem:[%s311 + $0x64] sm:$0xf]
      %v371 = vld [vmem:[%s311 + $0x68] sm:$0xf]
      %v372 = vld [vmem:[%s311 + $0x6c] sm:$0xf]
      %v373 = vld [vmem:[%s311 + $0x70] sm:$0xf]
      %v374 = vld [vmem:[%s311 + $0x74] sm:$0xf]
      %v375 = vld [vmem:[%s311 + $0x78] sm:$0xf]
      %v376 = vld [vmem:[%s311 + $0x7c] sm:$0xf]
      %v377 = vunpack.c.l.bf16 %v345
      %v378 = vunpack.c.l.bf16 %v346
      %v379 = vunpack.c.l.bf16 %v347
      %v380 = vunpack.c.l.bf16 %v348
      %v381 = vunpack.c.l.bf16 %v349
      %v382 = vunpack.c.l.bf16 %v350
      %v383 = vunpack.c.l.bf16 %v351
      %v384 = vunpack.c.l.bf16 %v352
      %v385 = vunpack.c.l.bf16 %v353
      %v386 = vunpack.c.l.bf16 %v354
      %v387 = vunpack.c.l.bf16 %v355
      %v388 = vunpack.c.l.bf16 %v356
      %v389 = vunpack.c.l.bf16 %v357
      %v390 = vunpack.c.l.bf16 %v358
      %v391 = vunpack.c.l.bf16 %v359
      %v392 = vunpack.c.l.bf16 %v360
      %v393 = vunpack.c.l.bf16 %v361
      %v394 = vunpack.c.l.bf16 %v362
      %v395 = vunpack.c.l.bf16 %v363
      %v396 = vunpack.c.l.bf16 %v364
      %v397 = vunpack.c.l.bf16 %v365
      %v398 = vunpack.c.l.bf16 %v366
      %v399 = vunpack.c.l.bf16 %v367
      %v400 = vunpack.c.l.bf16 %v368
      %v401 = vunpack.c.l.bf16 %v369
      %v402 = vunpack.c.l.bf16 %v370
      %v403 = vunpack.c.l.bf16 %v371
      %v404 = vunpack.c.l.bf16 %v372
      %v405 = vunpack.c.l.bf16 %v373
      %v406 = vunpack.c.l.bf16 %v374
      %v407 = vunpack.c.l.bf16 %v375
      %v408 = vunpack.c.l.bf16 %v376
      %v410 = vperm.slane %v341, 0
      %v412 = vmul.f32 %v377, %v410
      %v413 = vmul.f32 %v378, %v410
      %v414 = vmul.f32 %v379, %v410
      %v415 = vmul.f32 %v380, %v410
      %v416 = vmul.f32 %v381, %v410
      %v417 = vmul.f32 %v382, %v410
      %v418 = vmul.f32 %v383, %v410
      %v419 = vmul.f32 %v384, %v410
      %v420 = vmul.f32 %v385, %v410
      %v421 = vmul.f32 %v386, %v410
      %v422 = vmul.f32 %v387, %v410
      %v423 = vmul.f32 %v388, %v410
      %v424 = vmul.f32 %v389, %v410
      %v425 = vmul.f32 %v390, %v410
      %v426 = vmul.f32 %v391, %v410
      %v427 = vmul.f32 %v392, %v410
      %v428 = vmul.f32 %v393, %v410
      %v429 = vmul.f32 %v394, %v410
      %v430 = vmul.f32 %v395, %v410
      %v431 = vmul.f32 %v396, %v410
      %v432 = vmul.f32 %v397, %v410
      %v433 = vmul.f32 %v398, %v410
      %v434 = vmul.f32 %v399, %v410
      %v435 = vmul.f32 %v400, %v410
      %v436 = vmul.f32 %v401, %v410
      %v437 = vmul.f32 %v402, %v410
      %v438 = vmul.f32 %v403, %v410
      %v439 = vmul.f32 %v404, %v410
      %v440 = vmul.f32 %v405, %v410
      %v441 = vmul.f32 %v406, %v410
      %v442 = vmul.f32 %v407, %v410
      %v443 = vmul.f32 %v408, %v410
      %v445 = vperm.slane %v344, 0
      %v447 = vadd.f32 %v412, %v445
      %v448 = vadd.f32 %v413, %v445
      %v449 = vadd.f32 %v414, %v445
      %v450 = vadd.f32 %v415, %v445
      %v451 = vadd.f32 %v416, %v445
      %v452 = vadd.f32 %v417, %v445
      %v453 = vadd.f32 %v418, %v445
      %v454 = vadd.f32 %v419, %v445
      %v455 = vadd.f32 %v420, %v445
      %v456 = vadd.f32 %v421, %v445
      %v457 = vadd.f32 %v422, %v445
      %v458 = vadd.f32 %v423, %v445
      %v459 = vadd.f32 %v424, %v445
      %v460 = vadd.f32 %v425, %v445
      %v461 = vadd.f32 %v426, %v445
      %v462 = vadd.f32 %v427, %v445
      %v463 = vadd.f32 %v428, %v445
      %v464 = vadd.f32 %v429, %v445
      %v465 = vadd.f32 %v430, %v445
      %v466 = vadd.f32 %v431, %v445
      %v467 = vadd.f32 %v432, %v445
      %v468 = vadd.f32 %v433, %v445
      %v469 = vadd.f32 %v434, %v445
      %v470 = vadd.f32 %v435, %v445
      %v471 = vadd.f32 %v436, %v445
      %v472 = vadd.f32 %v437, %v445
      %v473 = vadd.f32 %v438, %v445
      %v474 = vadd.f32 %v439, %v445
      %v475 = vadd.f32 %v440, %v445
      %v476 = vadd.f32 %v441, %v445
      %v477 = vadd.f32 %v442, %v445
      %v478 = vadd.f32 %v443, %v445
      %v479 = vmax.f32 %v447, 0.0
      %v480 = vmax.f32 %v448, 0.0
      %v481 = vmax.f32 %v449, 0.0
      %v482 = vmax.f32 %v450, 0.0
      %v483 = vmax.f32 %v451, 0.0
      %v484 = vmax.f32 %v452, 0.0
      %v485 = vmax.f32 %v453, 0.0
      %v486 = vmax.f32 %v454, 0.0
      %v487 = vmax.f32 %v455, 0.0
      %v488 = vmax.f32 %v456, 0.0
      %v489 = vmax.f32 %v457, 0.0
      %v490 = vmax.f32 %v458, 0.0
      %v491 = vmax.f32 %v459, 0.0
      %v492 = vmax.f32 %v460, 0.0
      %v493 = vmax.f32 %v461, 0.0
      %v494 = vmax.f32 %v462, 0.0
      %v495 = vmax.f32 %v463, 0.0
      %v496 = vmax.f32 %v464, 0.0
      %v497 = vmax.f32 %v465, 0.0
      %v498 = vmax.f32 %v466, 0.0
      %v499 = vmax.f32 %v467, 0.0
      %v500 = vmax.f32 %v468, 0.0
      %v501 = vmax.f32 %v469, 0.0
      %v502 = vmax.f32 %v470, 0.0
      %v503 = vmax.f32 %v471, 0.0
      %v504 = vmax.f32 %v472, 0.0
      %v505 = vmax.f32 %v473, 0.0
      %v506 = vmax.f32 %v474, 0.0
      %v507 = vmax.f32 %v475, 0.0
      %v508 = vmax.f32 %v476, 0.0
      %v509 = vmax.f32 %v477, 0.0
      %v510 = vmax.f32 %v478, 0.0
      %511 = vst [vmem:[#allocation2] sm:$0xff] 0.0
      %512 = vst [vmem:[#allocation2 + $0x8] sm:$0xff] 0.0
      %513 = vst [vmem:[#allocation2 + $0x10] sm:$0x3] 0.0
      %514 = vst [vmem:[#allocation2 + $0x132] sm:$0xff] 0.0
      %515 = vst [vmem:[#allocation2 + $0x13a] sm:$0xff] 0.0
      %516 = vst [vmem:[#allocation2 + $0x142] sm:$0x3f] 0.0
      %vm549 = vcmask 1040384
      %v550 = vrot.slane %v479, 7
      %v551 = vrot.slane %v480, 7
      %v552 = vsel %vm549, %v550, %v551
      %v553 = vrot.slane %v481, 7
      %v554 = vrot.slane %v482, 7
      %v555 = vsel %vm549, %v553, %v554
      %v556 = vrot.slane %v483, 7
      %v557 = vrot.slane %v484, 7
      %v558 = vsel %vm549, %v556, %v557
      %v559 = vrot.slane %v485, 7
      %v560 = vrot.slane %v486, 7
      %v561 = vsel %vm549, %v559, %v560
      %v562 = vrot.slane %v487, 7
      %v563 = vrot.slane %v488, 7
      %v564 = vsel %vm549, %v562, %v563
      %v565 = vrot.slane %v489, 7
      %v566 = vrot.slane %v490, 7
      %v567 = vsel %vm549, %v565, %v566
      %v568 = vrot.slane %v491, 7
      %v569 = vrot.slane %v492, 7
      %v570 = vsel %vm549, %v568, %v569
      %v571 = vrot.slane %v493, 7
      %v572 = vrot.slane %v494, 7
      %v573 = vsel %vm549, %v571, %v572
      %v574 = vrot.slane %v495, 7
      %v575 = vrot.slane %v496, 7
      %v576 = vsel %vm549, %v574, %v575
      %v577 = vrot.slane %v497, 7
      %v578 = vrot.slane %v498, 7
      %v579 = vsel %vm549, %v577, %v578
      %v580 = vrot.slane %v499, 7
      %v581 = vrot.slane %v500, 7
      %v582 = vsel %vm549, %v580, %v581
      %v583 = vrot.slane %v501, 7
      %v584 = vrot.slane %v502, 7
      %v585 = vsel %vm549, %v583, %v584
      %v586 = vrot.slane %v503, 7
      %v587 = vrot.slane %v504, 7
      %v588 = vsel %vm549, %v586, %v587
      %v589 = vrot.slane %v505, 7
      %v590 = vrot.slane %v506, 7
      %v591 = vsel %vm549, %v589, %v590
      %v592 = vrot.slane %v507, 7
      %v593 = vrot.slane %v508, 7
      %v594 = vsel %vm549, %v592, %v593
      %v595 = vrot.slane %v509, 7
      %v596 = vrot.slane %v510, 7
      %v597 = vsel %vm549, %v595, %v596
      %v630 = vsel %vm549, 0.0, %v550
      %v631 = vsel %vm549, 0.0, %v553
      %v632 = vsel %vm549, 0.0, %v556
      %v633 = vsel %vm549, 0.0, %v559
      %v634 = vsel %vm549, 0.0, %v562
      %v635 = vsel %vm549, 0.0, %v565
      %v636 = vsel %vm549, 0.0, %v568
      %v637 = vsel %vm549, 0.0, %v571
      %v638 = vsel %vm549, 0.0, %v574
      %v639 = vsel %vm549, 0.0, %v577
      %v640 = vsel %vm549, 0.0, %v580
      %v641 = vsel %vm549, 0.0, %v583
      %v642 = vsel %vm549, 0.0, %v586
      %v643 = vsel %vm549, 0.0, %v589
      %v644 = vsel %vm549, 0.0, %v592
      %v645 = vsel %vm549, 0.0, %v595
      %v646 = vsel %vm549, %v551, 0.0
      %v647 = vsel %vm549, %v554, 0.0
      %v648 = vsel %vm549, %v557, 0.0
      %v649 = vsel %vm549, %v560, 0.0
      %v650 = vsel %vm549, %v563, 0.0
      %v651 = vsel %vm549, %v566, 0.0
      %v652 = vsel %vm549, %v569, 0.0
      %v653 = vsel %vm549, %v572, 0.0
      %v654 = vsel %vm549, %v575, 0.0
      %v655 = vsel %vm549, %v578, 0.0
      %v656 = vsel %vm549, %v581, 0.0
      %v657 = vsel %vm549, %v584, 0.0
      %v658 = vsel %vm549, %v587, 0.0
      %v659 = vsel %vm549, %v590, 0.0
      %v660 = vsel %vm549, %v593, 0.0
      %v661 = vsel %vm549, %v596, 0.0
      %v694 = vrot.slane %v630, 2
      %v695 = vrot.slane %v630, 4
      %v696 = vrot.slane %v630, 6
      %v697 = vrot.slane %v552, 2
      %v698 = vrot.slane %v552, 4
      %v699 = vrot.slane %v552, 6
      %v700 = vrot.slane %v631, 2
      %v701 = vrot.slane %v631, 4
      %v702 = vrot.slane %v631, 6
      %v703 = vrot.slane %v555, 2
      %v704 = vrot.slane %v555, 4
      %v705 = vrot.slane %v555, 6
      %v706 = vrot.slane %v632, 2
      %v707 = vrot.slane %v632, 4
      %v708 = vrot.slane %v632, 6
      %v709 = vrot.slane %v558, 2
      %v710 = vrot.slane %v558, 4
      %v711 = vrot.slane %v558, 6
      %v712 = vrot.slane %v633, 2
      %v713 = vrot.slane %v633, 4
      %v714 = vrot.slane %v633, 6
      %v715 = vrot.slane %v561, 2
      %v716 = vrot.slane %v561, 4
      %v717 = vrot.slane %v561, 6
      %v718 = vrot.slane %v634, 2
      %v719 = vrot.slane %v634, 4
      %v720 = vrot.slane %v634, 6
      %v721 = vrot.slane %v564, 2
      %v722 = vrot.slane %v564, 4
      %v723 = vrot.slane %v564, 6
      %v724 = vrot.slane %v635, 2
      %v725 = vrot.slane %v635, 4
      %v726 = vrot.slane %v635, 6
      %v727 = vrot.slane %v567, 2
      %v728 = vrot.slane %v567, 4
      %v729 = vrot.slane %v567, 6
      %v730 = vrot.slane %v636, 2
      %v731 = vrot.slane %v636, 4
      %v732 = vrot.slane %v636, 6
      %v733 = vrot.slane %v570, 2
      %v734 = vrot.slane %v570, 4
      %v735 = vrot.slane %v570, 6
      %v736 = vrot.slane %v637, 2
      %v737 = vrot.slane %v637, 4
      %v738 = vrot.slane %v637, 6
      %v739 = vrot.slane %v573, 2
      %v740 = vrot.slane %v573, 4
      %v741 = vrot.slane %v573, 6
      %v742 = vrot.slane %v638, 2
      %v743 = vrot.slane %v638, 4
      %v744 = vrot.slane %v638, 6
      %v745 = vrot.slane %v576, 2
      %v746 = vrot.slane %v576, 4
      %v747 = vrot.slane %v576, 6
      %v748 = vrot.slane %v639, 2
      %v749 = vrot.slane %v639, 4
      %v750 = vrot.slane %v639, 6
      %v751 = vrot.slane %v579, 2
      %v752 = vrot.slane %v579, 4
      %v753 = vrot.slane %v579, 6
      %v754 = vrot.slane %v640, 2
      %v755 = vrot.slane %v640, 4
      %v756 = vrot.slane %v640, 6
      %v757 = vrot.slane %v582, 2
      %v758 = vrot.slane %v582, 4
      %v759 = vrot.slane %v582, 6
      %v760 = vrot.slane %v641, 2
      %v761 = vrot.slane %v641, 4
      %v762 = vrot.slane %v641, 6
      %v763 = vrot.slane %v585, 2
      %v764 = vrot.slane %v585, 4
      %v765 = vrot.slane %v585, 6
      %v766 = vrot.slane %v642, 2
      %v767 = vrot.slane %v642, 4
      %v768 = vrot.slane %v642, 6
      %v769 = vrot.slane %v588, 2
      %v770 = vrot.slane %v588, 4
      %v771 = vrot.slane %v588, 6
      %v772 = vrot.slane %v643, 2
      %v773 = vrot.slane %v643, 4
      %v774 = vrot.slane %v643, 6
      %v775 = vrot.slane %v591, 2
      %v776 = vrot.slane %v591, 4
      %v777 = vrot.slane %v591, 6
      %v778 = vrot.slane %v644, 2
      %v779 = vrot.slane %v644, 4
      %v780 = vrot.slane %v644, 6
      %v781 = vrot.slane %v594, 2
      %v782 = vrot.slane %v594, 4
      %v783 = vrot.slane %v594, 6
      %v784 = vrot.slane %v645, 2
      %v785 = vrot.slane %v645, 4
      %v786 = vrot.slane %v645, 6
      %v787 = vrot.slane %v597, 2
      %v788 = vrot.slane %v597, 4
      %v789 = vrot.slane %v597, 6
      %790 = vst [vmem:[#allocation1] ss:$4 sm:$0xff] %v630
      %s791 = scalar_lea.vmem [#allocation1], 1
      %792 = vst [vmem:[%s791] ss:$4 sm:$0xff] %v694
      %s793 = scalar_lea.vmem [#allocation1], 2
      %794 = vst [vmem:[%s793] ss:$4 sm:$0xff] %v695
      %s795 = scalar_lea.vmem [#allocation1], 3
      %796 = vst [vmem:[%s795] ss:$4 sm:$0xff] %v696
      %s797 = scalar_lea.vmem [#allocation1], 32
      %798 = vst [vmem:[%s797] ss:$4 sm:$0xff] %v552
      %s799 = scalar_lea.vmem [#allocation1], 33
      %800 = vst [vmem:[%s799] ss:$4 sm:$0xff] %v697
      %s801 = scalar_lea.vmem [#allocation1], 34
      %802 = vst [vmem:[%s801] ss:$4 sm:$0xff] %v698
      %s803 = scalar_lea.vmem [#allocation1], 35
      %804 = vst [vmem:[%s803] ss:$4 sm:$0xff] %v699
      %v805 = vld.sshfl [vmem:[#allocation1] sm:$0xff pattern:$0x73625140]
      %v806 = vld.sshfl [vmem:[#allocation1 + $0x20] sm:$0xff pattern:$0x73625140]
      %807 = vst [vmem:[#allocation1] ss:$4 sm:$0xff] %v646
      %808 = vst [vmem:[%s791] ss:$4 sm:$0xff] %v631
      %809 = vst [vmem:[%s793] ss:$4 sm:$0xff] %v700
      %810 = vst [vmem:[%s795] ss:$4 sm:$0xff] %v701
      %811 = vst [vmem:[%s797] ss:$4 sm:$0xff] %v702
      %812 = vst [vmem:[%s799] ss:$4 sm:$0xff] %v555
      %813 = vst [vmem:[%s801] ss:$4 sm:$0xff] %v703
      %814 = vst [vmem:[%s803] ss:$4 sm:$0xff] %v704
      %v815 = vld.sshfl [vmem:[#allocation1] sm:$0xff pattern:$0x73625140]
      %v816 = vld.sshfl [vmem:[#allocation1 + $0x20] sm:$0xff pattern:$0x73625140]
      %817 = vst [vmem:[#allocation1] ss:$4 sm:$0xff] %v705
      %818 = vst [vmem:[%s791] ss:$4 sm:$0xff] %v647
      %819 = vst [vmem:[%s793] ss:$4 sm:$0xff] %v632
      %820 = vst [vmem:[%s795] ss:$4 sm:$0xff] %v706
      %821 = vst [vmem:[%s797] ss:$4 sm:$0xff] %v707
      %822 = vst [vmem:[%s799] ss:$4 sm:$0xff] %v708
      %823 = vst [vmem:[%s801] ss:$4 sm:$0xff] %v558
      %824 = vst [vmem:[%s803] ss:$4 sm:$0xff] %v709
      %v825 = vld.sshfl [vmem:[#allocation1] sm:$0xff pattern:$0x73625140]
      %v826 = vld.sshfl [vmem:[#allocation1 + $0x20] sm:$0xff pattern:$0x73625140]
      %827 = vst [vmem:[#allocation1] ss:$4 sm:$0xff] %v710
      %828 = vst [vmem:[%s791] ss:$4 sm:$0xff] %v711
      %829 = vst [vmem:[%s793] ss:$4 sm:$0xff] %v648
      %830 = vst [vmem:[%s795] ss:$4 sm:$0xff] %v633
      %831 = vst [vmem:[%s797] ss:$4 sm:$0xff] %v712
      %832 = vst [vmem:[%s799] ss:$4 sm:$0xff] %v713
      %833 = vst [vmem:[%s801] ss:$4 sm:$0xff] %v714
      %834 = vst [vmem:[%s803] ss:$4 sm:$0xff] %v561
      %v835 = vld.sshfl [vmem:[#allocation1] sm:$0xff pattern:$0x73625140]
      %v836 = vld.sshfl [vmem:[#allocation1 + $0x20] sm:$0xff pattern:$0x73625140]
      %837 = vst [vmem:[#allocation1] ss:$4 sm:$0xff] %v715
      %838 = vst [vmem:[%s791] ss:$4 sm:$0xff] %v716
      %839 = vst [vmem:[%s793] ss:$4 sm:$0xff] %v717
      %840 = vst [vmem:[%s795] ss:$4 sm:$0xff] %v649
      %841 = vst [vmem:[%s797] ss:$4 sm:$0xff] %v634
      %842 = vst [vmem:[%s799] ss:$4 sm:$0xff] %v718
      %843 = vst [vmem:[%s801] ss:$4 sm:$0xff] %v719
      %844 = vst [vmem:[%s803] ss:$4 sm:$0xff] %v720
      %v845 = vld.sshfl [vmem:[#allocation1] sm:$0xff pattern:$0x73625140]
      %v846 = vld.sshfl [vmem:[#allocation1 + $0x20] sm:$0xff pattern:$0x73625140]
      %847 = vst [vmem:[#allocation1] ss:$4 sm:$0xff] %v564
      %848 = vst [vmem:[%s791] ss:$4 sm:$0xff] %v721
      %849 = vst [vmem:[%s793] ss:$4 sm:$0xff] %v722
      %850 = vst [vmem:[%s795] ss:$4 sm:$0xff] %v723
      %851 = vst [vmem:[%s797] ss:$4 sm:$0xff] %v650
      %852 = vst [vmem:[%s799] ss:$4 sm:$0xff] %v635
      %853 = vst [vmem:[%s801] ss:$4 sm:$0xff] %v724
      %854 = vst [vmem:[%s803] ss:$4 sm:$0xff] %v725
      %v855 = vld.sshfl [vmem:[#allocation1] sm:$0xff pattern:$0x73625140]
      %v856 = vld.sshfl [vmem:[#allocation1 + $0x20] sm:$0xff pattern:$0x73625140]
      %857 = vst [vmem:[#allocation1] ss:$4 sm:$0xff] %v726
      %858 = vst [vmem:[%s791] ss:$4 sm:$0xff] %v567
      %859 = vst [vmem:[%s793] ss:$4 sm:$0xff] %v727
      %860 = vst [vmem:[%s795] ss:$4 sm:$0xff] %v728
      %861 = vst [vmem:[%s797] ss:$4 sm:$0xff] %v729
      %862 = vst [vmem:[%s799] ss:$4 sm:$0xff] %v651
      %863 = vst [vmem:[%s801] ss:$4 sm:$0xff] %v636
      %864 = vst [vmem:[%s803] ss:$4 sm:$0xff] %v730
      %v865 = vld.sshfl [vmem:[#allocation1] sm:$0xff pattern:$0x73625140]
      %v866 = vld.sshfl [vmem:[#allocation1 + $0x20] sm:$0xff pattern:$0x73625140]
      %867 = vst [vmem:[#allocation1] ss:$4 sm:$0xff] %v731
      %868 = vst [vmem:[%s791] ss:$4 sm:$0xff] %v732
      %869 = vst [vmem:[%s793] ss:$4 sm:$0xff] %v570
      %870 = vst [vmem:[%s795] ss:$4 sm:$0xff] %v733
      %871 = vst [vmem:[%s797] ss:$4 sm:$0xff] %v734
      %872 = vst [vmem:[%s799] ss:$4 sm:$0xff] %v735
      %873 = vst [vmem:[%s801] ss:$4 sm:$0xff] %v652
      %874 = vst [vmem:[%s803] ss:$4 sm:$0xff] %v637
      %v875 = vld.sshfl [vmem:[#allocation1] sm:$0xff pattern:$0x73625140]
      %v876 = vld.sshfl [vmem:[#allocation1 + $0x20] sm:$0xff pattern:$0x73625140]
      %877 = vst [vmem:[#allocation1] ss:$4 sm:$0xff] %v736
      %878 = vst [vmem:[%s791] ss:$4 sm:$0xff] %v737
      %879 = vst [vmem:[%s793] ss:$4 sm:$0xff] %v738
      %880 = vst [vmem:[%s795] ss:$4 sm:$0xff] %v573
      %881 = vst [vmem:[%s797] ss:$4 sm:$0xff] %v739
      %882 = vst [vmem:[%s799] ss:$4 sm:$0xff] %v740
      %883 = vst [vmem:[%s801] ss:$4 sm:$0xff] %v741
      %884 = vst [vmem:[%s803] ss:$4 sm:$0xff] %v653
      %v885 = vld.sshfl [vmem:[#allocation1] sm:$0xff pattern:$0x73625140]
      %v886 = vld.sshfl [vmem:[#allocation1 + $0x20] sm:$0xff pattern:$0x73625140]
      %887 = vst [vmem:[#allocation1] ss:$4 sm:$0xff] %v638
      %888 = vst [vmem:[%s791] ss:$4 sm:$0xff] %v742
      %889 = vst [vmem:[%s793] ss:$4 sm:$0xff] %v743
      %890 = vst [vmem:[%s795] ss:$4 sm:$0xff] %v744
      %891 = vst [vmem:[%s797] ss:$4 sm:$0xff] %v576
      %892 = vst [vmem:[%s799] ss:$4 sm:$0xff] %v745
      %893 = vst [vmem:[%s801] ss:$4 sm:$0xff] %v746
      %894 = vst [vmem:[%s803] ss:$4 sm:$0xff] %v747
      %v895 = vld.sshfl [vmem:[#allocation1] sm:$0xff pattern:$0x73625140]
      %v896 = vld.sshfl [vmem:[#allocation1 + $0x20] sm:$0xff pattern:$0x73625140]
      %897 = vst [vmem:[#allocation1] ss:$4 sm:$0xff] %v654
      %898 = vst [vmem:[%s791] ss:$4 sm:$0xff] %v639
      %899 = vst [vmem:[%s793] ss:$4 sm:$0xff] %v748
      %900 = vst [vmem:[%s795] ss:$4 sm:$0xff] %v749
      %901 = vst [vmem:[%s797] ss:$4 sm:$0xff] %v750
      %902 = vst [vmem:[%s799] ss:$4 sm:$0xff] %v579
      %903 = vst [vmem:[%s801] ss:$4 sm:$0xff] %v751
      %904 = vst [vmem:[%s803] ss:$4 sm:$0xff] %v752
      %v905 = vld.sshfl [vmem:[#allocation1] sm:$0xff pattern:$0x73625140]
      %v906 = vld.sshfl [vmem:[#allocation1 + $0x20] sm:$0xff pattern:$0x73625140]
      %907 = vst [vmem:[#allocation1] ss:$4 sm:$0xff] %v753
      %908 = vst [vmem:[%s791] ss:$4 sm:$0xff] %v655
      %909 = vst [vmem:[%s793] ss:$4 sm:$0xff] %v640
      %910 = vst [vmem:[%s795] ss:$4 sm:$0xff] %v754
      %911 = vst [vmem:[%s797] ss:$4 sm:$0xff] %v755
      %912 = vst [vmem:[%s799] ss:$4 sm:$0xff] %v756
      %913 = vst [vmem:[%s801] ss:$4 sm:$0xff] %v582
      %914 = vst [vmem:[%s803] ss:$4 sm:$0xff] %v757
      %v915 = vld.sshfl [vmem:[#allocation1] sm:$0xff pattern:$0x73625140]
      %v916 = vld.sshfl [vmem:[#allocation1 + $0x20] sm:$0xff pattern:$0x73625140]
      %917 = vst [vmem:[#allocation1] ss:$4 sm:$0xff] %v758
      %918 = vst [vmem:[%s791] ss:$4 sm:$0xff] %v759
      %919 = vst [vmem:[%s793] ss:$4 sm:$0xff] %v656
      %920 = vst [vmem:[%s795] ss:$4 sm:$0xff] %v641
      %921 = vst [vmem:[%s797] ss:$4 sm:$0xff] %v760
      %922 = vst [vmem:[%s799] ss:$4 sm:$0xff] %v761
      %923 = vst [vmem:[%s801] ss:$4 sm:$0xff] %v762
      %924 = vst [vmem:[%s803] ss:$4 sm:$0xff] %v585
      %v925 = vld.sshfl [vmem:[#allocation1] sm:$0xff pattern:$0x73625140]
      %v926 = vld.sshfl [vmem:[#allocation1 + $0x20] sm:$0xff pattern:$0x73625140]
      %927 = vst [vmem:[#allocation1] ss:$4 sm:$0xff] %v763
      %928 = vst [vmem:[%s791] ss:$4 sm:$0xff] %v764
      %929 = vst [vmem:[%s793] ss:$4 sm:$0xff] %v765
      %930 = vst [vmem:[%s795] ss:$4 sm:$0xff] %v657
      %931 = vst [vmem:[%s797] ss:$4 sm:$0xff] %v642
      %932 = vst [vmem:[%s799] ss:$4 sm:$0xff] %v766
      %933 = vst [vmem:[%s801] ss:$4 sm:$0xff] %v767
      %934 = vst [vmem:[%s803] ss:$4 sm:$0xff] %v768
      %v935 = vld.sshfl [vmem:[#allocation1] sm:$0xff pattern:$0x73625140]
      %v936 = vld.sshfl [vmem:[#allocation1 + $0x20] sm:$0xff pattern:$0x73625140]
      %937 = vst [vmem:[#allocation1] ss:$4 sm:$0xff] %v588
      %938 = vst [vmem:[%s791] ss:$4 sm:$0xff] %v769
      %939 = vst [vmem:[%s793] ss:$4 sm:$0xff] %v770
      %940 = vst [vmem:[%s795] ss:$4 sm:$0xff] %v771
      %941 = vst [vmem:[%s797] ss:$4 sm:$0xff] %v658
      %942 = vst [vmem:[%s799] ss:$4 sm:$0xff] %v643
      %943 = vst [vmem:[%s801] ss:$4 sm:$0xff] %v772
      %944 = vst [vmem:[%s803] ss:$4 sm:$0xff] %v773
      %v945 = vld.sshfl [vmem:[#allocation1] sm:$0xff pattern:$0x73625140]
      %v946 = vld.sshfl [vmem:[#allocation1 + $0x20] sm:$0xff pattern:$0x73625140]
      %947 = vst [vmem:[#allocation1] ss:$4 sm:$0xff] %v774
      %948 = vst [vmem:[%s791] ss:$4 sm:$0xff] %v591
      %949 = vst [vmem:[%s793] ss:$4 sm:$0xff] %v775
      %950 = vst [vmem:[%s795] ss:$4 sm:$0xff] %v776
      %951 = vst [vmem:[%s797] ss:$4 sm:$0xff] %v777
      %952 = vst [vmem:[%s799] ss:$4 sm:$0xff] %v659
      %953 = vst [vmem:[%s801] ss:$4 sm:$0xff] %v644
      %954 = vst [vmem:[%s803] ss:$4 sm:$0xff] %v778
      %v955 = vld.sshfl [vmem:[#allocation1] sm:$0xff pattern:$0x73625140]
      %v956 = vld.sshfl [vmem:[#allocation1 + $0x20] sm:$0xff pattern:$0x73625140]
      %957 = vst [vmem:[#allocation1] ss:$4 sm:$0xff] %v779
      %958 = vst [vmem:[%s791] ss:$4 sm:$0xff] %v780
      %959 = vst [vmem:[%s793] ss:$4 sm:$0xff] %v594
      %960 = vst [vmem:[%s795] ss:$4 sm:$0xff] %v781
      %961 = vst [vmem:[%s797] ss:$4 sm:$0xff] %v782
      %962 = vst [vmem:[%s799] ss:$4 sm:$0xff] %v783
      %963 = vst [vmem:[%s801] ss:$4 sm:$0xff] %v660
      %964 = vst [vmem:[%s803] ss:$4 sm:$0xff] %v645
      %v965 = vld.sshfl [vmem:[#allocation1] sm:$0xff pattern:$0x73625140]
      %v966 = vld.sshfl [vmem:[#allocation1 + $0x20] sm:$0xff pattern:$0x73625140]
      %967 = vst [vmem:[#allocation1] ss:$4 sm:$0xff] %v784
      %968 = vst [vmem:[%s791] ss:$4 sm:$0xff] %v785
      %969 = vst [vmem:[%s793] ss:$4 sm:$0xff] %v786
      %970 = vst [vmem:[%s795] ss:$4 sm:$0xff] %v597
      %971 = vst [vmem:[%s797] ss:$4 sm:$0xff] %v787
      %972 = vst [vmem:[%s799] ss:$4 sm:$0xff] %v788
      %973 = vst [vmem:[%s801] ss:$4 sm:$0xff] %v789
      %974 = vst [vmem:[%s803] ss:$4 sm:$0xff] %v661
      %v975 = vld.sshfl [vmem:[#allocation1] sm:$0xff pattern:$0x73625140]
      %v976 = vld.sshfl [vmem:[#allocation1 + $0x20] sm:$0xff pattern:$0x73625140]
      %1013 = vst [vmem:[#allocation2 + $0x12] sm:$0xff] %v805
      %1014 = vst [vmem:[#allocation2 + $0x1a] sm:$0xff] %v806
      %1015 = vst [vmem:[#allocation2 + $0x22] sm:$0xff] %v815
      %1016 = vst [vmem:[#allocation2 + $0x2a] sm:$0xff] %v816
      %1017 = vst [vmem:[#allocation2 + $0x32] sm:$0xff] %v825
      %1018 = vst [vmem:[#allocation2 + $0x3a] sm:$0xff] %v826
      %1019 = vst [vmem:[#allocation2 + $0x42] sm:$0xff] %v835
      %1020 = vst [vmem:[#allocation2 + $0x4a] sm:$0xff] %v836
      %1021 = vst [vmem:[#allocation2 + $0x52] sm:$0xff] %v845
      %1022 = vst [vmem:[#allocation2 + $0x5a] sm:$0xff] %v846
      %1023 = vst [vmem:[#allocation2 + $0x62] sm:$0xff] %v855
      %1024 = vst [vmem:[#allocation2 + $0x6a] sm:$0xff] %v856
      %1025 = vst [vmem:[#allocation2 + $0x72] sm:$0xff] %v865
      %1026 = vst [vmem:[#allocation2 + $0x7a] sm:$0xff] %v866
      %1027 = vst [vmem:[#allocation2 + $0x82] sm:$0xff] %v875
      %1028 = vst [vmem:[#allocation2 + $0x8a] sm:$0xff] %v876
      %1029 = vst [vmem:[#allocation2 + $0x92] sm:$0xff] %v885
      %1030 = vst [vmem:[#allocation2 + $0x9a] sm:$0xff] %v886
      %1031 = vst [vmem:[#allocation2 + $0xa2] sm:$0xff] %v895
      %1032 = vst [vmem:[#allocation2 + $0xaa] sm:$0xff] %v896
      %1033 = vst [vmem:[#allocation2 + $0xb2] sm:$0xff] %v905
      %1034 = vst [vmem:[#allocation2 + $0xba] sm:$0xff] %v906
      %1035 = vst [vmem:[#allocation2 + $0xc2] sm:$0xff] %v915
      %1036 = vst [vmem:[#allocation2 + $0xca] sm:$0xff] %v916
      %1037 = vst [vmem:[#allocation2 + $0xd2] sm:$0xff] %v925
      %1038 = vst [vmem:[#allocation2 + $0xda] sm:$0xff] %v926
      %1039 = vst [vmem:[#allocation2 + $0xe2] sm:$0xff] %v935
      %1040 = vst [vmem:[#allocation2 + $0xea] sm:$0xff] %v936
      %1041 = vst [vmem:[#allocation2 + $0xf2] sm:$0xff] %v945
      %1042 = vst [vmem:[#allocation2 + $0xfa] sm:$0xff] %v946
      %1043 = vst [vmem:[#allocation2 + $0x102] sm:$0xff] %v955
      %1044 = vst [vmem:[#allocation2 + $0x10a] sm:$0xff] %v956
      %1045 = vst [vmem:[#allocation2 + $0x112] sm:$0xff] %v965
      %1046 = vst [vmem:[#allocation2 + $0x11a] sm:$0xff] %v966
      %1047 = vst [vmem:[#allocation2 + $0x122] sm:$0xff] %v975
      %1048 = vst [vmem:[#allocation2 + $0x12a] sm:$0xff] %v976
      %v1049 = vld [vmem:[#allocation2] sm:$0xff]
      %v1050 = vld [vmem:[#allocation2 + $0x8] sm:$0xff]
      %v1051 = vld [vmem:[#allocation2 + $0x10] sm:$0xff]
      %v1052 = vld [vmem:[#allocation2 + $0x18] sm:$0xff]
      %v1053 = vld [vmem:[#allocation2 + $0x20] sm:$0xff]
      %v1054 = vld [vmem:[#allocation2 + $0x28] sm:$0xff]
      %v1055 = vld [vmem:[#allocation2 + $0x30] sm:$0xff]
      %v1056 = vld [vmem:[#allocation2 + $0x38] sm:$0xff]
      %v1057 = vld [vmem:[#allocation2 + $0x40] sm:$0xff]
      %v1058 = vld [vmem:[#allocation2 + $0x48] sm:$0xff]
      %v1059 = vld [vmem:[#allocation2 + $0x50] sm:$0xff]
      %v1060 = vld [vmem:[#allocation2 + $0x58] sm:$0xff]
      %v1061 = vld [vmem:[#allocation2 + $0x60] sm:$0xff]
      %v1062 = vld [vmem:[#allocation2 + $0x68] sm:$0xff]
      %v1063 = vld [vmem:[#allocation2 + $0x70] sm:$0xff]
      %v1064 = vld [vmem:[#allocation2 + $0x78] sm:$0xff]
      %v1065 = vld [vmem:[#allocation2 + $0x80] sm:$0xff]
      %v1066 = vld [vmem:[#allocation2 + $0x88] sm:$0xff]
      %v1067 = vld [vmem:[#allocation2 + $0x90] sm:$0xff]
      %v1068 = vld [vmem:[#allocation2 + $0x98] sm:$0xff]
      %v1069 = vld [vmem:[#allocation2 + $0xa0] sm:$0xff]
      %v1070 = vld [vmem:[#allocation2 + $0xa8] sm:$0xff]
      %v1071 = vld [vmem:[#allocation2 + $0xb0] sm:$0xff]
      %v1072 = vld [vmem:[#allocation2 + $0xb8] sm:$0xff]
      %v1073 = vld [vmem:[#allocation2 + $0xc0] sm:$0xff]
      %v1074 = vld [vmem:[#allocation2 + $0xc8] sm:$0xff]
      %v1075 = vld [vmem:[#allocation2 + $0xd0] sm:$0xff]
      %v1076 = vld [vmem:[#allocation2 + $0xd8] sm:$0xff]
      %v1077 = vld [vmem:[#allocation2 + $0xe0] sm:$0xff]
      %v1078 = vld [vmem:[#allocation2 + $0xe8] sm:$0xff]
      %v1079 = vld [vmem:[#allocation2 + $0xf0] sm:$0xff]
      %v1080 = vld [vmem:[#allocation2 + $0xf8] sm:$0xff]
      %v1081 = vld [vmem:[#allocation2 + $0x100] sm:$0xff]
      %v1082 = vld [vmem:[#allocation2 + $0x108] sm:$0xff]
      %v1083 = vld [vmem:[#allocation2 + $0x110] sm:$0xff]
      %v1084 = vld [vmem:[#allocation2 + $0x118] sm:$0xff]
      %v1085 = vpack.c.bf16 %v1050, %v1049
      %v1086 = vpack.c.bf16 %v1052, %v1051
      %v1087 = vpack.c.bf16 %v1054, %v1053
      %v1088 = vpack.c.bf16 %v1056, %v1055
      %v1089 = vpack.c.bf16 %v1058, %v1057
      %v1090 = vpack.c.bf16 %v1060, %v1059
      %v1091 = vpack.c.bf16 %v1062, %v1061
      %v1092 = vpack.c.bf16 %v1064, %v1063
      %v1093 = vpack.c.bf16 %v1066, %v1065
      %v1094 = vpack.c.bf16 %v1068, %v1067
      %v1095 = vpack.c.bf16 %v1070, %v1069
      %v1096 = vpack.c.bf16 %v1072, %v1071
      %v1097 = vpack.c.bf16 %v1074, %v1073
      %v1098 = vpack.c.bf16 %v1076, %v1075
      %v1099 = vpack.c.bf16 %v1078, %v1077
      %v1100 = vpack.c.bf16 %v1080, %v1079
      %v1101 = vpack.c.bf16 %v1082, %v1081
      %v1102 = vpack.c.bf16 %v1084, %v1083
      %v1103 = vld [vmem:[%s5] sm:$0xf]
      %v1104 = vld [vmem:[%s5 + $0x4] sm:$0xf]
      %v1105 = vld [vmem:[%s5 + $0x8] sm:$0xf]
      %v1106 = vld [vmem:[%s5 + $0xc] sm:$0xf]
      %v1107 = vld [vmem:[%s5 + $0x10] sm:$0xf]
      %v1108 = vld [vmem:[%s5 + $0x14] sm:$0xf]
      %v1109 = vld [vmem:[%s5 + $0x18] sm:$0xf]
      %v1110 = vld [vmem:[%s5 + $0x1c] sm:$0xf]
      %v1111 = vld [vmem:[%s5 + $0x20] sm:$0xf]
      %v1112 = vld [vmem:[%s5 + $0x24] sm:$0xf]
      %v1113 = vld [vmem:[%s5 + $0x28] sm:$0xf]
      %v1114 = vld [vmem:[%s5 + $0x2c] sm:$0xf]
      %v1115 = vld [vmem:[%s5 + $0x30] sm:$0xf]
      %v1116 = vld [vmem:[%s5 + $0x34] sm:$0xf]
      %v1117 = vld [vmem:[%s5 + $0x38] sm:$0xf]
      %v1118 = vld [vmem:[%s5 + $0x3c] sm:$0xf]
      %v1135 = vunpack.c.l.b16 %v1103
      %v1136 = vunpack.c.l.b16 %v1104
      %v1137 = vunpack.c.l.b16 %v1105
      %v1138 = vunpack.c.l.b16 %v1106
      %v1139 = vunpack.c.l.b16 %v1107
      %v1140 = vunpack.c.l.b16 %v1108
      %v1141 = vunpack.c.l.b16 %v1109
      %v1142 = vunpack.c.l.b16 %v1110
      %v1143 = vunpack.c.l.b16 %v1111
      %v1144 = vunpack.c.l.b16 %v1112
      %v1145 = vunpack.c.l.b16 %v1113
      %v1146 = vunpack.c.l.b16 %v1114
      %v1147 = vunpack.c.l.b16 %v1115
      %v1148 = vunpack.c.l.b16 %v1116
      %v1149 = vunpack.c.l.b16 %v1117
      %v1150 = vunpack.c.l.b16 %v1118
      %v1151 = vpack.c.b16 %v1136, %v1135
      %v1152 = vpack.c.b16 %v1138, %v1137
      %v1153 = vpack.c.b16 %v1140, %v1139
      %v1154 = vpack.c.b16 %v1142, %v1141
      %v1155 = vpack.c.b16 %v1144, %v1143
      %v1156 = vpack.c.b16 %v1146, %v1145
      %v1157 = vpack.c.b16 %v1148, %v1147
      %v1158 = vpack.c.b16 %v1150, %v1149
      %1167 = vmatpush.bf16.msra.mxu0 %v1158
      %1168 = vmatpush.bf16.msra.mxu0 %v1157
      %1169 = vmatpush.bf16.msra.mxu0 %v1156
      %1170 = vmatpush.bf16.msra.mxu0 %v1155
      %1171 = vmatpush.bf16.msra.mxu0 %v1154
      %1172 = vmatpush.bf16.msra.mxu0 %v1153
      %1173 = vmatpush.bf16.msra.mxu0 %v1152
      %1174 = vmatpush.bf16.msra.mxu0 %v1151
      %1175 = vmatmul.bf16.gmra.mxu0 %v1085
      %v1176 = vpop.f32.mrf.mxu0
      %v1177 = vadd.f32 0.0, %v1176
      %v1178 = vpop.f32.mrf.mxu0
      %v1179 = vadd.f32 0.0, %v1178
      %1180 = vmatmul.bf16.gmra.mxu0 %v1086
      %v1181 = vpop.f32.mrf.mxu0
      %v1182 = vadd.f32 0.0, %v1181
      %v1183 = vpop.f32.mrf.mxu0
      %v1184 = vadd.f32 0.0, %v1183
      %1185 = vmatmul.bf16.gmra.mxu0 %v1087
      %v1186 = vpop.f32.mrf.mxu0
      %v1187 = vadd.f32 0.0, %v1186
      %v1188 = vpop.f32.mrf.mxu0
      %v1189 = vadd.f32 0.0, %v1188
      %1190 = vmatmul.bf16.gmra.mxu0 %v1088
      %v1191 = vpop.f32.mrf.mxu0
      %v1192 = vadd.f32 0.0, %v1191
      %v1193 = vpop.f32.mrf.mxu0
      %v1194 = vadd.f32 0.0, %v1193
      %1195 = vmatmul.bf16.gmra.mxu0 %v1089
      %v1196 = vpop.f32.mrf.mxu0
      %v1197 = vadd.f32 0.0, %v1196
      %v1198 = vpop.f32.mrf.mxu0
      %v1199 = vadd.f32 0.0, %v1198
      %1200 = vmatmul.bf16.gmra.mxu0 %v1090
      %v1201 = vpop.f32.mrf.mxu0
      %v1202 = vadd.f32 0.0, %v1201
      %v1203 = vpop.f32.mrf.mxu0
      %v1204 = vadd.f32 0.0, %v1203
      %1205 = vmatmul.bf16.gmra.mxu0 %v1091
      %v1206 = vpop.f32.mrf.mxu0
      %v1207 = vadd.f32 0.0, %v1206
      %v1208 = vpop.f32.mrf.mxu0
      %v1209 = vadd.f32 0.0, %v1208
      %1210 = vmatmul.bf16.gmra.mxu0 %v1092
      %v1211 = vpop.f32.mrf.mxu0
      %v1212 = vadd.f32 0.0, %v1211
      %v1213 = vpop.f32.mrf.mxu0
      %v1214 = vadd.f32 0.0, %v1213
      %1215 = vmatmul.bf16.gmra.mxu0 %v1093
      %v1216 = vpop.f32.mrf.mxu0
      %v1217 = vadd.f32 0.0, %v1216
      %v1218 = vpop.f32.mrf.mxu0
      %v1219 = vadd.f32 0.0, %v1218
      %1220 = vmatmul.bf16.gmra.mxu0 %v1094
      %v1221 = vpop.f32.mrf.mxu0
      %v1222 = vadd.f32 0.0, %v1221
      %v1223 = vpop.f32.mrf.mxu0
      %v1224 = vadd.f32 0.0, %v1223
      %1225 = vmatmul.bf16.gmra.mxu0 %v1095
      %v1226 = vpop.f32.mrf.mxu0
      %v1227 = vadd.f32 0.0, %v1226
      %v1228 = vpop.f32.mrf.mxu0
      %v1229 = vadd.f32 0.0, %v1228
      %1230 = vmatmul.bf16.gmra.mxu0 %v1096
      %v1231 = vpop.f32.mrf.mxu0
      %v1232 = vadd.f32 0.0, %v1231
      %v1233 = vpop.f32.mrf.mxu0
      %v1234 = vadd.f32 0.0, %v1233
      %1235 = vmatmul.bf16.gmra.mxu0 %v1097
      %v1236 = vpop.f32.mrf.mxu0
      %v1237 = vadd.f32 0.0, %v1236
      %v1238 = vpop.f32.mrf.mxu0
      %v1239 = vadd.f32 0.0, %v1238
      %1240 = vmatmul.bf16.gmra.mxu0 %v1098
      %v1241 = vpop.f32.mrf.mxu0
      %v1242 = vadd.f32 0.0, %v1241
      %v1243 = vpop.f32.mrf.mxu0
      %v1244 = vadd.f32 0.0, %v1243
      %1245 = vmatmul.bf16.gmra.mxu0 %v1099
      %v1246 = vpop.f32.mrf.mxu0
      %v1247 = vadd.f32 0.0, %v1246
      %v1248 = vpop.f32.mrf.mxu0
      %v1249 = vadd.f32 0.0, %v1248
      %1250 = vmatmul.bf16.gmra.mxu0 %v1100
      %v1251 = vpop.f32.mrf.mxu0
      %v1252 = vadd.f32 0.0, %v1251
      %v1253 = vpop.f32.mrf.mxu0
      %v1254 = vadd.f32 0.0, %v1253
      %1255 = vmatmul.bf16.gmra.mxu0 %v1101
      %v1256 = vpop.f32.mrf.mxu0
      %v1257 = vadd.f32 0.0, %v1256
      %v1258 = vpop.f32.mrf.mxu0
      %v1259 = vadd.f32 0.0, %v1258
      %1260 = vmatmul.bf16.gmra.mxu0 %v1102
      %v1261 = vpop.f32.mrf.mxu0
      %v1262 = vadd.f32 0.0, %v1261
      %v1263 = vpop.f32.mrf.mxu0
      %v1264 = vadd.f32 0.0, %v1263
      %1265 = vdwg.mxu0
      %1266 = vst [vmem:[#allocation3] sm:$0xff] %v1177
      %1267 = vst [vmem:[#allocation3 + $0x8] sm:$0xff] %v1179
      %1268 = vst [vmem:[#allocation3 + $0x10] sm:$0xff] %v1182
      %1269 = vst [vmem:[#allocation3 + $0x18] sm:$0xff] %v1184
      %1270 = vst [vmem:[#allocation3 + $0x20] sm:$0xff] %v1187
      %1271 = vst [vmem:[#allocation3 + $0x28] sm:$0xff] %v1189
      %1272 = vst [vmem:[#allocation3 + $0x30] sm:$0xff] %v1192
      %1273 = vst [vmem:[#allocation3 + $0x38] sm:$0xff] %v1194
      %1274 = vst [vmem:[#allocation3 + $0x40] sm:$0xff] %v1197
      %1275 = vst [vmem:[#allocation3 + $0x48] sm:$0xff] %v1199
      %1276 = vst [vmem:[#allocation3 + $0x50] sm:$0xff] %v1202
      %1277 = vst [vmem:[#allocation3 + $0x58] sm:$0xff] %v1204
      %1278 = vst [vmem:[#allocation3 + $0x60] sm:$0xff] %v1207
      %1279 = vst [vmem:[#allocation3 + $0x68] sm:$0xff] %v1209
      %1280 = vst [vmem:[#allocation3 + $0x70] sm:$0xff] %v1212
      %1281 = vst [vmem:[#allocation3 + $0x78] sm:$0xff] %v1214
      %1282 = vst [vmem:[#allocation3 + $0x80] sm:$0xff] %v1217
      %1283 = vst [vmem:[#allocation3 + $0x88] sm:$0xff] %v1219
      %1284 = vst [vmem:[#allocation3 + $0x90] sm:$0xff] %v1222
      %1285 = vst [vmem:[#allocation3 + $0x98] sm:$0xff] %v1224
      %1286 = vst [vmem:[#allocation3 + $0xa0] sm:$0xff] %v1227
      %1287 = vst [vmem:[#allocation3 + $0xa8] sm:$0xff] %v1229
      %1288 = vst [vmem:[#allocation3 + $0xb0] sm:$0xff] %v1232
      %1289 = vst [vmem:[#allocation3 + $0xb8] sm:$0xff] %v1234
      %1290 = vst [vmem:[#allocation3 + $0xc0] sm:$0xff] %v1237
      %1291 = vst [vmem:[#allocation3 + $0xc8] sm:$0xff] %v1239
      %1292 = vst [vmem:[#allocation3 + $0xd0] sm:$0xff] %v1242
      %1293 = vst [vmem:[#allocation3 + $0xd8] sm:$0xff] %v1244
      %1294 = vst [vmem:[#allocation3 + $0xe0] sm:$0xff] %v1247
      %1295 = vst [vmem:[#allocation3 + $0xe8] sm:$0xff] %v1249
      %1296 = vst [vmem:[#allocation3 + $0xf0] sm:$0xff] %v1252
      %1297 = vst [vmem:[#allocation3 + $0xf8] sm:$0xff] %v1254
      %1298 = vst [vmem:[#allocation3 + $0x100] sm:$0xff] %v1257
      %1299 = vst [vmem:[#allocation3 + $0x108] sm:$0xff] %v1259
      %1300 = vst [vmem:[#allocation3 + $0x110] sm:$0xff] %v1262
      %1301 = vst [vmem:[#allocation3 + $0x118] sm:$0xff] %v1264
      %v1302 = vld [vmem:[#allocation2 + $0x1] sm:$0xff]
      %v1303 = vld [vmem:[#allocation2 + $0x9] sm:$0xff]
      %v1304 = vld [vmem:[#allocation2 + $0x11] sm:$0xff]
      %v1305 = vld [vmem:[#allocation2 + $0x19] sm:$0xff]
      %v1306 = vld [vmem:[#allocation2 + $0x21] sm:$0xff]
      %v1307 = vld [vmem:[#allocation2 + $0x29] sm:$0xff]
      %v1308 = vld [vmem:[#allocation2 + $0x31] sm:$0xff]
      %v1309 = vld [vmem:[#allocation2 + $0x39] sm:$0xff]
      %v1310 = vld [vmem:[#allocation2 + $0x41] sm:$0xff]
      %v1311 = vld [vmem:[#allocation2 + $0x49] sm:$0xff]
      %v1312 = vld [vmem:[#allocation2 + $0x51] sm:$0xff]
      %v1313 = vld [vmem:[#allocation2 + $0x59] sm:$0xff]
      %v1314 = vld [vmem:[#allocation2 + $0x61] sm:$0xff]
      %v1315 = vld [vmem:[#allocation2 + $0x69] sm:$0xff]
      %v1316 = vld [vmem:[#allocation2 + $0x71] sm:$0xff]
      %v1317 = vld [vmem:[#allocation2 + $0x79] sm:$0xff]
      %v1318 = vld [vmem:[#allocation2 + $0x81] sm:$0xff]
      %v1319 = vld [vmem:[#allocation2 + $0x89] sm:$0xff]
      %v1320 = vld [vmem:[#allocation2 + $0x91] sm:$0xff]
      %v1321 = vld [vmem:[#allocation2 + $0x99] sm:$0xff]
      %v1322 = vld [vmem:[#allocation2 + $0xa1] sm:$0xff]
      %v1323 = vld [vmem:[#allocation2 + $0xa9] sm:$0xff]
      %v1324 = vld [vmem:[#allocation2 + $0xb1] sm:$0xff]
      %v1325 = vld [vmem:[#allocation2 + $0xb9] sm:$0xff]
      %v1326 = vld [vmem:[#allocation2 + $0xc1] sm:$0xff]
      %v1327 = vld [vmem:[#allocation2 + $0xc9] sm:$0xff]
      %v1328 = vld [vmem:[#allocation2 + $0xd1] sm:$0xff]
      %v1329 = vld [vmem:[#allocation2 + $0xd9] sm:$0xff]
      %v1330 = vld [vmem:[#allocation2 + $0xe1] sm:$0xff]
      %v1331 = vld [vmem:[#allocation2 + $0xe9] sm:$0xff]
      %v1332 = vld [vmem:[#allocation2 + $0xf1] sm:$0xff]
      %v1333 = vld [vmem:[#allocation2 + $0xf9] sm:$0xff]
      %v1334 = vld [vmem:[#allocation2 + $0x101] sm:$0xff]
      %v1335 = vld [vmem:[#allocation2 + $0x109] sm:$0xff]
      %v1336 = vld [vmem:[#allocation2 + $0x111] sm:$0xff]
      %v1337 = vld [vmem:[#allocation2 + $0x119] sm:$0xff]
      %v1338 = vpack.c.bf16 %v1303, %v1302
      %v1339 = vpack.c.bf16 %v1305, %v1304
      %v1340 = vpack.c.bf16 %v1307, %v1306
      %v1341 = vpack.c.bf16 %v1309, %v1308
      %v1342 = vpack.c.bf16 %v1311, %v1310
      %v1343 = vpack.c.bf16 %v1313, %v1312
      %v1344 = vpack.c.bf16 %v1315, %v1314
      %v1345 = vpack.c.bf16 %v1317, %v1316
      %v1346 = vpack.c.bf16 %v1319, %v1318
      %v1347 = vpack.c.bf16 %v1321, %v1320
      %v1348 = vpack.c.bf16 %v1323, %v1322
      %v1349 = vpack.c.bf16 %v1325, %v1324
      %v1350 = vpack.c.bf16 %v1327, %v1326
      %v1351 = vpack.c.bf16 %v1329, %v1328
      %v1352 = vpack.c.bf16 %v1331, %v1330
      %v1353 = vpack.c.bf16 %v1333, %v1332
      %v1354 = vpack.c.bf16 %v1335, %v1334
      %v1355 = vpack.c.bf16 %v1337, %v1336
      %s1356 = scalar_lea.vmem %s5, 64
      %v1357 = vld [vmem:[%s1356] sm:$0xf]
      %v1358 = vld [vmem:[%s1356 + $0x4] sm:$0xf]
      %v1359 = vld [vmem:[%s1356 + $0x8] sm:$0xf]
      %v1360 = vld [vmem:[%s1356 + $0xc] sm:$0xf]
      %v1361 = vld [vmem:[%s1356 + $0x10] sm:$0xf]
      %v1362 = vld [vmem:[%s1356 + $0x14] sm:$0xf]
      %v1363 = vld [vmem:[%s1356 + $0x18] sm:$0xf]
      %v1364 = vld [vmem:[%s1356 + $0x1c] sm:$0xf]
      %v1365 = vld [vmem:[%s1356 + $0x20] sm:$0xf]
      %v1366 = vld [vmem:[%s1356 + $0x24] sm:$0xf]
      %v1367 = vld [vmem:[%s1356 + $0x28] sm:$0xf]
      %v1368 = vld [vmem:[%s1356 + $0x2c] sm:$0xf]
      %v1369 = vld [vmem:[%s1356 + $0x30] sm:$0xf]
      %v1370 = vld [vmem:[%s1356 + $0x34] sm:$0xf]
      %v1371 = vld [vmem:[%s1356 + $0x38] sm:$0xf]
      %v1372 = vld [vmem:[%s1356 + $0x3c] sm:$0xf]
      %v1389 = vunpack.c.l.b16 %v1357
      %v1390 = vunpack.c.l.b16 %v1358
      %v1391 = vunpack.c.l.b16 %v1359
      %v1392 = vunpack.c.l.b16 %v1360
      %v1393 = vunpack.c.l.b16 %v1361
      %v1394 = vunpack.c.l.b16 %v1362
      %v1395 = vunpack.c.l.b16 %v1363
      %v1396 = vunpack.c.l.b16 %v1364
      %v1397 = vunpack.c.l.b16 %v1365
      %v1398 = vunpack.c.l.b16 %v1366
      %v1399 = vunpack.c.l.b16 %v1367
      %v1400 = vunpack.c.l.b16 %v1368
      %v1401 = vunpack.c.l.b16 %v1369
      %v1402 = vunpack.c.l.b16 %v1370
      %v1403 = vunpack.c.l.b16 %v1371
      %v1404 = vunpack.c.l.b16 %v1372
      %v1405 = vpack.c.b16 %v1390, %v1389
      %v1406 = vpack.c.b16 %v1392, %v1391
      %v1407 = vpack.c.b16 %v1394, %v1393
      %v1408 = vpack.c.b16 %v1396, %v1395
      %v1409 = vpack.c.b16 %v1398, %v1397
      %v1410 = vpack.c.b16 %v1400, %v1399
      %v1411 = vpack.c.b16 %v1402, %v1401
      %v1412 = vpack.c.b16 %v1404, %v1403
      %1421 = vmatpush.bf16.msra.mxu0 %v1412
      %1422 = vmatpush.bf16.msra.mxu0 %v1411
      %1423 = vmatpush.bf16.msra.mxu0 %v1410
      %1424 = vmatpush.bf16.msra.mxu0 %v1409
      %1425 = vmatpush.bf16.msra.mxu0 %v1408
      %1426 = vmatpush.bf16.msra.mxu0 %v1407
      %1427 = vmatpush.bf16.msra.mxu0 %v1406
      %1428 = vmatpush.bf16.msra.mxu0 %v1405
      %1429 = vmatmul.bf16.gmra.mxu0 %v1338
      %v1430 = vpop.f32.mrf.mxu0
      %v1431 = vadd.f32 0.0, %v1430
      %v1432 = vpop.f32.mrf.mxu0
      %v1433 = vadd.f32 0.0, %v1432
      %1434 = vmatmul.bf16.gmra.mxu0 %v1339
      %v1435 = vpop.f32.mrf.mxu0
      %v1436 = vadd.f32 0.0, %v1435
      %v1437 = vpop.f32.mrf.mxu0
      %v1438 = vadd.f32 0.0, %v1437
      %1439 = vmatmul.bf16.gmra.mxu0 %v1340
      %v1440 = vpop.f32.mrf.mxu0
      %v1441 = vadd.f32 0.0, %v1440
      %v1442 = vpop.f32.mrf.mxu0
      %v1443 = vadd.f32 0.0, %v1442
      %1444 = vmatmul.bf16.gmra.mxu0 %v1341
      %v1445 = vpop.f32.mrf.mxu0
      %v1446 = vadd.f32 0.0, %v1445
      %v1447 = vpop.f32.mrf.mxu0
      %v1448 = vadd.f32 0.0, %v1447
      %1449 = vmatmul.bf16.gmra.mxu0 %v1342
      %v1450 = vpop.f32.mrf.mxu0
      %v1451 = vadd.f32 0.0, %v1450
      %v1452 = vpop.f32.mrf.mxu0
      %v1453 = vadd.f32 0.0, %v1452
      %1454 = vmatmul.bf16.gmra.mxu0 %v1343
      %v1455 = vpop.f32.mrf.mxu0
      %v1456 = vadd.f32 0.0, %v1455
      %v1457 = vpop.f32.mrf.mxu0
      %v1458 = vadd.f32 0.0, %v1457
      %1459 = vmatmul.bf16.gmra.mxu0 %v1344
      %v1460 = vpop.f32.mrf.mxu0
      %v1461 = vadd.f32 0.0, %v1460
      %v1462 = vpop.f32.mrf.mxu0
      %v1463 = vadd.f32 0.0, %v1462
      %1464 = vmatmul.bf16.gmra.mxu0 %v1345
      %v1465 = vpop.f32.mrf.mxu0
      %v1466 = vadd.f32 0.0, %v1465
      %v1467 = vpop.f32.mrf.mxu0
      %v1468 = vadd.f32 0.0, %v1467
      %1469 = vmatmul.bf16.gmra.mxu0 %v1346
      %v1470 = vpop.f32.mrf.mxu0
      %v1471 = vadd.f32 0.0, %v1470
      %v1472 = vpop.f32.mrf.mxu0
      %v1473 = vadd.f32 0.0, %v1472
      %1474 = vmatmul.bf16.gmra.mxu0 %v1347
      %v1475 = vpop.f32.mrf.mxu0
      %v1476 = vadd.f32 0.0, %v1475
      %v1477 = vpop.f32.mrf.mxu0
      %v1478 = vadd.f32 0.0, %v1477
      %1479 = vmatmul.bf16.gmra.mxu0 %v1348
      %v1480 = vpop.f32.mrf.mxu0
      %v1481 = vadd.f32 0.0, %v1480
      %v1482 = vpop.f32.mrf.mxu0
      %v1483 = vadd.f32 0.0, %v1482
      %1484 = vmatmul.bf16.gmra.mxu0 %v1349
      %v1485 = vpop.f32.mrf.mxu0
      %v1486 = vadd.f32 0.0, %v1485
      %v1487 = vpop.f32.mrf.mxu0
      %v1488 = vadd.f32 0.0, %v1487
      %1489 = vmatmul.bf16.gmra.mxu0 %v1350
      %v1490 = vpop.f32.mrf.mxu0
      %v1491 = vadd.f32 0.0, %v1490
      %v1492 = vpop.f32.mrf.mxu0
      %v1493 = vadd.f32 0.0, %v1492
      %1494 = vmatmul.bf16.gmra.mxu0 %v1351
      %v1495 = vpop.f32.mrf.mxu0
      %v1496 = vadd.f32 0.0, %v1495
      %v1497 = vpop.f32.mrf.mxu0
      %v1498 = vadd.f32 0.0, %v1497
      %1499 = vmatmul.bf16.gmra.mxu0 %v1352
      %v1500 = vpop.f32.mrf.mxu0
      %v1501 = vadd.f32 0.0, %v1500
      %v1502 = vpop.f32.mrf.mxu0
      %v1503 = vadd.f32 0.0, %v1502
      %1504 = vmatmul.bf16.gmra.mxu0 %v1353
      %v1505 = vpop.f32.mrf.mxu0
      %v1506 = vadd.f32 0.0, %v1505
      %v1507 = vpop.f32.mrf.mxu0
      %v1508 = vadd.f32 0.0, %v1507
      %1509 = vmatmul.bf16.gmra.mxu0 %v1354
      %v1510 = vpop.f32.mrf.mxu0
      %v1511 = vadd.f32 0.0, %v1510
      %v1512 = vpop.f32.mrf.mxu0
      %v1513 = vadd.f32 0.0, %v1512
      %1514 = vmatmul.bf16.gmra.mxu0 %v1355
      %v1515 = vpop.f32.mrf.mxu0
      %v1516 = vadd.f32 0.0, %v1515
      %v1517 = vpop.f32.mrf.mxu0
      %v1518 = vadd.f32 0.0, %v1517
      %1519 = vdwg.mxu0
      %v1520 = vld [vmem:[#allocation3] sm:$0xff]
      %v1521 = vld [vmem:[#allocation3 + $0x8] sm:$0xff]
      %v1522 = vld [vmem:[#allocation3 + $0x10] sm:$0xff]
      %v1523 = vld [vmem:[#allocation3 + $0x18] sm:$0xff]
      %v1524 = vld [vmem:[#allocation3 + $0x20] sm:$0xff]
      %v1525 = vld [vmem:[#allocation3 + $0x28] sm:$0xff]
      %v1526 = vld [vmem:[#allocation3 + $0x30] sm:$0xff]
      %v1527 = vld [vmem:[#allocation3 + $0x38] sm:$0xff]
      %v1528 = vld [vmem:[#allocation3 + $0x40] sm:$0xff]
      %v1529 = vld [vmem:[#allocation3 + $0x48] sm:$0xff]
      %v1530 = vld [vmem:[#allocation3 + $0x50] sm:$0xff]
      %v1531 = vld [vmem:[#allocation3 + $0x58] sm:$0xff]
      %v1532 = vld [vmem:[#allocation3 + $0x60] sm:$0xff]
      %v1533 = vld [vmem:[#allocation3 + $0x68] sm:$0xff]
      %v1534 = vld [vmem:[#allocation3 + $0x70] sm:$0xff]
      %v1535 = vld [vmem:[#allocation3 + $0x78] sm:$0xff]
      %v1536 = vld [vmem:[#allocation3 + $0x80] sm:$0xff]
      %v1537 = vld [vmem:[#allocation3 + $0x88] sm:$0xff]
      %v1538 = vld [vmem:[#allocation3 + $0x90] sm:$0xff]
      %v1539 = vld [vmem:[#allocation3 + $0x98] sm:$0xff]
      %v1540 = vld [vmem:[#allocation3 + $0xa0] sm:$0xff]
      %v1541 = vld [vmem:[#allocation3 + $0xa8] sm:$0xff]
      %v1542 = vld [vmem:[#allocation3 + $0xb0] sm:$0xff]
      %v1543 = vld [vmem:[#allocation3 + $0xb8] sm:$0xff]
      %v1544 = vld [vmem:[#allocation3 + $0xc0] sm:$0xff]
      %v1545 = vld [vmem:[#allocation3 + $0xc8] sm:$0xff]
      %v1546 = vld [vmem:[#allocation3 + $0xd0] sm:$0xff]
      %v1547 = vld [vmem:[#allocation3 + $0xd8] sm:$0xff]
      %v1548 = vld [vmem:[#allocation3 + $0xe0] sm:$0xff]
      %v1549 = vld [vmem:[#allocation3 + $0xe8] sm:$0xff]
      %v1550 = vld [vmem:[#allocation3 + $0xf0] sm:$0xff]
      %v1551 = vld [vmem:[#allocation3 + $0xf8] sm:$0xff]
      %v1552 = vld [vmem:[#allocation3 + $0x100] sm:$0xff]
      %v1553 = vld [vmem:[#allocation3 + $0x108] sm:$0xff]
      %v1554 = vld [vmem:[#allocation3 + $0x110] sm:$0xff]
      %v1555 = vld [vmem:[#allocation3 + $0x118] sm:$0xff]
      %v1556 = vadd.f32 %v1520, %v1431
      %v1557 = vadd.f32 %v1521, %v1433
      %v1558 = vadd.f32 %v1522, %v1436
      %v1559 = vadd.f32 %v1523, %v1438
      %v1560 = vadd.f32 %v1524, %v1441
      %v1561 = vadd.f32 %v1525, %v1443
      %v1562 = vadd.f32 %v1526, %v1446
      %v1563 = vadd.f32 %v1527, %v1448
      %v1564 = vadd.f32 %v1528, %v1451
      %v1565 = vadd.f32 %v1529, %v1453
      %v1566 = vadd.f32 %v1530, %v1456
      %v1567 = vadd.f32 %v1531, %v1458
      %v1568 = vadd.f32 %v1532, %v1461
      %v1569 = vadd.f32 %v1533, %v1463
      %v1570 = vadd.f32 %v1534, %v1466
      %v1571 = vadd.f32 %v1535, %v1468
      %v1572 = vadd.f32 %v1536, %v1471
      %v1573 = vadd.f32 %v1537, %v1473
      %v1574 = vadd.f32 %v1538, %v1476
      %v1575 = vadd.f32 %v1539, %v1478
      %v1576 = vadd.f32 %v1540, %v1481
      %v1577 = vadd.f32 %v1541, %v1483
      %v1578 = vadd.f32 %v1542, %v1486
      %v1579 = vadd.f32 %v1543, %v1488
      %v1580 = vadd.f32 %v1544, %v1491
      %v1581 = vadd.f32 %v1545, %v1493
      %v1582 = vadd.f32 %v1546, %v1496
      %v1583 = vadd.f32 %v1547, %v1498
      %v1584 = vadd.f32 %v1548, %v1501
      %v1585 = vadd.f32 %v1549, %v1503
      %v1586 = vadd.f32 %v1550, %v1506
      %v1587 = vadd.f32 %v1551, %v1508
      %v1588 = vadd.f32 %v1552, %v1511
      %v1589 = vadd.f32 %v1553, %v1513
      %v1590 = vadd.f32 %v1554, %v1516
      %v1591 = vadd.f32 %v1555, %v1518
      %1592 = vst [vmem:[#allocation3] sm:$0xff] %v1556
      %1593 = vst [vmem:[#allocation3 + $0x8] sm:$0xff] %v1557
      %1594 = vst [vmem:[#allocation3 + $0x10] sm:$0xff] %v1558
      %1595 = vst [vmem:[#allocation3 + $0x18] sm:$0xff] %v1559
      %1596 = vst [vmem:[#allocation3 + $0x20] sm:$0xff] %v1560
      %1597 = vst [vmem:[#allocation3 + $0x28] sm:$0xff] %v1561
      %1598 = vst [vmem:[#allocation3 + $0x30] sm:$0xff] %v1562
      %1599 = vst [vmem:[#allocation3 + $0x38] sm:$0xff] %v1563
      %1600 = vst [vmem:[#allocation3 + $0x40] sm:$0xff] %v1564
      %1601 = vst [vmem:[#allocation3 + $0x48] sm:$0xff] %v1565
      %1602 = vst [vmem:[#allocation3 + $0x50] sm:$0xff] %v1566
      %1603 = vst [vmem:[#allocation3 + $0x58] sm:$0xff] %v1567
      %1604 = vst [vmem:[#allocation3 + $0x60] sm:$0xff] %v1568
      %1605 = vst [vmem:[#allocation3 + $0x68] sm:$0xff] %v1569
      %1606 = vst [vmem:[#allocation3 + $0x70] sm:$0xff] %v1570
      %1607 = vst [vmem:[#allocation3 + $0x78] sm:$0xff] %v1571
      %1608 = vst [vmem:[#allocation3 + $0x80] sm:$0xff] %v1572
      %1609 = vst [vmem:[#allocation3 + $0x88] sm:$0xff] %v1573
      %1610 = vst [vmem:[#allocation3 + $0x90] sm:$0xff] %v1574
      %1611 = vst [vmem:[#allocation3 + $0x98] sm:$0xff] %v1575
      %1612 = vst [vmem:[#allocation3 + $0xa0] sm:$0xff] %v1576
      %1613 = vst [vmem:[#allocation3 + $0xa8] sm:$0xff] %v1577
      %1614 = vst [vmem:[#allocation3 + $0xb0] sm:$0xff] %v1578
      %1615 = vst [vmem:[#allocation3 + $0xb8] sm:$0xff] %v1579
      %1616 = vst [vmem:[#allocation3 + $0xc0] sm:$0xff] %v1580
      %1617 = vst [vmem:[#allocation3 + $0xc8] sm:$0xff] %v1581
      %1618 = vst [vmem:[#allocation3 + $0xd0] sm:$0xff] %v1582
      %1619 = vst [vmem:[#allocation3 + $0xd8] sm:$0xff] %v1583
      %1620 = vst [vmem:[#allocation3 + $0xe0] sm:$0xff] %v1584
      %1621 = vst [vmem:[#allocation3 + $0xe8] sm:$0xff] %v1585
      %1622 = vst [vmem:[#allocation3 + $0xf0] sm:$0xff] %v1586
      %1623 = vst [vmem:[#allocation3 + $0xf8] sm:$0xff] %v1587
      %1624 = vst [vmem:[#allocation3 + $0x100] sm:$0xff] %v1588
      %1625 = vst [vmem:[#allocation3 + $0x108] sm:$0xff] %v1589
      %1626 = vst [vmem:[#allocation3 + $0x110] sm:$0xff] %v1590
      %1627 = vst [vmem:[#allocation3 + $0x118] sm:$0xff] %v1591
      %v1628 = vld [vmem:[#allocation2 + $0x2] sm:$0xff]
      %v1629 = vld [vmem:[#allocation2 + $0xa] sm:$0xff]
      %v1630 = vld [vmem:[#allocation2 + $0x12] sm:$0xff]
      %v1631 = vld [vmem:[#allocation2 + $0x1a] sm:$0xff]
      %v1632 = vld [vmem:[#allocation2 + $0x22] sm:$0xff]
      %v1633 = vld [vmem:[#allocation2 + $0x2a] sm:$0xff]
      %v1634 = vld [vmem:[#allocation2 + $0x32] sm:$0xff]
      %v1635 = vld [vmem:[#allocation2 + $0x3a] sm:$0xff]
      %v1636 = vld [vmem:[#allocation2 + $0x42] sm:$0xff]
      %v1637 = vld [vmem:[#allocation2 + $0x4a] sm:$0xff]
      %v1638 = vld [vmem:[#allocation2 + $0x52] sm:$0xff]
      %v1639 = vld [vmem:[#allocation2 + $0x5a] sm:$0xff]
      %v1640 = vld [vmem:[#allocation2 + $0x62] sm:$0xff]
      %v1641 = vld [vmem:[#allocation2 + $0x6a] sm:$0xff]
      %v1642 = vld [vmem:[#allocation2 + $0x72] sm:$0xff]
      %v1643 = vld [vmem:[#allocation2 + $0x7a] sm:$0xff]
      %v1644 = vld [vmem:[#allocation2 + $0x82] sm:$0xff]
      %v1645 = vld [vmem:[#allocation2 + $0x8a] sm:$0xff]
      %v1646 = vld [vmem:[#allocation2 + $0x92] sm:$0xff]
      %v1647 = vld [vmem:[#allocation2 + $0x9a] sm:$0xff]
      %v1648 = vld [vmem:[#allocation2 + $0xa2] sm:$0xff]
      %v1649 = vld [vmem:[#allocation2 + $0xaa] sm:$0xff]
      %v1650 = vld [vmem:[#allocation2 + $0xb2] sm:$0xff]
      %v1651 = vld [vmem:[#allocation2 + $0xba] sm:$0xff]
      %v1652 = vld [vmem:[#allocation2 + $0xc2] sm:$0xff]
      %v1653 = vld [vmem:[#allocation2 + $0xca] sm:$0xff]
      %v1654 = vld [vmem:[#allocation2 + $0xd2] sm:$0xff]
      %v1655 = vld [vmem:[#allocation2 + $0xda] sm:$0xff]
      %v1656 = vld [vmem:[#allocation2 + $0xe2] sm:$0xff]
      %v1657 = vld [vmem:[#allocation2 + $0xea] sm:$0xff]
      %v1658 = vld [vmem:[#allocation2 + $0xf2] sm:$0xff]
      %v1659 = vld [vmem:[#allocation2 + $0xfa] sm:$0xff]
      %v1660 = vld [vmem:[#allocation2 + $0x102] sm:$0xff]
      %v1661 = vld [vmem:[#allocation2 + $0x10a] sm:$0xff]
      %v1662 = vld [vmem:[#allocation2 + $0x112] sm:$0xff]
      %v1663 = vld [vmem:[#allocation2 + $0x11a] sm:$0xff]
      %v1664 = vpack.c.bf16 %v1629, %v1628
      %v1665 = vpack.c.bf16 %v1631, %v1630
      %v1666 = vpack.c.bf16 %v1633, %v1632
      %v1667 = vpack.c.bf16 %v1635, %v1634
      %v1668 = vpack.c.bf16 %v1637, %v1636
      %v1669 = vpack.c.bf16 %v1639, %v1638
      %v1670 = vpack.c.bf16 %v1641, %v1640
      %v1671 = vpack.c.bf16 %v1643, %v1642
      %v1672 = vpack.c.bf16 %v1645, %v1644
      %v1673 = vpack.c.bf16 %v1647, %v1646
      %v1674 = vpack.c.bf16 %v1649, %v1648
      %v1675 = vpack.c.bf16 %v1651, %v1650
      %v1676 = vpack.c.bf16 %v1653, %v1652
      %v1677 = vpack.c.bf16 %v1655, %v1654
      %v1678 = vpack.c.bf16 %v1657, %v1656
      %v1679 = vpack.c.bf16 %v1659, %v1658
      %v1680 = vpack.c.bf16 %v1661, %v1660
      %v1681 = vpack.c.bf16 %v1663, %v1662
      %s1682 = scalar_lea.vmem %s5, 128
      %v1683 = vld [vmem:[%s1682] sm:$0xf]
      %v1684 = vld [vmem:[%s1682 + $0x4] sm:$0xf]
      %v1685 = vld [vmem:[%s1682 + $0x8] sm:$0xf]
      %v1686 = vld [vmem:[%s1682 + $0xc] sm:$0xf]
      %v1687 = vld [vmem:[%s1682 + $0x10] sm:$0xf]
      %v1688 = vld [vmem:[%s1682 + $0x14] sm:$0xf]
      %v1689 = vld [vmem:[%s1682 + $0x18] sm:$0xf]
      %v1690 = vld [vmem:[%s1682 + $0x1c] sm:$0xf]
      %v1691 = vld [vmem:[%s1682 + $0x20] sm:$0xf]
      %v1692 = vld [vmem:[%s1682 + $0x24] sm:$0xf]
      %v1693 = vld [vmem:[%s1682 + $0x28] sm:$0xf]
      %v1694 = vld [vmem:[%s1682 + $0x2c] sm:$0xf]
      %v1695 = vld [vmem:[%s1682 + $0x30] sm:$0xf]
      %v1696 = vld [vmem:[%s1682 + $0x34] sm:$0xf]
      %v1697 = vld [vmem:[%s1682 + $0x38] sm:$0xf]
      %v1698 = vld [vmem:[%s1682 + $0x3c] sm:$0xf]
      %v1715 = vunpack.c.l.b16 %v1683
      %v1716 = vunpack.c.l.b16 %v1684
      %v1717 = vunpack.c.l.b16 %v1685
      %v1718 = vunpack.c.l.b16 %v1686
      %v1719 = vunpack.c.l.b16 %v1687
      %v1720 = vunpack.c.l.b16 %v1688
      %v1721 = vunpack.c.l.b16 %v1689
      %v1722 = vunpack.c.l.b16 %v1690
      %v1723 = vunpack.c.l.b16 %v1691
      %v1724 = vunpack.c.l.b16 %v1692
      %v1725 = vunpack.c.l.b16 %v1693
      %v1726 = vunpack.c.l.b16 %v1694
      %v1727 = vunpack.c.l.b16 %v1695
      %v1728 = vunpack.c.l.b16 %v1696
      %v1729 = vunpack.c.l.b16 %v1697
      %v1730 = vunpack.c.l.b16 %v1698
      %v1731 = vpack.c.b16 %v1716, %v1715
      %v1732 = vpack.c.b16 %v1718, %v1717
      %v1733 = vpack.c.b16 %v1720, %v1719
      %v1734 = vpack.c.b16 %v1722, %v1721
      %v1735 = vpack.c.b16 %v1724, %v1723
      %v1736 = vpack.c.b16 %v1726, %v1725
      %v1737 = vpack.c.b16 %v1728, %v1727
      %v1738 = vpack.c.b16 %v1730, %v1729
      %1747 = vmatpush.bf16.msra.mxu0 %v1738
      %1748 = vmatpush.bf16.msra.mxu0 %v1737
      %1749 = vmatpush.bf16.msra.mxu0 %v1736
      %1750 = vmatpush.bf16.msra.mxu0 %v1735
      %1751 = vmatpush.bf16.msra.mxu0 %v1734
      %1752 = vmatpush.bf16.msra.mxu0 %v1733
      %1753 = vmatpush.bf16.msra.mxu0 %v1732
      %1754 = vmatpush.bf16.msra.mxu0 %v1731
      %1755 = vmatmul.bf16.gmra.mxu0 %v1664
      %v1756 = vpop.f32.mrf.mxu0
      %v1757 = vadd.f32 0.0, %v1756
      %v1758 = vpop.f32.mrf.mxu0
      %v1759 = vadd.f32 0.0, %v1758
      %1760 = vmatmul.bf16.gmra.mxu0 %v1665
      %v1761 = vpop.f32.mrf.mxu0
      %v1762 = vadd.f32 0.0, %v1761
      %v1763 = vpop.f32.mrf.mxu0
      %v1764 = vadd.f32 0.0, %v1763
      %1765 = vmatmul.bf16.gmra.mxu0 %v1666
      %v1766 = vpop.f32.mrf.mxu0
      %v1767 = vadd.f32 0.0, %v1766
      %v1768 = vpop.f32.mrf.mxu0
      %v1769 = vadd.f32 0.0, %v1768
      %1770 = vmatmul.bf16.gmra.mxu0 %v1667
      %v1771 = vpop.f32.mrf.mxu0
      %v1772 = vadd.f32 0.0, %v1771
      %v1773 = vpop.f32.mrf.mxu0
      %v1774 = vadd.f32 0.0, %v1773
      %1775 = vmatmul.bf16.gmra.mxu0 %v1668
      %v1776 = vpop.f32.mrf.mxu0
      %v1777 = vadd.f32 0.0, %v1776
      %v1778 = vpop.f32.mrf.mxu0
      %v1779 = vadd.f32 0.0, %v1778
      %1780 = vmatmul.bf16.gmra.mxu0 %v1669
      %v1781 = vpop.f32.mrf.mxu0
      %v1782 = vadd.f32 0.0, %v1781
      %v1783 = vpop.f32.mrf.mxu0
      %v1784 = vadd.f32 0.0, %v1783
      %1785 = vmatmul.bf16.gmra.mxu0 %v1670
      %v1786 = vpop.f32.mrf.mxu0
      %v1787 = vadd.f32 0.0, %v1786
      %v1788 = vpop.f32.mrf.mxu0
      %v1789 = vadd.f32 0.0, %v1788
      %1790 = vmatmul.bf16.gmra.mxu0 %v1671
      %v1791 = vpop.f32.mrf.mxu0
      %v1792 = vadd.f32 0.0, %v1791
      %v1793 = vpop.f32.mrf.mxu0
      %v1794 = vadd.f32 0.0, %v1793
      %1795 = vmatmul.bf16.gmra.mxu0 %v1672
      %v1796 = vpop.f32.mrf.mxu0
      %v1797 = vadd.f32 0.0, %v1796
      %v1798 = vpop.f32.mrf.mxu0
      %v1799 = vadd.f32 0.0, %v1798
      %1800 = vmatmul.bf16.gmra.mxu0 %v1673
      %v1801 = vpop.f32.mrf.mxu0
      %v1802 = vadd.f32 0.0, %v1801
      %v1803 = vpop.f32.mrf.mxu0
      %v1804 = vadd.f32 0.0, %v1803
      %1805 = vmatmul.bf16.gmra.mxu0 %v1674
      %v1806 = vpop.f32.mrf.mxu0
      %v1807 = vadd.f32 0.0, %v1806
      %v1808 = vpop.f32.mrf.mxu0
      %v1809 = vadd.f32 0.0, %v1808
      %1810 = vmatmul.bf16.gmra.mxu0 %v1675
      %v1811 = vpop.f32.mrf.mxu0
      %v1812 = vadd.f32 0.0, %v1811
      %v1813 = vpop.f32.mrf.mxu0
      %v1814 = vadd.f32 0.0, %v1813
      %1815 = vmatmul.bf16.gmra.mxu0 %v1676
      %v1816 = vpop.f32.mrf.mxu0
      %v1817 = vadd.f32 0.0, %v1816
      %v1818 = vpop.f32.mrf.mxu0
      %v1819 = vadd.f32 0.0, %v1818
      %1820 = vmatmul.bf16.gmra.mxu0 %v1677
      %v1821 = vpop.f32.mrf.mxu0
      %v1822 = vadd.f32 0.0, %v1821
      %v1823 = vpop.f32.mrf.mxu0
      %v1824 = vadd.f32 0.0, %v1823
      %1825 = vmatmul.bf16.gmra.mxu0 %v1678
      %v1826 = vpop.f32.mrf.mxu0
      %v1827 = vadd.f32 0.0, %v1826
      %v1828 = vpop.f32.mrf.mxu0
      %v1829 = vadd.f32 0.0, %v1828
      %1830 = vmatmul.bf16.gmra.mxu0 %v1679
      %v1831 = vpop.f32.mrf.mxu0
      %v1832 = vadd.f32 0.0, %v1831
      %v1833 = vpop.f32.mrf.mxu0
      %v1834 = vadd.f32 0.0, %v1833
      %1835 = vmatmul.bf16.gmra.mxu0 %v1680
      %v1836 = vpop.f32.mrf.mxu0
      %v1837 = vadd.f32 0.0, %v1836
      %v1838 = vpop.f32.mrf.mxu0
      %v1839 = vadd.f32 0.0, %v1838
      %1840 = vmatmul.bf16.gmra.mxu0 %v1681
      %v1841 = vpop.f32.mrf.mxu0
      %v1842 = vadd.f32 0.0, %v1841
      %v1843 = vpop.f32.mrf.mxu0
      %v1844 = vadd.f32 0.0, %v1843
      %1845 = vdwg.mxu0
      %v1846 = vld [vmem:[#allocation3] sm:$0xff]
      %v1847 = vld [vmem:[#allocation3 + $0x8] sm:$0xff]
      %v1848 = vld [vmem:[#allocation3 + $0x10] sm:$0xff]
      %v1849 = vld [vmem:[#allocation3 + $0x18] sm:$0xff]
      %v1850 = vld [vmem:[#allocation3 + $0x20] sm:$0xff]
      %v1851 = vld [vmem:[#allocation3 + $0x28] sm:$0xff]
      %v1852 = vld [vmem:[#allocation3 + $0x30] sm:$0xff]
      %v1853 = vld [vmem:[#allocation3 + $0x38] sm:$0xff]
      %v1854 = vld [vmem:[#allocation3 + $0x40] sm:$0xff]
      %v1855 = vld [vmem:[#allocation3 + $0x48] sm:$0xff]
      %v1856 = vld [vmem:[#allocation3 + $0x50] sm:$0xff]
      %v1857 = vld [vmem:[#allocation3 + $0x58] sm:$0xff]
      %v1858 = vld [vmem:[#allocation3 + $0x60] sm:$0xff]
      %v1859 = vld [vmem:[#allocation3 + $0x68] sm:$0xff]
      %v1860 = vld [vmem:[#allocation3 + $0x70] sm:$0xff]
      %v1861 = vld [vmem:[#allocation3 + $0x78] sm:$0xff]
      %v1862 = vld [vmem:[#allocation3 + $0x80] sm:$0xff]
      %v1863 = vld [vmem:[#allocation3 + $0x88] sm:$0xff]
      %v1864 = vld [vmem:[#allocation3 + $0x90] sm:$0xff]
      %v1865 = vld [vmem:[#allocation3 + $0x98] sm:$0xff]
      %v1866 = vld [vmem:[#allocation3 + $0xa0] sm:$0xff]
      %v1867 = vld [vmem:[#allocation3 + $0xa8] sm:$0xff]
      %v1868 = vld [vmem:[#allocation3 + $0xb0] sm:$0xff]
      %v1869 = vld [vmem:[#allocation3 + $0xb8] sm:$0xff]
      %v1870 = vld [vmem:[#allocation3 + $0xc0] sm:$0xff]
      %v1871 = vld [vmem:[#allocation3 + $0xc8] sm:$0xff]
      %v1872 = vld [vmem:[#allocation3 + $0xd0] sm:$0xff]
      %v1873 = vld [vmem:[#allocation3 + $0xd8] sm:$0xff]
      %v1874 = vld [vmem:[#allocation3 + $0xe0] sm:$0xff]
      %v1875 = vld [vmem:[#allocation3 + $0xe8] sm:$0xff]
      %v1876 = vld [vmem:[#allocation3 + $0xf0] sm:$0xff]
      %v1877 = vld [vmem:[#allocation3 + $0xf8] sm:$0xff]
      %v1878 = vld [vmem:[#allocation3 + $0x100] sm:$0xff]
      %v1879 = vld [vmem:[#allocation3 + $0x108] sm:$0xff]
      %v1880 = vld [vmem:[#allocation3 + $0x110] sm:$0xff]
      %v1881 = vld [vmem:[#allocation3 + $0x118] sm:$0xff]
      %v1882 = vadd.f32 %v1846, %v1757
      %v1883 = vadd.f32 %v1847, %v1759
      %v1884 = vadd.f32 %v1848, %v1762
      %v1885 = vadd.f32 %v1849, %v1764
      %v1886 = vadd.f32 %v1850, %v1767
      %v1887 = vadd.f32 %v1851, %v1769
      %v1888 = vadd.f32 %v1852, %v1772
      %v1889 = vadd.f32 %v1853, %v1774
      %v1890 = vadd.f32 %v1854, %v1777
      %v1891 = vadd.f32 %v1855, %v1779
      %v1892 = vadd.f32 %v1856, %v1782
      %v1893 = vadd.f32 %v1857, %v1784
      %v1894 = vadd.f32 %v1858, %v1787
      %v1895 = vadd.f32 %v1859, %v1789
      %v1896 = vadd.f32 %v1860, %v1792
      %v1897 = vadd.f32 %v1861, %v1794
      %v1898 = vadd.f32 %v1862, %v1797
      %v1899 = vadd.f32 %v1863, %v1799
      %v1900 = vadd.f32 %v1864, %v1802
      %v1901 = vadd.f32 %v1865, %v1804
      %v1902 = vadd.f32 %v1866, %v1807
      %v1903 = vadd.f32 %v1867, %v1809
      %v1904 = vadd.f32 %v1868, %v1812
      %v1905 = vadd.f32 %v1869, %v1814
      %v1906 = vadd.f32 %v1870, %v1817
      %v1907 = vadd.f32 %v1871, %v1819
      %v1908 = vadd.f32 %v1872, %v1822
      %v1909 = vadd.f32 %v1873, %v1824
      %v1910 = vadd.f32 %v1874, %v1827
      %v1911 = vadd.f32 %v1875, %v1829
      %v1912 = vadd.f32 %v1876, %v1832
      %v1913 = vadd.f32 %v1877, %v1834
      %v1914 = vadd.f32 %v1878, %v1837
      %v1915 = vadd.f32 %v1879, %v1839
      %v1916 = vadd.f32 %v1880, %v1842
      %v1917 = vadd.f32 %v1881, %v1844
      %1918 = vst [vmem:[#allocation3] sm:$0xff] %v1882
      %1919 = vst [vmem:[#allocation3 + $0x8] sm:$0xff] %v1883
      %1920 = vst [vmem:[#allocation3 + $0x10] sm:$0xff] %v1884
      %1921 = vst [vmem:[#allocation3 + $0x18] sm:$0xff] %v1885
      %1922 = vst [vmem:[#allocation3 + $0x20] sm:$0xff] %v1886
      %1923 = vst [vmem:[#allocation3 + $0x28] sm:$0xff] %v1887
      %1924 = vst [vmem:[#allocation3 + $0x30] sm:$0xff] %v1888
      %1925 = vst [vmem:[#allocation3 + $0x38] sm:$0xff] %v1889
      %1926 = vst [vmem:[#allocation3 + $0x40] sm:$0xff] %v1890
      %1927 = vst [vmem:[#allocation3 + $0x48] sm:$0xff] %v1891
      %1928 = vst [vmem:[#allocation3 + $0x50] sm:$0xff] %v1892
      %1929 = vst [vmem:[#allocation3 + $0x58] sm:$0xff] %v1893
      %1930 = vst [vmem:[#allocation3 + $0x60] sm:$0xff] %v1894
      %1931 = vst [vmem:[#allocation3 + $0x68] sm:$0xff] %v1895
      %1932 = vst [vmem:[#allocation3 + $0x70] sm:$0xff] %v1896
      %1933 = vst [vmem:[#allocation3 + $0x78] sm:$0xff] %v1897
      %1934 = vst [vmem:[#allocation3 + $0x80] sm:$0xff] %v1898
      %1935 = vst [vmem:[#allocation3 + $0x88] sm:$0xff] %v1899
      %1936 = vst [vmem:[#allocation3 + $0x90] sm:$0xff] %v1900
      %1937 = vst [vmem:[#allocation3 + $0x98] sm:$0xff] %v1901
      %1938 = vst [vmem:[#allocation3 + $0xa0] sm:$0xff] %v1902
      %1939 = vst [vmem:[#allocation3 + $0xa8] sm:$0xff] %v1903
      %1940 = vst [vmem:[#allocation3 + $0xb0] sm:$0xff] %v1904
      %1941 = vst [vmem:[#allocation3 + $0xb8] sm:$0xff] %v1905
      %1942 = vst [vmem:[#allocation3 + $0xc0] sm:$0xff] %v1906
      %1943 = vst [vmem:[#allocation3 + $0xc8] sm:$0xff] %v1907
      %1944 = vst [vmem:[#allocation3 + $0xd0] sm:$0xff] %v1908
      %1945 = vst [vmem:[#allocation3 + $0xd8] sm:$0xff] %v1909
      %1946 = vst [vmem:[#allocation3 + $0xe0] sm:$0xff] %v1910
      %1947 = vst [vmem:[#allocation3 + $0xe8] sm:$0xff] %v1911
      %1948 = vst [vmem:[#allocation3 + $0xf0] sm:$0xff] %v1912
      %1949 = vst [vmem:[#allocation3 + $0xf8] sm:$0xff] %v1913
      %1950 = vst [vmem:[#allocation3 + $0x100] sm:$0xff] %v1914
      %1951 = vst [vmem:[#allocation3 + $0x108] sm:$0xff] %v1915
      %1952 = vst [vmem:[#allocation3 + $0x110] sm:$0xff] %v1916
      %1953 = vst [vmem:[#allocation3 + $0x118] sm:$0xff] %v1917
      %v1954 = vld [vmem:[#allocation2 + $0x12] sm:$0xff]
      %v1955 = vld [vmem:[#allocation2 + $0x1a] sm:$0xff]
      %v1956 = vld [vmem:[#allocation2 + $0x22] sm:$0xff]
      %v1957 = vld [vmem:[#allocation2 + $0x2a] sm:$0xff]
      %v1958 = vld [vmem:[#allocation2 + $0x32] sm:$0xff]
      %v1959 = vld [vmem:[#allocation2 + $0x3a] sm:$0xff]
      %v1960 = vld [vmem:[#allocation2 + $0x42] sm:$0xff]
      %v1961 = vld [vmem:[#allocation2 + $0x4a] sm:$0xff]
      %v1962 = vld [vmem:[#allocation2 + $0x52] sm:$0xff]
      %v1963 = vld [vmem:[#allocation2 + $0x5a] sm:$0xff]
      %v1964 = vld [vmem:[#allocation2 + $0x62] sm:$0xff]
      %v1965 = vld [vmem:[#allocation2 + $0x6a] sm:$0xff]
      %v1966 = vld [vmem:[#allocation2 + $0x72] sm:$0xff]
      %v1967 = vld [vmem:[#allocation2 + $0x7a] sm:$0xff]
      %v1968 = vld [vmem:[#allocation2 + $0x82] sm:$0xff]
      %v1969 = vld [vmem:[#allocation2 + $0x8a] sm:$0xff]
      %v1970 = vld [vmem:[#allocation2 + $0x92] sm:$0xff]
      %v1971 = vld [vmem:[#allocation2 + $0x9a] sm:$0xff]
      %v1972 = vld [vmem:[#allocation2 + $0xa2] sm:$0xff]
      %v1973 = vld [vmem:[#allocation2 + $0xaa] sm:$0xff]
      %v1974 = vld [vmem:[#allocation2 + $0xb2] sm:$0xff]
      %v1975 = vld [vmem:[#allocation2 + $0xba] sm:$0xff]
      %v1976 = vld [vmem:[#allocation2 + $0xc2] sm:$0xff]
      %v1977 = vld [vmem:[#allocation2 + $0xca] sm:$0xff]
      %v1978 = vld [vmem:[#allocation2 + $0xd2] sm:$0xff]
      %v1979 = vld [vmem:[#allocation2 + $0xda] sm:$0xff]
      %v1980 = vld [vmem:[#allocation2 + $0xe2] sm:$0xff]
      %v1981 = vld [vmem:[#allocation2 + $0xea] sm:$0xff]
      %v1982 = vld [vmem:[#allocation2 + $0xf2] sm:$0xff]
      %v1983 = vld [vmem:[#allocation2 + $0xfa] sm:$0xff]
      %v1984 = vld [vmem:[#allocation2 + $0x102] sm:$0xff]
      %v1985 = vld [vmem:[#allocation2 + $0x10a] sm:$0xff]
      %v1986 = vld [vmem:[#allocation2 + $0x112] sm:$0xff]
      %v1987 = vld [vmem:[#allocation2 + $0x11a] sm:$0xff]
      %v1988 = vld [vmem:[#allocation2 + $0x122] sm:$0xff]
      %v1989 = vld [vmem:[#allocation2 + $0x12a] sm:$0xff]
      %v1990 = vpack.c.bf16 %v1955, %v1954
      %v1991 = vpack.c.bf16 %v1957, %v1956
      %v1992 = vpack.c.bf16 %v1959, %v1958
      %v1993 = vpack.c.bf16 %v1961, %v1960
      %v1994 = vpack.c.bf16 %v1963, %v1962
      %v1995 = vpack.c.bf16 %v1965, %v1964
      %v1996 = vpack.c.bf16 %v1967, %v1966
      %v1997 = vpack.c.bf16 %v1969, %v1968
      %v1998 = vpack.c.bf16 %v1971, %v1970
      %v1999 = vpack.c.bf16 %v1973, %v1972
      %v2000 = vpack.c.bf16 %v1975, %v1974
      %v2001 = vpack.c.bf16 %v1977, %v1976
      %v2002 = vpack.c.bf16 %v1979, %v1978
      %v2003 = vpack.c.bf16 %v1981, %v1980
      %v2004 = vpack.c.bf16 %v1983, %v1982
      %v2005 = vpack.c.bf16 %v1985, %v1984
      %v2006 = vpack.c.bf16 %v1987, %v1986
      %v2007 = vpack.c.bf16 %v1989, %v1988
      %s2008 = scalar_lea.vmem %s5, 192
      %v2009 = vld [vmem:[%s2008] sm:$0xf]
      %v2010 = vld [vmem:[%s2008 + $0x4] sm:$0xf]
      %v2011 = vld [vmem:[%s2008 + $0x8] sm:$0xf]
      %v2012 = vld [vmem:[%s2008 + $0xc] sm:$0xf]
      %v2013 = vld [vmem:[%s2008 + $0x10] sm:$0xf]
      %v2014 = vld [vmem:[%s2008 + $0x14] sm:$0xf]
      %v2015 = vld [vmem:[%s2008 + $0x18] sm:$0xf]
      %v2016 = vld [vmem:[%s2008 + $0x1c] sm:$0xf]
      %v2017 = vld [vmem:[%s2008 + $0x20] sm:$0xf]
      %v2018 = vld [vmem:[%s2008 + $0x24] sm:$0xf]
      %v2019 = vld [vmem:[%s2008 + $0x28] sm:$0xf]
      %v2020 = vld [vmem:[%s2008 + $0x2c] sm:$0xf]
      %v2021 = vld [vmem:[%s2008 + $0x30] sm:$0xf]
      %v2022 = vld [vmem:[%s2008 + $0x34] sm:$0xf]
      %v2023 = vld [vmem:[%s2008 + $0x38] sm:$0xf]
      %v2024 = vld [vmem:[%s2008 + $0x3c] sm:$0xf]
      %v2041 = vunpack.c.l.b16 %v2009
      %v2042 = vunpack.c.l.b16 %v2010
      %v2043 = vunpack.c.l.b16 %v2011
      %v2044 = vunpack.c.l.b16 %v2012
      %v2045 = vunpack.c.l.b16 %v2013
      %v2046 = vunpack.c.l.b16 %v2014
      %v2047 = vunpack.c.l.b16 %v2015
      %v2048 = vunpack.c.l.b16 %v2016
      %v2049 = vunpack.c.l.b16 %v2017
      %v2050 = vunpack.c.l.b16 %v2018
      %v2051 = vunpack.c.l.b16 %v2019
      %v2052 = vunpack.c.l.b16 %v2020
      %v2053 = vunpack.c.l.b16 %v2021
      %v2054 = vunpack.c.l.b16 %v2022
      %v2055 = vunpack.c.l.b16 %v2023
      %v2056 = vunpack.c.l.b16 %v2024
      %v2057 = vpack.c.b16 %v2042, %v2041
      %v2058 = vpack.c.b16 %v2044, %v2043
      %v2059 = vpack.c.b16 %v2046, %v2045
      %v2060 = vpack.c.b16 %v2048, %v2047
      %v2061 = vpack.c.b16 %v2050, %v2049
      %v2062 = vpack.c.b16 %v2052, %v2051
      %v2063 = vpack.c.b16 %v2054, %v2053
      %v2064 = vpack.c.b16 %v2056, %v2055
      %2073 = vmatpush.bf16.msra.mxu0 %v2064
      %2074 = vmatpush.bf16.msra.mxu0 %v2063
      %2075 = vmatpush.bf16.msra.mxu0 %v2062
      %2076 = vmatpush.bf16.msra.mxu0 %v2061
      %2077 = vmatpush.bf16.msra.mxu0 %v2060
      %2078 = vmatpush.bf16.msra.mxu0 %v2059
      %2079 = vmatpush.bf16.msra.mxu0 %v2058
      %2080 = vmatpush.bf16.msra.mxu0 %v2057
      %2081 = vmatmul.bf16.gmra.mxu0 %v1990
      %v2082 = vpop.f32.mrf.mxu0
      %v2083 = vadd.f32 0.0, %v2082
      %v2084 = vpop.f32.mrf.mxu0
      %v2085 = vadd.f32 0.0, %v2084
      %2086 = vmatmul.bf16.gmra.mxu0 %v1991
      %v2087 = vpop.f32.mrf.mxu0
      %v2088 = vadd.f32 0.0, %v2087
      %v2089 = vpop.f32.mrf.mxu0
      %v2090 = vadd.f32 0.0, %v2089
      %2091 = vmatmul.bf16.gmra.mxu0 %v1992
      %v2092 = vpop.f32.mrf.mxu0
      %v2093 = vadd.f32 0.0, %v2092
      %v2094 = vpop.f32.mrf.mxu0
      %v2095 = vadd.f32 0.0, %v2094
      %2096 = vmatmul.bf16.gmra.mxu0 %v1993
      %v2097 = vpop.f32.mrf.mxu0
      %v2098 = vadd.f32 0.0, %v2097
      %v2099 = vpop.f32.mrf.mxu0
      %v2100 = vadd.f32 0.0, %v2099
      %2101 = vmatmul.bf16.gmra.mxu0 %v1994
      %v2102 = vpop.f32.mrf.mxu0
      %v2103 = vadd.f32 0.0, %v2102
      %v2104 = vpop.f32.mrf.mxu0
      %v2105 = vadd.f32 0.0, %v2104
      %2106 = vmatmul.bf16.gmra.mxu0 %v1995
      %v2107 = vpop.f32.mrf.mxu0
      %v2108 = vadd.f32 0.0, %v2107
      %v2109 = vpop.f32.mrf.mxu0
      %v2110 = vadd.f32 0.0, %v2109
      %2111 = vmatmul.bf16.gmra.mxu0 %v1996
      %v2112 = vpop.f32.mrf.mxu0
      %v2113 = vadd.f32 0.0, %v2112
      %v2114 = vpop.f32.mrf.mxu0
      %v2115 = vadd.f32 0.0, %v2114
      %2116 = vmatmul.bf16.gmra.mxu0 %v1997
      %v2117 = vpop.f32.mrf.mxu0
      %v2118 = vadd.f32 0.0, %v2117
      %v2119 = vpop.f32.mrf.mxu0
      %v2120 = vadd.f32 0.0, %v2119
      %2121 = vmatmul.bf16.gmra.mxu0 %v1998
      %v2122 = vpop.f32.mrf.mxu0
      %v2123 = vadd.f32 0.0, %v2122
      %v2124 = vpop.f32.mrf.mxu0
      %v2125 = vadd.f32 0.0, %v2124
      %2126 = vmatmul.bf16.gmra.mxu0 %v1999
      %v2127 = vpop.f32.mrf.mxu0
      %v2128 = vadd.f32 0.0, %v2127
      %v2129 = vpop.f32.mrf.mxu0
      %v2130 = vadd.f32 0.0, %v2129
      %2131 = vmatmul.bf16.gmra.mxu0 %v2000
      %v2132 = vpop.f32.mrf.mxu0
      %v2133 = vadd.f32 0.0, %v2132
      %v2134 = vpop.f32.mrf.mxu0
      %v2135 = vadd.f32 0.0, %v2134
      %2136 = vmatmul.bf16.gmra.mxu0 %v2001
      %v2137 = vpop.f32.mrf.mxu0
      %v2138 = vadd.f32 0.0, %v2137
      %v2139 = vpop.f32.mrf.mxu0
      %v2140 = vadd.f32 0.0, %v2139
      %2141 = vmatmul.bf16.gmra.mxu0 %v2002
      %v2142 = vpop.f32.mrf.mxu0
      %v2143 = vadd.f32 0.0, %v2142
      %v2144 = vpop.f32.mrf.mxu0
      %v2145 = vadd.f32 0.0, %v2144
      %2146 = vmatmul.bf16.gmra.mxu0 %v2003
      %v2147 = vpop.f32.mrf.mxu0
      %v2148 = vadd.f32 0.0, %v2147
      %v2149 = vpop.f32.mrf.mxu0
      %v2150 = vadd.f32 0.0, %v2149
      %2151 = vmatmul.bf16.gmra.mxu0 %v2004
      %v2152 = vpop.f32.mrf.mxu0
      %v2153 = vadd.f32 0.0, %v2152
      %v2154 = vpop.f32.mrf.mxu0
      %v2155 = vadd.f32 0.0, %v2154
      %2156 = vmatmul.bf16.gmra.mxu0 %v2005
      %v2157 = vpop.f32.mrf.mxu0
      %v2158 = vadd.f32 0.0, %v2157
      %v2159 = vpop.f32.mrf.mxu0
      %v2160 = vadd.f32 0.0, %v2159
      %2161 = vmatmul.bf16.gmra.mxu0 %v2006
      %v2162 = vpop.f32.mrf.mxu0
      %v2163 = vadd.f32 0.0, %v2162
      %v2164 = vpop.f32.mrf.mxu0
      %v2165 = vadd.f32 0.0, %v2164
      %2166 = vmatmul.bf16.gmra.mxu0 %v2007
      %v2167 = vpop.f32.mrf.mxu0
      %v2168 = vadd.f32 0.0, %v2167
      %v2169 = vpop.f32.mrf.mxu0
      %v2170 = vadd.f32 0.0, %v2169
      %2171 = vdwg.mxu0
      %v2172 = vld [vmem:[#allocation3] sm:$0xff]
      %v2173 = vld [vmem:[#allocation3 + $0x8] sm:$0xff]
      %v2174 = vld [vmem:[#allocation3 + $0x10] sm:$0xff]
      %v2175 = vld [vmem:[#allocation3 + $0x18] sm:$0xff]
      %v2176 = vld [vmem:[#allocation3 + $0x20] sm:$0xff]
      %v2177 = vld [vmem:[#allocation3 + $0x28] sm:$0xff]
      %v2178 = vld [vmem:[#allocation3 + $0x30] sm:$0xff]
      %v2179 = vld [vmem:[#allocation3 + $0x38] sm:$0xff]
      %v2180 = vld [vmem:[#allocation3 + $0x40] sm:$0xff]
      %v2181 = vld [vmem:[#allocation3 + $0x48] sm:$0xff]
      %v2182 = vld [vmem:[#allocation3 + $0x50] sm:$0xff]
      %v2183 = vld [vmem:[#allocation3 + $0x58] sm:$0xff]
      %v2184 = vld [vmem:[#allocation3 + $0x60] sm:$0xff]
      %v2185 = vld [vmem:[#allocation3 + $0x68] sm:$0xff]
      %v2186 = vld [vmem:[#allocation3 + $0x70] sm:$0xff]
      %v2187 = vld [vmem:[#allocation3 + $0x78] sm:$0xff]
      %v2188 = vld [vmem:[#allocation3 + $0x80] sm:$0xff]
      %v2189 = vld [vmem:[#allocation3 + $0x88] sm:$0xff]
      %v2190 = vld [vmem:[#allocation3 + $0x90] sm:$0xff]
      %v2191 = vld [vmem:[#allocation3 + $0x98] sm:$0xff]
      %v2192 = vld [vmem:[#allocation3 + $0xa0] sm:$0xff]
      %v2193 = vld [vmem:[#allocation3 + $0xa8] sm:$0xff]
      %v2194 = vld [vmem:[#allocation3 + $0xb0] sm:$0xff]
      %v2195 = vld [vmem:[#allocation3 + $0xb8] sm:$0xff]
      %v2196 = vld [vmem:[#allocation3 + $0xc0] sm:$0xff]
      %v2197 = vld [vmem:[#allocation3 + $0xc8] sm:$0xff]
      %v2198 = vld [vmem:[#allocation3 + $0xd0] sm:$0xff]
      %v2199 = vld [vmem:[#allocation3 + $0xd8] sm:$0xff]
      %v2200 = vld [vmem:[#allocation3 + $0xe0] sm:$0xff]
      %v2201 = vld [vmem:[#allocation3 + $0xe8] sm:$0xff]
      %v2202 = vld [vmem:[#allocation3 + $0xf0] sm:$0xff]
      %v2203 = vld [vmem:[#allocation3 + $0xf8] sm:$0xff]
      %v2204 = vld [vmem:[#allocation3 + $0x100] sm:$0xff]
      %v2205 = vld [vmem:[#allocation3 + $0x108] sm:$0xff]
      %v2206 = vld [vmem:[#allocation3 + $0x110] sm:$0xff]
      %v2207 = vld [vmem:[#allocation3 + $0x118] sm:$0xff]
      %v2208 = vadd.f32 %v2172, %v2083
      %v2209 = vadd.f32 %v2173, %v2085
      %v2210 = vadd.f32 %v2174, %v2088
      %v2211 = vadd.f32 %v2175, %v2090
      %v2212 = vadd.f32 %v2176, %v2093
      %v2213 = vadd.f32 %v2177, %v2095
      %v2214 = vadd.f32 %v2178, %v2098
      %v2215 = vadd.f32 %v2179, %v2100
      %v2216 = vadd.f32 %v2180, %v2103
      %v2217 = vadd.f32 %v2181, %v2105
      %v2218 = vadd.f32 %v2182, %v2108
      %v2219 = vadd.f32 %v2183, %v2110
      %v2220 = vadd.f32 %v2184, %v2113
      %v2221 = vadd.f32 %v2185, %v2115
      %v2222 = vadd.f32 %v2186, %v2118
      %v2223 = vadd.f32 %v2187, %v2120
      %v2224 = vadd.f32 %v2188, %v2123
      %v2225 = vadd.f32 %v2189, %v2125
      %v2226 = vadd.f32 %v2190, %v2128
      %v2227 = vadd.f32 %v2191, %v2130
      %v2228 = vadd.f32 %v2192, %v2133
      %v2229 = vadd.f32 %v2193, %v2135
      %v2230 = vadd.f32 %v2194, %v2138
      %v2231 = vadd.f32 %v2195, %v2140
      %v2232 = vadd.f32 %v2196, %v2143
      %v2233 = vadd.f32 %v2197, %v2145
      %v2234 = vadd.f32 %v2198, %v2148
      %v2235 = vadd.f32 %v2199, %v2150
      %v2236 = vadd.f32 %v2200, %v2153
      %v2237 = vadd.f32 %v2201, %v2155
      %v2238 = vadd.f32 %v2202, %v2158
      %v2239 = vadd.f32 %v2203, %v2160
      %v2240 = vadd.f32 %v2204, %v2163
      %v2241 = vadd.f32 %v2205, %v2165
      %v2242 = vadd.f32 %v2206, %v2168
      %v2243 = vadd.f32 %v2207, %v2170
      %2244 = vst [vmem:[#allocation3] sm:$0xff] %v2208
      %2245 = vst [vmem:[#allocation3 + $0x8] sm:$0xff] %v2209
      %2246 = vst [vmem:[#allocation3 + $0x10] sm:$0xff] %v2210
      %2247 = vst [vmem:[#allocation3 + $0x18] sm:$0xff] %v2211
      %2248 = vst [vmem:[#allocation3 + $0x20] sm:$0xff] %v2212
      %2249 = vst [vmem:[#allocation3 + $0x28] sm:$0xff] %v2213
      %2250 = vst [vmem:[#allocation3 + $0x30] sm:$0xff] %v2214
      %2251 = vst [vmem:[#allocation3 + $0x38] sm:$0xff] %v2215
      %2252 = vst [vmem:[#allocation3 + $0x40] sm:$0xff] %v2216
      %2253 = vst [vmem:[#allocation3 + $0x48] sm:$0xff] %v2217
      %2254 = vst [vmem:[#allocation3 + $0x50] sm:$0xff] %v2218
      %2255 = vst [vmem:[#allocation3 + $0x58] sm:$0xff] %v2219
      %2256 = vst [vmem:[#allocation3 + $0x60] sm:$0xff] %v2220
      %2257 = vst [vmem:[#allocation3 + $0x68] sm:$0xff] %v2221
      %2258 = vst [vmem:[#allocation3 + $0x70] sm:$0xff] %v2222
      %2259 = vst [vmem:[#allocation3 + $0x78] sm:$0xff] %v2223
      %2260 = vst [vmem:[#allocation3 + $0x80] sm:$0xff] %v2224
      %2261 = vst [vmem:[#allocation3 + $0x88] sm:$0xff] %v2225
      %2262 = vst [vmem:[#allocation3 + $0x90] sm:$0xff] %v2226
      %2263 = vst [vmem:[#allocation3 + $0x98] sm:$0xff] %v2227
      %2264 = vst [vmem:[#allocation3 + $0xa0] sm:$0xff] %v2228
      %2265 = vst [vmem:[#allocation3 + $0xa8] sm:$0xff] %v2229
      %2266 = vst [vmem:[#allocation3 + $0xb0] sm:$0xff] %v2230
      %2267 = vst [vmem:[#allocation3 + $0xb8] sm:$0xff] %v2231
      %2268 = vst [vmem:[#allocation3 + $0xc0] sm:$0xff] %v2232
      %2269 = vst [vmem:[#allocation3 + $0xc8] sm:$0xff] %v2233
      %2270 = vst [vmem:[#allocation3 + $0xd0] sm:$0xff] %v2234
      %2271 = vst [vmem:[#allocation3 + $0xd8] sm:$0xff] %v2235
      %2272 = vst [vmem:[#allocation3 + $0xe0] sm:$0xff] %v2236
      %2273 = vst [vmem:[#allocation3 + $0xe8] sm:$0xff] %v2237
      %2274 = vst [vmem:[#allocation3 + $0xf0] sm:$0xff] %v2238
      %2275 = vst [vmem:[#allocation3 + $0xf8] sm:$0xff] %v2239
      %2276 = vst [vmem:[#allocation3 + $0x100] sm:$0xff] %v2240
      %2277 = vst [vmem:[#allocation3 + $0x108] sm:$0xff] %v2241
      %2278 = vst [vmem:[#allocation3 + $0x110] sm:$0xff] %v2242
      %2279 = vst [vmem:[#allocation3 + $0x118] sm:$0xff] %v2243
      %v2280 = vld [vmem:[#allocation2 + $0x13] sm:$0xff]
      %v2281 = vld [vmem:[#allocation2 + $0x1b] sm:$0xff]
      %v2282 = vld [vmem:[#allocation2 + $0x23] sm:$0xff]
      %v2283 = vld [vmem:[#allocation2 + $0x2b] sm:$0xff]
      %v2284 = vld [vmem:[#allocation2 + $0x33] sm:$0xff]
      %v2285 = vld [vmem:[#allocation2 + $0x3b] sm:$0xff]
      %v2286 = vld [vmem:[#allocation2 + $0x43] sm:$0xff]
      %v2287 = vld [vmem:[#allocation2 + $0x4b] sm:$0xff]
      %v2288 = vld [vmem:[#allocation2 + $0x53] sm:$0xff]
      %v2289 = vld [vmem:[#allocation2 + $0x5b] sm:$0xff]
      %v2290 = vld [vmem:[#allocation2 + $0x63] sm:$0xff]
      %v2291 = vld [vmem:[#allocation2 + $0x6b] sm:$0xff]
      %v2292 = vld [vmem:[#allocation2 + $0x73] sm:$0xff]
      %v2293 = vld [vmem:[#allocation2 + $0x7b] sm:$0xff]
      %v2294 = vld [vmem:[#allocation2 + $0x83] sm:$0xff]
      %v2295 = vld [vmem:[#allocation2 + $0x8b] sm:$0xff]
      %v2296 = vld [vmem:[#allocation2 + $0x93] sm:$0xff]
      %v2297 = vld [vmem:[#allocation2 + $0x9b] sm:$0xff]
      %v2298 = vld [vmem:[#allocation2 + $0xa3] sm:$0xff]
      %v2299 = vld [vmem:[#allocation2 + $0xab] sm:$0xff]
      %v2300 = vld [vmem:[#allocation2 + $0xb3] sm:$0xff]
      %v2301 = vld [vmem:[#allocation2 + $0xbb] sm:$0xff]
      %v2302 = vld [vmem:[#allocation2 + $0xc3] sm:$0xff]
      %v2303 = vld [vmem:[#allocation2 + $0xcb] sm:$0xff]
      %v2304 = vld [vmem:[#allocation2 + $0xd3] sm:$0xff]
      %v2305 = vld [vmem:[#allocation2 + $0xdb] sm:$0xff]
      %v2306 = vld [vmem:[#allocation2 + $0xe3] sm:$0xff]
      %v2307 = vld [vmem:[#allocation2 + $0xeb] sm:$0xff]
      %v2308 = vld [vmem:[#allocation2 + $0xf3] sm:$0xff]
      %v2309 = vld [vmem:[#allocation2 + $0xfb] sm:$0xff]
      %v2310 = vld [vmem:[#allocation2 + $0x103] sm:$0xff]
      %v2311 = vld [vmem:[#allocation2 + $0x10b] sm:$0xff]
      %v2312 = vld [vmem:[#allocation2 + $0x113] sm:$0xff]
      %v2313 = vld [vmem:[#allocation2 + $0x11b] sm:$0xff]
      %v2314 = vld [vmem:[#allocation2 + $0x123] sm:$0xff]
      %v2315 = vld [vmem:[#allocation2 + $0x12b] sm:$0xff]
      %v2316 = vpack.c.bf16 %v2281, %v2280
      %v2317 = vpack.c.bf16 %v2283, %v2282
      %v2318 = vpack.c.bf16 %v2285, %v2284
      %v2319 = vpack.c.bf16 %v2287, %v2286
      %v2320 = vpack.c.bf16 %v2289, %v2288
      %v2321 = vpack.c.bf16 %v2291, %v2290
      %v2322 = vpack.c.bf16 %v2293, %v2292
      %v2323 = vpack.c.bf16 %v2295, %v2294
      %v2324 = vpack.c.bf16 %v2297, %v2296
      %v2325 = vpack.c.bf16 %v2299, %v2298
      %v2326 = vpack.c.bf16 %v2301, %v2300
      %v2327 = vpack.c.bf16 %v2303, %v2302
      %v2328 = vpack.c.bf16 %v2305, %v2304
      %v2329 = vpack.c.bf16 %v2307, %v2306
      %v2330 = vpack.c.bf16 %v2309, %v2308
      %v2331 = vpack.c.bf16 %v2311, %v2310
      %v2332 = vpack.c.bf16 %v2313, %v2312
      %v2333 = vpack.c.bf16 %v2315, %v2314
      %s2334 = scalar_lea.vmem %s5, 256
      %v2335 = vld [vmem:[%s2334] sm:$0xf]
      %v2336 = vld [vmem:[%s2334 + $0x4] sm:$0xf]
      %v2337 = vld [vmem:[%s2334 + $0x8] sm:$0xf]
      %v2338 = vld [vmem:[%s2334 + $0xc] sm:$0xf]
      %v2339 = vld [vmem:[%s2334 + $0x10] sm:$0xf]
      %v2340 = vld [vmem:[%s2334 + $0x14] sm:$0xf]
      %v2341 = vld [vmem:[%s2334 + $0x18] sm:$0xf]
      %v2342 = vld [vmem:[%s2334 + $0x1c] sm:$0xf]
      %v2343 = vld [vmem:[%s2334 + $0x20] sm:$0xf]
      %v2344 = vld [vmem:[%s2334 + $0x24] sm:$0xf]
      %v2345 = vld [vmem:[%s2334 + $0x28] sm:$0xf]
      %v2346 = vld [vmem:[%s2334 + $0x2c] sm:$0xf]
      %v2347 = vld [vmem:[%s2334 + $0x30] sm:$0xf]
      %v2348 = vld [vmem:[%s2334 + $0x34] sm:$0xf]
      %v2349 = vld [vmem:[%s2334 + $0x38] sm:$0xf]
      %v2350 = vld [vmem:[%s2334 + $0x3c] sm:$0xf]
      %v2367 = vunpack.c.l.b16 %v2335
      %v2368 = vunpack.c.l.b16 %v2336
      %v2369 = vunpack.c.l.b16 %v2337
      %v2370 = vunpack.c.l.b16 %v2338
      %v2371 = vunpack.c.l.b16 %v2339
      %v2372 = vunpack.c.l.b16 %v2340
      %v2373 = vunpack.c.l.b16 %v2341
      %v2374 = vunpack.c.l.b16 %v2342
      %v2375 = vunpack.c.l.b16 %v2343
      %v2376 = vunpack.c.l.b16 %v2344
      %v2377 = vunpack.c.l.b16 %v2345
      %v2378 = vunpack.c.l.b16 %v2346
      %v2379 = vunpack.c.l.b16 %v2347
      %v2380 = vunpack.c.l.b16 %v2348
      %v2381 = vunpack.c.l.b16 %v2349
      %v2382 = vunpack.c.l.b16 %v2350
      %v2383 = vpack.c.b16 %v2368, %v2367
      %v2384 = vpack.c.b16 %v2370, %v2369
      %v2385 = vpack.c.b16 %v2372, %v2371
      %v2386 = vpack.c.b16 %v2374, %v2373
      %v2387 = vpack.c.b16 %v2376, %v2375
      %v2388 = vpack.c.b16 %v2378, %v2377
      %v2389 = vpack.c.b16 %v2380, %v2379
      %v2390 = vpack.c.b16 %v2382, %v2381
      %2399 = vmatpush.bf16.msra.mxu0 %v2390
      %2400 = vmatpush.bf16.msra.mxu0 %v2389
      %2401 = vmatpush.bf16.msra.mxu0 %v2388
      %2402 = vmatpush.bf16.msra.mxu0 %v2387
      %2403 = vmatpush.bf16.msra.mxu0 %v2386
      %2404 = vmatpush.bf16.msra.mxu0 %v2385
      %2405 = vmatpush.bf16.msra.mxu0 %v2384
      %2406 = vmatpush.bf16.msra.mxu0 %v2383
      %2407 = vmatmul.bf16.gmra.mxu0 %v2316
      %v2408 = vpop.f32.mrf.mxu0
      %v2409 = vadd.f32 0.0, %v2408
      %v2410 = vpop.f32.mrf.mxu0
      %v2411 = vadd.f32 0.0, %v2410
      %2412 = vmatmul.bf16.gmra.mxu0 %v2317
      %v2413 = vpop.f32.mrf.mxu0
      %v2414 = vadd.f32 0.0, %v2413
      %v2415 = vpop.f32.mrf.mxu0
      %v2416 = vadd.f32 0.0, %v2415
      %2417 = vmatmul.bf16.gmra.mxu0 %v2318
      %v2418 = vpop.f32.mrf.mxu0
      %v2419 = vadd.f32 0.0, %v2418
      %v2420 = vpop.f32.mrf.mxu0
      %v2421 = vadd.f32 0.0, %v2420
      %2422 = vmatmul.bf16.gmra.mxu0 %v2319
      %v2423 = vpop.f32.mrf.mxu0
      %v2424 = vadd.f32 0.0, %v2423
      %v2425 = vpop.f32.mrf.mxu0
      %v2426 = vadd.f32 0.0, %v2425
      %2427 = vmatmul.bf16.gmra.mxu0 %v2320
      %v2428 = vpop.f32.mrf.mxu0
      %v2429 = vadd.f32 0.0, %v2428
      %v2430 = vpop.f32.mrf.mxu0
      %v2431 = vadd.f32 0.0, %v2430
      %2432 = vmatmul.bf16.gmra.mxu0 %v2321
      %v2433 = vpop.f32.mrf.mxu0
      %v2434 = vadd.f32 0.0, %v2433
      %v2435 = vpop.f32.mrf.mxu0
      %v2436 = vadd.f32 0.0, %v2435
      %2437 = vmatmul.bf16.gmra.mxu0 %v2322
      %v2438 = vpop.f32.mrf.mxu0
      %v2439 = vadd.f32 0.0, %v2438
      %v2440 = vpop.f32.mrf.mxu0
      %v2441 = vadd.f32 0.0, %v2440
      %2442 = vmatmul.bf16.gmra.mxu0 %v2323
      %v2443 = vpop.f32.mrf.mxu0
      %v2444 = vadd.f32 0.0, %v2443
      %v2445 = vpop.f32.mrf.mxu0
      %v2446 = vadd.f32 0.0, %v2445
      %2447 = vmatmul.bf16.gmra.mxu0 %v2324
      %v2448 = vpop.f32.mrf.mxu0
      %v2449 = vadd.f32 0.0, %v2448
      %v2450 = vpop.f32.mrf.mxu0
      %v2451 = vadd.f32 0.0, %v2450
      %2452 = vmatmul.bf16.gmra.mxu0 %v2325
      %v2453 = vpop.f32.mrf.mxu0
      %v2454 = vadd.f32 0.0, %v2453
      %v2455 = vpop.f32.mrf.mxu0
      %v2456 = vadd.f32 0.0, %v2455
      %2457 = vmatmul.bf16.gmra.mxu0 %v2326
      %v2458 = vpop.f32.mrf.mxu0
      %v2459 = vadd.f32 0.0, %v2458
      %v2460 = vpop.f32.mrf.mxu0
      %v2461 = vadd.f32 0.0, %v2460
      %2462 = vmatmul.bf16.gmra.mxu0 %v2327
      %v2463 = vpop.f32.mrf.mxu0
      %v2464 = vadd.f32 0.0, %v2463
      %v2465 = vpop.f32.mrf.mxu0
      %v2466 = vadd.f32 0.0, %v2465
      %2467 = vmatmul.bf16.gmra.mxu0 %v2328
      %v2468 = vpop.f32.mrf.mxu0
      %v2469 = vadd.f32 0.0, %v2468
      %v2470 = vpop.f32.mrf.mxu0
      %v2471 = vadd.f32 0.0, %v2470
      %2472 = vmatmul.bf16.gmra.mxu0 %v2329
      %v2473 = vpop.f32.mrf.mxu0
      %v2474 = vadd.f32 0.0, %v2473
      %v2475 = vpop.f32.mrf.mxu0
      %v2476 = vadd.f32 0.0, %v2475
      %2477 = vmatmul.bf16.gmra.mxu0 %v2330
      %v2478 = vpop.f32.mrf.mxu0
      %v2479 = vadd.f32 0.0, %v2478
      %v2480 = vpop.f32.mrf.mxu0
      %v2481 = vadd.f32 0.0, %v2480
      %2482 = vmatmul.bf16.gmra.mxu0 %v2331
      %v2483 = vpop.f32.mrf.mxu0
      %v2484 = vadd.f32 0.0, %v2483
      %v2485 = vpop.f32.mrf.mxu0
      %v2486 = vadd.f32 0.0, %v2485
      %2487 = vmatmul.bf16.gmra.mxu0 %v2332
      %v2488 = vpop.f32.mrf.mxu0
      %v2489 = vadd.f32 0.0, %v2488
      %v2490 = vpop.f32.mrf.mxu0
      %v2491 = vadd.f32 0.0, %v2490
      %2492 = vmatmul.bf16.gmra.mxu0 %v2333
      %v2493 = vpop.f32.mrf.mxu0
      %v2494 = vadd.f32 0.0, %v2493
      %v2495 = vpop.f32.mrf.mxu0
      %v2496 = vadd.f32 0.0, %v2495
      %2497 = vdwg.mxu0
      %v2498 = vld [vmem:[#allocation3] sm:$0xff]
      %v2499 = vld [vmem:[#allocation3 + $0x8] sm:$0xff]
      %v2500 = vld [vmem:[#allocation3 + $0x10] sm:$0xff]
      %v2501 = vld [vmem:[#allocation3 + $0x18] sm:$0xff]
      %v2502 = vld [vmem:[#allocation3 + $0x20] sm:$0xff]
      %v2503 = vld [vmem:[#allocation3 + $0x28] sm:$0xff]
      %v2504 = vld [vmem:[#allocation3 + $0x30] sm:$0xff]
      %v2505 = vld [vmem:[#allocation3 + $0x38] sm:$0xff]
      %v2506 = vld [vmem:[#allocation3 + $0x40] sm:$0xff]
      %v2507 = vld [vmem:[#allocation3 + $0x48] sm:$0xff]
      %v2508 = vld [vmem:[#allocation3 + $0x50] sm:$0xff]
      %v2509 = vld [vmem:[#allocation3 + $0x58] sm:$0xff]
      %v2510 = vld [vmem:[#allocation3 + $0x60] sm:$0xff]
      %v2511 = vld [vmem:[#allocation3 + $0x68] sm:$0xff]
      %v2512 = vld [vmem:[#allocation3 + $0x70] sm:$0xff]
      %v2513 = vld [vmem:[#allocation3 + $0x78] sm:$0xff]
      %v2514 = vld [vmem:[#allocation3 + $0x80] sm:$0xff]
      %v2515 = vld [vmem:[#allocation3 + $0x88] sm:$0xff]
      %v2516 = vld [vmem:[#allocation3 + $0x90] sm:$0xff]
      %v2517 = vld [vmem:[#allocation3 + $0x98] sm:$0xff]
      %v2518 = vld [vmem:[#allocation3 + $0xa0] sm:$0xff]
      %v2519 = vld [vmem:[#allocation3 + $0xa8] sm:$0xff]
      %v2520 = vld [vmem:[#allocation3 + $0xb0] sm:$0xff]
      %v2521 = vld [vmem:[#allocation3 + $0xb8] sm:$0xff]
      %v2522 = vld [vmem:[#allocation3 + $0xc0] sm:$0xff]
      %v2523 = vld [vmem:[#allocation3 + $0xc8] sm:$0xff]
      %v2524 = vld [vmem:[#allocation3 + $0xd0] sm:$0xff]
      %v2525 = vld [vmem:[#allocation3 + $0xd8] sm:$0xff]
      %v2526 = vld [vmem:[#allocation3 + $0xe0] sm:$0xff]
      %v2527 = vld [vmem:[#allocation3 + $0xe8] sm:$0xff]
      %v2528 = vld [vmem:[#allocation3 + $0xf0] sm:$0xff]
      %v2529 = vld [vmem:[#allocation3 + $0xf8] sm:$0xff]
      %v2530 = vld [vmem:[#allocation3 + $0x100] sm:$0xff]
      %v2531 = vld [vmem:[#allocation3 + $0x108] sm:$0xff]
      %v2532 = vld [vmem:[#allocation3 + $0x110] sm:$0xff]
      %v2533 = vld [vmem:[#allocation3 + $0x118] sm:$0xff]
      %v2534 = vadd.f32 %v2498, %v2409
      %v2535 = vadd.f32 %v2499, %v2411
      %v2536 = vadd.f32 %v2500, %v2414
      %v2537 = vadd.f32 %v2501, %v2416
      %v2538 = vadd.f32 %v2502, %v2419
      %v2539 = vadd.f32 %v2503, %v2421
      %v2540 = vadd.f32 %v2504, %v2424
      %v2541 = vadd.f32 %v2505, %v2426
      %v2542 = vadd.f32 %v2506, %v2429
      %v2543 = vadd.f32 %v2507, %v2431
      %v2544 = vadd.f32 %v2508, %v2434
      %v2545 = vadd.f32 %v2509, %v2436
      %v2546 = vadd.f32 %v2510, %v2439
      %v2547 = vadd.f32 %v2511, %v2441
      %v2548 = vadd.f32 %v2512, %v2444
      %v2549 = vadd.f32 %v2513, %v2446
      %v2550 = vadd.f32 %v2514, %v2449
      %v2551 = vadd.f32 %v2515, %v2451
      %v2552 = vadd.f32 %v2516, %v2454
      %v2553 = vadd.f32 %v2517, %v2456
      %v2554 = vadd.f32 %v2518, %v2459
      %v2555 = vadd.f32 %v2519, %v2461
      %v2556 = vadd.f32 %v2520, %v2464
      %v2557 = vadd.f32 %v2521, %v2466
      %v2558 = vadd.f32 %v2522, %v2469
      %v2559 = vadd.f32 %v2523, %v2471
      %v2560 = vadd.f32 %v2524, %v2474
      %v2561 = vadd.f32 %v2525, %v2476
      %v2562 = vadd.f32 %v2526, %v2479
      %v2563 = vadd.f32 %v2527, %v2481
      %v2564 = vadd.f32 %v2528, %v2484
      %v2565 = vadd.f32 %v2529, %v2486
      %v2566 = vadd.f32 %v2530, %v2489
      %v2567 = vadd.f32 %v2531, %v2491
      %v2568 = vadd.f32 %v2532, %v2494
      %v2569 = vadd.f32 %v2533, %v2496
      %2570 = vst [vmem:[#allocation3] sm:$0xff] %v2534
      %2571 = vst [vmem:[#allocation3 + $0x8] sm:$0xff] %v2535
      %2572 = vst [vmem:[#allocation3 + $0x10] sm:$0xff] %v2536
      %2573 = vst [vmem:[#allocation3 + $0x18] sm:$0xff] %v2537
      %2574 = vst [vmem:[#allocation3 + $0x20] sm:$0xff] %v2538
      %2575 = vst [vmem:[#allocation3 + $0x28] sm:$0xff] %v2539
      %2576 = vst [vmem:[#allocation3 + $0x30] sm:$0xff] %v2540
      %2577 = vst [vmem:[#allocation3 + $0x38] sm:$0xff] %v2541
      %2578 = vst [vmem:[#allocation3 + $0x40] sm:$0xff] %v2542
      %2579 = vst [vmem:[#allocation3 + $0x48] sm:$0xff] %v2543
      %2580 = vst [vmem:[#allocation3 + $0x50] sm:$0xff] %v2544
      %2581 = vst [vmem:[#allocation3 + $0x58] sm:$0xff] %v2545
      %2582 = vst [vmem:[#allocation3 + $0x60] sm:$0xff] %v2546
      %2583 = vst [vmem:[#allocation3 + $0x68] sm:$0xff] %v2547
      %2584 = vst [vmem:[#allocation3 + $0x70] sm:$0xff] %v2548
      %2585 = vst [vmem:[#allocation3 + $0x78] sm:$0xff] %v2549
      %2586 = vst [vmem:[#allocation3 + $0x80] sm:$0xff] %v2550
      %2587 = vst [vmem:[#allocation3 + $0x88] sm:$0xff] %v2551
      %2588 = vst [vmem:[#allocation3 + $0x90] sm:$0xff] %v2552
      %2589 = vst [vmem:[#allocation3 + $0x98] sm:$0xff] %v2553
      %2590 = vst [vmem:[#allocation3 + $0xa0] sm:$0xff] %v2554
      %2591 = vst [vmem:[#allocation3 + $0xa8] sm:$0xff] %v2555
      %2592 = vst [vmem:[#allocation3 + $0xb0] sm:$0xff] %v2556
      %2593 = vst [vmem:[#allocation3 + $0xb8] sm:$0xff] %v2557
      %2594 = vst [vmem:[#allocation3 + $0xc0] sm:$0xff] %v2558
      %2595 = vst [vmem:[#allocation3 + $0xc8] sm:$0xff] %v2559
      %2596 = vst [vmem:[#allocation3 + $0xd0] sm:$0xff] %v2560
      %2597 = vst [vmem:[#allocation3 + $0xd8] sm:$0xff] %v2561
      %2598 = vst [vmem:[#allocation3 + $0xe0] sm:$0xff] %v2562
      %2599 = vst [vmem:[#allocation3 + $0xe8] sm:$0xff] %v2563
      %2600 = vst [vmem:[#allocation3 + $0xf0] sm:$0xff] %v2564
      %2601 = vst [vmem:[#allocation3 + $0xf8] sm:$0xff] %v2565
      %2602 = vst [vmem:[#allocation3 + $0x100] sm:$0xff] %v2566
      %2603 = vst [vmem:[#allocation3 + $0x108] sm:$0xff] %v2567
      %2604 = vst [vmem:[#allocation3 + $0x110] sm:$0xff] %v2568
      %2605 = vst [vmem:[#allocation3 + $0x118] sm:$0xff] %v2569
      %v2606 = vld [vmem:[#allocation2 + $0x14] sm:$0xff]
      %v2607 = vld [vmem:[#allocation2 + $0x1c] sm:$0xff]
      %v2608 = vld [vmem:[#allocation2 + $0x24] sm:$0xff]
      %v2609 = vld [vmem:[#allocation2 + $0x2c] sm:$0xff]
      %v2610 = vld [vmem:[#allocation2 + $0x34] sm:$0xff]
      %v2611 = vld [vmem:[#allocation2 + $0x3c] sm:$0xff]
      %v2612 = vld [vmem:[#allocation2 + $0x44] sm:$0xff]
      %v2613 = vld [vmem:[#allocation2 + $0x4c] sm:$0xff]
      %v2614 = vld [vmem:[#allocation2 + $0x54] sm:$0xff]
      %v2615 = vld [vmem:[#allocation2 + $0x5c] sm:$0xff]
      %v2616 = vld [vmem:[#allocation2 + $0x64] sm:$0xff]
      %v2617 = vld [vmem:[#allocation2 + $0x6c] sm:$0xff]
      %v2618 = vld [vmem:[#allocation2 + $0x74] sm:$0xff]
      %v2619 = vld [vmem:[#allocation2 + $0x7c] sm:$0xff]
      %v2620 = vld [vmem:[#allocation2 + $0x84] sm:$0xff]
      %v2621 = vld [vmem:[#allocation2 + $0x8c] sm:$0xff]
      %v2622 = vld [vmem:[#allocation2 + $0x94] sm:$0xff]
      %v2623 = vld [vmem:[#allocation2 + $0x9c] sm:$0xff]
      %v2624 = vld [vmem:[#allocation2 + $0xa4] sm:$0xff]
      %v2625 = vld [vmem:[#allocation2 + $0xac] sm:$0xff]
      %v2626 = vld [vmem:[#allocation2 + $0xb4] sm:$0xff]
      %v2627 = vld [vmem:[#allocation2 + $0xbc] sm:$0xff]
      %v2628 = vld [vmem:[#allocation2 + $0xc4] sm:$0xff]
      %v2629 = vld [vmem:[#allocation2 + $0xcc] sm:$0xff]
      %v2630 = vld [vmem:[#allocation2 + $0xd4] sm:$0xff]
      %v2631 = vld [vmem:[#allocation2 + $0xdc] sm:$0xff]
      %v2632 = vld [vmem:[#allocation2 + $0xe4] sm:$0xff]
      %v2633 = vld [vmem:[#allocation2 + $0xec] sm:$0xff]
      %v2634 = vld [vmem:[#allocation2 + $0xf4] sm:$0xff]
      %v2635 = vld [vmem:[#allocation2 + $0xfc] sm:$0xff]
      %v2636 = vld [vmem:[#allocation2 + $0x104] sm:$0xff]
      %v2637 = vld [vmem:[#allocation2 + $0x10c] sm:$0xff]
      %v2638 = vld [vmem:[#allocation2 + $0x114] sm:$0xff]
      %v2639 = vld [vmem:[#allocation2 + $0x11c] sm:$0xff]
      %v2640 = vld [vmem:[#allocation2 + $0x124] sm:$0xff]
      %v2641 = vld [vmem:[#allocation2 + $0x12c] sm:$0xff]
      %v2642 = vpack.c.bf16 %v2607, %v2606
      %v2643 = vpack.c.bf16 %v2609, %v2608
      %v2644 = vpack.c.bf16 %v2611, %v2610
      %v2645 = vpack.c.bf16 %v2613, %v2612
      %v2646 = vpack.c.bf16 %v2615, %v2614
      %v2647 = vpack.c.bf16 %v2617, %v2616
      %v2648 = vpack.c.bf16 %v2619, %v2618
      %v2649 = vpack.c.bf16 %v2621, %v2620
      %v2650 = vpack.c.bf16 %v2623, %v2622
      %v2651 = vpack.c.bf16 %v2625, %v2624
      %v2652 = vpack.c.bf16 %v2627, %v2626
      %v2653 = vpack.c.bf16 %v2629, %v2628
      %v2654 = vpack.c.bf16 %v2631, %v2630
      %v2655 = vpack.c.bf16 %v2633, %v2632
      %v2656 = vpack.c.bf16 %v2635, %v2634
      %v2657 = vpack.c.bf16 %v2637, %v2636
      %v2658 = vpack.c.bf16 %v2639, %v2638
      %v2659 = vpack.c.bf16 %v2641, %v2640
      %s2660 = scalar_lea.vmem %s5, 320
      %v2661 = vld [vmem:[%s2660] sm:$0xf]
      %v2662 = vld [vmem:[%s2660 + $0x4] sm:$0xf]
      %v2663 = vld [vmem:[%s2660 + $0x8] sm:$0xf]
      %v2664 = vld [vmem:[%s2660 + $0xc] sm:$0xf]
      %v2665 = vld [vmem:[%s2660 + $0x10] sm:$0xf]
      %v2666 = vld [vmem:[%s2660 + $0x14] sm:$0xf]
      %v2667 = vld [vmem:[%s2660 + $0x18] sm:$0xf]
      %v2668 = vld [vmem:[%s2660 + $0x1c] sm:$0xf]
      %v2669 = vld [vmem:[%s2660 + $0x20] sm:$0xf]
      %v2670 = vld [vmem:[%s2660 + $0x24] sm:$0xf]
      %v2671 = vld [vmem:[%s2660 + $0x28] sm:$0xf]
      %v2672 = vld [vmem:[%s2660 + $0x2c] sm:$0xf]
      %v2673 = vld [vmem:[%s2660 + $0x30] sm:$0xf]
      %v2674 = vld [vmem:[%s2660 + $0x34] sm:$0xf]
      %v2675 = vld [vmem:[%s2660 + $0x38] sm:$0xf]
      %v2676 = vld [vmem:[%s2660 + $0x3c] sm:$0xf]
      %v2693 = vunpack.c.l.b16 %v2661
      %v2694 = vunpack.c.l.b16 %v2662
      %v2695 = vunpack.c.l.b16 %v2663
      %v2696 = vunpack.c.l.b16 %v2664
      %v2697 = vunpack.c.l.b16 %v2665
      %v2698 = vunpack.c.l.b16 %v2666
      %v2699 = vunpack.c.l.b16 %v2667
      %v2700 = vunpack.c.l.b16 %v2668
      %v2701 = vunpack.c.l.b16 %v2669
      %v2702 = vunpack.c.l.b16 %v2670
      %v2703 = vunpack.c.l.b16 %v2671
      %v2704 = vunpack.c.l.b16 %v2672
      %v2705 = vunpack.c.l.b16 %v2673
      %v2706 = vunpack.c.l.b16 %v2674
      %v2707 = vunpack.c.l.b16 %v2675
      %v2708 = vunpack.c.l.b16 %v2676
      %v2709 = vpack.c.b16 %v2694, %v2693
      %v2710 = vpack.c.b16 %v2696, %v2695
      %v2711 = vpack.c.b16 %v2698, %v2697
      %v2712 = vpack.c.b16 %v2700, %v2699
      %v2713 = vpack.c.b16 %v2702, %v2701
      %v2714 = vpack.c.b16 %v2704, %v2703
      %v2715 = vpack.c.b16 %v2706, %v2705
      %v2716 = vpack.c.b16 %v2708, %v2707
      %2725 = vmatpush.bf16.msra.mxu0 %v2716
      %2726 = vmatpush.bf16.msra.mxu0 %v2715
      %2727 = vmatpush.bf16.msra.mxu0 %v2714
      %2728 = vmatpush.bf16.msra.mxu0 %v2713
      %2729 = vmatpush.bf16.msra.mxu0 %v2712
      %2730 = vmatpush.bf16.msra.mxu0 %v2711
      %2731 = vmatpush.bf16.msra.mxu0 %v2710
      %2732 = vmatpush.bf16.msra.mxu0 %v2709
      %2733 = vmatmul.bf16.gmra.mxu0 %v2642
      %v2734 = vpop.f32.mrf.mxu0
      %v2735 = vadd.f32 0.0, %v2734
      %v2736 = vpop.f32.mrf.mxu0
      %v2737 = vadd.f32 0.0, %v2736
      %2738 = vmatmul.bf16.gmra.mxu0 %v2643
      %v2739 = vpop.f32.mrf.mxu0
      %v2740 = vadd.f32 0.0, %v2739
      %v2741 = vpop.f32.mrf.mxu0
      %v2742 = vadd.f32 0.0, %v2741
      %2743 = vmatmul.bf16.gmra.mxu0 %v2644
      %v2744 = vpop.f32.mrf.mxu0
      %v2745 = vadd.f32 0.0, %v2744
      %v2746 = vpop.f32.mrf.mxu0
      %v2747 = vadd.f32 0.0, %v2746
      %2748 = vmatmul.bf16.gmra.mxu0 %v2645
      %v2749 = vpop.f32.mrf.mxu0
      %v2750 = vadd.f32 0.0, %v2749
      %v2751 = vpop.f32.mrf.mxu0
      %v2752 = vadd.f32 0.0, %v2751
      %2753 = vmatmul.bf16.gmra.mxu0 %v2646
      %v2754 = vpop.f32.mrf.mxu0
      %v2755 = vadd.f32 0.0, %v2754
      %v2756 = vpop.f32.mrf.mxu0
      %v2757 = vadd.f32 0.0, %v2756
      %2758 = vmatmul.bf16.gmra.mxu0 %v2647
      %v2759 = vpop.f32.mrf.mxu0
      %v2760 = vadd.f32 0.0, %v2759
      %v2761 = vpop.f32.mrf.mxu0
      %v2762 = vadd.f32 0.0, %v2761
      %2763 = vmatmul.bf16.gmra.mxu0 %v2648
      %v2764 = vpop.f32.mrf.mxu0
      %v2765 = vadd.f32 0.0, %v2764
      %v2766 = vpop.f32.mrf.mxu0
      %v2767 = vadd.f32 0.0, %v2766
      %2768 = vmatmul.bf16.gmra.mxu0 %v2649
      %v2769 = vpop.f32.mrf.mxu0
      %v2770 = vadd.f32 0.0, %v2769
      %v2771 = vpop.f32.mrf.mxu0
      %v2772 = vadd.f32 0.0, %v2771
      %2773 = vmatmul.bf16.gmra.mxu0 %v2650
      %v2774 = vpop.f32.mrf.mxu0
      %v2775 = vadd.f32 0.0, %v2774
      %v2776 = vpop.f32.mrf.mxu0
      %v2777 = vadd.f32 0.0, %v2776
      %2778 = vmatmul.bf16.gmra.mxu0 %v2651
      %v2779 = vpop.f32.mrf.mxu0
      %v2780 = vadd.f32 0.0, %v2779
      %v2781 = vpop.f32.mrf.mxu0
      %v2782 = vadd.f32 0.0, %v2781
      %2783 = vmatmul.bf16.gmra.mxu0 %v2652
      %v2784 = vpop.f32.mrf.mxu0
      %v2785 = vadd.f32 0.0, %v2784
      %v2786 = vpop.f32.mrf.mxu0
      %v2787 = vadd.f32 0.0, %v2786
      %2788 = vmatmul.bf16.gmra.mxu0 %v2653
      %v2789 = vpop.f32.mrf.mxu0
      %v2790 = vadd.f32 0.0, %v2789
      %v2791 = vpop.f32.mrf.mxu0
      %v2792 = vadd.f32 0.0, %v2791
      %2793 = vmatmul.bf16.gmra.mxu0 %v2654
      %v2794 = vpop.f32.mrf.mxu0
      %v2795 = vadd.f32 0.0, %v2794
      %v2796 = vpop.f32.mrf.mxu0
      %v2797 = vadd.f32 0.0, %v2796
      %2798 = vmatmul.bf16.gmra.mxu0 %v2655
      %v2799 = vpop.f32.mrf.mxu0
      %v2800 = vadd.f32 0.0, %v2799
      %v2801 = vpop.f32.mrf.mxu0
      %v2802 = vadd.f32 0.0, %v2801
      %2803 = vmatmul.bf16.gmra.mxu0 %v2656
      %v2804 = vpop.f32.mrf.mxu0
      %v2805 = vadd.f32 0.0, %v2804
      %v2806 = vpop.f32.mrf.mxu0
      %v2807 = vadd.f32 0.0, %v2806
      %2808 = vmatmul.bf16.gmra.mxu0 %v2657
      %v2809 = vpop.f32.mrf.mxu0
      %v2810 = vadd.f32 0.0, %v2809
      %v2811 = vpop.f32.mrf.mxu0
      %v2812 = vadd.f32 0.0, %v2811
      %2813 = vmatmul.bf16.gmra.mxu0 %v2658
      %v2814 = vpop.f32.mrf.mxu0
      %v2815 = vadd.f32 0.0, %v2814
      %v2816 = vpop.f32.mrf.mxu0
      %v2817 = vadd.f32 0.0, %v2816
      %2818 = vmatmul.bf16.gmra.mxu0 %v2659
      %v2819 = vpop.f32.mrf.mxu0
      %v2820 = vadd.f32 0.0, %v2819
      %v2821 = vpop.f32.mrf.mxu0
      %v2822 = vadd.f32 0.0, %v2821
      %2823 = vdwg.mxu0
      %v2824 = vld [vmem:[#allocation3] sm:$0xff]
      %v2825 = vld [vmem:[#allocation3 + $0x8] sm:$0xff]
      %v2826 = vld [vmem:[#allocation3 + $0x10] sm:$0xff]
      %v2827 = vld [vmem:[#allocation3 + $0x18] sm:$0xff]
      %v2828 = vld [vmem:[#allocation3 + $0x20] sm:$0xff]
      %v2829 = vld [vmem:[#allocation3 + $0x28] sm:$0xff]
      %v2830 = vld [vmem:[#allocation3 + $0x30] sm:$0xff]
      %v2831 = vld [vmem:[#allocation3 + $0x38] sm:$0xff]
      %v2832 = vld [vmem:[#allocation3 + $0x40] sm:$0xff]
      %v2833 = vld [vmem:[#allocation3 + $0x48] sm:$0xff]
      %v2834 = vld [vmem:[#allocation3 + $0x50] sm:$0xff]
      %v2835 = vld [vmem:[#allocation3 + $0x58] sm:$0xff]
      %v2836 = vld [vmem:[#allocation3 + $0x60] sm:$0xff]
      %v2837 = vld [vmem:[#allocation3 + $0x68] sm:$0xff]
      %v2838 = vld [vmem:[#allocation3 + $0x70] sm:$0xff]
      %v2839 = vld [vmem:[#allocation3 + $0x78] sm:$0xff]
      %v2840 = vld [vmem:[#allocation3 + $0x80] sm:$0xff]
      %v2841 = vld [vmem:[#allocation3 + $0x88] sm:$0xff]
      %v2842 = vld [vmem:[#allocation3 + $0x90] sm:$0xff]
      %v2843 = vld [vmem:[#allocation3 + $0x98] sm:$0xff]
      %v2844 = vld [vmem:[#allocation3 + $0xa0] sm:$0xff]
      %v2845 = vld [vmem:[#allocation3 + $0xa8] sm:$0xff]
      %v2846 = vld [vmem:[#allocation3 + $0xb0] sm:$0xff]
      %v2847 = vld [vmem:[#allocation3 + $0xb8] sm:$0xff]
      %v2848 = vld [vmem:[#allocation3 + $0xc0] sm:$0xff]
      %v2849 = vld [vmem:[#allocation3 + $0xc8] sm:$0xff]
      %v2850 = vld [vmem:[#allocation3 + $0xd0] sm:$0xff]
      %v2851 = vld [vmem:[#allocation3 + $0xd8] sm:$0xff]
      %v2852 = vld [vmem:[#allocation3 + $0xe0] sm:$0xff]
      %v2853 = vld [vmem:[#allocation3 + $0xe8] sm:$0xff]
      %v2854 = vld [vmem:[#allocation3 + $0xf0] sm:$0xff]
      %v2855 = vld [vmem:[#allocation3 + $0xf8] sm:$0xff]
      %v2856 = vld [vmem:[#allocation3 + $0x100] sm:$0xff]
      %v2857 = vld [vmem:[#allocation3 + $0x108] sm:$0xff]
      %v2858 = vld [vmem:[#allocation3 + $0x110] sm:$0xff]
      %v2859 = vld [vmem:[#allocation3 + $0x118] sm:$0xff]
      %v2860 = vadd.f32 %v2824, %v2735
      %v2861 = vadd.f32 %v2825, %v2737
      %v2862 = vadd.f32 %v2826, %v2740
      %v2863 = vadd.f32 %v2827, %v2742
      %v2864 = vadd.f32 %v2828, %v2745
      %v2865 = vadd.f32 %v2829, %v2747
      %v2866 = vadd.f32 %v2830, %v2750
      %v2867 = vadd.f32 %v2831, %v2752
      %v2868 = vadd.f32 %v2832, %v2755
      %v2869 = vadd.f32 %v2833, %v2757
      %v2870 = vadd.f32 %v2834, %v2760
      %v2871 = vadd.f32 %v2835, %v2762
      %v2872 = vadd.f32 %v2836, %v2765
      %v2873 = vadd.f32 %v2837, %v2767
      %v2874 = vadd.f32 %v2838, %v2770
      %v2875 = vadd.f32 %v2839, %v2772
      %v2876 = vadd.f32 %v2840, %v2775
      %v2877 = vadd.f32 %v2841, %v2777
      %v2878 = vadd.f32 %v2842, %v2780
      %v2879 = vadd.f32 %v2843, %v2782
      %v2880 = vadd.f32 %v2844, %v2785
      %v2881 = vadd.f32 %v2845, %v2787
      %v2882 = vadd.f32 %v2846, %v2790
      %v2883 = vadd.f32 %v2847, %v2792
      %v2884 = vadd.f32 %v2848, %v2795
      %v2885 = vadd.f32 %v2849, %v2797
      %v2886 = vadd.f32 %v2850, %v2800
      %v2887 = vadd.f32 %v2851, %v2802
      %v2888 = vadd.f32 %v2852, %v2805
      %v2889 = vadd.f32 %v2853, %v2807
      %v2890 = vadd.f32 %v2854, %v2810
      %v2891 = vadd.f32 %v2855, %v2812
      %v2892 = vadd.f32 %v2856, %v2815
      %v2893 = vadd.f32 %v2857, %v2817
      %v2894 = vadd.f32 %v2858, %v2820
      %v2895 = vadd.f32 %v2859, %v2822
      %2896 = vst [vmem:[#allocation3] sm:$0xff] %v2860
      %2897 = vst [vmem:[#allocation3 + $0x8] sm:$0xff] %v2861
      %2898 = vst [vmem:[#allocation3 + $0x10] sm:$0xff] %v2862
      %2899 = vst [vmem:[#allocation3 + $0x18] sm:$0xff] %v2863
      %2900 = vst [vmem:[#allocation3 + $0x20] sm:$0xff] %v2864
      %2901 = vst [vmem:[#allocation3 + $0x28] sm:$0xff] %v2865
      %2902 = vst [vmem:[#allocation3 + $0x30] sm:$0xff] %v2866
      %2903 = vst [vmem:[#allocation3 + $0x38] sm:$0xff] %v2867
      %2904 = vst [vmem:[#allocation3 + $0x40] sm:$0xff] %v2868
      %2905 = vst [vmem:[#allocation3 + $0x48] sm:$0xff] %v2869
      %2906 = vst [vmem:[#allocation3 + $0x50] sm:$0xff] %v2870
      %2907 = vst [vmem:[#allocation3 + $0x58] sm:$0xff] %v2871
      %2908 = vst [vmem:[#allocation3 + $0x60] sm:$0xff] %v2872
      %2909 = vst [vmem:[#allocation3 + $0x68] sm:$0xff] %v2873
      %2910 = vst [vmem:[#allocation3 + $0x70] sm:$0xff] %v2874
      %2911 = vst [vmem:[#allocation3 + $0x78] sm:$0xff] %v2875
      %2912 = vst [vmem:[#allocation3 + $0x80] sm:$0xff] %v2876
      %2913 = vst [vmem:[#allocation3 + $0x88] sm:$0xff] %v2877
      %2914 = vst [vmem:[#allocation3 + $0x90] sm:$0xff] %v2878
      %2915 = vst [vmem:[#allocation3 + $0x98] sm:$0xff] %v2879
      %2916 = vst [vmem:[#allocation3 + $0xa0] sm:$0xff] %v2880
      %2917 = vst [vmem:[#allocation3 + $0xa8] sm:$0xff] %v2881
      %2918 = vst [vmem:[#allocation3 + $0xb0] sm:$0xff] %v2882
      %2919 = vst [vmem:[#allocation3 + $0xb8] sm:$0xff] %v2883
      %2920 = vst [vmem:[#allocation3 + $0xc0] sm:$0xff] %v2884
      %2921 = vst [vmem:[#allocation3 + $0xc8] sm:$0xff] %v2885
      %2922 = vst [vmem:[#allocation3 + $0xd0] sm:$0xff] %v2886
      %2923 = vst [vmem:[#allocation3 + $0xd8] sm:$0xff] %v2887
      %2924 = vst [vmem:[#allocation3 + $0xe0] sm:$0xff] %v2888
      %2925 = vst [vmem:[#allocation3 + $0xe8] sm:$0xff] %v2889
      %2926 = vst [vmem:[#allocation3 + $0xf0] sm:$0xff] %v2890
      %2927 = vst [vmem:[#allocation3 + $0xf8] sm:$0xff] %v2891
      %2928 = vst [vmem:[#allocation3 + $0x100] sm:$0xff] %v2892
      %2929 = vst [vmem:[#allocation3 + $0x108] sm:$0xff] %v2893
      %2930 = vst [vmem:[#allocation3 + $0x110] sm:$0xff] %v2894
      %2931 = vst [vmem:[#allocation3 + $0x118] sm:$0xff] %v2895
      %v2932 = vld [vmem:[#allocation2 + $0x24] sm:$0xff]
      %v2933 = vld [vmem:[#allocation2 + $0x2c] sm:$0xff]
      %v2934 = vld [vmem:[#allocation2 + $0x34] sm:$0xff]
      %v2935 = vld [vmem:[#allocation2 + $0x3c] sm:$0xff]
      %v2936 = vld [vmem:[#allocation2 + $0x44] sm:$0xff]
      %v2937 = vld [vmem:[#allocation2 + $0x4c] sm:$0xff]
      %v2938 = vld [vmem:[#allocation2 + $0x54] sm:$0xff]
      %v2939 = vld [vmem:[#allocation2 + $0x5c] sm:$0xff]
      %v2940 = vld [vmem:[#allocation2 + $0x64] sm:$0xff]
      %v2941 = vld [vmem:[#allocation2 + $0x6c] sm:$0xff]
      %v2942 = vld [vmem:[#allocation2 + $0x74] sm:$0xff]
      %v2943 = vld [vmem:[#allocation2 + $0x7c] sm:$0xff]
      %v2944 = vld [vmem:[#allocation2 + $0x84] sm:$0xff]
      %v2945 = vld [vmem:[#allocation2 + $0x8c] sm:$0xff]
      %v2946 = vld [vmem:[#allocation2 + $0x94] sm:$0xff]
      %v2947 = vld [vmem:[#allocation2 + $0x9c] sm:$0xff]
      %v2948 = vld [vmem:[#allocation2 + $0xa4] sm:$0xff]
      %v2949 = vld [vmem:[#allocation2 + $0xac] sm:$0xff]
      %v2950 = vld [vmem:[#allocation2 + $0xb4] sm:$0xff]
      %v2951 = vld [vmem:[#allocation2 + $0xbc] sm:$0xff]
      %v2952 = vld [vmem:[#allocation2 + $0xc4] sm:$0xff]
      %v2953 = vld [vmem:[#allocation2 + $0xcc] sm:$0xff]
      %v2954 = vld [vmem:[#allocation2 + $0xd4] sm:$0xff]
      %v2955 = vld [vmem:[#allocation2 + $0xdc] sm:$0xff]
      %v2956 = vld [vmem:[#allocation2 + $0xe4] sm:$0xff]
      %v2957 = vld [vmem:[#allocation2 + $0xec] sm:$0xff]
      %v2958 = vld [vmem:[#allocation2 + $0xf4] sm:$0xff]
      %v2959 = vld [vmem:[#allocation2 + $0xfc] sm:$0xff]
      %v2960 = vld [vmem:[#allocation2 + $0x104] sm:$0xff]
      %v2961 = vld [vmem:[#allocation2 + $0x10c] sm:$0xff]
      %v2962 = vld [vmem:[#allocation2 + $0x114] sm:$0xff]
      %v2963 = vld [vmem:[#allocation2 + $0x11c] sm:$0xff]
      %v2964 = vld [vmem:[#allocation2 + $0x124] sm:$0xff]
      %v2965 = vld [vmem:[#allocation2 + $0x12c] sm:$0xff]
      %v2966 = vld [vmem:[#allocation2 + $0x134] sm:$0xff]
      %v2967 = vld [vmem:[#allocation2 + $0x13c] sm:$0xff]
      %v2968 = vpack.c.bf16 %v2933, %v2932
      %v2969 = vpack.c.bf16 %v2935, %v2934
      %v2970 = vpack.c.bf16 %v2937, %v2936
      %v2971 = vpack.c.bf16 %v2939, %v2938
      %v2972 = vpack.c.bf16 %v2941, %v2940
      %v2973 = vpack.c.bf16 %v2943, %v2942
      %v2974 = vpack.c.bf16 %v2945, %v2944
      %v2975 = vpack.c.bf16 %v2947, %v2946
      %v2976 = vpack.c.bf16 %v2949, %v2948
      %v2977 = vpack.c.bf16 %v2951, %v2950
      %v2978 = vpack.c.bf16 %v2953, %v2952
      %v2979 = vpack.c.bf16 %v2955, %v2954
      %v2980 = vpack.c.bf16 %v2957, %v2956
      %v2981 = vpack.c.bf16 %v2959, %v2958
      %v2982 = vpack.c.bf16 %v2961, %v2960
      %v2983 = vpack.c.bf16 %v2963, %v2962
      %v2984 = vpack.c.bf16 %v2965, %v2964
      %v2985 = vpack.c.bf16 %v2967, %v2966
      %s2986 = scalar_lea.vmem %s5, 384
      %v2987 = vld [vmem:[%s2986] sm:$0xf]
      %v2988 = vld [vmem:[%s2986 + $0x4] sm:$0xf]
      %v2989 = vld [vmem:[%s2986 + $0x8] sm:$0xf]
      %v2990 = vld [vmem:[%s2986 + $0xc] sm:$0xf]
      %v2991 = vld [vmem:[%s2986 + $0x10] sm:$0xf]
      %v2992 = vld [vmem:[%s2986 + $0x14] sm:$0xf]
      %v2993 = vld [vmem:[%s2986 + $0x18] sm:$0xf]
      %v2994 = vld [vmem:[%s2986 + $0x1c] sm:$0xf]
      %v2995 = vld [vmem:[%s2986 + $0x20] sm:$0xf]
      %v2996 = vld [vmem:[%s2986 + $0x24] sm:$0xf]
      %v2997 = vld [vmem:[%s2986 + $0x28] sm:$0xf]
      %v2998 = vld [vmem:[%s2986 + $0x2c] sm:$0xf]
      %v2999 = vld [vmem:[%s2986 + $0x30] sm:$0xf]
      %v3000 = vld [vmem:[%s2986 + $0x34] sm:$0xf]
      %v3001 = vld [vmem:[%s2986 + $0x38] sm:$0xf]
      %v3002 = vld [vmem:[%s2986 + $0x3c] sm:$0xf]
      %v3019 = vunpack.c.l.b16 %v2987
      %v3020 = vunpack.c.l.b16 %v2988
      %v3021 = vunpack.c.l.b16 %v2989
      %v3022 = vunpack.c.l.b16 %v2990
      %v3023 = vunpack.c.l.b16 %v2991
      %v3024 = vunpack.c.l.b16 %v2992
      %v3025 = vunpack.c.l.b16 %v2993
      %v3026 = vunpack.c.l.b16 %v2994
      %v3027 = vunpack.c.l.b16 %v2995
      %v3028 = vunpack.c.l.b16 %v2996
      %v3029 = vunpack.c.l.b16 %v2997
      %v3030 = vunpack.c.l.b16 %v2998
      %v3031 = vunpack.c.l.b16 %v2999
      %v3032 = vunpack.c.l.b16 %v3000
      %v3033 = vunpack.c.l.b16 %v3001
      %v3034 = vunpack.c.l.b16 %v3002
      %v3035 = vpack.c.b16 %v3020, %v3019
      %v3036 = vpack.c.b16 %v3022, %v3021
      %v3037 = vpack.c.b16 %v3024, %v3023
      %v3038 = vpack.c.b16 %v3026, %v3025
      %v3039 = vpack.c.b16 %v3028, %v3027
      %v3040 = vpack.c.b16 %v3030, %v3029
      %v3041 = vpack.c.b16 %v3032, %v3031
      %v3042 = vpack.c.b16 %v3034, %v3033
      %3051 = vmatpush.bf16.msra.mxu0 %v3042
      %3052 = vmatpush.bf16.msra.mxu0 %v3041
      %3053 = vmatpush.bf16.msra.mxu0 %v3040
      %3054 = vmatpush.bf16.msra.mxu0 %v3039
      %3055 = vmatpush.bf16.msra.mxu0 %v3038
      %3056 = vmatpush.bf16.msra.mxu0 %v3037
      %3057 = vmatpush.bf16.msra.mxu0 %v3036
      %3058 = vmatpush.bf16.msra.mxu0 %v3035
      %3059 = vmatmul.bf16.gmra.mxu0 %v2968
      %v3060 = vpop.f32.mrf.mxu0
      %v3061 = vadd.f32 0.0, %v3060
      %v3062 = vpop.f32.mrf.mxu0
      %v3063 = vadd.f32 0.0, %v3062
      %3064 = vmatmul.bf16.gmra.mxu0 %v2969
      %v3065 = vpop.f32.mrf.mxu0
      %v3066 = vadd.f32 0.0, %v3065
      %v3067 = vpop.f32.mrf.mxu0
      %v3068 = vadd.f32 0.0, %v3067
      %3069 = vmatmul.bf16.gmra.mxu0 %v2970
      %v3070 = vpop.f32.mrf.mxu0
      %v3071 = vadd.f32 0.0, %v3070
      %v3072 = vpop.f32.mrf.mxu0
      %v3073 = vadd.f32 0.0, %v3072
      %3074 = vmatmul.bf16.gmra.mxu0 %v2971
      %v3075 = vpop.f32.mrf.mxu0
      %v3076 = vadd.f32 0.0, %v3075
      %v3077 = vpop.f32.mrf.mxu0
      %v3078 = vadd.f32 0.0, %v3077
      %3079 = vmatmul.bf16.gmra.mxu0 %v2972
      %v3080 = vpop.f32.mrf.mxu0
      %v3081 = vadd.f32 0.0, %v3080
      %v3082 = vpop.f32.mrf.mxu0
      %v3083 = vadd.f32 0.0, %v3082
      %3084 = vmatmul.bf16.gmra.mxu0 %v2973
      %v3085 = vpop.f32.mrf.mxu0
      %v3086 = vadd.f32 0.0, %v3085
      %v3087 = vpop.f32.mrf.mxu0
      %v3088 = vadd.f32 0.0, %v3087
      %3089 = vmatmul.bf16.gmra.mxu0 %v2974
      %v3090 = vpop.f32.mrf.mxu0
      %v3091 = vadd.f32 0.0, %v3090
      %v3092 = vpop.f32.mrf.mxu0
      %v3093 = vadd.f32 0.0, %v3092
      %3094 = vmatmul.bf16.gmra.mxu0 %v2975
      %v3095 = vpop.f32.mrf.mxu0
      %v3096 = vadd.f32 0.0, %v3095
      %v3097 = vpop.f32.mrf.mxu0
      %v3098 = vadd.f32 0.0, %v3097
      %3099 = vmatmul.bf16.gmra.mxu0 %v2976
      %v3100 = vpop.f32.mrf.mxu0
      %v3101 = vadd.f32 0.0, %v3100
      %v3102 = vpop.f32.mrf.mxu0
      %v3103 = vadd.f32 0.0, %v3102
      %3104 = vmatmul.bf16.gmra.mxu0 %v2977
      %v3105 = vpop.f32.mrf.mxu0
      %v3106 = vadd.f32 0.0, %v3105
      %v3107 = vpop.f32.mrf.mxu0
      %v3108 = vadd.f32 0.0, %v3107
      %3109 = vmatmul.bf16.gmra.mxu0 %v2978
      %v3110 = vpop.f32.mrf.mxu0
      %v3111 = vadd.f32 0.0, %v3110
      %v3112 = vpop.f32.mrf.mxu0
      %v3113 = vadd.f32 0.0, %v3112
      %3114 = vmatmul.bf16.gmra.mxu0 %v2979
      %v3115 = vpop.f32.mrf.mxu0
      %v3116 = vadd.f32 0.0, %v3115
      %v3117 = vpop.f32.mrf.mxu0
      %v3118 = vadd.f32 0.0, %v3117
      %3119 = vmatmul.bf16.gmra.mxu0 %v2980
      %v3120 = vpop.f32.mrf.mxu0
      %v3121 = vadd.f32 0.0, %v3120
      %v3122 = vpop.f32.mrf.mxu0
      %v3123 = vadd.f32 0.0, %v3122
      %3124 = vmatmul.bf16.gmra.mxu0 %v2981
      %v3125 = vpop.f32.mrf.mxu0
      %v3126 = vadd.f32 0.0, %v3125
      %v3127 = vpop.f32.mrf.mxu0
      %v3128 = vadd.f32 0.0, %v3127
      %3129 = vmatmul.bf16.gmra.mxu0 %v2982
      %v3130 = vpop.f32.mrf.mxu0
      %v3131 = vadd.f32 0.0, %v3130
      %v3132 = vpop.f32.mrf.mxu0
      %v3133 = vadd.f32 0.0, %v3132
      %3134 = vmatmul.bf16.gmra.mxu0 %v2983
      %v3135 = vpop.f32.mrf.mxu0
      %v3136 = vadd.f32 0.0, %v3135
      %v3137 = vpop.f32.mrf.mxu0
      %v3138 = vadd.f32 0.0, %v3137
      %3139 = vmatmul.bf16.gmra.mxu0 %v2984
      %v3140 = vpop.f32.mrf.mxu0
      %v3141 = vadd.f32 0.0, %v3140
      %v3142 = vpop.f32.mrf.mxu0
      %v3143 = vadd.f32 0.0, %v3142
      %3144 = vmatmul.bf16.gmra.mxu0 %v2985
      %v3145 = vpop.f32.mrf.mxu0
      %v3146 = vadd.f32 0.0, %v3145
      %v3147 = vpop.f32.mrf.mxu0
      %v3148 = vadd.f32 0.0, %v3147
      %3149 = vdwg.mxu0
      %v3150 = vld [vmem:[#allocation3] sm:$0xff]
      %v3151 = vld [vmem:[#allocation3 + $0x8] sm:$0xff]
      %v3152 = vld [vmem:[#allocation3 + $0x10] sm:$0xff]
      %v3153 = vld [vmem:[#allocation3 + $0x18] sm:$0xff]
      %v3154 = vld [vmem:[#allocation3 + $0x20] sm:$0xff]
      %v3155 = vld [vmem:[#allocation3 + $0x28] sm:$0xff]
      %v3156 = vld [vmem:[#allocation3 + $0x30] sm:$0xff]
      %v3157 = vld [vmem:[#allocation3 + $0x38] sm:$0xff]
      %v3158 = vld [vmem:[#allocation3 + $0x40] sm:$0xff]
      %v3159 = vld [vmem:[#allocation3 + $0x48] sm:$0xff]
      %v3160 = vld [vmem:[#allocation3 + $0x50] sm:$0xff]
      %v3161 = vld [vmem:[#allocation3 + $0x58] sm:$0xff]
      %v3162 = vld [vmem:[#allocation3 + $0x60] sm:$0xff]
      %v3163 = vld [vmem:[#allocation3 + $0x68] sm:$0xff]
      %v3164 = vld [vmem:[#allocation3 + $0x70] sm:$0xff]
      %v3165 = vld [vmem:[#allocation3 + $0x78] sm:$0xff]
      %v3166 = vld [vmem:[#allocation3 + $0x80] sm:$0xff]
      %v3167 = vld [vmem:[#allocation3 + $0x88] sm:$0xff]
      %v3168 = vld [vmem:[#allocation3 + $0x90] sm:$0xff]
      %v3169 = vld [vmem:[#allocation3 + $0x98] sm:$0xff]
      %v3170 = vld [vmem:[#allocation3 + $0xa0] sm:$0xff]
      %v3171 = vld [vmem:[#allocation3 + $0xa8] sm:$0xff]
      %v3172 = vld [vmem:[#allocation3 + $0xb0] sm:$0xff]
      %v3173 = vld [vmem:[#allocation3 + $0xb8] sm:$0xff]
      %v3174 = vld [vmem:[#allocation3 + $0xc0] sm:$0xff]
      %v3175 = vld [vmem:[#allocation3 + $0xc8] sm:$0xff]
      %v3176 = vld [vmem:[#allocation3 + $0xd0] sm:$0xff]
      %v3177 = vld [vmem:[#allocation3 + $0xd8] sm:$0xff]
      %v3178 = vld [vmem:[#allocation3 + $0xe0] sm:$0xff]
      %v3179 = vld [vmem:[#allocation3 + $0xe8] sm:$0xff]
      %v3180 = vld [vmem:[#allocation3 + $0xf0] sm:$0xff]
      %v3181 = vld [vmem:[#allocation3 + $0xf8] sm:$0xff]
      %v3182 = vld [vmem:[#allocation3 + $0x100] sm:$0xff]
      %v3183 = vld [vmem:[#allocation3 + $0x108] sm:$0xff]
      %v3184 = vld [vmem:[#allocation3 + $0x110] sm:$0xff]
      %v3185 = vld [vmem:[#allocation3 + $0x118] sm:$0xff]
      %v3186 = vadd.f32 %v3150, %v3061
      %v3187 = vadd.f32 %v3151, %v3063
      %v3188 = vadd.f32 %v3152, %v3066
      %v3189 = vadd.f32 %v3153, %v3068
      %v3190 = vadd.f32 %v3154, %v3071
      %v3191 = vadd.f32 %v3155, %v3073
      %v3192 = vadd.f32 %v3156, %v3076
      %v3193 = vadd.f32 %v3157, %v3078
      %v3194 = vadd.f32 %v3158, %v3081
      %v3195 = vadd.f32 %v3159, %v3083
      %v3196 = vadd.f32 %v3160, %v3086
      %v3197 = vadd.f32 %v3161, %v3088
      %v3198 = vadd.f32 %v3162, %v3091
      %v3199 = vadd.f32 %v3163, %v3093
      %v3200 = vadd.f32 %v3164, %v3096
      %v3201 = vadd.f32 %v3165, %v3098
      %v3202 = vadd.f32 %v3166, %v3101
      %v3203 = vadd.f32 %v3167, %v3103
      %v3204 = vadd.f32 %v3168, %v3106
      %v3205 = vadd.f32 %v3169, %v3108
      %v3206 = vadd.f32 %v3170, %v3111
      %v3207 = vadd.f32 %v3171, %v3113
      %v3208 = vadd.f32 %v3172, %v3116
      %v3209 = vadd.f32 %v3173, %v3118
      %v3210 = vadd.f32 %v3174, %v3121
      %v3211 = vadd.f32 %v3175, %v3123
      %v3212 = vadd.f32 %v3176, %v3126
      %v3213 = vadd.f32 %v3177, %v3128
      %v3214 = vadd.f32 %v3178, %v3131
      %v3215 = vadd.f32 %v3179, %v3133
      %v3216 = vadd.f32 %v3180, %v3136
      %v3217 = vadd.f32 %v3181, %v3138
      %v3218 = vadd.f32 %v3182, %v3141
      %v3219 = vadd.f32 %v3183, %v3143
      %v3220 = vadd.f32 %v3184, %v3146
      %v3221 = vadd.f32 %v3185, %v3148
      %3222 = vst [vmem:[#allocation3] sm:$0xff] %v3186
      %3223 = vst [vmem:[#allocation3 + $0x8] sm:$0xff] %v3187
      %3224 = vst [vmem:[#allocation3 + $0x10] sm:$0xff] %v3188
      %3225 = vst [vmem:[#allocation3 + $0x18] sm:$0xff] %v3189
      %3226 = vst [vmem:[#allocation3 + $0x20] sm:$0xff] %v3190
      %3227 = vst [vmem:[#allocation3 + $0x28] sm:$0xff] %v3191
      %3228 = vst [vmem:[#allocation3 + $0x30] sm:$0xff] %v3192
      %3229 = vst [vmem:[#allocation3 + $0x38] sm:$0xff] %v3193
      %3230 = vst [vmem:[#allocation3 + $0x40] sm:$0xff] %v3194
      %3231 = vst [vmem:[#allocation3 + $0x48] sm:$0xff] %v3195
      %3232 = vst [vmem:[#allocation3 + $0x50] sm:$0xff] %v3196
      %3233 = vst [vmem:[#allocation3 + $0x58] sm:$0xff] %v3197
      %3234 = vst [vmem:[#allocation3 + $0x60] sm:$0xff] %v3198
      %3235 = vst [vmem:[#allocation3 + $0x68] sm:$0xff] %v3199
      %3236 = vst [vmem:[#allocation3 + $0x70] sm:$0xff] %v3200
      %3237 = vst [vmem:[#allocation3 + $0x78] sm:$0xff] %v3201
      %3238 = vst [vmem:[#allocation3 + $0x80] sm:$0xff] %v3202
      %3239 = vst [vmem:[#allocation3 + $0x88] sm:$0xff] %v3203
      %3240 = vst [vmem:[#allocation3 + $0x90] sm:$0xff] %v3204
      %3241 = vst [vmem:[#allocation3 + $0x98] sm:$0xff] %v3205
      %3242 = vst [vmem:[#allocation3 + $0xa0] sm:$0xff] %v3206
      %3243 = vst [vmem:[#allocation3 + $0xa8] sm:$0xff] %v3207
      %3244 = vst [vmem:[#allocation3 + $0xb0] sm:$0xff] %v3208
      %3245 = vst [vmem:[#allocation3 + $0xb8] sm:$0xff] %v3209
      %3246 = vst [vmem:[#allocation3 + $0xc0] sm:$0xff] %v3210
      %3247 = vst [vmem:[#allocation3 + $0xc8] sm:$0xff] %v3211
      %3248 = vst [vmem:[#allocation3 + $0xd0] sm:$0xff] %v3212
      %3249 = vst [vmem:[#allocation3 + $0xd8] sm:$0xff] %v3213
      %3250 = vst [vmem:[#allocation3 + $0xe0] sm:$0xff] %v3214
      %3251 = vst [vmem:[#allocation3 + $0xe8] sm:$0xff] %v3215
      %3252 = vst [vmem:[#allocation3 + $0xf0] sm:$0xff] %v3216
      %3253 = vst [vmem:[#allocation3 + $0xf8] sm:$0xff] %v3217
      %3254 = vst [vmem:[#allocation3 + $0x100] sm:$0xff] %v3218
      %3255 = vst [vmem:[#allocation3 + $0x108] sm:$0xff] %v3219
      %3256 = vst [vmem:[#allocation3 + $0x110] sm:$0xff] %v3220
      %3257 = vst [vmem:[#allocation3 + $0x118] sm:$0xff] %v3221
      %v3258 = vld [vmem:[#allocation2 + $0x25] sm:$0xff]
      %v3259 = vld [vmem:[#allocation2 + $0x2d] sm:$0xff]
      %v3260 = vld [vmem:[#allocation2 + $0x35] sm:$0xff]
      %v3261 = vld [vmem:[#allocation2 + $0x3d] sm:$0xff]
      %v3262 = vld [vmem:[#allocation2 + $0x45] sm:$0xff]
      %v3263 = vld [vmem:[#allocation2 + $0x4d] sm:$0xff]
      %v3264 = vld [vmem:[#allocation2 + $0x55] sm:$0xff]
      %v3265 = vld [vmem:[#allocation2 + $0x5d] sm:$0xff]
      %v3266 = vld [vmem:[#allocation2 + $0x65] sm:$0xff]
      %v3267 = vld [vmem:[#allocation2 + $0x6d] sm:$0xff]
      %v3268 = vld [vmem:[#allocation2 + $0x75] sm:$0xff]
      %v3269 = vld [vmem:[#allocation2 + $0x7d] sm:$0xff]
      %v3270 = vld [vmem:[#allocation2 + $0x85] sm:$0xff]
      %v3271 = vld [vmem:[#allocation2 + $0x8d] sm:$0xff]
      %v3272 = vld [vmem:[#allocation2 + $0x95] sm:$0xff]
      %v3273 = vld [vmem:[#allocation2 + $0x9d] sm:$0xff]
      %v3274 = vld [vmem:[#allocation2 + $0xa5] sm:$0xff]
      %v3275 = vld [vmem:[#allocation2 + $0xad] sm:$0xff]
      %v3276 = vld [vmem:[#allocation2 + $0xb5] sm:$0xff]
      %v3277 = vld [vmem:[#allocation2 + $0xbd] sm:$0xff]
      %v3278 = vld [vmem:[#allocation2 + $0xc5] sm:$0xff]
      %v3279 = vld [vmem:[#allocation2 + $0xcd] sm:$0xff]
      %v3280 = vld [vmem:[#allocation2 + $0xd5] sm:$0xff]
      %v3281 = vld [vmem:[#allocation2 + $0xdd] sm:$0xff]
      %v3282 = vld [vmem:[#allocation2 + $0xe5] sm:$0xff]
      %v3283 = vld [vmem:[#allocation2 + $0xed] sm:$0xff]
      %v3284 = vld [vmem:[#allocation2 + $0xf5] sm:$0xff]
      %v3285 = vld [vmem:[#allocation2 + $0xfd] sm:$0xff]
      %v3286 = vld [vmem:[#allocation2 + $0x105] sm:$0xff]
      %v3287 = vld [vmem:[#allocation2 + $0x10d] sm:$0xff]
      %v3288 = vld [vmem:[#allocation2 + $0x115] sm:$0xff]
      %v3289 = vld [vmem:[#allocation2 + $0x11d] sm:$0xff]
      %v3290 = vld [vmem:[#allocation2 + $0x125] sm:$0xff]
      %v3291 = vld [vmem:[#allocation2 + $0x12d] sm:$0xff]
      %v3292 = vld [vmem:[#allocation2 + $0x135] sm:$0xff]
      %v3293 = vld [vmem:[#allocation2 + $0x13d] sm:$0xff]
      %v3294 = vpack.c.bf16 %v3259, %v3258
      %v3295 = vpack.c.bf16 %v3261, %v3260
      %v3296 = vpack.c.bf16 %v3263, %v3262
      %v3297 = vpack.c.bf16 %v3265, %v3264
      %v3298 = vpack.c.bf16 %v3267, %v3266
      %v3299 = vpack.c.bf16 %v3269, %v3268
      %v3300 = vpack.c.bf16 %v3271, %v3270
      %v3301 = vpack.c.bf16 %v3273, %v3272
      %v3302 = vpack.c.bf16 %v3275, %v3274
      %v3303 = vpack.c.bf16 %v3277, %v3276
      %v3304 = vpack.c.bf16 %v3279, %v3278
      %v3305 = vpack.c.bf16 %v3281, %v3280
      %v3306 = vpack.c.bf16 %v3283, %v3282
      %v3307 = vpack.c.bf16 %v3285, %v3284
      %v3308 = vpack.c.bf16 %v3287, %v3286
      %v3309 = vpack.c.bf16 %v3289, %v3288
      %v3310 = vpack.c.bf16 %v3291, %v3290
      %v3311 = vpack.c.bf16 %v3293, %v3292
      %s3312 = scalar_lea.vmem %s5, 448
      %v3313 = vld [vmem:[%s3312] sm:$0xf]
      %v3314 = vld [vmem:[%s3312 + $0x4] sm:$0xf]
      %v3315 = vld [vmem:[%s3312 + $0x8] sm:$0xf]
      %v3316 = vld [vmem:[%s3312 + $0xc] sm:$0xf]
      %v3317 = vld [vmem:[%s3312 + $0x10] sm:$0xf]
      %v3318 = vld [vmem:[%s3312 + $0x14] sm:$0xf]
      %v3319 = vld [vmem:[%s3312 + $0x18] sm:$0xf]
      %v3320 = vld [vmem:[%s3312 + $0x1c] sm:$0xf]
      %v3321 = vld [vmem:[%s3312 + $0x20] sm:$0xf]
      %v3322 = vld [vmem:[%s3312 + $0x24] sm:$0xf]
      %v3323 = vld [vmem:[%s3312 + $0x28] sm:$0xf]
      %v3324 = vld [vmem:[%s3312 + $0x2c] sm:$0xf]
      %v3325 = vld [vmem:[%s3312 + $0x30] sm:$0xf]
      %v3326 = vld [vmem:[%s3312 + $0x34] sm:$0xf]
      %v3327 = vld [vmem:[%s3312 + $0x38] sm:$0xf]
      %v3328 = vld [vmem:[%s3312 + $0x3c] sm:$0xf]
      %v3345 = vunpack.c.l.b16 %v3313
      %v3346 = vunpack.c.l.b16 %v3314
      %v3347 = vunpack.c.l.b16 %v3315
      %v3348 = vunpack.c.l.b16 %v3316
      %v3349 = vunpack.c.l.b16 %v3317
      %v3350 = vunpack.c.l.b16 %v3318
      %v3351 = vunpack.c.l.b16 %v3319
      %v3352 = vunpack.c.l.b16 %v3320
      %v3353 = vunpack.c.l.b16 %v3321
      %v3354 = vunpack.c.l.b16 %v3322
      %v3355 = vunpack.c.l.b16 %v3323
      %v3356 = vunpack.c.l.b16 %v3324
      %v3357 = vunpack.c.l.b16 %v3325
      %v3358 = vunpack.c.l.b16 %v3326
      %v3359 = vunpack.c.l.b16 %v3327
      %v3360 = vunpack.c.l.b16 %v3328
      %v3361 = vpack.c.b16 %v3346, %v3345
      %v3362 = vpack.c.b16 %v3348, %v3347
      %v3363 = vpack.c.b16 %v3350, %v3349
      %v3364 = vpack.c.b16 %v3352, %v3351
      %v3365 = vpack.c.b16 %v3354, %v3353
      %v3366 = vpack.c.b16 %v3356, %v3355
      %v3367 = vpack.c.b16 %v3358, %v3357
      %v3368 = vpack.c.b16 %v3360, %v3359
      %3377 = vmatpush.bf16.msra.mxu0 %v3368
      %3378 = vmatpush.bf16.msra.mxu0 %v3367
      %3379 = vmatpush.bf16.msra.mxu0 %v3366
      %3380 = vmatpush.bf16.msra.mxu0 %v3365
      %3381 = vmatpush.bf16.msra.mxu0 %v3364
      %3382 = vmatpush.bf16.msra.mxu0 %v3363
      %3383 = vmatpush.bf16.msra.mxu0 %v3362
      %3384 = vmatpush.bf16.msra.mxu0 %v3361
      %3385 = vmatmul.bf16.gmra.mxu0 %v3294
      %v3386 = vpop.f32.mrf.mxu0
      %v3387 = vadd.f32 0.0, %v3386
      %v3388 = vpop.f32.mrf.mxu0
      %v3389 = vadd.f32 0.0, %v3388
      %3390 = vmatmul.bf16.gmra.mxu0 %v3295
      %v3391 = vpop.f32.mrf.mxu0
      %v3392 = vadd.f32 0.0, %v3391
      %v3393 = vpop.f32.mrf.mxu0
      %v3394 = vadd.f32 0.0, %v3393
      %3395 = vmatmul.bf16.gmra.mxu0 %v3296
      %v3396 = vpop.f32.mrf.mxu0
      %v3397 = vadd.f32 0.0, %v3396
      %v3398 = vpop.f32.mrf.mxu0
      %v3399 = vadd.f32 0.0, %v3398
      %3400 = vmatmul.bf16.gmra.mxu0 %v3297
      %v3401 = vpop.f32.mrf.mxu0
      %v3402 = vadd.f32 0.0, %v3401
      %v3403 = vpop.f32.mrf.mxu0
      %v3404 = vadd.f32 0.0, %v3403
      %3405 = vmatmul.bf16.gmra.mxu0 %v3298
      %v3406 = vpop.f32.mrf.mxu0
      %v3407 = vadd.f32 0.0, %v3406
      %v3408 = vpop.f32.mrf.mxu0
      %v3409 = vadd.f32 0.0, %v3408
      %3410 = vmatmul.bf16.gmra.mxu0 %v3299
      %v3411 = vpop.f32.mrf.mxu0
      %v3412 = vadd.f32 0.0, %v3411
      %v3413 = vpop.f32.mrf.mxu0
      %v3414 = vadd.f32 0.0, %v3413
      %3415 = vmatmul.bf16.gmra.mxu0 %v3300
      %v3416 = vpop.f32.mrf.mxu0
      %v3417 = vadd.f32 0.0, %v3416
      %v3418 = vpop.f32.mrf.mxu0
      %v3419 = vadd.f32 0.0, %v3418
      %3420 = vmatmul.bf16.gmra.mxu0 %v3301
      %v3421 = vpop.f32.mrf.mxu0
      %v3422 = vadd.f32 0.0, %v3421
      %v3423 = vpop.f32.mrf.mxu0
      %v3424 = vadd.f32 0.0, %v3423
      %3425 = vmatmul.bf16.gmra.mxu0 %v3302
      %v3426 = vpop.f32.mrf.mxu0
      %v3427 = vadd.f32 0.0, %v3426
      %v3428 = vpop.f32.mrf.mxu0
      %v3429 = vadd.f32 0.0, %v3428
      %3430 = vmatmul.bf16.gmra.mxu0 %v3303
      %v3431 = vpop.f32.mrf.mxu0
      %v3432 = vadd.f32 0.0, %v3431
      %v3433 = vpop.f32.mrf.mxu0
      %v3434 = vadd.f32 0.0, %v3433
      %3435 = vmatmul.bf16.gmra.mxu0 %v3304
      %v3436 = vpop.f32.mrf.mxu0
      %v3437 = vadd.f32 0.0, %v3436
      %v3438 = vpop.f32.mrf.mxu0
      %v3439 = vadd.f32 0.0, %v3438
      %3440 = vmatmul.bf16.gmra.mxu0 %v3305
      %v3441 = vpop.f32.mrf.mxu0
      %v3442 = vadd.f32 0.0, %v3441
      %v3443 = vpop.f32.mrf.mxu0
      %v3444 = vadd.f32 0.0, %v3443
      %3445 = vmatmul.bf16.gmra.mxu0 %v3306
      %v3446 = vpop.f32.mrf.mxu0
      %v3447 = vadd.f32 0.0, %v3446
      %v3448 = vpop.f32.mrf.mxu0
      %v3449 = vadd.f32 0.0, %v3448
      %3450 = vmatmul.bf16.gmra.mxu0 %v3307
      %v3451 = vpop.f32.mrf.mxu0
      %v3452 = vadd.f32 0.0, %v3451
      %v3453 = vpop.f32.mrf.mxu0
      %v3454 = vadd.f32 0.0, %v3453
      %3455 = vmatmul.bf16.gmra.mxu0 %v3308
      %v3456 = vpop.f32.mrf.mxu0
      %v3457 = vadd.f32 0.0, %v3456
      %v3458 = vpop.f32.mrf.mxu0
      %v3459 = vadd.f32 0.0, %v3458
      %3460 = vmatmul.bf16.gmra.mxu0 %v3309
      %v3461 = vpop.f32.mrf.mxu0
      %v3462 = vadd.f32 0.0, %v3461
      %v3463 = vpop.f32.mrf.mxu0
      %v3464 = vadd.f32 0.0, %v3463
      %3465 = vmatmul.bf16.gmra.mxu0 %v3310
      %v3466 = vpop.f32.mrf.mxu0
      %v3467 = vadd.f32 0.0, %v3466
      %v3468 = vpop.f32.mrf.mxu0
      %v3469 = vadd.f32 0.0, %v3468
      %3470 = vmatmul.bf16.gmra.mxu0 %v3311
      %v3471 = vpop.f32.mrf.mxu0
      %v3472 = vadd.f32 0.0, %v3471
      %v3473 = vpop.f32.mrf.mxu0
      %v3474 = vadd.f32 0.0, %v3473
      %3475 = vdwg.mxu0
      %v3476 = vld [vmem:[#allocation3] sm:$0xff]
      %v3477 = vld [vmem:[#allocation3 + $0x8] sm:$0xff]
      %v3478 = vld [vmem:[#allocation3 + $0x10] sm:$0xff]
      %v3479 = vld [vmem:[#allocation3 + $0x18] sm:$0xff]
      %v3480 = vld [vmem:[#allocation3 + $0x20] sm:$0xff]
      %v3481 = vld [vmem:[#allocation3 + $0x28] sm:$0xff]
      %v3482 = vld [vmem:[#allocation3 + $0x30] sm:$0xff]
      %v3483 = vld [vmem:[#allocation3 + $0x38] sm:$0xff]
      %v3484 = vld [vmem:[#allocation3 + $0x40] sm:$0xff]
      %v3485 = vld [vmem:[#allocation3 + $0x48] sm:$0xff]
      %v3486 = vld [vmem:[#allocation3 + $0x50] sm:$0xff]
      %v3487 = vld [vmem:[#allocation3 + $0x58] sm:$0xff]
      %v3488 = vld [vmem:[#allocation3 + $0x60] sm:$0xff]
      %v3489 = vld [vmem:[#allocation3 + $0x68] sm:$0xff]
      %v3490 = vld [vmem:[#allocation3 + $0x70] sm:$0xff]
      %v3491 = vld [vmem:[#allocation3 + $0x78] sm:$0xff]
      %v3492 = vld [vmem:[#allocation3 + $0x80] sm:$0xff]
      %v3493 = vld [vmem:[#allocation3 + $0x88] sm:$0xff]
      %v3494 = vld [vmem:[#allocation3 + $0x90] sm:$0xff]
      %v3495 = vld [vmem:[#allocation3 + $0x98] sm:$0xff]
      %v3496 = vld [vmem:[#allocation3 + $0xa0] sm:$0xff]
      %v3497 = vld [vmem:[#allocation3 + $0xa8] sm:$0xff]
      %v3498 = vld [vmem:[#allocation3 + $0xb0] sm:$0xff]
      %v3499 = vld [vmem:[#allocation3 + $0xb8] sm:$0xff]
      %v3500 = vld [vmem:[#allocation3 + $0xc0] sm:$0xff]
      %v3501 = vld [vmem:[#allocation3 + $0xc8] sm:$0xff]
      %v3502 = vld [vmem:[#allocation3 + $0xd0] sm:$0xff]
      %v3503 = vld [vmem:[#allocation3 + $0xd8] sm:$0xff]
      %v3504 = vld [vmem:[#allocation3 + $0xe0] sm:$0xff]
      %v3505 = vld [vmem:[#allocation3 + $0xe8] sm:$0xff]
      %v3506 = vld [vmem:[#allocation3 + $0xf0] sm:$0xff]
      %v3507 = vld [vmem:[#allocation3 + $0xf8] sm:$0xff]
      %v3508 = vld [vmem:[#allocation3 + $0x100] sm:$0xff]
      %v3509 = vld [vmem:[#allocation3 + $0x108] sm:$0xff]
      %v3510 = vld [vmem:[#allocation3 + $0x110] sm:$0xff]
      %v3511 = vld [vmem:[#allocation3 + $0x118] sm:$0xff]
      %v3512 = vadd.f32 %v3476, %v3387
      %v3513 = vadd.f32 %v3477, %v3389
      %v3514 = vadd.f32 %v3478, %v3392
      %v3515 = vadd.f32 %v3479, %v3394
      %v3516 = vadd.f32 %v3480, %v3397
      %v3517 = vadd.f32 %v3481, %v3399
      %v3518 = vadd.f32 %v3482, %v3402
      %v3519 = vadd.f32 %v3483, %v3404
      %v3520 = vadd.f32 %v3484, %v3407
      %v3521 = vadd.f32 %v3485, %v3409
      %v3522 = vadd.f32 %v3486, %v3412
      %v3523 = vadd.f32 %v3487, %v3414
      %v3524 = vadd.f32 %v3488, %v3417
      %v3525 = vadd.f32 %v3489, %v3419
      %v3526 = vadd.f32 %v3490, %v3422
      %v3527 = vadd.f32 %v3491, %v3424
      %v3528 = vadd.f32 %v3492, %v3427
      %v3529 = vadd.f32 %v3493, %v3429
      %v3530 = vadd.f32 %v3494, %v3432
      %v3531 = vadd.f32 %v3495, %v3434
      %v3532 = vadd.f32 %v3496, %v3437
      %v3533 = vadd.f32 %v3497, %v3439
      %v3534 = vadd.f32 %v3498, %v3442
      %v3535 = vadd.f32 %v3499, %v3444
      %v3536 = vadd.f32 %v3500, %v3447
      %v3537 = vadd.f32 %v3501, %v3449
      %v3538 = vadd.f32 %v3502, %v3452
      %v3539 = vadd.f32 %v3503, %v3454
      %v3540 = vadd.f32 %v3504, %v3457
      %v3541 = vadd.f32 %v3505, %v3459
      %v3542 = vadd.f32 %v3506, %v3462
      %v3543 = vadd.f32 %v3507, %v3464
      %v3544 = vadd.f32 %v3508, %v3467
      %v3545 = vadd.f32 %v3509, %v3469
      %v3546 = vadd.f32 %v3510, %v3472
      %v3547 = vadd.f32 %v3511, %v3474
      %3548 = vst [vmem:[#allocation3] sm:$0xff] %v3512
      %3549 = vst [vmem:[#allocation3 + $0x8] sm:$0xff] %v3513
      %3550 = vst [vmem:[#allocation3 + $0x10] sm:$0xff] %v3514
      %3551 = vst [vmem:[#allocation3 + $0x18] sm:$0xff] %v3515
      %3552 = vst [vmem:[#allocation3 + $0x20] sm:$0xff] %v3516
      %3553 = vst [vmem:[#allocation3 + $0x28] sm:$0xff] %v3517
      %3554 = vst [vmem:[#allocation3 + $0x30] sm:$0xff] %v3518
      %3555 = vst [vmem:[#allocation3 + $0x38] sm:$0xff] %v3519
      %3556 = vst [vmem:[#allocation3 + $0x40] sm:$0xff] %v3520
      %3557 = vst [vmem:[#allocation3 + $0x48] sm:$0xff] %v3521
      %3558 = vst [vmem:[#allocation3 + $0x50] sm:$0xff] %v3522
      %3559 = vst [vmem:[#allocation3 + $0x58] sm:$0xff] %v3523
      %3560 = vst [vmem:[#allocation3 + $0x60] sm:$0xff] %v3524
      %3561 = vst [vmem:[#allocation3 + $0x68] sm:$0xff] %v3525
      %3562 = vst [vmem:[#allocation3 + $0x70] sm:$0xff] %v3526
      %3563 = vst [vmem:[#allocation3 + $0x78] sm:$0xff] %v3527
      %3564 = vst [vmem:[#allocation3 + $0x80] sm:$0xff] %v3528
      %3565 = vst [vmem:[#allocation3 + $0x88] sm:$0xff] %v3529
      %3566 = vst [vmem:[#allocation3 + $0x90] sm:$0xff] %v3530
      %3567 = vst [vmem:[#allocation3 + $0x98] sm:$0xff] %v3531
      %3568 = vst [vmem:[#allocation3 + $0xa0] sm:$0xff] %v3532
      %3569 = vst [vmem:[#allocation3 + $0xa8] sm:$0xff] %v3533
      %3570 = vst [vmem:[#allocation3 + $0xb0] sm:$0xff] %v3534
      %3571 = vst [vmem:[#allocation3 + $0xb8] sm:$0xff] %v3535
      %3572 = vst [vmem:[#allocation3 + $0xc0] sm:$0xff] %v3536
      %3573 = vst [vmem:[#allocation3 + $0xc8] sm:$0xff] %v3537
      %3574 = vst [vmem:[#allocation3 + $0xd0] sm:$0xff] %v3538
      %3575 = vst [vmem:[#allocation3 + $0xd8] sm:$0xff] %v3539
      %3576 = vst [vmem:[#allocation3 + $0xe0] sm:$0xff] %v3540
      %3577 = vst [vmem:[#allocation3 + $0xe8] sm:$0xff] %v3541
      %3578 = vst [vmem:[#allocation3 + $0xf0] sm:$0xff] %v3542
      %3579 = vst [vmem:[#allocation3 + $0xf8] sm:$0xff] %v3543
      %3580 = vst [vmem:[#allocation3 + $0x100] sm:$0xff] %v3544
      %3581 = vst [vmem:[#allocation3 + $0x108] sm:$0xff] %v3545
      %3582 = vst [vmem:[#allocation3 + $0x110] sm:$0xff] %v3546
      %3583 = vst [vmem:[#allocation3 + $0x118] sm:$0xff] %v3547
      %v3584 = vld [vmem:[#allocation2 + $0x26] sm:$0xff]
      %v3585 = vld [vmem:[#allocation2 + $0x2e] sm:$0xff]
      %v3586 = vld [vmem:[#allocation2 + $0x36] sm:$0xff]
      %v3587 = vld [vmem:[#allocation2 + $0x3e] sm:$0xff]
      %v3588 = vld [vmem:[#allocation2 + $0x46] sm:$0xff]
      %v3589 = vld [vmem:[#allocation2 + $0x4e] sm:$0xff]
      %v3590 = vld [vmem:[#allocation2 + $0x56] sm:$0xff]
      %v3591 = vld [vmem:[#allocation2 + $0x5e] sm:$0xff]
      %v3592 = vld [vmem:[#allocation2 + $0x66] sm:$0xff]
      %v3593 = vld [vmem:[#allocation2 + $0x6e] sm:$0xff]
      %v3594 = vld [vmem:[#allocation2 + $0x76] sm:$0xff]
      %v3595 = vld [vmem:[#allocation2 + $0x7e] sm:$0xff]
      %v3596 = vld [vmem:[#allocation2 + $0x86] sm:$0xff]
      %v3597 = vld [vmem:[#allocation2 + $0x8e] sm:$0xff]
      %v3598 = vld [vmem:[#allocation2 + $0x96] sm:$0xff]
      %v3599 = vld [vmem:[#allocation2 + $0x9e] sm:$0xff]
      %v3600 = vld [vmem:[#allocation2 + $0xa6] sm:$0xff]
      %v3601 = vld [vmem:[#allocation2 + $0xae] sm:$0xff]
      %v3602 = vld [vmem:[#allocation2 + $0xb6] sm:$0xff]
      %v3603 = vld [vmem:[#allocation2 + $0xbe] sm:$0xff]
      %v3604 = vld [vmem:[#allocation2 + $0xc6] sm:$0xff]
      %v3605 = vld [vmem:[#allocation2 + $0xce] sm:$0xff]
      %v3606 = vld [vmem:[#allocation2 + $0xd6] sm:$0xff]
      %v3607 = vld [vmem:[#allocation2 + $0xde] sm:$0xff]
      %v3608 = vld [vmem:[#allocation2 + $0xe6] sm:$0xff]
      %v3609 = vld [vmem:[#allocation2 + $0xee] sm:$0xff]
      %v3610 = vld [vmem:[#allocation2 + $0xf6] sm:$0xff]
      %v3611 = vld [vmem:[#allocation2 + $0xfe] sm:$0xff]
      %v3612 = vld [vmem:[#allocation2 + $0x106] sm:$0xff]
      %v3613 = vld [vmem:[#allocation2 + $0x10e] sm:$0xff]
      %v3614 = vld [vmem:[#allocation2 + $0x116] sm:$0xff]
      %v3615 = vld [vmem:[#allocation2 + $0x11e] sm:$0xff]
      %v3616 = vld [vmem:[#allocation2 + $0x126] sm:$0xff]
      %v3617 = vld [vmem:[#allocation2 + $0x12e] sm:$0xff]
      %v3618 = vld [vmem:[#allocation2 + $0x136] sm:$0xff]
      %v3619 = vld [vmem:[#allocation2 + $0x13e] sm:$0xff]
      %v3620 = vpack.c.bf16 %v3585, %v3584
      %v3621 = vpack.c.bf16 %v3587, %v3586
      %v3622 = vpack.c.bf16 %v3589, %v3588
      %v3623 = vpack.c.bf16 %v3591, %v3590
      %v3624 = vpack.c.bf16 %v3593, %v3592
      %v3625 = vpack.c.bf16 %v3595, %v3594
      %v3626 = vpack.c.bf16 %v3597, %v3596
      %v3627 = vpack.c.bf16 %v3599, %v3598
      %v3628 = vpack.c.bf16 %v3601, %v3600
      %v3629 = vpack.c.bf16 %v3603, %v3602
      %v3630 = vpack.c.bf16 %v3605, %v3604
      %v3631 = vpack.c.bf16 %v3607, %v3606
      %v3632 = vpack.c.bf16 %v3609, %v3608
      %v3633 = vpack.c.bf16 %v3611, %v3610
      %v3634 = vpack.c.bf16 %v3613, %v3612
      %v3635 = vpack.c.bf16 %v3615, %v3614
      %v3636 = vpack.c.bf16 %v3617, %v3616
      %v3637 = vpack.c.bf16 %v3619, %v3618
      %s3638 = scalar_lea.vmem %s5, 512
      %v3639 = vld [vmem:[%s3638] sm:$0xf]
      %v3640 = vld [vmem:[%s3638 + $0x4] sm:$0xf]
      %v3641 = vld [vmem:[%s3638 + $0x8] sm:$0xf]
      %v3642 = vld [vmem:[%s3638 + $0xc] sm:$0xf]
      %v3643 = vld [vmem:[%s3638 + $0x10] sm:$0xf]
      %v3644 = vld [vmem:[%s3638 + $0x14] sm:$0xf]
      %v3645 = vld [vmem:[%s3638 + $0x18] sm:$0xf]
      %v3646 = vld [vmem:[%s3638 + $0x1c] sm:$0xf]
      %v3647 = vld [vmem:[%s3638 + $0x20] sm:$0xf]
      %v3648 = vld [vmem:[%s3638 + $0x24] sm:$0xf]
      %v3649 = vld [vmem:[%s3638 + $0x28] sm:$0xf]
      %v3650 = vld [vmem:[%s3638 + $0x2c] sm:$0xf]
      %v3651 = vld [vmem:[%s3638 + $0x30] sm:$0xf]
      %v3652 = vld [vmem:[%s3638 + $0x34] sm:$0xf]
      %v3653 = vld [vmem:[%s3638 + $0x38] sm:$0xf]
      %v3654 = vld [vmem:[%s3638 + $0x3c] sm:$0xf]
      %v3671 = vunpack.c.l.b16 %v3639
      %v3672 = vunpack.c.l.b16 %v3640
      %v3673 = vunpack.c.l.b16 %v3641
      %v3674 = vunpack.c.l.b16 %v3642
      %v3675 = vunpack.c.l.b16 %v3643
      %v3676 = vunpack.c.l.b16 %v3644
      %v3677 = vunpack.c.l.b16 %v3645
      %v3678 = vunpack.c.l.b16 %v3646
      %v3679 = vunpack.c.l.b16 %v3647
      %v3680 = vunpack.c.l.b16 %v3648
      %v3681 = vunpack.c.l.b16 %v3649
      %v3682 = vunpack.c.l.b16 %v3650
      %v3683 = vunpack.c.l.b16 %v3651
      %v3684 = vunpack.c.l.b16 %v3652
      %v3685 = vunpack.c.l.b16 %v3653
      %v3686 = vunpack.c.l.b16 %v3654
      %v3687 = vpack.c.b16 %v3672, %v3671
      %v3688 = vpack.c.b16 %v3674, %v3673
      %v3689 = vpack.c.b16 %v3676, %v3675
      %v3690 = vpack.c.b16 %v3678, %v3677
      %v3691 = vpack.c.b16 %v3680, %v3679
      %v3692 = vpack.c.b16 %v3682, %v3681
      %v3693 = vpack.c.b16 %v3684, %v3683
      %v3694 = vpack.c.b16 %v3686, %v3685
      %3703 = vmatpush.bf16.msra.mxu0 %v3694
      %3704 = vmatpush.bf16.msra.mxu0 %v3693
      %3705 = vmatpush.bf16.msra.mxu0 %v3692
      %3706 = vmatpush.bf16.msra.mxu0 %v3691
      %3707 = vmatpush.bf16.msra.mxu0 %v3690
      %3708 = vmatpush.bf16.msra.mxu0 %v3689
      %3709 = vmatpush.bf16.msra.mxu0 %v3688
      %3710 = vmatpush.bf16.msra.mxu0 %v3687
      %3711 = vmatmul.bf16.gmra.mxu0 %v3620
      %v3712 = vpop.f32.mrf.mxu0
      %v3713 = vadd.f32 0.0, %v3712
      %v3714 = vpop.f32.mrf.mxu0
      %v3715 = vadd.f32 0.0, %v3714
      %3716 = vmatmul.bf16.gmra.mxu0 %v3621
      %v3717 = vpop.f32.mrf.mxu0
      %v3718 = vadd.f32 0.0, %v3717
      %v3719 = vpop.f32.mrf.mxu0
      %v3720 = vadd.f32 0.0, %v3719
      %3721 = vmatmul.bf16.gmra.mxu0 %v3622
      %v3722 = vpop.f32.mrf.mxu0
      %v3723 = vadd.f32 0.0, %v3722
      %v3724 = vpop.f32.mrf.mxu0
      %v3725 = vadd.f32 0.0, %v3724
      %3726 = vmatmul.bf16.gmra.mxu0 %v3623
      %v3727 = vpop.f32.mrf.mxu0
      %v3728 = vadd.f32 0.0, %v3727
      %v3729 = vpop.f32.mrf.mxu0
      %v3730 = vadd.f32 0.0, %v3729
      %3731 = vmatmul.bf16.gmra.mxu0 %v3624
      %v3732 = vpop.f32.mrf.mxu0
      %v3733 = vadd.f32 0.0, %v3732
      %v3734 = vpop.f32.mrf.mxu0
      %v3735 = vadd.f32 0.0, %v3734
      %3736 = vmatmul.bf16.gmra.mxu0 %v3625
      %v3737 = vpop.f32.mrf.mxu0
      %v3738 = vadd.f32 0.0, %v3737
      %v3739 = vpop.f32.mrf.mxu0
      %v3740 = vadd.f32 0.0, %v3739
      %3741 = vmatmul.bf16.gmra.mxu0 %v3626
      %v3742 = vpop.f32.mrf.mxu0
      %v3743 = vadd.f32 0.0, %v3742
      %v3744 = vpop.f32.mrf.mxu0
      %v3745 = vadd.f32 0.0, %v3744
      %3746 = vmatmul.bf16.gmra.mxu0 %v3627
      %v3747 = vpop.f32.mrf.mxu0
      %v3748 = vadd.f32 0.0, %v3747
      %v3749 = vpop.f32.mrf.mxu0
      %v3750 = vadd.f32 0.0, %v3749
      %3751 = vmatmul.bf16.gmra.mxu0 %v3628
      %v3752 = vpop.f32.mrf.mxu0
      %v3753 = vadd.f32 0.0, %v3752
      %v3754 = vpop.f32.mrf.mxu0
      %v3755 = vadd.f32 0.0, %v3754
      %3756 = vmatmul.bf16.gmra.mxu0 %v3629
      %v3757 = vpop.f32.mrf.mxu0
      %v3758 = vadd.f32 0.0, %v3757
      %v3759 = vpop.f32.mrf.mxu0
      %v3760 = vadd.f32 0.0, %v3759
      %3761 = vmatmul.bf16.gmra.mxu0 %v3630
      %v3762 = vpop.f32.mrf.mxu0
      %v3763 = vadd.f32 0.0, %v3762
      %v3764 = vpop.f32.mrf.mxu0
      %v3765 = vadd.f32 0.0, %v3764
      %3766 = vmatmul.bf16.gmra.mxu0 %v3631
      %v3767 = vpop.f32.mrf.mxu0
      %v3768 = vadd.f32 0.0, %v3767
      %v3769 = vpop.f32.mrf.mxu0
      %v3770 = vadd.f32 0.0, %v3769
      %3771 = vmatmul.bf16.gmra.mxu0 %v3632
      %v3772 = vpop.f32.mrf.mxu0
      %v3773 = vadd.f32 0.0, %v3772
      %v3774 = vpop.f32.mrf.mxu0
      %v3775 = vadd.f32 0.0, %v3774
      %3776 = vmatmul.bf16.gmra.mxu0 %v3633
      %v3777 = vpop.f32.mrf.mxu0
      %v3778 = vadd.f32 0.0, %v3777
      %v3779 = vpop.f32.mrf.mxu0
      %v3780 = vadd.f32 0.0, %v3779
      %3781 = vmatmul.bf16.gmra.mxu0 %v3634
      %v3782 = vpop.f32.mrf.mxu0
      %v3783 = vadd.f32 0.0, %v3782
      %v3784 = vpop.f32.mrf.mxu0
      %v3785 = vadd.f32 0.0, %v3784
      %3786 = vmatmul.bf16.gmra.mxu0 %v3635
      %v3787 = vpop.f32.mrf.mxu0
      %v3788 = vadd.f32 0.0, %v3787
      %v3789 = vpop.f32.mrf.mxu0
      %v3790 = vadd.f32 0.0, %v3789
      %3791 = vmatmul.bf16.gmra.mxu0 %v3636
      %v3792 = vpop.f32.mrf.mxu0
      %v3793 = vadd.f32 0.0, %v3792
      %v3794 = vpop.f32.mrf.mxu0
      %v3795 = vadd.f32 0.0, %v3794
      %3796 = vmatmul.bf16.gmra.mxu0 %v3637
      %v3797 = vpop.f32.mrf.mxu0
      %v3798 = vadd.f32 0.0, %v3797
      %v3799 = vpop.f32.mrf.mxu0
      %v3800 = vadd.f32 0.0, %v3799
      %3801 = vdwg.mxu0
      %v3802 = vld [vmem:[#allocation3] sm:$0xff]
      %v3803 = vld [vmem:[#allocation3 + $0x8] sm:$0xff]
      %v3804 = vld [vmem:[#allocation3 + $0x10] sm:$0xff]
      %v3805 = vld [vmem:[#allocation3 + $0x18] sm:$0xff]
      %v3806 = vld [vmem:[#allocation3 + $0x20] sm:$0xff]
      %v3807 = vld [vmem:[#allocation3 + $0x28] sm:$0xff]
      %v3808 = vld [vmem:[#allocation3 + $0x30] sm:$0xff]
      %v3809 = vld [vmem:[#allocation3 + $0x38] sm:$0xff]
      %v3810 = vld [vmem:[#allocation3 + $0x40] sm:$0xff]
      %v3811 = vld [vmem:[#allocation3 + $0x48] sm:$0xff]
      %v3812 = vld [vmem:[#allocation3 + $0x50] sm:$0xff]
      %v3813 = vld [vmem:[#allocation3 + $0x58] sm:$0xff]
      %v3814 = vld [vmem:[#allocation3 + $0x60] sm:$0xff]
      %v3815 = vld [vmem:[#allocation3 + $0x68] sm:$0xff]
      %v3816 = vld [vmem:[#allocation3 + $0x70] sm:$0xff]
      %v3817 = vld [vmem:[#allocation3 + $0x78] sm:$0xff]
      %v3818 = vld [vmem:[#allocation3 + $0x80] sm:$0xff]
      %v3819 = vld [vmem:[#allocation3 + $0x88] sm:$0xff]
      %v3820 = vld [vmem:[#allocation3 + $0x90] sm:$0xff]
      %v3821 = vld [vmem:[#allocation3 + $0x98] sm:$0xff]
      %v3822 = vld [vmem:[#allocation3 + $0xa0] sm:$0xff]
      %v3823 = vld [vmem:[#allocation3 + $0xa8] sm:$0xff]
      %v3824 = vld [vmem:[#allocation3 + $0xb0] sm:$0xff]
      %v3825 = vld [vmem:[#allocation3 + $0xb8] sm:$0xff]
      %v3826 = vld [vmem:[#allocation3 + $0xc0] sm:$0xff]
      %v3827 = vld [vmem:[#allocation3 + $0xc8] sm:$0xff]
      %v3828 = vld [vmem:[#allocation3 + $0xd0] sm:$0xff]
      %v3829 = vld [vmem:[#allocation3 + $0xd8] sm:$0xff]
      %v3830 = vld [vmem:[#allocation3 + $0xe0] sm:$0xff]
      %v3831 = vld [vmem:[#allocation3 + $0xe8] sm:$0xff]
      %v3832 = vld [vmem:[#allocation3 + $0xf0] sm:$0xff]
      %v3833 = vld [vmem:[#allocation3 + $0xf8] sm:$0xff]
      %v3834 = vld [vmem:[#allocation3 + $0x100] sm:$0xff]
      %v3835 = vld [vmem:[#allocation3 + $0x108] sm:$0xff]
      %v3836 = vld [vmem:[#allocation3 + $0x110] sm:$0xff]
      %v3837 = vld [vmem:[#allocation3 + $0x118] sm:$0xff]
      %v3838 = vadd.f32 %v3802, %v3713
      %v3839 = vadd.f32 %v3803, %v3715
      %v3840 = vadd.f32 %v3804, %v3718
      %v3841 = vadd.f32 %v3805, %v3720
      %v3842 = vadd.f32 %v3806, %v3723
      %v3843 = vadd.f32 %v3807, %v3725
      %v3844 = vadd.f32 %v3808, %v3728
      %v3845 = vadd.f32 %v3809, %v3730
      %v3846 = vadd.f32 %v3810, %v3733
      %v3847 = vadd.f32 %v3811, %v3735
      %v3848 = vadd.f32 %v3812, %v3738
      %v3849 = vadd.f32 %v3813, %v3740
      %v3850 = vadd.f32 %v3814, %v3743
      %v3851 = vadd.f32 %v3815, %v3745
      %v3852 = vadd.f32 %v3816, %v3748
      %v3853 = vadd.f32 %v3817, %v3750
      %v3854 = vadd.f32 %v3818, %v3753
      %v3855 = vadd.f32 %v3819, %v3755
      %v3856 = vadd.f32 %v3820, %v3758
      %v3857 = vadd.f32 %v3821, %v3760
      %v3858 = vadd.f32 %v3822, %v3763
      %v3859 = vadd.f32 %v3823, %v3765
      %v3860 = vadd.f32 %v3824, %v3768
      %v3861 = vadd.f32 %v3825, %v3770
      %v3862 = vadd.f32 %v3826, %v3773
      %v3863 = vadd.f32 %v3827, %v3775
      %v3864 = vadd.f32 %v3828, %v3778
      %v3865 = vadd.f32 %v3829, %v3780
      %v3866 = vadd.f32 %v3830, %v3783
      %v3867 = vadd.f32 %v3831, %v3785
      %v3868 = vadd.f32 %v3832, %v3788
      %v3869 = vadd.f32 %v3833, %v3790
      %v3870 = vadd.f32 %v3834, %v3793
      %v3871 = vadd.f32 %v3835, %v3795
      %v3872 = vadd.f32 %v3836, %v3798
      %v3873 = vadd.f32 %v3837, %v3800
      %3874 = vst [vmem:[#allocation3] sm:$0xff] %v3838
      %3875 = vst [vmem:[#allocation3 + $0x8] sm:$0xff] %v3839
      %3876 = vst [vmem:[#allocation3 + $0x10] sm:$0xff] %v3840
      %3877 = vst [vmem:[#allocation3 + $0x18] sm:$0xff] %v3841
      %3878 = vst [vmem:[#allocation3 + $0x20] sm:$0xff] %v3842
      %3879 = vst [vmem:[#allocation3 + $0x28] sm:$0xff] %v3843
      %3880 = vst [vmem:[#allocation3 + $0x30] sm:$0xff] %v3844
      %3881 = vst [vmem:[#allocation3 + $0x38] sm:$0xff] %v3845
      %3882 = vst [vmem:[#allocation3 + $0x40] sm:$0xff] %v3846
      %3883 = vst [vmem:[#allocation3 + $0x48] sm:$0xff] %v3847
      %3884 = vst [vmem:[#allocation3 + $0x50] sm:$0xff] %v3848
      %3885 = vst [vmem:[#allocation3 + $0x58] sm:$0xff] %v3849
      %3886 = vst [vmem:[#allocation3 + $0x60] sm:$0xff] %v3850
      %3887 = vst [vmem:[#allocation3 + $0x68] sm:$0xff] %v3851
      %3888 = vst [vmem:[#allocation3 + $0x70] sm:$0xff] %v3852
      %3889 = vst [vmem:[#allocation3 + $0x78] sm:$0xff] %v3853
      %3890 = vst [vmem:[#allocation3 + $0x80] sm:$0xff] %v3854
      %3891 = vst [vmem:[#allocation3 + $0x88] sm:$0xff] %v3855
      %3892 = vst [vmem:[#allocation3 + $0x90] sm:$0xff] %v3856
      %3893 = vst [vmem:[#allocation3 + $0x98] sm:$0xff] %v3857
      %3894 = vst [vmem:[#allocation3 + $0xa0] sm:$0xff] %v3858
      %3895 = vst [vmem:[#allocation3 + $0xa8] sm:$0xff] %v3859
      %3896 = vst [vmem:[#allocation3 + $0xb0] sm:$0xff] %v3860
      %3897 = vst [vmem:[#allocation3 + $0xb8] sm:$0xff] %v3861
      %3898 = vst [vmem:[#allocation3 + $0xc0] sm:$0xff] %v3862
      %3899 = vst [vmem:[#allocation3 + $0xc8] sm:$0xff] %v3863
      %3900 = vst [vmem:[#allocation3 + $0xd0] sm:$0xff] %v3864
      %3901 = vst [vmem:[#allocation3 + $0xd8] sm:$0xff] %v3865
      %3902 = vst [vmem:[#allocation3 + $0xe0] sm:$0xff] %v3866
      %3903 = vst [vmem:[#allocation3 + $0xe8] sm:$0xff] %v3867
      %3904 = vst [vmem:[#allocation3 + $0xf0] sm:$0xff] %v3868
      %3905 = vst [vmem:[#allocation3 + $0xf8] sm:$0xff] %v3869
      %3906 = vst [vmem:[#allocation3 + $0x100] sm:$0xff] %v3870
      %3907 = vst [vmem:[#allocation3 + $0x108] sm:$0xff] %v3871
      %3908 = vst [vmem:[#allocation3 + $0x110] sm:$0xff] %v3872
      %3909 = vst [vmem:[#allocation3 + $0x118] sm:$0xff] %v3873
      %v3910 = vld [vmem:[#allocation3] sm:$0xff]
      %v3911 = vld [vmem:[#allocation3 + $0x8] sm:$0xff]
      %v3912 = vld [vmem:[#allocation3 + $0x10] sm:$0xff]
      %v3913 = vld [vmem:[#allocation3 + $0x18] sm:$0xff]
      %v3914 = vld [vmem:[#allocation3 + $0x20] sm:$0xff]
      %v3915 = vld [vmem:[#allocation3 + $0x28] sm:$0xff]
      %v3916 = vld [vmem:[#allocation3 + $0x30] sm:$0xff]
      %v3917 = vld [vmem:[#allocation3 + $0x38] sm:$0xff]
      %v3918 = vld [vmem:[#allocation3 + $0x40] sm:$0xff]
      %v3919 = vld [vmem:[#allocation3 + $0x48] sm:$0xff]
      %v3920 = vld [vmem:[#allocation3 + $0x50] sm:$0xff]
      %v3921 = vld [vmem:[#allocation3 + $0x58] sm:$0xff]
      %v3922 = vld [vmem:[#allocation3 + $0x60] sm:$0xff]
      %v3923 = vld [vmem:[#allocation3 + $0x68] sm:$0xff]
      %v3924 = vld [vmem:[#allocation3 + $0x70] sm:$0xff]
      %v3925 = vld [vmem:[#allocation3 + $0x78] sm:$0xff]
      %v3926 = vld [vmem:[#allocation3 + $0x80] sm:$0xff]
      %v3927 = vld [vmem:[#allocation3 + $0x88] sm:$0xff]
      %v3928 = vld [vmem:[#allocation3 + $0x90] sm:$0xff]
      %v3929 = vld [vmem:[#allocation3 + $0x98] sm:$0xff]
      %v3930 = vld [vmem:[#allocation3 + $0xa0] sm:$0xff]
      %v3931 = vld [vmem:[#allocation3 + $0xa8] sm:$0xff]
      %v3932 = vld [vmem:[#allocation3 + $0xb0] sm:$0xff]
      %v3933 = vld [vmem:[#allocation3 + $0xb8] sm:$0xff]
      %v3934 = vld [vmem:[#allocation3 + $0xc0] sm:$0xff]
      %v3935 = vld [vmem:[#allocation3 + $0xc8] sm:$0xff]
      %v3936 = vld [vmem:[#allocation3 + $0xd0] sm:$0xff]
      %v3937 = vld [vmem:[#allocation3 + $0xd8] sm:$0xff]
      %v3938 = vld [vmem:[#allocation3 + $0xe0] sm:$0xff]
      %v3939 = vld [vmem:[#allocation3 + $0xe8] sm:$0xff]
      %v3940 = vld [vmem:[#allocation3 + $0xf0] sm:$0xff]
      %v3941 = vld [vmem:[#allocation3 + $0xf8] sm:$0xff]
      %v3942 = vld [vmem:[#allocation3 + $0x100] sm:$0xff]
      %v3943 = vld [vmem:[#allocation3 + $0x108] sm:$0xff]
      %v3944 = vld [vmem:[#allocation3 + $0x110] sm:$0xff]
      %v3945 = vld [vmem:[#allocation3 + $0x118] sm:$0xff]
      %v3982 = vrot.slane %v3910, 2
      %v3983 = vrot.slane %v3910, 4
      %v3984 = vrot.slane %v3910, 6
      %v3985 = vrot.slane %v3911, 2
      %v3986 = vrot.slane %v3911, 4
      %v3987 = vrot.slane %v3911, 6
      %v3988 = vrot.slane %v3912, 2
      %v3989 = vrot.slane %v3912, 4
      %v3990 = vrot.slane %v3912, 6
      %v3991 = vrot.slane %v3913, 2
      %v3992 = vrot.slane %v3913, 4
      %v3993 = vrot.slane %v3913, 6
      %v3994 = vrot.slane %v3914, 4
      %v3995 = vrot.slane %v3914, 6
      %v3996 = vrot.slane %v3915, 2
      %v3997 = vrot.slane %v3915, 4
      %v3998 = vrot.slane %v3915, 6
      %v3999 = vrot.slane %v3916, 2
      %v4000 = vrot.slane %v3916, 6
      %v4001 = vrot.slane %v3917, 2
      %v4002 = vrot.slane %v3917, 4
      %v4003 = vrot.slane %v3917, 6
      %v4004 = vrot.slane %v3918, 2
      %v4005 = vrot.slane %v3918, 4
      %v4006 = vrot.slane %v3919, 2
      %v4007 = vrot.slane %v3919, 4
      %v4008 = vrot.slane %v3919, 6
      %v4009 = vrot.slane %v3920, 2
      %v4010 = vrot.slane %v3920, 4
      %v4011 = vrot.slane %v3920, 6
      %v4012 = vrot.slane %v3921, 2
      %v4013 = vrot.slane %v3921, 4
      %v4014 = vrot.slane %v3921, 6
      %v4015 = vrot.slane %v3922, 2
      %v4016 = vrot.slane %v3922, 4
      %v4017 = vrot.slane %v3922, 6
      %v4018 = vrot.slane %v3923, 4
      %v4019 = vrot.slane %v3923, 6
      %v4020 = vrot.slane %v3924, 2
      %v4021 = vrot.slane %v3924, 4
      %v4022 = vrot.slane %v3924, 6
      %v4023 = vrot.slane %v3925, 2
      %v4024 = vrot.slane %v3925, 6
      %v4025 = vrot.slane %v3926, 2
      %v4026 = vrot.slane %v3926, 4
      %v4027 = vrot.slane %v3926, 6
      %v4028 = vrot.slane %v3927, 2
      %v4029 = vrot.slane %v3927, 4
      %v4030 = vrot.slane %v3928, 2
      %v4031 = vrot.slane %v3928, 4
      %v4032 = vrot.slane %v3928, 6
      %v4033 = vrot.slane %v3929, 2
      %v4034 = vrot.slane %v3929, 4
      %v4035 = vrot.slane %v3929, 6
      %v4036 = vrot.slane %v3930, 2
      %v4037 = vrot.slane %v3930, 4
      %v4038 = vrot.slane %v3930, 6
      %v4039 = vrot.slane %v3931, 2
      %v4040 = vrot.slane %v3931, 4
      %v4041 = vrot.slane %v3931, 6
      %v4042 = vrot.slane %v3932, 4
      %v4043 = vrot.slane %v3932, 6
      %v4044 = vrot.slane %v3933, 2
      %v4045 = vrot.slane %v3933, 4
      %v4046 = vrot.slane %v3933, 6
      %v4047 = vrot.slane %v3934, 2
      %v4048 = vrot.slane %v3934, 6
      %v4049 = vrot.slane %v3935, 2
      %v4050 = vrot.slane %v3935, 4
      %v4051 = vrot.slane %v3935, 6
      %v4052 = vrot.slane %v3936, 2
      %v4053 = vrot.slane %v3936, 4
      %v4054 = vrot.slane %v3937, 2
      %v4055 = vrot.slane %v3937, 4
      %v4056 = vrot.slane %v3937, 6
      %v4057 = vrot.slane %v3938, 2
      %v4058 = vrot.slane %v3938, 4
      %v4059 = vrot.slane %v3938, 6
      %v4060 = vrot.slane %v3939, 2
      %v4061 = vrot.slane %v3939, 4
      %v4062 = vrot.slane %v3939, 6
      %v4063 = vrot.slane %v3940, 2
      %v4064 = vrot.slane %v3940, 4
      %v4065 = vrot.slane %v3940, 6
      %v4066 = vrot.slane %v3941, 4
      %v4067 = vrot.slane %v3941, 6
      %v4068 = vrot.slane %v3942, 2
      %v4069 = vrot.slane %v3942, 4
      %v4070 = vrot.slane %v3942, 6
      %v4071 = vrot.slane %v3943, 2
      %v4072 = vrot.slane %v3943, 6
      %v4073 = vrot.slane %v3944, 2
      %v4074 = vrot.slane %v3944, 4
      %v4075 = vrot.slane %v3944, 6
      %v4076 = vrot.slane %v3945, 2
      %v4077 = vrot.slane %v3945, 4
      %4174 = vst [vmem:[#allocation1] ss:$4 sm:$0xff] %v3910
      %s4175 = scalar_lea.vmem [#allocation1], 1
      %4176 = vst [vmem:[%s4175] ss:$4 sm:$0xff] %v3982
      %s4177 = scalar_lea.vmem [#allocation1], 2
      %4178 = vst [vmem:[%s4177] ss:$4 sm:$0xff] %v3983
      %s4179 = scalar_lea.vmem [#allocation1], 3
      %4180 = vst [vmem:[%s4179] ss:$4 sm:$0xff] %v3984
      %s4181 = scalar_lea.vmem [#allocation1], 32
      %4182 = vst [vmem:[%s4181] ss:$4 sm:$0xff] %v3911
      %s4183 = scalar_lea.vmem [#allocation1], 33
      %4184 = vst [vmem:[%s4183] ss:$4 sm:$0xff] %v3985
      %s4185 = scalar_lea.vmem [#allocation1], 34
      %4186 = vst [vmem:[%s4185] ss:$4 sm:$0xff] %v3986
      %s4187 = scalar_lea.vmem [#allocation1], 35
      %4188 = vst [vmem:[%s4187] ss:$4 sm:$0xff] %v3987
      %v4189 = vld.sshfl [vmem:[#allocation1] sm:$0xff pattern:$0x73625140]
      %v4190 = vld.sshfl [vmem:[#allocation1 + $0x20] sm:$0xff pattern:$0x73625140]
      %4191 = vst [vmem:[#allocation1] ss:$4 sm:$0xff] %v3988
      %4192 = vst [vmem:[%s4175] ss:$4 sm:$0xff] %v3989
      %4193 = vst [vmem:[%s4177] ss:$4 sm:$0xff] %v3990
      %4194 = vst [vmem:[%s4179] ss:$4 sm:$0xff] %v3913
      %4195 = vst [vmem:[%s4181] ss:$4 sm:$0xff] %v3991
      %4196 = vst [vmem:[%s4183] ss:$4 sm:$0xff] %v3992
      %4197 = vst [vmem:[%s4185] ss:$4 sm:$0xff] %v3993
      %4198 = vst [vmem:[%s4187] ss:$4 sm:$0xff] %v3914
      %v4199 = vld.sshfl [vmem:[#allocation1] sm:$0xff pattern:$0x73625140]
      %v4200 = vld.sshfl [vmem:[#allocation1 + $0x20] sm:$0xff pattern:$0x73625140]
      %4201 = vst [vmem:[#allocation1] ss:$4 sm:$0xff] %v3994
      %4202 = vst [vmem:[%s4175] ss:$4 sm:$0xff] %v3995
      %4203 = vst [vmem:[%s4177] ss:$4 sm:$0xff] %v3915
      %4204 = vst [vmem:[%s4179] ss:$4 sm:$0xff] %v3996
      %4205 = vst [vmem:[%s4181] ss:$4 sm:$0xff] %v3997
      %4206 = vst [vmem:[%s4183] ss:$4 sm:$0xff] %v3998
      %4207 = vst [vmem:[%s4185] ss:$4 sm:$0xff] %v3916
      %4208 = vst [vmem:[%s4187] ss:$4 sm:$0xff] %v3999
      %v4209 = vld.sshfl [vmem:[#allocation1] sm:$0xff pattern:$0x73625140]
      %v4210 = vld.sshfl [vmem:[#allocation1 + $0x20] sm:$0xff pattern:$0x73625140]
      %4211 = vst [vmem:[#allocation1] ss:$4 sm:$0xff] %v4000
      %4212 = vst [vmem:[%s4175] ss:$4 sm:$0xff] %v3917
      %4213 = vst [vmem:[%s4177] ss:$4 sm:$0xff] %v4001
      %4214 = vst [vmem:[%s4179] ss:$4 sm:$0xff] %v4002
      %4215 = vst [vmem:[%s4181] ss:$4 sm:$0xff] %v4003
      %4216 = vst [vmem:[%s4183] ss:$4 sm:$0xff] %v3918
      %4217 = vst [vmem:[%s4185] ss:$4 sm:$0xff] %v4004
      %4218 = vst [vmem:[%s4187] ss:$4 sm:$0xff] %v4005
      %v4219 = vld.sshfl [vmem:[#allocation1] sm:$0xff pattern:$0x73625140]
      %v4220 = vld.sshfl [vmem:[#allocation1 + $0x20] sm:$0xff pattern:$0x73625140]
      %4221 = vst [vmem:[#allocation1] ss:$4 sm:$0xff] %v3919
      %4222 = vst [vmem:[%s4175] ss:$4 sm:$0xff] %v4006
      %4223 = vst [vmem:[%s4177] ss:$4 sm:$0xff] %v4007
      %4224 = vst [vmem:[%s4179] ss:$4 sm:$0xff] %v4008
      %4225 = vst [vmem:[%s4181] ss:$4 sm:$0xff] %v3920
      %4226 = vst [vmem:[%s4183] ss:$4 sm:$0xff] %v4009
      %4227 = vst [vmem:[%s4185] ss:$4 sm:$0xff] %v4010
      %4228 = vst [vmem:[%s4187] ss:$4 sm:$0xff] %v4011
      %v4229 = vld.sshfl [vmem:[#allocation1] sm:$0xff pattern:$0x73625140]
      %v4230 = vld.sshfl [vmem:[#allocation1 + $0x20] sm:$0xff pattern:$0x73625140]
      %4231 = vst [vmem:[#allocation1] ss:$4 sm:$0xff] %v4012
      %4232 = vst [vmem:[%s4175] ss:$4 sm:$0xff] %v4013
      %4233 = vst [vmem:[%s4177] ss:$4 sm:$0xff] %v4014
      %4234 = vst [vmem:[%s4179] ss:$4 sm:$0xff] %v3922
      %4235 = vst [vmem:[%s4181] ss:$4 sm:$0xff] %v4015
      %4236 = vst [vmem:[%s4183] ss:$4 sm:$0xff] %v4016
      %4237 = vst [vmem:[%s4185] ss:$4 sm:$0xff] %v4017
      %4238 = vst [vmem:[%s4187] ss:$4 sm:$0xff] %v3923
      %v4239 = vld.sshfl [vmem:[#allocation1] sm:$0xff pattern:$0x73625140]
      %v4240 = vld.sshfl [vmem:[#allocation1 + $0x20] sm:$0xff pattern:$0x73625140]
      %4241 = vst [vmem:[#allocation1] ss:$4 sm:$0xff] %v4018
      %4242 = vst [vmem:[%s4175] ss:$4 sm:$0xff] %v4019
      %4243 = vst [vmem:[%s4177] ss:$4 sm:$0xff] %v3924
      %4244 = vst [vmem:[%s4179] ss:$4 sm:$0xff] %v4020
      %4245 = vst [vmem:[%s4181] ss:$4 sm:$0xff] %v4021
      %4246 = vst [vmem:[%s4183] ss:$4 sm:$0xff] %v4022
      %4247 = vst [vmem:[%s4185] ss:$4 sm:$0xff] %v3925
      %4248 = vst [vmem:[%s4187] ss:$4 sm:$0xff] %v4023
      %v4249 = vld.sshfl [vmem:[#allocation1] sm:$0xff pattern:$0x73625140]
      %v4250 = vld.sshfl [vmem:[#allocation1 + $0x20] sm:$0xff pattern:$0x73625140]
      %4251 = vst [vmem:[#allocation1] ss:$4 sm:$0xff] %v4024
      %4252 = vst [vmem:[%s4175] ss:$4 sm:$0xff] %v3926
      %4253 = vst [vmem:[%s4177] ss:$4 sm:$0xff] %v4025
      %4254 = vst [vmem:[%s4179] ss:$4 sm:$0xff] %v4026
      %4255 = vst [vmem:[%s4181] ss:$4 sm:$0xff] %v4027
      %4256 = vst [vmem:[%s4183] ss:$4 sm:$0xff] %v3927
      %4257 = vst [vmem:[%s4185] ss:$4 sm:$0xff] %v4028
      %4258 = vst [vmem:[%s4187] ss:$4 sm:$0xff] %v4029
      %v4259 = vld.sshfl [vmem:[#allocation1] sm:$0xff pattern:$0x73625140]
      %v4260 = vld.sshfl [vmem:[#allocation1 + $0x20] sm:$0xff pattern:$0x73625140]
      %4261 = vst [vmem:[#allocation1] ss:$4 sm:$0xff] %v3928
      %4262 = vst [vmem:[%s4175] ss:$4 sm:$0xff] %v4030
      %4263 = vst [vmem:[%s4177] ss:$4 sm:$0xff] %v4031
      %4264 = vst [vmem:[%s4179] ss:$4 sm:$0xff] %v4032
      %4265 = vst [vmem:[%s4181] ss:$4 sm:$0xff] %v3929
      %4266 = vst [vmem:[%s4183] ss:$4 sm:$0xff] %v4033
      %4267 = vst [vmem:[%s4185] ss:$4 sm:$0xff] %v4034
      %4268 = vst [vmem:[%s4187] ss:$4 sm:$0xff] %v4035
      %v4269 = vld.sshfl [vmem:[#allocation1] sm:$0xff pattern:$0x73625140]
      %v4270 = vld.sshfl [vmem:[#allocation1 + $0x20] sm:$0xff pattern:$0x73625140]
      %4271 = vst [vmem:[#allocation1] ss:$4 sm:$0xff] %v4036
      %4272 = vst [vmem:[%s4175] ss:$4 sm:$0xff] %v4037
      %4273 = vst [vmem:[%s4177] ss:$4 sm:$0xff] %v4038
      %4274 = vst [vmem:[%s4179] ss:$4 sm:$0xff] %v3931
      %4275 = vst [vmem:[%s4181] ss:$4 sm:$0xff] %v4039
      %4276 = vst [vmem:[%s4183] ss:$4 sm:$0xff] %v4040
      %4277 = vst [vmem:[%s4185] ss:$4 sm:$0xff] %v4041
      %4278 = vst [vmem:[%s4187] ss:$4 sm:$0xff] %v3932
      %v4279 = vld.sshfl [vmem:[#allocation1] sm:$0xff pattern:$0x73625140]
      %v4280 = vld.sshfl [vmem:[#allocation1 + $0x20] sm:$0xff pattern:$0x73625140]
      %4281 = vst [vmem:[#allocation1] ss:$4 sm:$0xff] %v4042
      %4282 = vst [vmem:[%s4175] ss:$4 sm:$0xff] %v4043
      %4283 = vst [vmem:[%s4177] ss:$4 sm:$0xff] %v3933
      %4284 = vst [vmem:[%s4179] ss:$4 sm:$0xff] %v4044
      %4285 = vst [vmem:[%s4181] ss:$4 sm:$0xff] %v4045
      %4286 = vst [vmem:[%s4183] ss:$4 sm:$0xff] %v4046
      %4287 = vst [vmem:[%s4185] ss:$4 sm:$0xff] %v3934
      %4288 = vst [vmem:[%s4187] ss:$4 sm:$0xff] %v4047
      %v4289 = vld.sshfl [vmem:[#allocation1] sm:$0xff pattern:$0x73625140]
      %v4290 = vld.sshfl [vmem:[#allocation1 + $0x20] sm:$0xff pattern:$0x73625140]
      %4291 = vst [vmem:[#allocation1] ss:$4 sm:$0xff] %v4048
      %4292 = vst [vmem:[%s4175] ss:$4 sm:$0xff] %v3935
      %4293 = vst [vmem:[%s4177] ss:$4 sm:$0xff] %v4049
      %4294 = vst [vmem:[%s4179] ss:$4 sm:$0xff] %v4050
      %4295 = vst [vmem:[%s4181] ss:$4 sm:$0xff] %v4051
      %4296 = vst [vmem:[%s4183] ss:$4 sm:$0xff] %v3936
      %4297 = vst [vmem:[%s4185] ss:$4 sm:$0xff] %v4052
      %4298 = vst [vmem:[%s4187] ss:$4 sm:$0xff] %v4053
      %v4299 = vld.sshfl [vmem:[#allocation1] sm:$0xff pattern:$0x73625140]
      %v4300 = vld.sshfl [vmem:[#allocation1 + $0x20] sm:$0xff pattern:$0x73625140]
      %4301 = vst [vmem:[#allocation1] ss:$4 sm:$0xff] %v3937
      %4302 = vst [vmem:[%s4175] ss:$4 sm:$0xff] %v4054
      %4303 = vst [vmem:[%s4177] ss:$4 sm:$0xff] %v4055
      %4304 = vst [vmem:[%s4179] ss:$4 sm:$0xff] %v4056
      %4305 = vst [vmem:[%s4181] ss:$4 sm:$0xff] %v3938
      %4306 = vst [vmem:[%s4183] ss:$4 sm:$0xff] %v4057
      %4307 = vst [vmem:[%s4185] ss:$4 sm:$0xff] %v4058
      %4308 = vst [vmem:[%s4187] ss:$4 sm:$0xff] %v4059
      %v4309 = vld.sshfl [vmem:[#allocation1] sm:$0xff pattern:$0x73625140]
      %v4310 = vld.sshfl [vmem:[#allocation1 + $0x20] sm:$0xff pattern:$0x73625140]
      %4311 = vst [vmem:[#allocation1] ss:$4 sm:$0xff] %v4060
      %4312 = vst [vmem:[%s4175] ss:$4 sm:$0xff] %v4061
      %4313 = vst [vmem:[%s4177] ss:$4 sm:$0xff] %v4062
      %4314 = vst [vmem:[%s4179] ss:$4 sm:$0xff] %v3940
      %4315 = vst [vmem:[%s4181] ss:$4 sm:$0xff] %v4063
      %4316 = vst [vmem:[%s4183] ss:$4 sm:$0xff] %v4064
      %4317 = vst [vmem:[%s4185] ss:$4 sm:$0xff] %v4065
      %4318 = vst [vmem:[%s4187] ss:$4 sm:$0xff] %v3941
      %v4319 = vld.sshfl [vmem:[#allocation1] sm:$0xff pattern:$0x73625140]
      %v4320 = vld.sshfl [vmem:[#allocation1 + $0x20] sm:$0xff pattern:$0x73625140]
      %4321 = vst [vmem:[#allocation1] ss:$4 sm:$0xff] %v4066
      %4322 = vst [vmem:[%s4175] ss:$4 sm:$0xff] %v4067
      %4323 = vst [vmem:[%s4177] ss:$4 sm:$0xff] %v3942
      %4324 = vst [vmem:[%s4179] ss:$4 sm:$0xff] %v4068
      %4325 = vst [vmem:[%s4181] ss:$4 sm:$0xff] %v4069
      %4326 = vst [vmem:[%s4183] ss:$4 sm:$0xff] %v4070
      %4327 = vst [vmem:[%s4185] ss:$4 sm:$0xff] %v3943
      %4328 = vst [vmem:[%s4187] ss:$4 sm:$0xff] %v4071
      %v4329 = vld.sshfl [vmem:[#allocation1] sm:$0xff pattern:$0x73625140]
      %v4330 = vld.sshfl [vmem:[#allocation1 + $0x20] sm:$0xff pattern:$0x73625140]
      %4331 = vst [vmem:[#allocation1] ss:$4 sm:$0xff] %v4072
      %4332 = vst [vmem:[%s4175] ss:$4 sm:$0xff] %v3944
      %4333 = vst [vmem:[%s4177] ss:$4 sm:$0xff] %v4073
      %4334 = vst [vmem:[%s4179] ss:$4 sm:$0xff] %v4074
      %4335 = vst [vmem:[%s4181] ss:$4 sm:$0xff] %v4075
      %4336 = vst [vmem:[%s4183] ss:$4 sm:$0xff] %v3945
      %4337 = vst [vmem:[%s4185] ss:$4 sm:$0xff] %v4076
      %4338 = vst [vmem:[%s4187] ss:$4 sm:$0xff] %v4077
      %v4339 = vld.sshfl [vmem:[#allocation1] sm:$0xff pattern:$0x73625140]
      %v4340 = vld.sshfl [vmem:[#allocation1 + $0x20] sm:$0xff pattern:$0x73625140]
      %v4373 = vpack.c.bf16 %v4189, %v4189
      %v4374 = vpack.c.bf16 %v4190, %v4190
      %v4375 = vpack.c.bf16 %v4199, %v4199
      %v4376 = vpack.c.bf16 %v4200, %v4200
      %v4377 = vpack.c.bf16 %v4209, %v4209
      %v4378 = vpack.c.bf16 %v4210, %v4210
      %v4379 = vpack.c.bf16 %v4219, %v4219
      %v4380 = vpack.c.bf16 %v4220, %v4220
      %v4381 = vpack.c.bf16 %v4229, %v4229
      %v4382 = vpack.c.bf16 %v4230, %v4230
      %v4383 = vpack.c.bf16 %v4239, %v4239
      %v4384 = vpack.c.bf16 %v4240, %v4240
      %v4385 = vpack.c.bf16 %v4249, %v4249
      %v4386 = vpack.c.bf16 %v4250, %v4250
      %v4387 = vpack.c.bf16 %v4259, %v4259
      %v4388 = vpack.c.bf16 %v4260, %v4260
      %v4389 = vpack.c.bf16 %v4269, %v4269
      %v4390 = vpack.c.bf16 %v4270, %v4270
      %v4391 = vpack.c.bf16 %v4279, %v4279
      %v4392 = vpack.c.bf16 %v4280, %v4280
      %v4393 = vpack.c.bf16 %v4289, %v4289
      %v4394 = vpack.c.bf16 %v4290, %v4290
      %v4395 = vpack.c.bf16 %v4299, %v4299
      %v4396 = vpack.c.bf16 %v4300, %v4300
      %v4397 = vpack.c.bf16 %v4309, %v4309
      %v4398 = vpack.c.bf16 %v4310, %v4310
      %v4399 = vpack.c.bf16 %v4319, %v4319
      %v4400 = vpack.c.bf16 %v4320, %v4320
      %v4401 = vpack.c.bf16 %v4329, %v4329
      %v4402 = vpack.c.bf16 %v4330, %v4330
      %v4403 = vpack.c.bf16 %v4339, %v4339
      %v4404 = vpack.c.bf16 %v4340, %v4340
      %4405 = vst [vmem:[%s316] sm:$0xf] %v4373
      %4406 = vst [vmem:[%s316 + $0x4] sm:$0xf] %v4374
      %4407 = vst [vmem:[%s316 + $0x8] sm:$0xf] %v4375
      %4408 = vst [vmem:[%s316 + $0xc] sm:$0xf] %v4376
      %4409 = vst [vmem:[%s316 + $0x10] sm:$0xf] %v4377
      %4410 = vst [vmem:[%s316 + $0x14] sm:$0xf] %v4378
      %4411 = vst [vmem:[%s316 + $0x18] sm:$0xf] %v4379
      %4412 = vst [vmem:[%s316 + $0x1c] sm:$0xf] %v4380
      %4413 = vst [vmem:[%s316 + $0x20] sm:$0xf] %v4381
      %4414 = vst [vmem:[%s316 + $0x24] sm:$0xf] %v4382
      %4415 = vst [vmem:[%s316 + $0x28] sm:$0xf] %v4383
      %4416 = vst [vmem:[%s316 + $0x2c] sm:$0xf] %v4384
      %4417 = vst [vmem:[%s316 + $0x30] sm:$0xf] %v4385
      %4418 = vst [vmem:[%s316 + $0x34] sm:$0xf] %v4386
      %4419 = vst [vmem:[%s316 + $0x38] sm:$0xf] %v4387
      %4420 = vst [vmem:[%s316 + $0x3c] sm:$0xf] %v4388
      %4421 = vst [vmem:[%s316 + $0x40] sm:$0xf] %v4389
      %4422 = vst [vmem:[%s316 + $0x44] sm:$0xf] %v4390
      %4423 = vst [vmem:[%s316 + $0x48] sm:$0xf] %v4391
      %4424 = vst [vmem:[%s316 + $0x4c] sm:$0xf] %v4392
      %4425 = vst [vmem:[%s316 + $0x50] sm:$0xf] %v4393
      %4426 = vst [vmem:[%s316 + $0x54] sm:$0xf] %v4394
      %4427 = vst [vmem:[%s316 + $0x58] sm:$0xf] %v4395
      %4428 = vst [vmem:[%s316 + $0x5c] sm:$0xf] %v4396
      %4429 = vst [vmem:[%s316 + $0x60] sm:$0xf] %v4397
      %4430 = vst [vmem:[%s316 + $0x64] sm:$0xf] %v4398
      %4431 = vst [vmem:[%s316 + $0x68] sm:$0xf] %v4399
      %4432 = vst [vmem:[%s316 + $0x6c] sm:$0xf] %v4400
      %4433 = vst [vmem:[%s316 + $0x70] sm:$0xf] %v4401
      %4434 = vst [vmem:[%s316 + $0x74] sm:$0xf] %v4402
      %4435 = vst [vmem:[%s316 + $0x78] sm:$0xf] %v4403
      %4436 = vst [vmem:[%s316 + $0x7c] sm:$0xf] %v4404
      %4437 = vst [vmem:[#allocation1] ss:$4 sm:$0xff] %v3910
      %s4438 = scalar_lea.vmem [#allocation1], 1
      %4439 = vst [vmem:[%s4438] ss:$4 sm:$0xff] %v3982
      %s4440 = scalar_lea.vmem [#allocation1], 2
      %4441 = vst [vmem:[%s4440] ss:$4 sm:$0xff] %v3983
      %s4442 = scalar_lea.vmem [#allocation1], 3
      %4443 = vst [vmem:[%s4442] ss:$4 sm:$0xff] %v3984
      %s4444 = scalar_lea.vmem [#allocation1], 32
      %4445 = vst [vmem:[%s4444] ss:$4 sm:$0xff] %v3911
      %s4446 = scalar_lea.vmem [#allocation1], 33
      %4447 = vst [vmem:[%s4446] ss:$4 sm:$0xff] %v3985
      %s4448 = scalar_lea.vmem [#allocation1], 34
      %4449 = vst [vmem:[%s4448] ss:$4 sm:$0xff] %v3986
      %s4450 = scalar_lea.vmem [#allocation1], 35
      %4451 = vst [vmem:[%s4450] ss:$4 sm:$0xff] %v3987
      %v4452 = vld.sshfl [vmem:[#allocation1] sm:$0xff pattern:$0x73625140]
      %v4453 = vld.sshfl [vmem:[#allocation1 + $0x20] sm:$0xff pattern:$0x73625140]
      %4454 = vst [vmem:[#allocation1] ss:$4 sm:$0xff] %v3988
      %4455 = vst [vmem:[%s4438] ss:$4 sm:$0xff] %v3989
      %4456 = vst [vmem:[%s4440] ss:$4 sm:$0xff] %v3990
      %4457 = vst [vmem:[%s4442] ss:$4 sm:$0xff] %v3913
      %4458 = vst [vmem:[%s4444] ss:$4 sm:$0xff] %v3991
      %4459 = vst [vmem:[%s4446] ss:$4 sm:$0xff] %v3992
      %4460 = vst [vmem:[%s4448] ss:$4 sm:$0xff] %v3993
      %4461 = vst [vmem:[%s4450] ss:$4 sm:$0xff] %v3914
      %v4462 = vld.sshfl [vmem:[#allocation1] sm:$0xff pattern:$0x73625140]
      %v4463 = vld.sshfl [vmem:[#allocation1 + $0x20] sm:$0xff pattern:$0x73625140]
      %4464 = vst [vmem:[#allocation1] ss:$4 sm:$0xff] %v3994
      %4465 = vst [vmem:[%s4438] ss:$4 sm:$0xff] %v3995
      %4466 = vst [vmem:[%s4440] ss:$4 sm:$0xff] %v3915
      %4467 = vst [vmem:[%s4442] ss:$4 sm:$0xff] %v3996
      %4468 = vst [vmem:[%s4444] ss:$4 sm:$0xff] %v3997
      %4469 = vst [vmem:[%s4446] ss:$4 sm:$0xff] %v3998
      %4470 = vst [vmem:[%s4448] ss:$4 sm:$0xff] %v3916
      %4471 = vst [vmem:[%s4450] ss:$4 sm:$0xff] %v3999
      %v4472 = vld.sshfl [vmem:[#allocation1] sm:$0xff pattern:$0x73625140]
      %v4473 = vld.sshfl [vmem:[#allocation1 + $0x20] sm:$0xff pattern:$0x73625140]
      %4474 = vst [vmem:[#allocation1] ss:$4 sm:$0xff] %v4000
      %4475 = vst [vmem:[%s4438] ss:$4 sm:$0xff] %v3917
      %4476 = vst [vmem:[%s4440] ss:$4 sm:$0xff] %v4001
      %4477 = vst [vmem:[%s4442] ss:$4 sm:$0xff] %v4002
      %4478 = vst [vmem:[%s4444] ss:$4 sm:$0xff] %v4003
      %4479 = vst [vmem:[%s4446] ss:$4 sm:$0xff] %v3918
      %4480 = vst [vmem:[%s4448] ss:$4 sm:$0xff] %v4004
      %4481 = vst [vmem:[%s4450] ss:$4 sm:$0xff] %v4005
      %v4482 = vld.sshfl [vmem:[#allocation1] sm:$0xff pattern:$0x73625140]
      %v4483 = vld.sshfl [vmem:[#allocation1 + $0x20] sm:$0xff pattern:$0x73625140]
      %4484 = vst [vmem:[#allocation1] ss:$4 sm:$0xff] %v3919
      %4485 = vst [vmem:[%s4438] ss:$4 sm:$0xff] %v4006
      %4486 = vst [vmem:[%s4440] ss:$4 sm:$0xff] %v4007
      %4487 = vst [vmem:[%s4442] ss:$4 sm:$0xff] %v4008
      %4488 = vst [vmem:[%s4444] ss:$4 sm:$0xff] %v3920
      %4489 = vst [vmem:[%s4446] ss:$4 sm:$0xff] %v4009
      %4490 = vst [vmem:[%s4448] ss:$4 sm:$0xff] %v4010
      %4491 = vst [vmem:[%s4450] ss:$4 sm:$0xff] %v4011
      %v4492 = vld.sshfl [vmem:[#allocation1] sm:$0xff pattern:$0x73625140]
      %v4493 = vld.sshfl [vmem:[#allocation1 + $0x20] sm:$0xff pattern:$0x73625140]
      %4494 = vst [vmem:[#allocation1] ss:$4 sm:$0xff] %v4012
      %4495 = vst [vmem:[%s4438] ss:$4 sm:$0xff] %v4013
      %4496 = vst [vmem:[%s4440] ss:$4 sm:$0xff] %v4014
      %4497 = vst [vmem:[%s4442] ss:$4 sm:$0xff] %v3922
      %4498 = vst [vmem:[%s4444] ss:$4 sm:$0xff] %v4015
      %4499 = vst [vmem:[%s4446] ss:$4 sm:$0xff] %v4016
      %4500 = vst [vmem:[%s4448] ss:$4 sm:$0xff] %v4017
      %4501 = vst [vmem:[%s4450] ss:$4 sm:$0xff] %v3923
      %v4502 = vld.sshfl [vmem:[#allocation1] sm:$0xff pattern:$0x73625140]
      %v4503 = vld.sshfl [vmem:[#allocation1 + $0x20] sm:$0xff pattern:$0x73625140]
      %4504 = vst [vmem:[#allocation1] ss:$4 sm:$0xff] %v4018
      %4505 = vst [vmem:[%s4438] ss:$4 sm:$0xff] %v4019
      %4506 = vst [vmem:[%s4440] ss:$4 sm:$0xff] %v3924
      %4507 = vst [vmem:[%s4442] ss:$4 sm:$0xff] %v4020
      %4508 = vst [vmem:[%s4444] ss:$4 sm:$0xff] %v4021
      %4509 = vst [vmem:[%s4446] ss:$4 sm:$0xff] %v4022
      %4510 = vst [vmem:[%s4448] ss:$4 sm:$0xff] %v3925
      %4511 = vst [vmem:[%s4450] ss:$4 sm:$0xff] %v4023
      %v4512 = vld.sshfl [vmem:[#allocation1] sm:$0xff pattern:$0x73625140]
      %v4513 = vld.sshfl [vmem:[#allocation1 + $0x20] sm:$0xff pattern:$0x73625140]
      %4514 = vst [vmem:[#allocation1] ss:$4 sm:$0xff] %v4024
      %4515 = vst [vmem:[%s4438] ss:$4 sm:$0xff] %v3926
      %4516 = vst [vmem:[%s4440] ss:$4 sm:$0xff] %v4025
      %4517 = vst [vmem:[%s4442] ss:$4 sm:$0xff] %v4026
      %4518 = vst [vmem:[%s4444] ss:$4 sm:$0xff] %v4027
      %4519 = vst [vmem:[%s4446] ss:$4 sm:$0xff] %v3927
      %4520 = vst [vmem:[%s4448] ss:$4 sm:$0xff] %v4028
      %4521 = vst [vmem:[%s4450] ss:$4 sm:$0xff] %v4029
      %v4522 = vld.sshfl [vmem:[#allocation1] sm:$0xff pattern:$0x73625140]
      %v4523 = vld.sshfl [vmem:[#allocation1 + $0x20] sm:$0xff pattern:$0x73625140]
      %4524 = vst [vmem:[#allocation1] ss:$4 sm:$0xff] %v3928
      %4525 = vst [vmem:[%s4438] ss:$4 sm:$0xff] %v4030
      %4526 = vst [vmem:[%s4440] ss:$4 sm:$0xff] %v4031
      %4527 = vst [vmem:[%s4442] ss:$4 sm:$0xff] %v4032
      %4528 = vst [vmem:[%s4444] ss:$4 sm:$0xff] %v3929
      %4529 = vst [vmem:[%s4446] ss:$4 sm:$0xff] %v4033
      %4530 = vst [vmem:[%s4448] ss:$4 sm:$0xff] %v4034
      %4531 = vst [vmem:[%s4450] ss:$4 sm:$0xff] %v4035
      %v4532 = vld.sshfl [vmem:[#allocation1] sm:$0xff pattern:$0x73625140]
      %v4533 = vld.sshfl [vmem:[#allocation1 + $0x20] sm:$0xff pattern:$0x73625140]
      %4534 = vst [vmem:[#allocation1] ss:$4 sm:$0xff] %v4036
      %4535 = vst [vmem:[%s4438] ss:$4 sm:$0xff] %v4037
      %4536 = vst [vmem:[%s4440] ss:$4 sm:$0xff] %v4038
      %4537 = vst [vmem:[%s4442] ss:$4 sm:$0xff] %v3931
      %4538 = vst [vmem:[%s4444] ss:$4 sm:$0xff] %v4039
      %4539 = vst [vmem:[%s4446] ss:$4 sm:$0xff] %v4040
      %4540 = vst [vmem:[%s4448] ss:$4 sm:$0xff] %v4041
      %4541 = vst [vmem:[%s4450] ss:$4 sm:$0xff] %v3932
      %v4542 = vld.sshfl [vmem:[#allocation1] sm:$0xff pattern:$0x73625140]
      %v4543 = vld.sshfl [vmem:[#allocation1 + $0x20] sm:$0xff pattern:$0x73625140]
      %4544 = vst [vmem:[#allocation1] ss:$4 sm:$0xff] %v4042
      %4545 = vst [vmem:[%s4438] ss:$4 sm:$0xff] %v4043
      %4546 = vst [vmem:[%s4440] ss:$4 sm:$0xff] %v3933
      %4547 = vst [vmem:[%s4442] ss:$4 sm:$0xff] %v4044
      %4548 = vst [vmem:[%s4444] ss:$4 sm:$0xff] %v4045
      %4549 = vst [vmem:[%s4446] ss:$4 sm:$0xff] %v4046
      %4550 = vst [vmem:[%s4448] ss:$4 sm:$0xff] %v3934
      %4551 = vst [vmem:[%s4450] ss:$4 sm:$0xff] %v4047
      %v4552 = vld.sshfl [vmem:[#allocation1] sm:$0xff pattern:$0x73625140]
      %v4553 = vld.sshfl [vmem:[#allocation1 + $0x20] sm:$0xff pattern:$0x73625140]
      %4554 = vst [vmem:[#allocation1] ss:$4 sm:$0xff] %v4048
      %4555 = vst [vmem:[%s4438] ss:$4 sm:$0xff] %v3935
      %4556 = vst [vmem:[%s4440] ss:$4 sm:$0xff] %v4049
      %4557 = vst [vmem:[%s4442] ss:$4 sm:$0xff] %v4050
      %4558 = vst [vmem:[%s4444] ss:$4 sm:$0xff] %v4051
      %4559 = vst [vmem:[%s4446] ss:$4 sm:$0xff] %v3936
      %4560 = vst [vmem:[%s4448] ss:$4 sm:$0xff] %v4052
      %4561 = vst [vmem:[%s4450] ss:$4 sm:$0xff] %v4053
      %v4562 = vld.sshfl [vmem:[#allocation1] sm:$0xff pattern:$0x73625140]
      %v4563 = vld.sshfl [vmem:[#allocation1 + $0x20] sm:$0xff pattern:$0x73625140]
      %4564 = vst [vmem:[#allocation1] ss:$4 sm:$0xff] %v3937
      %4565 = vst [vmem:[%s4438] ss:$4 sm:$0xff] %v4054
      %4566 = vst [vmem:[%s4440] ss:$4 sm:$0xff] %v4055
      %4567 = vst [vmem:[%s4442] ss:$4 sm:$0xff] %v4056
      %4568 = vst [vmem:[%s4444] ss:$4 sm:$0xff] %v3938
      %4569 = vst [vmem:[%s4446] ss:$4 sm:$0xff] %v4057
      %4570 = vst [vmem:[%s4448] ss:$4 sm:$0xff] %v4058
      %4571 = vst [vmem:[%s4450] ss:$4 sm:$0xff] %v4059
      %v4572 = vld.sshfl [vmem:[#allocation1] sm:$0xff pattern:$0x73625140]
      %v4573 = vld.sshfl [vmem:[#allocation1 + $0x20] sm:$0xff pattern:$0x73625140]
      %4574 = vst [vmem:[#allocation1] ss:$4 sm:$0xff] %v4060
      %4575 = vst [vmem:[%s4438] ss:$4 sm:$0xff] %v4061
      %4576 = vst [vmem:[%s4440] ss:$4 sm:$0xff] %v4062
      %4577 = vst [vmem:[%s4442] ss:$4 sm:$0xff] %v3940
      %4578 = vst [vmem:[%s4444] ss:$4 sm:$0xff] %v4063
      %4579 = vst [vmem:[%s4446] ss:$4 sm:$0xff] %v4064
      %4580 = vst [vmem:[%s4448] ss:$4 sm:$0xff] %v4065
      %4581 = vst [vmem:[%s4450] ss:$4 sm:$0xff] %v3941
      %v4582 = vld.sshfl [vmem:[#allocation1] sm:$0xff pattern:$0x73625140]
      %v4583 = vld.sshfl [vmem:[#allocation1 + $0x20] sm:$0xff pattern:$0x73625140]
      %4584 = vst [vmem:[#allocation1] ss:$4 sm:$0xff] %v4066
      %4585 = vst [vmem:[%s4438] ss:$4 sm:$0xff] %v4067
      %4586 = vst [vmem:[%s4440] ss:$4 sm:$0xff] %v3942
      %4587 = vst [vmem:[%s4442] ss:$4 sm:$0xff] %v4068
      %4588 = vst [vmem:[%s4444] ss:$4 sm:$0xff] %v4069
      %4589 = vst [vmem:[%s4446] ss:$4 sm:$0xff] %v4070
      %4590 = vst [vmem:[%s4448] ss:$4 sm:$0xff] %v3943
      %4591 = vst [vmem:[%s4450] ss:$4 sm:$0xff] %v4071
      %v4592 = vld.sshfl [vmem:[#allocation1] sm:$0xff pattern:$0x73625140]
      %v4593 = vld.sshfl [vmem:[#allocation1 + $0x20] sm:$0xff pattern:$0x73625140]
      %4594 = vst [vmem:[#allocation1] ss:$4 sm:$0xff] %v4072
      %4595 = vst [vmem:[%s4438] ss:$4 sm:$0xff] %v3944
      %4596 = vst [vmem:[%s4440] ss:$4 sm:$0xff] %v4073
      %4597 = vst [vmem:[%s4442] ss:$4 sm:$0xff] %v4074
      %4598 = vst [vmem:[%s4444] ss:$4 sm:$0xff] %v4075
      %4599 = vst [vmem:[%s4446] ss:$4 sm:$0xff] %v3945
      %4600 = vst [vmem:[%s4448] ss:$4 sm:$0xff] %v4076
      %4601 = vst [vmem:[%s4450] ss:$4 sm:$0xff] %v4077
      %v4602 = vld.sshfl [vmem:[#allocation1] sm:$0xff pattern:$0x73625140]
      %v4603 = vld.sshfl [vmem:[#allocation1 + $0x20] sm:$0xff pattern:$0x73625140]
      %v4636 = vadd.f32 %v4452, %v4453
      %v4637 = vadd.f32 %v4636, %v4462
      %v4638 = vadd.f32 %v4637, %v4463
      %v4639 = vadd.f32 %v4638, %v4472
      %v4640 = vadd.f32 %v4639, %v4473
      %v4641 = vadd.f32 %v4640, %v4482
      %v4642 = vadd.f32 %v4641, %v4483
      %v4643 = vadd.f32 %v4642, %v4492
      %v4644 = vadd.f32 %v4643, %v4493
      %v4645 = vadd.f32 %v4644, %v4502
      %v4646 = vadd.f32 %v4645, %v4503
      %v4647 = vadd.f32 %v4646, %v4512
      %v4648 = vadd.f32 %v4647, %v4513
      %v4649 = vadd.f32 %v4648, %v4522
      %v4650 = vadd.f32 %v4649, %v4523
      %v4651 = vadd.f32 %v4650, %v4532
      %v4652 = vadd.f32 %v4651, %v4533
      %v4653 = vadd.f32 %v4652, %v4542
      %v4654 = vadd.f32 %v4653, %v4543
      %v4655 = vadd.f32 %v4654, %v4552
      %v4656 = vadd.f32 %v4655, %v4553
      %v4657 = vadd.f32 %v4656, %v4562
      %v4658 = vadd.f32 %v4657, %v4563
      %v4659 = vadd.f32 %v4658, %v4572
      %v4660 = vadd.f32 %v4659, %v4573
      %v4661 = vadd.f32 %v4660, %v4582
      %v4662 = vadd.f32 %v4661, %v4583
      %v4663 = vadd.f32 %v4662, %v4592
      %v4664 = vadd.f32 %v4663, %v4593
      %v4665 = vadd.f32 %v4664, %v4602
      %v4666 = vadd.f32 %v4665, %v4603
      %v4667 = vrot.slane %v4666, 4
      %v4668 = vadd.f32 %v4666, %v4667
      %v4669 = vrot.slane %v4668, 2
      %v4670 = vadd.f32 %v4668, %v4669
      %v4671 = vrot.slane %v4670, 1
      %v4672 = vadd.f32 %v4670, %v4671
      %4673 = vst [vmem:[%s319] sm:$0x1] %v4672
      %v4674 = vmul.f32 %v3910, %v3910
      %v4675 = vmul.f32 %v3982, %v3982
      %v4676 = vmul.f32 %v3983, %v3983
      %v4677 = vmul.f32 %v3984, %v3984
      %v4678 = vmul.f32 %v3911, %v3911
      %v4679 = vmul.f32 %v3985, %v3985
      %v4680 = vmul.f32 %v3986, %v3986
      %v4681 = vmul.f32 %v3987, %v3987
      %v4682 = vmul.f32 %v3988, %v3988
      %v4683 = vmul.f32 %v3989, %v3989
      %v4684 = vmul.f32 %v3990, %v3990
      %v4685 = vmul.f32 %v3913, %v3913
      %v4686 = vmul.f32 %v3991, %v3991
      %v4687 = vmul.f32 %v3992, %v3992
      %v4688 = vmul.f32 %v3993, %v3993
      %v4689 = vmul.f32 %v3914, %v3914
      %v4690 = vmul.f32 %v3994, %v3994
      %v4691 = vmul.f32 %v3995, %v3995
      %v4692 = vmul.f32 %v3915, %v3915
      %v4693 = vmul.f32 %v3996, %v3996
      %v4694 = vmul.f32 %v3997, %v3997
      %v4695 = vmul.f32 %v3998, %v3998
      %v4696 = vmul.f32 %v3916, %v3916
      %v4697 = vmul.f32 %v3999, %v3999
      %v4698 = vmul.f32 %v4000, %v4000
      %v4699 = vmul.f32 %v3917, %v3917
      %v4700 = vmul.f32 %v4001, %v4001
      %v4701 = vmul.f32 %v4002, %v4002
      %v4702 = vmul.f32 %v4003, %v4003
      %v4703 = vmul.f32 %v3918, %v3918
      %v4704 = vmul.f32 %v4004, %v4004
      %v4705 = vmul.f32 %v4005, %v4005
      %v4706 = vmul.f32 %v3919, %v3919
      %v4707 = vmul.f32 %v4006, %v4006
      %v4708 = vmul.f32 %v4007, %v4007
      %v4709 = vmul.f32 %v4008, %v4008
      %v4710 = vmul.f32 %v3920, %v3920
      %v4711 = vmul.f32 %v4009, %v4009
      %v4712 = vmul.f32 %v4010, %v4010
      %v4713 = vmul.f32 %v4011, %v4011
      %v4714 = vmul.f32 %v4012, %v4012
      %v4715 = vmul.f32 %v4013, %v4013
      %v4716 = vmul.f32 %v4014, %v4014
      %v4717 = vmul.f32 %v3922, %v3922
      %v4718 = vmul.f32 %v4015, %v4015
      %v4719 = vmul.f32 %v4016, %v4016
      %v4720 = vmul.f32 %v4017, %v4017
      %v4721 = vmul.f32 %v3923, %v3923
      %v4722 = vmul.f32 %v4018, %v4018
      %v4723 = vmul.f32 %v4019, %v4019
      %v4724 = vmul.f32 %v3924, %v3924
      %v4725 = vmul.f32 %v4020, %v4020
      %v4726 = vmul.f32 %v4021, %v4021
      %v4727 = vmul.f32 %v4022, %v4022
      %v4728 = vmul.f32 %v3925, %v3925
      %v4729 = vmul.f32 %v4023, %v4023
      %v4730 = vmul.f32 %v4024, %v4024
      %v4731 = vmul.f32 %v3926, %v3926
      %v4732 = vmul.f32 %v4025, %v4025
      %v4733 = vmul.f32 %v4026, %v4026
      %v4734 = vmul.f32 %v4027, %v4027
      %v4735 = vmul.f32 %v3927, %v3927
      %v4736 = vmul.f32 %v4028, %v4028
      %v4737 = vmul.f32 %v4029, %v4029
      %v4738 = vmul.f32 %v3928, %v3928
      %v4739 = vmul.f32 %v4030, %v4030
      %v4740 = vmul.f32 %v4031, %v4031
      %v4741 = vmul.f32 %v4032, %v4032
      %v4742 = vmul.f32 %v3929, %v3929
      %v4743 = vmul.f32 %v4033, %v4033
      %v4744 = vmul.f32 %v4034, %v4034
      %v4745 = vmul.f32 %v4035, %v4035
      %v4746 = vmul.f32 %v4036, %v4036
      %v4747 = vmul.f32 %v4037, %v4037
      %v4748 = vmul.f32 %v4038, %v4038
      %v4749 = vmul.f32 %v3931, %v3931
      %v4750 = vmul.f32 %v4039, %v4039
      %v4751 = vmul.f32 %v4040, %v4040
      %v4752 = vmul.f32 %v4041, %v4041
      %v4753 = vmul.f32 %v3932, %v3932
      %v4754 = vmul.f32 %v4042, %v4042
      %v4755 = vmul.f32 %v4043, %v4043
      %v4756 = vmul.f32 %v3933, %v3933
      %v4757 = vmul.f32 %v4044, %v4044
      %v4758 = vmul.f32 %v4045, %v4045
      %v4759 = vmul.f32 %v4046, %v4046
      %v4760 = vmul.f32 %v3934, %v3934
      %v4761 = vmul.f32 %v4047, %v4047
      %v4762 = vmul.f32 %v4048, %v4048
      %v4763 = vmul.f32 %v3935, %v3935
      %v4764 = vmul.f32 %v4049, %v4049
      %v4765 = vmul.f32 %v4050, %v4050
      %v4766 = vmul.f32 %v4051, %v4051
      %v4767 = vmul.f32 %v3936, %v3936
      %v4768 = vmul.f32 %v4052, %v4052
      %v4769 = vmul.f32 %v4053, %v4053
      %v4770 = vmul.f32 %v3937, %v3937
      %v4771 = vmul.f32 %v4054, %v4054
      %v4772 = vmul.f32 %v4055, %v4055
      %v4773 = vmul.f32 %v4056, %v4056
      %v4774 = vmul.f32 %v3938, %v3938
      %v4775 = vmul.f32 %v4057, %v4057
      %v4776 = vmul.f32 %v4058, %v4058
      %v4777 = vmul.f32 %v4059, %v4059
      %v4778 = vmul.f32 %v4060, %v4060
      %v4779 = vmul.f32 %v4061, %v4061
      %v4780 = vmul.f32 %v4062, %v4062
      %v4781 = vmul.f32 %v3940, %v3940
      %v4782 = vmul.f32 %v4063, %v4063
      %v4783 = vmul.f32 %v4064, %v4064
      %v4784 = vmul.f32 %v4065, %v4065
      %v4785 = vmul.f32 %v3941, %v3941
      %v4786 = vmul.f32 %v4066, %v4066
      %v4787 = vmul.f32 %v4067, %v4067
      %v4788 = vmul.f32 %v3942, %v3942
      %v4789 = vmul.f32 %v4068, %v4068
      %v4790 = vmul.f32 %v4069, %v4069
      %v4791 = vmul.f32 %v4070, %v4070
      %v4792 = vmul.f32 %v3943, %v3943
      %v4793 = vmul.f32 %v4071, %v4071
      %v4794 = vmul.f32 %v4072, %v4072
      %v4795 = vmul.f32 %v3944, %v3944
      %v4796 = vmul.f32 %v4073, %v4073
      %v4797 = vmul.f32 %v4074, %v4074
      %v4798 = vmul.f32 %v4075, %v4075
      %v4799 = vmul.f32 %v3945, %v3945
      %v4800 = vmul.f32 %v4076, %v4076
      %v4801 = vmul.f32 %v4077, %v4077
      %4930 = vst [vmem:[#allocation1] ss:$4 sm:$0xff] %v4674
      %s4931 = scalar_lea.vmem [#allocation1], 1
      %4932 = vst [vmem:[%s4931] ss:$4 sm:$0xff] %v4675
      %s4933 = scalar_lea.vmem [#allocation1], 2
      %4934 = vst [vmem:[%s4933] ss:$4 sm:$0xff] %v4676
      %s4935 = scalar_lea.vmem [#allocation1], 3
      %4936 = vst [vmem:[%s4935] ss:$4 sm:$0xff] %v4677
      %s4937 = scalar_lea.vmem [#allocation1], 32
      %4938 = vst [vmem:[%s4937] ss:$4 sm:$0xff] %v4678
      %s4939 = scalar_lea.vmem [#allocation1], 33
      %4940 = vst [vmem:[%s4939] ss:$4 sm:$0xff] %v4679
      %s4941 = scalar_lea.vmem [#allocation1], 34
      %4942 = vst [vmem:[%s4941] ss:$4 sm:$0xff] %v4680
      %s4943 = scalar_lea.vmem [#allocation1], 35
      %4944 = vst [vmem:[%s4943] ss:$4 sm:$0xff] %v4681
      %v4945 = vld.sshfl [vmem:[#allocation1] sm:$0xff pattern:$0x73625140]
      %v4946 = vld.sshfl [vmem:[#allocation1 + $0x20] sm:$0xff pattern:$0x73625140]
      %4947 = vst [vmem:[#allocation1] ss:$4 sm:$0xff] %v4682
      %4948 = vst [vmem:[%s4931] ss:$4 sm:$0xff] %v4683
      %4949 = vst [vmem:[%s4933] ss:$4 sm:$0xff] %v4684
      %4950 = vst [vmem:[%s4935] ss:$4 sm:$0xff] %v4685
      %4951 = vst [vmem:[%s4937] ss:$4 sm:$0xff] %v4686
      %4952 = vst [vmem:[%s4939] ss:$4 sm:$0xff] %v4687
      %4953 = vst [vmem:[%s4941] ss:$4 sm:$0xff] %v4688
      %4954 = vst [vmem:[%s4943] ss:$4 sm:$0xff] %v4689
      %v4955 = vld.sshfl [vmem:[#allocation1] sm:$0xff pattern:$0x73625140]
      %v4956 = vld.sshfl [vmem:[#allocation1 + $0x20] sm:$0xff pattern:$0x73625140]
      %4957 = vst [vmem:[#allocation1] ss:$4 sm:$0xff] %v4690
      %4958 = vst [vmem:[%s4931] ss:$4 sm:$0xff] %v4691
      %4959 = vst [vmem:[%s4933] ss:$4 sm:$0xff] %v4692
      %4960 = vst [vmem:[%s4935] ss:$4 sm:$0xff] %v4693
      %4961 = vst [vmem:[%s4937] ss:$4 sm:$0xff] %v4694
      %4962 = vst [vmem:[%s4939] ss:$4 sm:$0xff] %v4695
      %4963 = vst [vmem:[%s4941] ss:$4 sm:$0xff] %v4696
      %4964 = vst [vmem:[%s4943] ss:$4 sm:$0xff] %v4697
      %v4965 = vld.sshfl [vmem:[#allocation1] sm:$0xff pattern:$0x73625140]
      %v4966 = vld.sshfl [vmem:[#allocation1 + $0x20] sm:$0xff pattern:$0x73625140]
      %4967 = vst [vmem:[#allocation1] ss:$4 sm:$0xff] %v4698
      %4968 = vst [vmem:[%s4931] ss:$4 sm:$0xff] %v4699
      %4969 = vst [vmem:[%s4933] ss:$4 sm:$0xff] %v4700
      %4970 = vst [vmem:[%s4935] ss:$4 sm:$0xff] %v4701
      %4971 = vst [vmem:[%s4937] ss:$4 sm:$0xff] %v4702
      %4972 = vst [vmem:[%s4939] ss:$4 sm:$0xff] %v4703
      %4973 = vst [vmem:[%s4941] ss:$4 sm:$0xff] %v4704
      %4974 = vst [vmem:[%s4943] ss:$4 sm:$0xff] %v4705
      %v4975 = vld.sshfl [vmem:[#allocation1] sm:$0xff pattern:$0x73625140]
      %v4976 = vld.sshfl [vmem:[#allocation1 + $0x20] sm:$0xff pattern:$0x73625140]
      %4977 = vst [vmem:[#allocation1] ss:$4 sm:$0xff] %v4706
      %4978 = vst [vmem:[%s4931] ss:$4 sm:$0xff] %v4707
      %4979 = vst [vmem:[%s4933] ss:$4 sm:$0xff] %v4708
      %4980 = vst [vmem:[%s4935] ss:$4 sm:$0xff] %v4709
      %4981 = vst [vmem:[%s4937] ss:$4 sm:$0xff] %v4710
      %4982 = vst [vmem:[%s4939] ss:$4 sm:$0xff] %v4711
      %4983 = vst [vmem:[%s4941] ss:$4 sm:$0xff] %v4712
      %4984 = vst [vmem:[%s4943] ss:$4 sm:$0xff] %v4713
      %v4985 = vld.sshfl [vmem:[#allocation1] sm:$0xff pattern:$0x73625140]
      %v4986 = vld.sshfl [vmem:[#allocation1 + $0x20] sm:$0xff pattern:$0x73625140]
      %4987 = vst [vmem:[#allocation1] ss:$4 sm:$0xff] %v4714
      %4988 = vst [vmem:[%s4931] ss:$4 sm:$0xff] %v4715
      %4989 = vst [vmem:[%s4933] ss:$4 sm:$0xff] %v4716
      %4990 = vst [vmem:[%s4935] ss:$4 sm:$0xff] %v4717
      %4991 = vst [vmem:[%s4937] ss:$4 sm:$0xff] %v4718
      %4992 = vst [vmem:[%s4939] ss:$4 sm:$0xff] %v4719
      %4993 = vst [vmem:[%s4941] ss:$4 sm:$0xff] %v4720
      %4994 = vst [vmem:[%s4943] ss:$4 sm:$0xff] %v4721
      %v4995 = vld.sshfl [vmem:[#allocation1] sm:$0xff pattern:$0x73625140]
      %v4996 = vld.sshfl [vmem:[#allocation1 + $0x20] sm:$0xff pattern:$0x73625140]
      %4997 = vst [vmem:[#allocation1] ss:$4 sm:$0xff] %v4722
      %4998 = vst [vmem:[%s4931] ss:$4 sm:$0xff] %v4723
      %4999 = vst [vmem:[%s4933] ss:$4 sm:$0xff] %v4724
      %5000 = vst [vmem:[%s4935] ss:$4 sm:$0xff] %v4725
      %5001 = vst [vmem:[%s4937] ss:$4 sm:$0xff] %v4726
      %5002 = vst [vmem:[%s4939] ss:$4 sm:$0xff] %v4727
      %5003 = vst [vmem:[%s4941] ss:$4 sm:$0xff] %v4728
      %5004 = vst [vmem:[%s4943] ss:$4 sm:$0xff] %v4729
      %v5005 = vld.sshfl [vmem:[#allocation1] sm:$0xff pattern:$0x73625140]
      %v5006 = vld.sshfl [vmem:[#allocation1 + $0x20] sm:$0xff pattern:$0x73625140]
      %5007 = vst [vmem:[#allocation1] ss:$4 sm:$0xff] %v4730
      %5008 = vst [vmem:[%s4931] ss:$4 sm:$0xff] %v4731
      %5009 = vst [vmem:[%s4933] ss:$4 sm:$0xff] %v4732
      %5010 = vst [vmem:[%s4935] ss:$4 sm:$0xff] %v4733
      %5011 = vst [vmem:[%s4937] ss:$4 sm:$0xff] %v4734
      %5012 = vst [vmem:[%s4939] ss:$4 sm:$0xff] %v4735
      %5013 = vst [vmem:[%s4941] ss:$4 sm:$0xff] %v4736
      %5014 = vst [vmem:[%s4943] ss:$4 sm:$0xff] %v4737
      %v5015 = vld.sshfl [vmem:[#allocation1] sm:$0xff pattern:$0x73625140]
      %v5016 = vld.sshfl [vmem:[#allocation1 + $0x20] sm:$0xff pattern:$0x73625140]
      %5017 = vst [vmem:[#allocation1] ss:$4 sm:$0xff] %v4738
      %5018 = vst [vmem:[%s4931] ss:$4 sm:$0xff] %v4739
      %5019 = vst [vmem:[%s4933] ss:$4 sm:$0xff] %v4740
      %5020 = vst [vmem:[%s4935] ss:$4 sm:$0xff] %v4741
      %5021 = vst [vmem:[%s4937] ss:$4 sm:$0xff] %v4742
      %5022 = vst [vmem:[%s4939] ss:$4 sm:$0xff] %v4743
      %5023 = vst [vmem:[%s4941] ss:$4 sm:$0xff] %v4744
      %5024 = vst [vmem:[%s4943] ss:$4 sm:$0xff] %v4745
      %v5025 = vld.sshfl [vmem:[#allocation1] sm:$0xff pattern:$0x73625140]
      %v5026 = vld.sshfl [vmem:[#allocation1 + $0x20] sm:$0xff pattern:$0x73625140]
      %5027 = vst [vmem:[#allocation1] ss:$4 sm:$0xff] %v4746
      %5028 = vst [vmem:[%s4931] ss:$4 sm:$0xff] %v4747
      %5029 = vst [vmem:[%s4933] ss:$4 sm:$0xff] %v4748
      %5030 = vst [vmem:[%s4935] ss:$4 sm:$0xff] %v4749
      %5031 = vst [vmem:[%s4937] ss:$4 sm:$0xff] %v4750
      %5032 = vst [vmem:[%s4939] ss:$4 sm:$0xff] %v4751
      %5033 = vst [vmem:[%s4941] ss:$4 sm:$0xff] %v4752
      %5034 = vst [vmem:[%s4943] ss:$4 sm:$0xff] %v4753
      %v5035 = vld.sshfl [vmem:[#allocation1] sm:$0xff pattern:$0x73625140]
      %v5036 = vld.sshfl [vmem:[#allocation1 + $0x20] sm:$0xff pattern:$0x73625140]
      %5037 = vst [vmem:[#allocation1] ss:$4 sm:$0xff] %v4754
      %5038 = vst [vmem:[%s4931] ss:$4 sm:$0xff] %v4755
      %5039 = vst [vmem:[%s4933] ss:$4 sm:$0xff] %v4756
      %5040 = vst [vmem:[%s4935] ss:$4 sm:$0xff] %v4757
      %5041 = vst [vmem:[%s4937] ss:$4 sm:$0xff] %v4758
      %5042 = vst [vmem:[%s4939] ss:$4 sm:$0xff] %v4759
      %5043 = vst [vmem:[%s4941] ss:$4 sm:$0xff] %v4760
      %5044 = vst [vmem:[%s4943] ss:$4 sm:$0xff] %v4761
      %v5045 = vld.sshfl [vmem:[#allocation1] sm:$0xff pattern:$0x73625140]
      %v5046 = vld.sshfl [vmem:[#allocation1 + $0x20] sm:$0xff pattern:$0x73625140]
      %5047 = vst [vmem:[#allocation1] ss:$4 sm:$0xff] %v4762
      %5048 = vst [vmem:[%s4931] ss:$4 sm:$0xff] %v4763
      %5049 = vst [vmem:[%s4933] ss:$4 sm:$0xff] %v4764
      %5050 = vst [vmem:[%s4935] ss:$4 sm:$0xff] %v4765
      %5051 = vst [vmem:[%s4937] ss:$4 sm:$0xff] %v4766
      %5052 = vst [vmem:[%s4939] ss:$4 sm:$0xff] %v4767
      %5053 = vst [vmem:[%s4941] ss:$4 sm:$0xff] %v4768
      %5054 = vst [vmem:[%s4943] ss:$4 sm:$0xff] %v4769
      %v5055 = vld.sshfl [vmem:[#allocation1] sm:$0xff pattern:$0x73625140]
      %v5056 = vld.sshfl [vmem:[#allocation1 + $0x20] sm:$0xff pattern:$0x73625140]
      %5057 = vst [vmem:[#allocation1] ss:$4 sm:$0xff] %v4770
      %5058 = vst [vmem:[%s4931] ss:$4 sm:$0xff] %v4771
      %5059 = vst [vmem:[%s4933] ss:$4 sm:$0xff] %v4772
      %5060 = vst [vmem:[%s4935] ss:$4 sm:$0xff] %v4773
      %5061 = vst [vmem:[%s4937] ss:$4 sm:$0xff] %v4774
      %5062 = vst [vmem:[%s4939] ss:$4 sm:$0xff] %v4775
      %5063 = vst [vmem:[%s4941] ss:$4 sm:$0xff] %v4776
      %5064 = vst [vmem:[%s4943] ss:$4 sm:$0xff] %v4777
      %v5065 = vld.sshfl [vmem:[#allocation1] sm:$0xff pattern:$0x73625140]
      %v5066 = vld.sshfl [vmem:[#allocation1 + $0x20] sm:$0xff pattern:$0x73625140]
      %5067 = vst [vmem:[#allocation1] ss:$4 sm:$0xff] %v4778
      %5068 = vst [vmem:[%s4931] ss:$4 sm:$0xff] %v4779
      %5069 = vst [vmem:[%s4933] ss:$4 sm:$0xff] %v4780
      %5070 = vst [vmem:[%s4935] ss:$4 sm:$0xff] %v4781
      %5071 = vst [vmem:[%s4937] ss:$4 sm:$0xff] %v4782
      %5072 = vst [vmem:[%s4939] ss:$4 sm:$0xff] %v4783
      %5073 = vst [vmem:[%s4941] ss:$4 sm:$0xff] %v4784
      %5074 = vst [vmem:[%s4943] ss:$4 sm:$0xff] %v4785
      %v5075 = vld.sshfl [vmem:[#allocation1] sm:$0xff pattern:$0x73625140]
      %v5076 = vld.sshfl [vmem:[#allocation1 + $0x20] sm:$0xff pattern:$0x73625140]
      %5077 = vst [vmem:[#allocation1] ss:$4 sm:$0xff] %v4786
      %5078 = vst [vmem:[%s4931] ss:$4 sm:$0xff] %v4787
      %5079 = vst [vmem:[%s4933] ss:$4 sm:$0xff] %v4788
      %5080 = vst [vmem:[%s4935] ss:$4 sm:$0xff] %v4789
      %5081 = vst [vmem:[%s4937] ss:$4 sm:$0xff] %v4790
      %5082 = vst [vmem:[%s4939] ss:$4 sm:$0xff] %v4791
      %5083 = vst [vmem:[%s4941] ss:$4 sm:$0xff] %v4792
      %5084 = vst [vmem:[%s4943] ss:$4 sm:$0xff] %v4793
      %v5085 = vld.sshfl [vmem:[#allocation1] sm:$0xff pattern:$0x73625140]
      %v5086 = vld.sshfl [vmem:[#allocation1 + $0x20] sm:$0xff pattern:$0x73625140]
      %5087 = vst [vmem:[#allocation1] ss:$4 sm:$0xff] %v4794
      %5088 = vst [vmem:[%s4931] ss:$4 sm:$0xff] %v4795
      %5089 = vst [vmem:[%s4933] ss:$4 sm:$0xff] %v4796
      %5090 = vst [vmem:[%s4935] ss:$4 sm:$0xff] %v4797
      %5091 = vst [vmem:[%s4937] ss:$4 sm:$0xff] %v4798
      %5092 = vst [vmem:[%s4939] ss:$4 sm:$0xff] %v4799
      %5093 = vst [vmem:[%s4941] ss:$4 sm:$0xff] %v4800
      %5094 = vst [vmem:[%s4943] ss:$4 sm:$0xff] %v4801
      %v5095 = vld.sshfl [vmem:[#allocation1] sm:$0xff pattern:$0x73625140]
      %v5096 = vld.sshfl [vmem:[#allocation1 + $0x20] sm:$0xff pattern:$0x73625140]
      %v5129 = vadd.f32 %v4945, %v4946
      %v5130 = vadd.f32 %v5129, %v4955
      %v5131 = vadd.f32 %v5130, %v4956
      %v5132 = vadd.f32 %v5131, %v4965
      %v5133 = vadd.f32 %v5132, %v4966
      %v5134 = vadd.f32 %v5133, %v4975
      %v5135 = vadd.f32 %v5134, %v4976
      %v5136 = vadd.f32 %v5135, %v4985
      %v5137 = vadd.f32 %v5136, %v4986
      %v5138 = vadd.f32 %v5137, %v4995
      %v5139 = vadd.f32 %v5138, %v4996
      %v5140 = vadd.f32 %v5139, %v5005
      %v5141 = vadd.f32 %v5140, %v5006
      %v5142 = vadd.f32 %v5141, %v5015
      %v5143 = vadd.f32 %v5142, %v5016
      %v5144 = vadd.f32 %v5143, %v5025
      %v5145 = vadd.f32 %v5144, %v5026
      %v5146 = vadd.f32 %v5145, %v5035
      %v5147 = vadd.f32 %v5146, %v5036
      %v5148 = vadd.f32 %v5147, %v5045
      %v5149 = vadd.f32 %v5148, %v5046
      %v5150 = vadd.f32 %v5149, %v5055
      %v5151 = vadd.f32 %v5150, %v5056
      %v5152 = vadd.f32 %v5151, %v5065
      %v5153 = vadd.f32 %v5152, %v5066
      %v5154 = vadd.f32 %v5153, %v5075
      %v5155 = vadd.f32 %v5154, %v5076
      %v5156 = vadd.f32 %v5155, %v5085
      %v5157 = vadd.f32 %v5156, %v5086
      %v5158 = vadd.f32 %v5157, %v5095
      %v5159 = vadd.f32 %v5158, %v5096
      %v5160 = vrot.slane %v5159, 4
      %v5161 = vadd.f32 %v5159, %v5160
      %v5162 = vrot.slane %v5161, 2
      %v5163 = vadd.f32 %v5161, %v5162
      %v5164 = vrot.slane %v5163, 1
      %v5165 = vadd.f32 %v5163, %v5164
      %5166 = vst [vmem:[%s322] sm:$0x1] %v5165
      %p5167 = scmp.lt.s32.totalorder %s20, 3
      %s5168 = scalar_select %p5167, %s20, 3
      %s5169 = smul.addr %s5168, 32
      %s5170 = smul.addr %s5169, 4
      %s5171 = scalar_lea.vmem %s6, %s5170
      %p5172 = scmp.lt.s32.totalorder %s20, 3
      %s5173 = scalar_select %p5172, %s20, 3
      %s5174 = scalar_lea.vmem %s7, %s5173
      %p5175 = scmp.lt.s32.totalorder %s20, 3
      %s5176 = scalar_select %p5175, %s20, 3
      %s5177 = scalar_lea.vmem %s8, %s5176
      // Predicated region
      $region45: #{bottleneck_forward.5} parent=43 // pred_check
        %p5178 = pneg %p169
      $region46: #{bottleneck_forward.5} parent=43 // pred_check_branch
        %5180 = sbr.rel (%p5178) target = $region48
      $region47: #{bottleneck_forward.5} parent=43 // pred_region
        _
      $region48: #{bottleneck_forward.5} parent=43 // pred_fallthru
        _
      // Predicated region
      $region49: #{bottleneck_forward.5} parent=43 // pred_check
        %p5181 = pneg %p195
      $region50: #{bottleneck_forward.5} parent=43 // pred_check_branch
        %5183 = sbr.rel (%p5181) target = $region52
      $region51: #{bottleneck_forward.5} parent=43 // pred_region
        _
      $region52: #{bottleneck_forward.5} parent=43 // pred_fallthru
        _
      // Predicated region
      $region53: #{bottleneck_forward.5} parent=43 // pred_check
        %p5184 = pneg %p221
      $region54: #{bottleneck_forward.5} parent=43 // pred_check_branch
        %5186 = sbr.rel (%p5184) target = $region56
      $region55: #{bottleneck_forward.5} parent=43 // pred_region
        _
      $region56: #{bottleneck_forward.5} parent=43 // pred_fallthru
        _
    $region44: #{bottleneck_forward.5} parent=5 // pred_fallthru
      _
    %p5187 = scmp.le.s32.totalorder 2, %s15
    // Predicated region
    $region57: #{bottleneck_forward.5} parent=5 // pred_check
      %p5188 = pneg %p5187
    $region58: #{bottleneck_forward.5} parent=5 // pred_check_branch
      %5190 = sbr.rel (%p5188) target = $region60
    $region59: #{bottleneck_forward.5} parent=5 // pred_region
      %s5191 = ssub.s32 %s15, 2
      // Predicated region
      $region61: #{bottleneck_forward.5} parent=59 // pred_check
        %p5192 = pneg %p175
      $region62: #{bottleneck_forward.5} parent=59 // pred_check_branch
        %5194 = sbr.rel (%p5192) target = $region64
      $region63: #{bottleneck_forward.5} parent=59 // pred_region
        %p5195 = scmp.lt.s32.totalorder %s21, 3
        %s5196 = scalar_select %p5195, %s21, 3
        %s5197 = smul.addr %s5196, 32
        %s5198 = smul.addr %s5197, 4
        %s5199 = scalar_lea.vmem %s6, %s5198
      $region64: #{bottleneck_forward.5} parent=59 // pred_fallthru
        _
      // Predicated region
      $region65: #{bottleneck_forward.5} parent=59 // pred_check
        %p5200 = pneg %p201
      $region66: #{bottleneck_forward.5} parent=59 // pred_check_branch
        %5202 = sbr.rel (%p5200) target = $region68
      $region67: #{bottleneck_forward.5} parent=59 // pred_region
        %p5203 = scmp.lt.s32.totalorder %s21, 3
        %s5204 = scalar_select %p5203, %s21, 3
        %s5205 = scalar_lea.vmem %s7, %s5204
      $region68: #{bottleneck_forward.5} parent=59 // pred_fallthru
        _
      // Predicated region
      $region69: #{bottleneck_forward.5} parent=59 // pred_check
        %p5206 = pneg %p227
      $region70: #{bottleneck_forward.5} parent=59 // pred_check_branch
        %5208 = sbr.rel (%p5206) target = $region72
      $region71: #{bottleneck_forward.5} parent=59 // pred_region
        %p5209 = scmp.lt.s32.totalorder %s21, 3
        %s5210 = scalar_select %p5209, %s21, 3
        %s5211 = scalar_lea.vmem %s8, %s5210
      $region72: #{bottleneck_forward.5} parent=59 // pred_fallthru
        _
    $region60: #{bottleneck_forward.5} parent=5 // pred_fallthru
      _
  $region6: #{bottleneck_forward.5} parent=0 // loop_footer
    %s19 = sadd.s32 1, %s15
  $region7: #{bottleneck_forward.5} parent=0 // loop_footer_branch
    %14 = sbr.rel target = $region3
  $region8: #{bottleneck_forward.5} parent=0 // loop_exit
    _

</llo_original>
